<compile_context>
chip_gen: v6e
topology: v6e:2x2x1
jax: 0.10.0
libtpu: 0.0.40
codegen_flags: <defaults>
</compile_context>

<pallas_src>
import math
from functools import partial

import jax
import jax.numpy as jnp
from jax import lax
from jax.experimental import pallas as pl
from jax.experimental.pallas import tpu as pltpu

# ----------------------------- small config (module-consistent) ---------------
IDIM = 16          # input feature dim
D_MODEL = 32       # output_dim (d_model)
N_HEADS = 4        # espnet2 ConformerEncoder default attention_heads
D_K = D_MODEL // N_HEADS
LINEAR_UNITS = 64  # hidden_dim (linear_units)
NUM_BLOCKS = 2
CNN_KERNEL = 31    # espnet default cnn_module_kernel
B = 2
T_IN = 32


# ============================ Pallas kernels ==================================
def _matmul_kernel(x_ref, w_ref, b_ref, o_ref, *, act):
    y = jnp.dot(x_ref[...], w_ref[...], preferred_element_type=jnp.float32) + b_ref[...]
    if act == "relu":
        y = jnp.maximum(y, 0.0)
    o_ref[...] = y


def pallas_matmul(x, w, b, act=None):
    # x: (M, K), w: (K, N), b: (N,)  -- single full-array block, no grid, no padding.
    M, _ = x.shape
    N = w.shape[1]
    return pl.pallas_call(
        partial(_matmul_kernel, act=act),
        out_shape=jax.ShapeDtypeStruct((M, N), jnp.float32),
    )(x, w, b.reshape(1, N))


# ---------------------------- fused conformer block ---------------------------
_BLOCK_KEYS = (
    "ln_g", "ln_b",
    "ffm_w1", "ffm_b1", "ffm_w2", "ffm_b2",
    "qkv_w", "qkv_b", "bias_u", "bias_v", "pa", "pb", "wo", "bo",
    "pw1_w", "pw1_b", "w2conv", "bn_scale", "bn_shift", "pw2_w", "pw2_b",
    "ff_w1", "ff_b1", "ff_w2", "ff_b2",
)


def _block_kernel(*args, heads, d_k, t_len, n_ln):
    (x_ref, valid_ref,
     lng_ref, lnb_ref,
     ffm_w1_ref, ffm_b1_ref, ffm_w2_ref, ffm_b2_ref,
     qkv_w_ref, qkv_b_ref, bu_ref, bv_ref, pa_ref, pb_ref, wo_ref, bo_ref,
     pw1_w_ref, pw1_b_ref, w2c_ref, bns_ref, bnsh_ref, pw2_w_ref, pw2_b_ref,
     ff_w1_ref, ff_b1_ref, ff_w2_ref, ff_b2_ref,
     o_ref) = args

    D = heads * d_k
    T = t_len
    x = x_ref[0]                          # (T, D)
    key_invalid = valid_ref[0] < 0.5      # (1, T) -- True for keys >= olen

    lng = lng_ref[...]                    # (n_ln, D) stacked LN gammas
    lnb = lnb_ref[...]

    def layer_norm(v, i):
        mu = jnp.mean(v, axis=-1, keepdims=True)
        c = v - mu
        var = jnp.mean(c * c, axis=-1, keepdims=True)
        return c * lax.rsqrt(var + 1e-12) * lng[i:i + 1, :] + lnb[i:i + 1, :]

    def sigmoid(v):
        return 1.0 / (1.0 + jnp.exp(-v))

    def swish(v):
        return v * sigmoid(v)

    def ffn(v, w1_ref, b1_ref, w2_ref, b2_ref):
        hid = swish(jnp.dot(v, w1_ref[...], preferred_element_type=jnp.float32) + b1_ref[...])
        return jnp.dot(hid, w2_ref[...], preferred_element_type=jnp.float32) + b2_ref[...]

    # ---- macaron feed-forward: x + 0.5 * ff(ln(x)) ----
    x = x + 0.5 * ffn(layer_norm(x, 0), ffm_w1_ref, ffm_b1_ref, ffm_w2_ref, ffm_b2_ref)

    # ---- legacy rel-pos multi-head self-attention ----
    xn = layer_norm(x, 1)
    qkv = jnp.dot(xn, qkv_w_ref[...], preferred_element_type=jnp.float32) + qkv_b_ref[...]
    q = qkv[:, 0:D]
    k = qkv[:, D:2 * D]
    v = qkv[:, 2 * D:3 * D]
    qu = q + bu_ref[...]                  # q + pos_bias_u  (heads packed on lanes)
    qv = q + bv_ref[...]                  # q + pos_bias_v
    # qvn[t] = qv[t+1] (zero on last row) via a constant super-diagonal shift matrix.
    row = lax.broadcasted_iota(jnp.int32, (T, T), 0)
    col = lax.broadcasted_iota(jnp.int32, (T, T), 1)
    sshift = (col == row + 1).astype(jnp.float32)
    qvn = jnp.dot(sshift, qv, preferred_element_type=jnp.float32)

    pa = pa_ref[...]                      # (T_s, T_t, D) precomputed rel-shift term (same row)
    pb = pb_ref[...]                      # (T_s, T_t, D) precomputed rel-shift term (next row)
    wo = wo_ref[...]
    inv_sqrt = 1.0 / math.sqrt(d_k)
    neg_min = jnp.finfo(jnp.float32).min

    att_out = jnp.zeros((T, D), jnp.float32)
    for h in range(heads):
        sl = slice(h * d_k, (h + 1) * d_k)
        ac = jnp.einsum("td,sd->ts", qu[:, sl], k[:, sl],
                        preferred_element_type=jnp.float32)               # (T, T)
        # rel-shifted positional term, computed transposed (s, t) then flipped.
        bd_t = (jnp.sum(qv[None, :, sl] * pa[:, :, sl], axis=-1)
                + jnp.sum(qvn[None, :, sl] * pb[:, :, sl], axis=-1))       # (T_s, T_t)
        scores = (ac + bd_t.T) * inv_sqrt
        scores = jnp.where(key_invalid, neg_min, scores)
        m = jnp.max(scores, axis=-1, keepdims=True)
        e = jnp.exp(scores - m)
        attn = e * pl.reciprocal(jnp.sum(e, axis=-1, keepdims=True), approx=True)
        attn = jnp.where(key_invalid, 0.0, attn)
        ctx = jnp.dot(attn, v[:, sl], preferred_element_type=jnp.float32)  # (T, d_k)
        # per-head slice of the output projection (sum over heads == concat @ wo)
        att_out = att_out + jnp.dot(ctx, wo[sl, :], preferred_element_type=jnp.float32)
    x = x + att_out + bo_ref[...]

    # ---- conv module: GLU -> depthwise conv (precomputed band) -> BN(eval) -> swish -> pw2 ----
    xn = layer_norm(x, 2)
    g2 = jnp.dot(xn, pw1_w_ref[...], preferred_element_type=jnp.float32) + pw1_b_ref[...]
    glu = g2[:, 0:D] * sigmoid(g2[:, D:2 * D])                             # (T, D)
    # out[t, c] = sum_j glu[j, c] * w2c[t, j, c]   (banded depthwise-conv tensor)
    conv = jnp.sum(glu[None, :, :] * w2c_ref[...], axis=1)                 # (T, D)
    y = swish(conv * bns_ref[...] + bnsh_ref[...])                         # folded conv-bias + BN
    x = x + jnp.dot(y, pw2_w_ref[...], preferred_element_type=jnp.float32) + pw2_b_ref[...]

    # ---- feed-forward: x + 0.5 * ff(ln(x)) ----
    x = x + 0.5 * ffn(layer_norm(x, 3), ff_w1_ref, ff_b1_ref, ff_w2_ref, ff_b2_ref)

    # ---- per-layer final norm (+ fused encoder after-norm on the last block) ----
    x = layer_norm(x, 4)
    if n_ln == 6:
        x = layer_norm(x, 5)
    o_ref[0] = x


def conformer_block(bp, x, key_valid):
    Bn, T, D = x.shape

    def const_spec(a):
        nd = a.ndim
        return pl.BlockSpec(a.shape, lambda b, _n=nd: (0,) * _n)

    weights = [bp[kk] for kk in _BLOCK_KEYS]
    in_specs = ([pl.BlockSpec((1, T, D), lambda b: (b, 0, 0)),
                 pl.BlockSpec((1, 1, T), lambda b: (b, 0, 0))]
                + [const_spec(a) for a in weights])
    return pl.pallas_call(
        partial(_block_kernel, heads=N_HEADS, d_k=D_K, t_len=T,
                n_ln=int(bp["ln_g"].shape[0])),
        out_shape=jax.ShapeDtypeStruct((Bn, T, D), jnp.float32),
        grid=(Bn,),
        in_specs=in_specs,
        out_specs=pl.BlockSpec((1, T, D), lambda b: (b, 0, 0)),
        compiler_params=pltpu.CompilerParams(dimension_semantics=("parallel",)),
    )(x, key_valid, *weights)


# ============================ JAX glue (model structure) ======================
def conv2d_im2col(x, w2, bias, kh, kw, stride, relu):
    # x: (B, Cin, H, W) NCHW; w2: (Cin*kh*kw, Cout) pre-reshaped; im2col glue + Pallas matmul.
    Bn, Cin, Hh, Ww = x.shape
    Cout = w2.shape[1]
    Ho = (Hh - kh) // stride + 1
    Wo = (Ww - kw) // stride + 1
    rows = []
    for i in range(kh):
        cols = []
        for j in range(kw):
            cols.append(x[:, :, i:i + stride * Ho:stride, j:j + stride * Wo:stride])
        rows.append(jnp.stack(cols, axis=-1))                 # (B, Cin, Ho, Wo, kw)
    patches = jnp.stack(rows, axis=-2)                        # (B, Cin, Ho, Wo, kh, kw)
    patches = patches.transpose(0, 2, 3, 1, 4, 5).reshape(Bn * Ho * Wo, Cin * kh * kw)
    out = pallas_matmul(patches, w2, bias, act="relu" if relu else None)
    return out.reshape(Bn, Ho, Wo, Cout).transpose(0, 3, 1, 2)


def sinusoidal_pe(T, d):
    pos = jnp.arange(T, dtype=jnp.float32)[:, None]
    div = jnp.exp(jnp.arange(0, d, 2, dtype=jnp.float32) * (-math.log(10000.0) / d))
    pe = jnp.zeros((T, d), jnp.float32)
    pe = pe.at[:, 0::2].set(jnp.sin(pos * div))
    pe = pe.at[:, 1::2].set(jnp.cos(pos * div))
    return pe


def prepare_params(params, t_pp):
    """One-time, input-independent precompute: packed weights, rel-shift position
    tensors, banded depthwise-conv tensor, folded pos-enc scale, fused after-norm."""
    D, H, dk, U, K = D_MODEL, N_HEADS, D_K, LINEAR_UNITS, CNN_KERNEL

    def conv_w(w):
        Cout, Cin, kh, kw = w.shape
        return w.transpose(1, 2, 3, 0).reshape(Cin * kh * kw, Cout)

    pos_emb = sinusoidal_pe(t_pp, D)
    t_i = jnp.arange(t_pp)[:, None]
    s_i = jnp.arange(t_pp)[None, :]

    prep = {
        "c1_w": conv_w(params["sub_conv1_w"]), "c1_b": params["sub_conv1_b"],
        "c2_w": conv_w(params["sub_conv2_w"]), "c2_b": params["sub_conv2_b"],
        # fold the legacy positional-encoding x*sqrt(D) scale into the subsample linear
        "lin_w": params["sub_lin_w"] * math.sqrt(D),
        "lin_b": params["sub_lin_b"] * math.sqrt(D),
        "blocks": [],
    }

    pad = (K - 1) // 2
    n_blocks = len(params["blocks"])
    for bi, blk in enumerate(params["blocks"]):
        mha, conv = blk["mha"], blk["conv"]
        # legacy rel-pos: p = linear_pos(pos_emb) (no bias).  The legacy rel_shift gives
        #   bd[t, s] = qv[t]·p[T-1+s-t]   for s <= t
        #            = 0                  for s == t+1
        #            = qv[t+1]·p[s-t-2]   for s >  t+1
        # which we encode as two position tensors PA/PB (layout (s, t, h*dk+d)).
        p = (pos_emb @ mha["wp"]).reshape(t_pp, H, dk)
        idx_a = jnp.clip(t_pp - 1 + s_i - t_i, 0, t_pp - 1)
        msk_a = (s_i <= t_i).astype(jnp.float32)
        idx_b = jnp.clip(s_i - t_i - 2, 0, t_pp - 1)
        msk_b = (s_i > t_i + 1).astype(jnp.float32)
        ga = p[idx_a] * msk_a[:, :, None, None]                 # (T_t, T_s, H, dk)
        gb = p[idx_b] * msk_b[:, :, None, None]
        pa = jnp.transpose(ga, (1, 0, 2, 3)).reshape(t_pp, t_pp, D)   # (T_s, T_t, D)
        pb = jnp.transpose(gb, (1, 0, 2, 3)).reshape(t_pp, t_pp, D)

        # depthwise conv taps as a banded (T_t, T_j, D) tensor (only |t-j| <= T-1 taps survive)
        tap = s_i - t_i + pad
        tap_ok = ((tap >= 0) & (tap < K)).astype(jnp.float32)
        w2conv = conv["dw_w"][jnp.clip(tap, 0, K - 1)] * tap_ok[:, :, None]

        ln_g_rows = [blk["ln_ff_mac_g"], blk["ln_mha_g"], blk["ln_conv_g"],
                     blk["ln_ff_g"], blk["ln_final_g"]]
        ln_b_rows = [blk["ln_ff_mac_b"], blk["ln_mha_b"], blk["ln_conv_b"],
                     blk["ln_ff_b"], blk["ln_final_b"]]
        if bi == n_blocks - 1:
            # fuse the encoder after-norm into the last block's kernel
            ln_g_rows.append(params["after_ln_g"])
            ln_b_rows.append(params["after_ln_b"])

        prep["blocks"].append({
            "ln_g": jnp.stack(ln_g_rows),
            "ln_b": jnp.stack(ln_b_rows),
            "ffm_w1": blk["ff_mac"]["w1"], "ffm_b1": blk["ff_mac"]["b1"].reshape(1, U),
            "ffm_w2": blk["ff_mac"]["w2"], "ffm_b2": blk["ff_mac"]["b2"].reshape(1, D),
            "qkv_w": jnp.concatenate([mha["wq"], mha["wk"], mha["wv"]], axis=1),
            "qkv_b": jnp.concatenate([mha["bq"], mha["bk"], mha["bv"]]).reshape(1, 3 * D),
            "bias_u": mha["pos_bias_u"].reshape(1, D),
            "bias_v": mha["pos_bias_v"].reshape(1, D),
            "pa": pa, "pb": pb,
            "wo": mha["wo"], "bo": mha["bo"].reshape(1, D),
            "pw1_w": jnp.concatenate([conv["pw1_wa"], conv["pw1_wb"]], axis=1),
            "pw1_b": jnp.concatenate([conv["pw1_ba"], conv["pw1_bb"]]).reshape(1, 2 * D),
            "w2conv": w2conv,
            "bn_scale": conv["bn_scale"].reshape(1, D),
            "bn_shift": conv["bn_shift"].reshape(1, D),
            "pw2_w": conv["pw2_w"], "pw2_b": conv["pw2_b"].reshape(1, D),
            "ff_w1": blk["ff"]["w1"], "ff_b1": blk["ff"]["b1"].reshape(1, U),
            "ff_w2": blk["ff"]["w2"], "ff_b2": blk["ff"]["b2"].reshape(1, D),
        })
    return prep


def espnet_forward(prep, x, ilens):
    Bn, T, _ = x.shape
    D = D_MODEL

    # --- Conv2dSubsampling (im2col glue + fused matmul/ReLU kernels) ---
    h = x[:, None, :, :]                                       # (B, 1, T, IDIM)
    h = conv2d_im2col(h, prep["c1_w"], prep["c1_b"], 3, 3, 2, True)
    h = conv2d_im2col(h, prep["c2_w"], prep["c2_b"], 3, 3, 2, True)
    _, C, Tpp, Fp = h.shape
    h = h.transpose(0, 2, 1, 3).reshape(Bn, Tpp, C * Fp)       # matches torch view(b,t,c*f)
    h = pallas_matmul(h.reshape(Bn * Tpp, C * Fp), prep["lin_w"], prep["lin_b"])
    h = h.reshape(Bn, Tpp, D)                                  # sqrt(D) scale already folded in

    # --- output lengths exactly as espnet: mask[:, :-2:2][:, :-2:2] ---
    t_idx = jnp.arange(T)
    mask = t_idx[None, :] < ilens[:, None]
    mask = mask[:, 0:T - 2:2]
    T1 = mask.shape[1]
    mask = mask[:, 0:T1 - 2:2]
    olens = jnp.sum(mask.astype(jnp.int32), axis=-1)

    key_valid = (jnp.arange(Tpp)[None, :] < olens[:, None]).astype(jnp.float32)
    key_valid = key_valid[:, None, :]                          # (B, 1, T'')

    # --- conformer blocks: one fused Pallas kernel per block (last also does after-norm) ---
    for bp in prep["blocks"]:
        h = conformer_block(bp, h, key_valid)

    return h, olens.astype(jnp.int32)


# ============================ deterministic init ==============================
def init_params(key):
    it = iter(jax.random.split(key, 256))

    def w(shape, scale=0.05):
        return jax.random.normal(next(it), shape, jnp.float32) * scale

    D, U, H, dk, K = D_MODEL, LINEAR_UNITS, N_HEADS, D_K, CNN_KERNEL
    f_sub = ((IDIM - 1) // 2 - 1) // 2
    params = {
        "sub_conv1_w": w((D, 1, 3, 3)), "sub_conv1_b": jnp.zeros((D,), jnp.float32),
        "sub_conv2_w": w((D, D, 3, 3)), "sub_conv2_b": jnp.zeros((D,), jnp.float32),
        "sub_lin_w": w((D * f_sub, D)), "sub_lin_b": jnp.zeros((D,), jnp.float32),
        "after_ln_g": jnp.ones((D,), jnp.float32), "after_ln_b": jnp.zeros((D,), jnp.float32),
        "blocks": [],
    }
    for _ in range(NUM_BLOCKS):
        dw_b = w((D,))
        bn_scale = jnp.ones((D,), jnp.float32) / jnp.sqrt(jnp.ones((D,), jnp.float32) + 1e-5)
        bn_shift = dw_b * bn_scale                              # (bias - running_mean)*scale + beta
        blk = {
            "ln_ff_mac_g": jnp.ones((D,), jnp.float32), "ln_ff_mac_b": jnp.zeros((D,), jnp.float32),
            "ln_mha_g": jnp.ones((D,), jnp.float32), "ln_mha_b": jnp.zeros((D,), jnp.float32),
            "ln_conv_g": jnp.ones((D,), jnp.float32), "ln_conv_b": jnp.zeros((D,), jnp.float32),
            "ln_ff_g": jnp.ones((D,), jnp.float32), "ln_ff_b": jnp.zeros((D,), jnp.float32),
            "ln_final_g": jnp.ones((D,), jnp.float32), "ln_final_b": jnp.zeros((D,), jnp.float32),
            "ff_mac": {"w1": w((D, U)), "b1": jnp.zeros((U,), jnp.float32),
                       "w2": w((U, D)), "b2": jnp.zeros((D,), jnp.float32)},
            "ff": {"w1": w((D, U)), "b1": jnp.zeros((U,), jnp.float32),
                   "w2": w((U, D)), "b2": jnp.zeros((D,), jnp.float32)},
            "mha": {"wq": w((D, D)), "bq": jnp.zeros((D,), jnp.float32),
                    "wk": w((D, D)), "bk": jnp.zeros((D,), jnp.float32),
                    "wv": w((D, D)), "bv": jnp.zeros((D,), jnp.float32),
                    "wo": w((D, D)), "bo": jnp.zeros((D,), jnp.float32),
                    "wp": w((D, D)),
                    "pos_bias_u": w((H, dk)), "pos_bias_v": w((H, dk))},
            "conv": {"pw1_wa": w((D, D)), "pw1_ba": jnp.zeros((D,), jnp.float32),
                     "pw1_wb": w((D, D)), "pw1_bb": jnp.zeros((D,), jnp.float32),
                     "dw_w": w((K, D)),
                     "bn_scale": bn_scale, "bn_shift": bn_shift,
                     "pw2_w": w((D, D)), "pw2_b": jnp.zeros((D,), jnp.float32)},
        }
        params["blocks"].append(blk)
    return params


# ============================ main ============================================
if __name__ == "__main__":
    key = jax.random.PRNGKey(0)
    k_par, k_x = jax.random.split(key)
    params = init_params(k_par)

    x = jax.random.normal(k_x, (B, T_IN, IDIM), jnp.float32)
    input_lens = jnp.array([T_IN, 20], dtype=jnp.int32)

    t_pp = ((T_IN - 1) // 2 - 1) // 2
    prep = prepare_params(params, t_pp)         # one-time, input-independent precompute

    fwd = jax.jit(espnet_forward)
    y, olens = fwd(prep, x, input_lens)
    y = jax.block_until_ready(y)
    olens = jax.block_until_ready(olens)

    assert y.shape == (B, t_pp, D_MODEL), y.shape
    assert olens.shape == (B,) and olens.dtype == jnp.int32
    assert bool(jnp.all(jnp.isfinite(y)))
    print("KERNEL_OK")
</pallas_src>

<mosaic_0001>
module attributes {stable_mosaic.version = 11 : i64} {
  func.func @_matmul_kernel(%arg0: memref<210x9xf32, #tpu.memory_space<vmem>>, %arg1: memref<9x32xf32, #tpu.memory_space<vmem>>, %arg2: memref<1x32xf32, #tpu.memory_space<vmem>>, %arg3: memref<210x32xf32, #tpu.memory_space<vmem>>) attributes {dimension_semantics = [], scalar_prefetch = 0 : i64, scratch_operands = 0 : i64, tpu.core_type = #tpu.core_type<tc>} {
    %c0 = arith.constant 0 : index
    %c0_0 = arith.constant 0 : index
    %0 = vector.load %arg0[%c0, %c0_0] : memref<210x9xf32, #tpu.memory_space<vmem>>, vector<210x9xf32>
    %c0_1 = arith.constant 0 : index
    %c0_2 = arith.constant 0 : index
    %1 = vector.load %arg1[%c0_1, %c0_2] : memref<9x32xf32, #tpu.memory_space<vmem>>, vector<9x32xf32>
    %cst = arith.constant dense<0.000000e+00> : vector<210x32xf32>
    %2 = tpu.matmul %0, %1, %cst {dimension_numbers = #tpu.dot_dimension_numbers<[1], [0], [0], [1], [0, 0, 1, 1], [], []>} : vector<210x9xf32>, vector<9x32xf32>, vector<210x32xf32> -> vector<210x32xf32>
    %c0_3 = arith.constant 0 : index
    %c0_4 = arith.constant 0 : index
    %3 = vector.load %arg2[%c0_3, %c0_4] : memref<1x32xf32, #tpu.memory_space<vmem>>, vector<1x32xf32>
    %4 = vector.broadcast %3 : vector<1x32xf32> to vector<210x32xf32>
    %5 = arith.addf %2, %4 : vector<210x32xf32>
    %cst_5 = arith.constant 0.000000e+00 : f32
    %6 = vector.broadcast %cst_5 : f32 to vector<210x32xf32>
    %7 = arith.maximumf %5, %6 : vector<210x32xf32>
    %c0_6 = arith.constant 0 : index
    %c0_7 = arith.constant 0 : index
    %8 = vector.load %arg3[%c0_6, %c0_7] : memref<210x32xf32, #tpu.memory_space<vmem>>, vector<210x32xf32>
    tpu.vector_store %arg3[%c0_6, %c0_7], %7 {strides = array<i32>} : memref<210x32xf32, #tpu.memory_space<vmem>>, vector<210x32xf32>,
    return
  }
}

module attributes {stable_mosaic.version = 11 : i64} {
  func.func @_matmul_kernel(%arg0: memref<42x288xf32, #tpu.memory_space<vmem>>, %arg1: memref<288x32xf32, #tpu.memory_space<vmem>>, %arg2: memref<1x32xf32, #tpu.memory_space<vmem>>, %arg3: memref<42x32xf32, #tpu.memory_space<vmem>>) attributes {dimension_semantics = [], scalar_prefetch = 0 : i64, scratch_operands = 0 : i64, tpu.core_type = #tpu.core_type<tc>} {
    %c0 = arith.constant 0 : index
    %c0_0 = arith.constant 0 : index
    %0 = vector.load %arg0[%c0, %c0_0] : memref<42x288xf32, #tpu.memory_space<vmem>>, vector<42x288xf32>
    %c0_1 = arith.constant 0 : index
    %c0_2 = arith.constant 0 : index
    %1 = vector.load %arg1[%c0_1, %c0_2] : memref<288x32xf32, #tpu.memory_space<vmem>>, vector<288x32xf32>
    %cst = arith.constant dense<0.000000e+00> : vector<42x32xf32>
    %2 = tpu.matmul %0, %1, %cst {dimension_numbers = #tpu.dot_dimension_numbers<[1], [0], [0], [1], [0, 0, 1, 1], [], []>} : vector<42x288xf32>, vector<288x32xf32>, vector<42x32xf32> -> vector<42x32xf32>
    %c0_3 = arith.constant 0 : index
    %c0_4 = arith.constant 0 : index
    %3 = vector.load %arg2[%c0_3, %c0_4] : memref<1x32xf32, #tpu.memory_space<vmem>>, vector<1x32xf32>
    %4 = vector.broadcast %3 : vector<1x32xf32> to vector<42x32xf32>
    %5 = arith.addf %2, %4 : vector<42x32xf32>
    %cst_5 = arith.constant 0.000000e+00 : f32
    %6 = vector.broadcast %cst_5 : f32 to vector<42x32xf32>
    %7 = arith.maximumf %5, %6 : vector<42x32xf32>
    %c0_6 = arith.constant 0 : index
    %c0_7 = arith.constant 0 : index
    %8 = vector.load %arg3[%c0_6, %c0_7] : memref<42x32xf32, #tpu.memory_space<vmem>>, vector<42x32xf32>
    tpu.vector_store %arg3[%c0_6, %c0_7], %7 {strides = array<i32>} : memref<42x32xf32, #tpu.memory_space<vmem>>, vector<42x32xf32>,
    return
  }
}

module attributes {stable_mosaic.version = 11 : i64} {
  func.func @_matmul_kernel(%arg0: memref<14x96xf32, #tpu.memory_space<vmem>>, %arg1: memref<96x32xf32, #tpu.memory_space<vmem>>, %arg2: memref<1x32xf32, #tpu.memory_space<vmem>>, %arg3: memref<14x32xf32, #tpu.memory_space<vmem>>) attributes {dimension_semantics = [], scalar_prefetch = 0 : i64, scratch_operands = 0 : i64, tpu.core_type = #tpu.core_type<tc>} {
    %c0 = arith.constant 0 : index
    %c0_0 = arith.constant 0 : index
    %0 = vector.load %arg0[%c0, %c0_0] : memref<14x96xf32, #tpu.memory_space<vmem>>, vector<14x96xf32>
    %c0_1 = arith.constant 0 : index
    %c0_2 = arith.constant 0 : index
    %1 = vector.load %arg1[%c0_1, %c0_2] : memref<96x32xf32, #tpu.memory_space<vmem>>, vector<96x32xf32>
    %cst = arith.constant dense<0.000000e+00> : vector<14x32xf32>
    %2 = tpu.matmul %0, %1, %cst {dimension_numbers = #tpu.dot_dimension_numbers<[1], [0], [0], [1], [0, 0, 1, 1], [], []>} : vector<14x96xf32>, vector<96x32xf32>, vector<14x32xf32> -> vector<14x32xf32>
    %c0_3 = arith.constant 0 : index
    %c0_4 = arith.constant 0 : index
    %3 = vector.load %arg2[%c0_3, %c0_4] : memref<1x32xf32, #tpu.memory_space<vmem>>, vector<1x32xf32>
    %4 = vector.broadcast %3 : vector<1x32xf32> to vector<14x32xf32>
    %5 = arith.addf %2, %4 : vector<14x32xf32>
    %c0_5 = arith.constant 0 : index
    %c0_6 = arith.constant 0 : index
    %6 = vector.load %arg3[%c0_5, %c0_6] : memref<14x32xf32, #tpu.memory_space<vmem>>, vector<14x32xf32>
    tpu.vector_store %arg3[%c0_5, %c0_6], %5 {strides = array<i32>} : memref<14x32xf32, #tpu.memory_space<vmem>>, vector<14x32xf32>,
    return
  }
}

module attributes {stable_mosaic.version = 11 : i64} {
  func.func @_block_kernel(%arg0: i32, %arg1: memref<1x7x32xf32, #tpu.memory_space<vmem>>, %arg2: memref<1x1x7xf32, #tpu.memory_space<vmem>>, %arg3: memref<5x32xf32, #tpu.memory_space<vmem>>, %arg4: memref<5x32xf32, #tpu.memory_space<vmem>>, %arg5: memref<32x64xf32, #tpu.memory_space<vmem>>, %arg6: memref<1x64xf32, #tpu.memory_space<vmem>>, %arg7: memref<64x32xf32, #tpu.memory_space<vmem>>, %arg8: memref<1x32xf32, #tpu.memory_space<vmem>>, %arg9: memref<32x96xf32, #tpu.memory_space<vmem>>, %arg10: memref<1x96xf32, #tpu.memory_space<vmem>>, %arg11: memref<1x32xf32, #tpu.memory_space<vmem>>, %arg12: memref<1x32xf32, #tpu.memory_space<vmem>>, %arg13: memref<7x7x32xf32, #tpu.memory_space<vmem>>, %arg14: memref<7x7x32xf32, #tpu.memory_space<vmem>>, %arg15: memref<32x32xf32, #tpu.memory_space<vmem>>, %arg16: memref<1x32xf32, #tpu.memory_space<vmem>>, %arg17: memref<32x64xf32, #tpu.memory_space<vmem>>, %arg18: memref<1x64xf32, #tpu.memory_space<vmem>>, %arg19: memref<7x7x32xf32, #tpu.memory_space<vmem>>, %arg20: memref<1x32xf32, #tpu.memory_space<vmem>>, %arg21: memref<1x32xf32, #tpu.memory_space<vmem>>, %arg22: memref<32x32xf32, #tpu.memory_space<vmem>>, %arg23: memref<1x32xf32, #tpu.memory_space<vmem>>, %arg24: memref<32x64xf32, #tpu.memory_space<vmem>>, %arg25: memref<1x64xf32, #tpu.memory_space<vmem>>, %arg26: memref<64x32xf32, #tpu.memory_space<vmem>>, %arg27: memref<1x32xf32, #tpu.memory_space<vmem>>, %arg28: memref<1x7x32xf32, #tpu.memory_space<vmem>>) attributes {dimension_semantics = [#tpu.dimension_semantics<parallel>], iteration_bounds = array<i64: 2>, scalar_prefetch = 0 : i64, scratch_operands = 0 : i64, tpu.core_type = #tpu.core_type<tc>, window_params = [{transform_indices = @transform_0, window_bounds = array<i64: 1, 7, 32>}, {transform_indices = @transform_1, window_bounds = array<i64: 1, 1, 7>}, {pipeline_mode = #tpu.pipeline_mode<synchronous>, transform_indices = @transform_2, window_bounds = array<i64: 5, 32>}, {pipeline_mode = #tpu.pipeline_mode<synchronous>, transform_indices = @transform_3, window_bounds = array<i64: 5, 32>}, {pipeline_mode = #tpu.pipeline_mode<synchronous>, transform_indices = @transform_4, window_bounds = array<i64: 32, 64>}, {pipeline_mode = #tpu.pipeline_mode<synchronous>, transform_indices = @transform_5, window_bounds = array<i64: 1, 64>}, {pipeline_mode = #tpu.pipeline_mode<synchronous>, transform_indices = @transform_6, window_bounds = array<i64: 64, 32>}, {pipeline_mode = #tpu.pipeline_mode<synchronous>, transform_indices = @transform_7, window_bounds = array<i64: 1, 32>}, {pipeline_mode = #tpu.pipeline_mode<synchronous>, transform_indices = @transform_8, window_bounds = array<i64: 32, 96>}, {pipeline_mode = #tpu.pipeline_mode<synchronous>, transform_indices = @transform_9, window_bounds = array<i64: 1, 96>}, {pipeline_mode = #tpu.pipeline_mode<synchronous>, transform_indices = @transform_10, window_bounds = array<i64: 1, 32>}, {pipeline_mode = #tpu.pipeline_mode<synchronous>, transform_indices = @transform_11, window_bounds = array<i64: 1, 32>}, {pipeline_mode = #tpu.pipeline_mode<synchronous>, transform_indices = @transform_12, window_bounds = array<i64: 7, 7, 32>}, {pipeline_mode = #tpu.pipeline_mode<synchronous>, transform_indices = @transform_13, window_bounds = array<i64: 7, 7, 32>}, {pipeline_mode = #tpu.pipeline_mode<synchronous>, transform_indices = @transform_14, window_bounds = array<i64: 32, 32>}, {pipeline_mode = #tpu.pipeline_mode<synchronous>, transform_indices = @transform_15, window_bounds = array<i64: 1, 32>}, {pipeline_mode = #tpu.pipeline_mode<synchronous>, transform_indices = @transform_16, window_bounds = array<i64: 32, 64>}, {pipeline_mode = #tpu.pipeline_mode<synchronous>, transform_indices = @transform_17, window_bounds = array<i64: 1, 64>}, {pipeline_mode = #tpu.pipeline_mode<synchronous>, transform_indices = @transform_18, window_bounds = array<i64: 7, 7, 32>}, {pipeline_mode = #tpu.pipeline_mode<synchronous>, transform_indices = @transform_19, window_bounds = array<i64: 1, 32>}, {pipeline_mode = #tpu.pipeline_mode<synchronous>, transform_indices = @transform_20, window_bounds = array<i64: 1, 32>}, {pipeline_mode = #tpu.pipeline_mode<synchronous>, transform_indices = @transform_21, window_bounds = array<i64: 32, 32>}, {pipeline_mode = #tpu.pipeline_mode<synchronous>, transform_indices = @transform_22, window_bounds = array<i64: 1, 32>}, {pipeline_mode = #tpu.pipeline_mode<synchronous>, transform_indices = @transform_23, window_bounds = array<i64: 32, 64>}, {pipeline_mode = #tpu.pipeline_mode<synchronous>, transform_indices = @transform_24, window_bounds = array<i64: 1, 64>}, {pipeline_mode = #tpu.pipeline_mode<synchronous>, transform_indices = @transform_25, window_bounds = array<i64: 64, 32>}, {pipeline_mode = #tpu.pipeline_mode<synchronous>, transform_indices = @transform_26, window_bounds = array<i64: 1, 32>}, {transform_indices = @transform_27, window_bounds = array<i64: 1, 7, 32>}]} {
    %c0 = arith.constant 0 : index
    %c0_0 = arith.constant 0 : index
    %c0_1 = arith.constant 0 : index
    %0 = vector.load %arg1[%c0, %c0_0, %c0_1] : memref<1x7x32xf32, #tpu.memory_space<vmem>>, vector<1x7x32xf32>
    %1 = vector.shape_cast %0 : vector<1x7x32xf32> to vector<7x32xf32>
    %c0_2 = arith.constant 0 : index
    %c0_3 = arith.constant 0 : index
    %c0_4 = arith.constant 0 : index
    %2 = vector.load %arg2[%c0_2, %c0_3, %c0_4] : memref<1x1x7xf32, #tpu.memory_space<vmem>>, vector<1x1x7xf32>
    %3 = vector.shape_cast %2 : vector<1x1x7xf32> to vector<1x7xf32>
    %cst = arith.constant 5.000000e-01 : f32
    %4 = vector.broadcast %cst : f32 to vector<1x7xf32>
    %5 = arith.cmpf olt, %3, %4 : vector<1x7xf32>
    %c0_5 = arith.constant 0 : index
    %c0_6 = arith.constant 0 : index
    %6 = vector.load %arg3[%c0_5, %c0_6] : memref<5x32xf32, #tpu.memory_space<vmem>>, vector<5x32xf32>
    %c0_7 = arith.constant 0 : index
    %c0_8 = arith.constant 0 : index
    %7 = vector.load %arg4[%c0_7, %c0_8] : memref<5x32xf32, #tpu.memory_space<vmem>>, vector<5x32xf32>
    %cst_9 = arith.constant dense<0.000000e+00> : vector<7xf32>
    %8 = vector.multi_reduction <add>, %1, %cst_9 [1] : vector<7x32xf32> to vector<7xf32>
    %9 = vector.shape_cast %8 : vector<7xf32> to vector<7x1xf32>
    %cst_10 = arith.constant 3.200000e+01 : f32
    %10 = vector.broadcast %cst_10 : f32 to vector<7x1xf32>
    %11 = arith.divf %9, %10 : vector<7x1xf32>
    %12 = vector.broadcast %11 : vector<7x1xf32> to vector<7x32xf32>
    %13 = arith.subf %1, %12 : vector<7x32xf32>
    %14 = arith.mulf %13, %13 : vector<7x32xf32>
    %cst_11 = arith.constant dense<0.000000e+00> : vector<7xf32>
    %15 = vector.multi_reduction <add>, %14, %cst_11 [1] : vector<7x32xf32> to vector<7xf32>
    %16 = vector.shape_cast %15 : vector<7xf32> to vector<7x1xf32>
    %cst_12 = arith.constant 3.200000e+01 : f32
    %17 = vector.broadcast %cst_12 : f32 to vector<7x1xf32>
    %18 = arith.divf %16, %17 : vector<7x1xf32>
    %cst_13 = arith.constant 9.99999996E-13 : f32
    %19 = vector.broadcast %cst_13 : f32 to vector<7x1xf32>
    %20 = arith.addf %18, %19 : vector<7x1xf32>
    %21 = math.rsqrt %20 : vector<7x1xf32>
    %22 = vector.broadcast %21 : vector<7x1xf32> to vector<7x32xf32>
    %23 = arith.mulf %13, %22 : vector<7x32xf32>
    %24 = vector.extract_strided_slice %6 {offsets = [0, 0], sizes = [1, 32], strides = [1, 1]} : vector<5x32xf32> to vector<1x32xf32>
    %25 = vector.broadcast %24 : vector<1x32xf32> to vector<7x32xf32>
    %26 = arith.mulf %23, %25 : vector<7x32xf32>
    %27 = vector.extract_strided_slice %7 {offsets = [0, 0], sizes = [1, 32], strides = [1, 1]} : vector<5x32xf32> to vector<1x32xf32>
    %28 = vector.broadcast %27 : vector<1x32xf32> to vector<7x32xf32>
    %29 = arith.addf %26, %28 : vector<7x32xf32>
    %c0_14 = arith.constant 0 : index
    %c0_15 = arith.constant 0 : index
    %30 = vector.load %arg5[%c0_14, %c0_15] : memref<32x64xf32, #tpu.memory_space<vmem>>, vector<32x64xf32>
    %cst_16 = arith.constant dense<0.000000e+00> : vector<7x64xf32>
    %31 = tpu.matmul %29, %30, %cst_16 {dimension_numbers = #tpu.dot_dimension_numbers<[1], [0], [0], [1], [0, 0, 1, 1], [], []>} : vector<7x32xf32>, vector<32x64xf32>, vector<7x64xf32> -> vector<7x64xf32>
    %c0_17 = arith.constant 0 : index
    %c0_18 = arith.constant 0 : index
    %32 = vector.load %arg6[%c0_17, %c0_18] : memref<1x64xf32, #tpu.memory_space<vmem>>, vector<1x64xf32>
    %33 = vector.broadcast %32 : vector<1x64xf32> to vector<7x64xf32>
    %34 = arith.addf %31, %33 : vector<7x64xf32>
    %cst_19 = arith.constant 0.000000e+00 : f32
    %35 = vector.broadcast %cst_19 : f32 to vector<7x64xf32>
    %36 = arith.subf %35, %34 : vector<7x64xf32>
    %37 = math.exp %36 : vector<7x64xf32>
    %cst_20 = arith.constant 1.000000e+00 : f32
    %38 = vector.broadcast %cst_20 : f32 to vector<7x64xf32>
    %39 = arith.addf %38, %37 : vector<7x64xf32>
    %cst_21 = arith.constant 1.000000e+00 : f32
    %40 = vector.broadcast %cst_21 : f32 to vector<7x64xf32>
    %41 = arith.divf %40, %39 : vector<7x64xf32>
    %42 = arith.mulf %34, %41 : vector<7x64xf32>
    %c0_22 = arith.constant 0 : index
    %c0_23 = arith.constant 0 : index
    %43 = vector.load %arg7[%c0_22, %c0_23] : memref<64x32xf32, #tpu.memory_space<vmem>>, vector<64x32xf32>
    %cst_24 = arith.constant dense<0.000000e+00> : vector<7x32xf32>
    %44 = tpu.matmul %42, %43, %cst_24 {dimension_numbers = #tpu.dot_dimension_numbers<[1], [0], [0], [1], [0, 0, 1, 1], [], []>} : vector<7x64xf32>, vector<64x32xf32>, vector<7x32xf32> -> vector<7x32xf32>
    %c0_25 = arith.constant 0 : index
    %c0_26 = arith.constant 0 : index
    %45 = vector.load %arg8[%c0_25, %c0_26] : memref<1x32xf32, #tpu.memory_space<vmem>>, vector<1x32xf32>
    %46 = vector.broadcast %45 : vector<1x32xf32> to vector<7x32xf32>
    %47 = arith.addf %44, %46 : vector<7x32xf32>
    %cst_27 = arith.constant 5.000000e-01 : f32
    %48 = vector.broadcast %cst_27 : f32 to vector<7x32xf32>
    %49 = arith.mulf %48, %47 : vector<7x32xf32>
    %50 = arith.addf %1, %49 : vector<7x32xf32>
    %cst_28 = arith.constant dense<0.000000e+00> : vector<7xf32>
    %51 = vector.multi_reduction <add>, %50, %cst_28 [1] : vector<7x32xf32> to vector<7xf32>
    %52 = vector.shape_cast %51 : vector<7xf32> to vector<7x1xf32>
    %cst_29 = arith.constant 3.200000e+01 : f32
    %53 = vector.broadcast %cst_29 : f32 to vector<7x1xf32>
    %54 = arith.divf %52, %53 : vector<7x1xf32>
    %55 = vector.broadcast %54 : vector<7x1xf32> to vector<7x32xf32>
    %56 = arith.subf %50, %55 : vector<7x32xf32>
    %57 = arith.mulf %56, %56 : vector<7x32xf32>
    %cst_30 = arith.constant dense<0.000000e+00> : vector<7xf32>
    %58 = vector.multi_reduction <add>, %57, %cst_30 [1] : vector<7x32xf32> to vector<7xf32>
    %59 = vector.shape_cast %58 : vector<7xf32> to vector<7x1xf32>
    %cst_31 = arith.constant 3.200000e+01 : f32
    %60 = vector.broadcast %cst_31 : f32 to vector<7x1xf32>
    %61 = arith.divf %59, %60 : vector<7x1xf32>
    %cst_32 = arith.constant 9.99999996E-13 : f32
    %62 = vector.broadcast %cst_32 : f32 to vector<7x1xf32>
    %63 = arith.addf %61, %62 : vector<7x1xf32>
    %64 = math.rsqrt %63 : vector<7x1xf32>
    %65 = vector.broadcast %64 : vector<7x1xf32> to vector<7x32xf32>
    %66 = arith.mulf %56, %65 : vector<7x32xf32>
    %67 = vector.extract_strided_slice %6 {offsets = [1, 0], sizes = [1, 32], strides = [1, 1]} : vector<5x32xf32> to vector<1x32xf32>
    %68 = vector.broadcast %67 : vector<1x32xf32> to vector<7x32xf32>
    %69 = arith.mulf %66, %68 : vector<7x32xf32>
    %70 = vector.extract_strided_slice %7 {offsets = [1, 0], sizes = [1, 32], strides = [1, 1]} : vector<5x32xf32> to vector<1x32xf32>
    %71 = vector.broadcast %70 : vector<1x32xf32> to vector<7x32xf32>
    %72 = arith.addf %69, %71 : vector<7x32xf32>
    %c0_33 = arith.constant 0 : index
    %c0_34 = arith.constant 0 : index
    %73 = vector.load %arg9[%c0_33, %c0_34] : memref<32x96xf32, #tpu.memory_space<vmem>>, vector<32x96xf32>
    %cst_35 = arith.constant dense<0.000000e+00> : vector<7x96xf32>
    %74 = tpu.matmul %72, %73, %cst_35 {dimension_numbers = #tpu.dot_dimension_numbers<[1], [0], [0], [1], [0, 0, 1, 1], [], []>} : vector<7x32xf32>, vector<32x96xf32>, vector<7x96xf32> -> vector<7x96xf32>
    %c0_36 = arith.constant 0 : index
    %c0_37 = arith.constant 0 : index
    %75 = vector.load %arg10[%c0_36, %c0_37] : memref<1x96xf32, #tpu.memory_space<vmem>>, vector<1x96xf32>
    %76 = vector.broadcast %75 : vector<1x96xf32> to vector<7x96xf32>
    %77 = arith.addf %74, %76 : vector<7x96xf32>
    %78 = vector.extract_strided_slice %77 {offsets = [0, 0], sizes = [7, 32], strides = [1, 1]} : vector<7x96xf32> to vector<7x32xf32>
    %79 = vector.extract_strided_slice %77 {offsets = [0, 32], sizes = [7, 32], strides = [1, 1]} : vector<7x96xf32> to vector<7x32xf32>
    %80 = vector.extract_strided_slice %77 {offsets = [0, 64], sizes = [7, 32], strides = [1, 1]} : vector<7x96xf32> to vector<7x32xf32>
    %c0_38 = arith.constant 0 : index
    %c0_39 = arith.constant 0 : index
    %81 = vector.load %arg11[%c0_38, %c0_39] : memref<1x32xf32, #tpu.memory_space<vmem>>, vector<1x32xf32>
    %82 = vector.broadcast %81 : vector<1x32xf32> to vector<7x32xf32>
    %83 = arith.addf %78, %82 : vector<7x32xf32>
    %c0_40 = arith.constant 0 : index
    %c0_41 = arith.constant 0 : index
    %84 = vector.load %arg12[%c0_40, %c0_41] : memref<1x32xf32, #tpu.memory_space<vmem>>, vector<1x32xf32>
    %85 = vector.broadcast %84 : vector<1x32xf32> to vector<7x32xf32>
    %86 = arith.addf %78, %85 : vector<7x32xf32>
    %87 = tpu.iota {dimensions = array<i32: 0>} : vector<7x7xi32>
    %88 = tpu.iota {dimensions = array<i32: 1>} : vector<7x7xi32>
    %c1_i32 = arith.constant 1 : i32
    %89 = vector.broadcast %c1_i32 : i32 to vector<7x7xi32>
    %90 = arith.addi %87, %89 : vector<7x7xi32>
    %91 = arith.cmpi eq, %88, %90 : vector<7x7xi32>
    %92 = arith.extui %91 : vector<7x7xi1> to vector<7x7xi32>
    %93 = arith.sitofp %92 : vector<7x7xi32> to vector<7x7xf32>
    %cst_42 = arith.constant dense<0.000000e+00> : vector<7x32xf32>
    %94 = tpu.matmul %93, %86, %cst_42 {dimension_numbers = #tpu.dot_dimension_numbers<[1], [0], [0], [1], [0, 0, 1, 1], [], []>} : vector<7x7xf32>, vector<7x32xf32>, vector<7x32xf32> -> vector<7x32xf32>
    %c0_43 = arith.constant 0 : index
    %c0_44 = arith.constant 0 : index
    %c0_45 = arith.constant 0 : index
    %95 = vector.load %arg13[%c0_43, %c0_44, %c0_45] : memref<7x7x32xf32, #tpu.memory_space<vmem>>, vector<7x7x32xf32>
    %c0_46 = arith.constant 0 : index
    %c0_47 = arith.constant 0 : index
    %c0_48 = arith.constant 0 : index
    %96 = vector.load %arg14[%c0_46, %c0_47, %c0_48] : memref<7x7x32xf32, #tpu.memory_space<vmem>>, vector<7x7x32xf32>
    %c0_49 = arith.constant 0 : index
    %c0_50 = arith.constant 0 : index
    %97 = vector.load %arg15[%c0_49, %c0_50] : memref<32x32xf32, #tpu.memory_space<vmem>>, vector<32x32xf32>
    %cst_51 = arith.constant 0.000000e+00 : f32
    %98 = vector.broadcast %cst_51 : f32 to vector<7x32xf32>
    %99 = vector.extract_strided_slice %83 {offsets = [0, 0], sizes = [7, 8], strides = [1, 1]} : vector<7x32xf32> to vector<7x8xf32>
    %100 = vector.extract_strided_slice %79 {offsets = [0, 0], sizes = [7, 8], strides = [1, 1]} : vector<7x32xf32> to vector<7x8xf32>
    "tpu.trace_start"() <{level = 10 : i32, message = "td,sd->ts"}> : () -> ()
    %cst_52 = arith.constant dense<0.000000e+00> : vector<7x7xf32>
    %101 = tpu.matmul %99, %100, %cst_52 {dimension_numbers = #tpu.dot_dimension_numbers<[1], [1], [0], [0], [0, 0, 1, 0], [], []>} : vector<7x8xf32>, vector<7x8xf32>, vector<7x7xf32> -> vector<7x7xf32>
    "tpu.trace_stop"() : () -> ()
    %102 = vector.extract_strided_slice %86 {offsets = [0, 0], sizes = [7, 8], strides = [1, 1]} : vector<7x32xf32> to vector<7x8xf32>
    %103 = vector.shape_cast %102 : vector<7x8xf32> to vector<1x7x8xf32>
    %104 = vector.extract_strided_slice %95 {offsets = [0, 0, 0], sizes = [7, 7, 8], strides = [1, 1, 1]} : vector<7x7x32xf32> to vector<7x7x8xf32>
    %105 = vector.broadcast %103 : vector<1x7x8xf32> to vector<7x7x8xf32>
    %106 = arith.mulf %105, %104 : vector<7x7x8xf32>
    %cst_53 = arith.constant dense<0.000000e+00> : vector<7x7xf32>
    %107 = vector.multi_reduction <add>, %106, %cst_53 [2] : vector<7x7x8xf32> to vector<7x7xf32>
    %108 = vector.extract_strided_slice %94 {offsets = [0, 0], sizes = [7, 8], strides = [1, 1]} : vector<7x32xf32> to vector<7x8xf32>
    %109 = vector.shape_cast %108 : vector<7x8xf32> to vector<1x7x8xf32>
    %110 = vector.extract_strided_slice %96 {offsets = [0, 0, 0], sizes = [7, 7, 8], strides = [1, 1, 1]} : vector<7x7x32xf32> to vector<7x7x8xf32>
    %111 = vector.broadcast %109 : vector<1x7x8xf32> to vector<7x7x8xf32>
    %112 = arith.mulf %111, %110 : vector<7x7x8xf32>
    %cst_54 = arith.constant dense<0.000000e+00> : vector<7x7xf32>
    %113 = vector.multi_reduction <add>, %112, %cst_54 [2] : vector<7x7x8xf32> to vector<7x7xf32>
    %114 = arith.addf %107, %113 : vector<7x7xf32>
    %115 = tpu.transpose %114, [1, 0] : vector<7x7xf32> -> vector<7x7xf32>
    %116 = arith.addf %101, %115 : vector<7x7xf32>
    %cst_55 = arith.constant 0.353553385 : f32
    %117 = vector.broadcast %cst_55 : f32 to vector<7x7xf32>
    %118 = arith.mulf %116, %117 : vector<7x7xf32>
    %cst_56 = arith.constant -3.40282347E+38 : f32
    %119 = vector.shape_cast %5 : vector<1x7xi1> to vector<1x7xi1>
    %120 = vector.broadcast %119 : vector<1x7xi1> to vector<7x7xi1>
    %121 = vector.broadcast %cst_56 : f32 to vector<7x7xf32>
    %122 = arith.select %120, %121, %118 : vector<7x7xi1>, vector<7x7xf32>
    %cst_57 = arith.constant dense<0xFF800000> : vector<7xf32>
    %123 = vector.multi_reduction <maximumf>, %122, %cst_57 [1] : vector<7x7xf32> to vector<7xf32>
    %124 = vector.shape_cast %123 : vector<7xf32> to vector<7x1xf32>
    %125 = vector.broadcast %124 : vector<7x1xf32> to vector<7x7xf32>
    %126 = arith.subf %122, %125 : vector<7x7xf32>
    %127 = math.exp %126 : vector<7x7xf32>
    %cst_58 = arith.constant dense<0.000000e+00> : vector<7xf32>
    %128 = vector.multi_reduction <add>, %127, %cst_58 [1] : vector<7x7xf32> to vector<7xf32>
    %129 = vector.shape_cast %128 : vector<7xf32> to vector<7x1xf32>
    %130 = tpu.reciprocal %129 {approx = true} : vector<7x1xf32> -> vector<7x1xf32>
    %131 = vector.broadcast %130 : vector<7x1xf32> to vector<7x7xf32>
    %132 = arith.mulf %127, %131 : vector<7x7xf32>
    %cst_59 = arith.constant 0.000000e+00 : f32
    %133 = vector.shape_cast %5 : vector<1x7xi1> to vector<1x7xi1>
    %134 = vector.broadcast %133 : vector<1x7xi1> to vector<7x7xi1>
    %135 = vector.broadcast %cst_59 : f32 to vector<7x7xf32>
    %136 = arith.select %134, %135, %132 : vector<7x7xi1>, vector<7x7xf32>
    %137 = vector.extract_strided_slice %80 {offsets = [0, 0], sizes = [7, 8], strides = [1, 1]} : vector<7x32xf32> to vector<7x8xf32>
    %cst_60 = arith.constant dense<0.000000e+00> : vector<7x8xf32>
    %138 = tpu.matmul %136, %137, %cst_60 {dimension_numbers = #tpu.dot_dimension_numbers<[1], [0], [0], [1], [0, 0, 1, 1], [], []>} : vector<7x7xf32>, vector<7x8xf32>, vector<7x8xf32> -> vector<7x8xf32>
    %139 = vector.extract_strided_slice %97 {offsets = [0, 0], sizes = [8, 32], strides = [1, 1]} : vector<32x32xf32> to vector<8x32xf32>
    %cst_61 = arith.constant dense<0.000000e+00> : vector<7x32xf32>
    %140 = tpu.matmul %138, %139, %cst_61 {dimension_numbers = #tpu.dot_dimension_numbers<[1], [0], [0], [1], [0, 0, 1, 1], [], []>} : vector<7x8xf32>, vector<8x32xf32>, vector<7x32xf32> -> vector<7x32xf32>
    %141 = arith.addf %98, %140 : vector<7x32xf32>
    %142 = vector.extract_strided_slice %83 {offsets = [0, 8], sizes = [7, 8], strides = [1, 1]} : vector<7x32xf32> to vector<7x8xf32>
    %143 = vector.extract_strided_slice %79 {offsets = [0, 8], sizes = [7, 8], strides = [1, 1]} : vector<7x32xf32> to vector<7x8xf32>
    "tpu.trace_start"() <{level = 10 : i32, message = "td,sd->ts"}> : () -> ()
    %cst_62 = arith.constant dense<0.000000e+00> : vector<7x7xf32>
    %144 = tpu.matmul %142, %143, %cst_62 {dimension_numbers = #tpu.dot_dimension_numbers<[1], [1], [0], [0], [0, 0, 1, 0], [], []>} : vector<7x8xf32>, vector<7x8xf32>, vector<7x7xf32> -> vector<7x7xf32>
    "tpu.trace_stop"() : () -> ()
    %145 = vector.extract_strided_slice %86 {offsets = [0, 8], sizes = [7, 8], strides = [1, 1]} : vector<7x32xf32> to vector<7x8xf32>
    %146 = vector.shape_cast %145 : vector<7x8xf32> to vector<1x7x8xf32>
    %147 = vector.extract_strided_slice %95 {offsets = [0, 0, 8], sizes = [7, 7, 8], strides = [1, 1, 1]} : vector<7x7x32xf32> to vector<7x7x8xf32>
    %148 = vector.broadcast %146 : vector<1x7x8xf32> to vector<7x7x8xf32>
    %149 = arith.mulf %148, %147 : vector<7x7x8xf32>
    %cst_63 = arith.constant dense<0.000000e+00> : vector<7x7xf32>
    %150 = vector.multi_reduction <add>, %149, %cst_63 [2] : vector<7x7x8xf32> to vector<7x7xf32>
    %151 = vector.extract_strided_slice %94 {offsets = [0, 8], sizes = [7, 8], strides = [1, 1]} : vector<7x32xf32> to vector<7x8xf32>
    %152 = vector.shape_cast %151 : vector<7x8xf32> to vector<1x7x8xf32>
    %153 = vector.extract_strided_slice %96 {offsets = [0, 0, 8], sizes = [7, 7, 8], strides = [1, 1, 1]} : vector<7x7x32xf32> to vector<7x7x8xf32>
    %154 = vector.broadcast %152 : vector<1x7x8xf32> to vector<7x7x8xf32>
    %155 = arith.mulf %154, %153 : vector<7x7x8xf32>
    %cst_64 = arith.constant dense<0.000000e+00> : vector<7x7xf32>
    %156 = vector.multi_reduction <add>, %155, %cst_64 [2] : vector<7x7x8xf32> to vector<7x7xf32>
    %157 = arith.addf %150, %156 : vector<7x7xf32>
    %158 = tpu.transpose %157, [1, 0] : vector<7x7xf32> -> vector<7x7xf32>
    %159 = arith.addf %144, %158 : vector<7x7xf32>
    %cst_65 = arith.constant 0.353553385 : f32
    %160 = vector.broadcast %cst_65 : f32 to vector<7x7xf32>
    %161 = arith.mulf %159, %160 : vector<7x7xf32>
    %cst_66 = arith.constant -3.40282347E+38 : f32
    %162 = vector.shape_cast %5 : vector<1x7xi1> to vector<1x7xi1>
    %163 = vector.broadcast %162 : vector<1x7xi1> to vector<7x7xi1>
    %164 = vector.broadcast %cst_66 : f32 to vector<7x7xf32>
    %165 = arith.select %163, %164, %161 : vector<7x7xi1>, vector<7x7xf32>
    %cst_67 = arith.constant dense<0xFF800000> : vector<7xf32>
    %166 = vector.multi_reduction <maximumf>, %165, %cst_67 [1] : vector<7x7xf32> to vector<7xf32>
    %167 = vector.shape_cast %166 : vector<7xf32> to vector<7x1xf32>
    %168 = vector.broadcast %167 : vector<7x1xf32> to vector<7x7xf32>
    %169 = arith.subf %165, %168 : vector<7x7xf32>
    %170 = math.exp %169 : vector<7x7xf32>
    %cst_68 = arith.constant dense<0.000000e+00> : vector<7xf32>
    %171 = vector.multi_reduction <add>, %170, %cst_68 [1] : vector<7x7xf32> to vector<7xf32>
    %172 = vector.shape_cast %171 : vector<7xf32> to vector<7x1xf32>
    %173 = tpu.reciprocal %172 {approx = true} : vector<7x1xf32> -> vector<7x1xf32>
    %174 = vector.broadcast %173 : vector<7x1xf32> to vector<7x7xf32>
    %175 = arith.mulf %170, %174 : vector<7x7xf32>
    %cst_69 = arith.constant 0.000000e+00 : f32
    %176 = vector.shape_cast %5 : vector<1x7xi1> to vector<1x7xi1>
    %177 = vector.broadcast %176 : vector<1x7xi1> to vector<7x7xi1>
    %178 = vector.broadcast %cst_69 : f32 to vector<7x7xf32>
    %179 = arith.select %177, %178, %175 : vector<7x7xi1>, vector<7x7xf32>
    %180 = vector.extract_strided_slice %80 {offsets = [0, 8], sizes = [7, 8], strides = [1, 1]} : vector<7x32xf32> to vector<7x8xf32>
    %cst_70 = arith.constant dense<0.000000e+00> : vector<7x8xf32>
    %181 = tpu.matmul %179, %180, %cst_70 {dimension_numbers = #tpu.dot_dimension_numbers<[1], [0], [0], [1], [0, 0, 1, 1], [], []>} : vector<7x7xf32>, vector<7x8xf32>, vector<7x8xf32> -> vector<7x8xf32>
    %182 = vector.extract_strided_slice %97 {offsets = [8, 0], sizes = [8, 32], strides = [1, 1]} : vector<32x32xf32> to vector<8x32xf32>
    %cst_71 = arith.constant dense<0.000000e+00> : vector<7x32xf32>
    %183 = tpu.matmul %181, %182, %cst_71 {dimension_numbers = #tpu.dot_dimension_numbers<[1], [0], [0], [1], [0, 0, 1, 1], [], []>} : vector<7x8xf32>, vector<8x32xf32>, vector<7x32xf32> -> vector<7x32xf32>
    %184 = arith.addf %141, %183 : vector<7x32xf32>
    %185 = vector.extract_strided_slice %83 {offsets = [0, 16], sizes = [7, 8], strides = [1, 1]} : vector<7x32xf32> to vector<7x8xf32>
    %186 = vector.extract_strided_slice %79 {offsets = [0, 16], sizes = [7, 8], strides = [1, 1]} : vector<7x32xf32> to vector<7x8xf32>
    "tpu.trace_start"() <{level = 10 : i32, message = "td,sd->ts"}> : () -> ()
    %cst_72 = arith.constant dense<0.000000e+00> : vector<7x7xf32>
    %187 = tpu.matmul %185, %186, %cst_72 {dimension_numbers = #tpu.dot_dimension_numbers<[1], [1], [0], [0], [0, 0, 1, 0], [], []>} : vector<7x8xf32>, vector<7x8xf32>, vector<7x7xf32> -> vector<7x7xf32>
    "tpu.trace_stop"() : () -> ()
    %188 = vector.extract_strided_slice %86 {offsets = [0, 16], sizes = [7, 8], strides = [1, 1]} : vector<7x32xf32> to vector<7x8xf32>
    %189 = vector.shape_cast %188 : vector<7x8xf32> to vector<1x7x8xf32>
    %190 = vector.extract_strided_slice %95 {offsets = [0, 0, 16], sizes = [7, 7, 8], strides = [1, 1, 1]} : vector<7x7x32xf32> to vector<7x7x8xf32>
    %191 = vector.broadcast %189 : vector<1x7x8xf32> to vector<7x7x8xf32>
    %192 = arith.mulf %191, %190 : vector<7x7x8xf32>
    %cst_73 = arith.constant dense<0.000000e+00> : vector<7x7xf32>
    %193 = vector.multi_reduction <add>, %192, %cst_73 [2] : vector<7x7x8xf32> to vector<7x7xf32>
    %194 = vector.extract_strided_slice %94 {offsets = [0, 16], sizes = [7, 8], strides = [1, 1]} : vector<7x32xf32> to vector<7x8xf32>
    %195 = vector.shape_cast %194 : vector<7x8xf32> to vector<1x7x8xf32>
    %196 = vector.extract_strided_slice %96 {offsets = [0, 0, 16], sizes = [7, 7, 8], strides = [1, 1, 1]} : vector<7x7x32xf32> to vector<7x7x8xf32>
    %197 = vector.broadcast %195 : vector<1x7x8xf32> to vector<7x7x8xf32>
    %198 = arith.mulf %197, %196 : vector<7x7x8xf32>
    %cst_74 = arith.constant dense<0.000000e+00> : vector<7x7xf32>
    %199 = vector.multi_reduction <add>, %198, %cst_74 [2] : vector<7x7x8xf32> to vector<7x7xf32>
    %200 = arith.addf %193, %199 : vector<7x7xf32>
    %201 = tpu.transpose %200, [1, 0] : vector<7x7xf32> -> vector<7x7xf32>
    %202 = arith.addf %187, %201 : vector<7x7xf32>
    %cst_75 = arith.constant 0.353553385 : f32
    %203 = vector.broadcast %cst_75 : f32 to vector<7x7xf32>
    %204 = arith.mulf %202, %203 : vector<7x7xf32>
    %cst_76 = arith.constant -3.40282347E+38 : f32
    %205 = vector.shape_cast %5 : vector<1x7xi1> to vector<1x7xi1>
    %206 = vector.broadcast %205 : vector<1x7xi1> to vector<7x7xi1>
    %207 = vector.broadcast %cst_76 : f32 to vector<7x7xf32>
    %208 = arith.select %206, %207, %204 : vector<7x7xi1>, vector<7x7xf32>
    %cst_77 = arith.constant dense<0xFF800000> : vector<7xf32>
    %209 = vector.multi_reduction <maximumf>, %208, %cst_77 [1] : vector<7x7xf32> to vector<7xf32>
    %210 = vector.shape_cast %209 : vector<7xf32> to vector<7x1xf32>
    %211 = vector.broadcast %210 : vector<7x1xf32> to vector<7x7xf32>
    %212 = arith.subf %208, %211 : vector<7x7xf32>
    %213 = math.exp %212 : vector<7x7xf32>
    %cst_78 = arith.constant dense<0.000000e+00> : vector<7xf32>
    %214 = vector.multi_reduction <add>, %213, %cst_78 [1] : vector<7x7xf32> to vector<7xf32>
    %215 = vector.shape_cast %214 : vector<7xf32> to vector<7x1xf32>
    %216 = tpu.reciprocal %215 {approx = true} : vector<7x1xf32> -> vector<7x1xf32>
    %217 = vector.broadcast %216 : vector<7x1xf32> to vector<7x7xf32>
    %218 = arith.mulf %213, %217 : vector<7x7xf32>
    %cst_79 = arith.constant 0.000000e+00 : f32
    %219 = vector.shape_cast %5 : vector<1x7xi1> to vector<1x7xi1>
    %220 = vector.broadcast %219 : vector<1x7xi1> to vector<7x7xi1>
    %221 = vector.broadcast %cst_79 : f32 to vector<7x7xf32>
    %222 = arith.select %220, %221, %218 : vector<7x7xi1>, vector<7x7xf32>
    %223 = vector.extract_strided_slice %80 {offsets = [0, 16], sizes = [7, 8], strides = [1, 1]} : vector<7x32xf32> to vector<7x8xf32>
    %cst_80 = arith.constant dense<0.000000e+00> : vector<7x8xf32>
    %224 = tpu.matmul %222, %223, %cst_80 {dimension_numbers = #tpu.dot_dimension_numbers<[1], [0], [0], [1], [0, 0, 1, 1], [], []>} : vector<7x7xf32>, vector<7x8xf32>, vector<7x8xf32> -> vector<7x8xf32>
    %225 = vector.extract_strided_slice %97 {offsets = [16, 0], sizes = [8, 32], strides = [1, 1]} : vector<32x32xf32> to vector<8x32xf32>
    %cst_81 = arith.constant dense<0.000000e+00> : vector<7x32xf32>
    %226 = tpu.matmul %224, %225, %cst_81 {dimension_numbers = #tpu.dot_dimension_numbers<[1], [0], [0], [1], [0, 0, 1, 1], [], []>} : vector<7x8xf32>, vector<8x32xf32>, vector<7x32xf32> -> vector<7x32xf32>
    %227 = arith.addf %184, %226 : vector<7x32xf32>
    %228 = vector.extract_strided_slice %83 {offsets = [0, 24], sizes = [7, 8], strides = [1, 1]} : vector<7x32xf32> to vector<7x8xf32>
    %229 = vector.extract_strided_slice %79 {offsets = [0, 24], sizes = [7, 8], strides = [1, 1]} : vector<7x32xf32> to vector<7x8xf32>
    "tpu.trace_start"() <{level = 10 : i32, message = "td,sd->ts"}> : () -> ()
    %cst_82 = arith.constant dense<0.000000e+00> : vector<7x7xf32>
    %230 = tpu.matmul %228, %229, %cst_82 {dimension_numbers = #tpu.dot_dimension_numbers<[1], [1], [0], [0], [0, 0, 1, 0], [], []>} : vector<7x8xf32>, vector<7x8xf32>, vector<7x7xf32> -> vector<7x7xf32>
    "tpu.trace_stop"() : () -> ()
    %231 = vector.extract_strided_slice %86 {offsets = [0, 24], sizes = [7, 8], strides = [1, 1]} : vector<7x32xf32> to vector<7x8xf32>
    %232 = vector.shape_cast %231 : vector<7x8xf32> to vector<1x7x8xf32>
    %233 = vector.extract_strided_slice %95 {offsets = [0, 0, 24], sizes = [7, 7, 8], strides = [1, 1, 1]} : vector<7x7x32xf32> to vector<7x7x8xf32>
    %234 = vector.broadcast %232 : vector<1x7x8xf32> to vector<7x7x8xf32>
    %235 = arith.mulf %234, %233 : vector<7x7x8xf32>
    %cst_83 = arith.constant dense<0.000000e+00> : vector<7x7xf32>
    %236 = vector.multi_reduction <add>, %235, %cst_83 [2] : vector<7x7x8xf32> to vector<7x7xf32>
    %237 = vector.extract_strided_slice %94 {offsets = [0, 24], sizes = [7, 8], strides = [1, 1]} : vector<7x32xf32> to vector<7x8xf32>
    %238 = vector.shape_cast %237 : vector<7x8xf32> to vector<1x7x8xf32>
    %239 = vector.extract_strided_slice %96 {offsets = [0, 0, 24], sizes = [7, 7, 8], strides = [1, 1, 1]} : vector<7x7x32xf32> to vector<7x7x8xf32>
    %240 = vector.broadcast %238 : vector<1x7x8xf32> to vector<7x7x8xf32>
    %241 = arith.mulf %240, %239 : vector<7x7x8xf32>
    %cst_84 = arith.constant dense<0.000000e+00> : vector<7x7xf32>
    %242 = vector.multi_reduction <add>, %241, %cst_84 [2] : vector<7x7x8xf32> to vector<7x7xf32>
    %243 = arith.addf %236, %242 : vector<7x7xf32>
    %244 = tpu.transpose %243, [1, 0] : vector<7x7xf32> -> vector<7x7xf32>
    %245 = arith.addf %230, %244 : vector<7x7xf32>
    %cst_85 = arith.constant 0.353553385 : f32
    %246 = vector.broadcast %cst_85 : f32 to vector<7x7xf32>
    %247 = arith.mulf %245, %246 : vector<7x7xf32>
    %cst_86 = arith.constant -3.40282347E+38 : f32
    %248 = vector.shape_cast %5 : vector<1x7xi1> to vector<1x7xi1>
    %249 = vector.broadcast %248 : vector<1x7xi1> to vector<7x7xi1>
    %250 = vector.broadcast %cst_86 : f32 to vector<7x7xf32>
    %251 = arith.select %249, %250, %247 : vector<7x7xi1>, vector<7x7xf32>
    %cst_87 = arith.constant dense<0xFF800000> : vector<7xf32>
    %252 = vector.multi_reduction <maximumf>, %251, %cst_87 [1] : vector<7x7xf32> to vector<7xf32>
    %253 = vector.shape_cast %252 : vector<7xf32> to vector<7x1xf32>
    %254 = vector.broadcast %253 : vector<7x1xf32> to vector<7x7xf32>
    %255 = arith.subf %251, %254 : vector<7x7xf32>
    %256 = math.exp %255 : vector<7x7xf32>
    %cst_88 = arith.constant dense<0.000000e+00> : vector<7xf32>
    %257 = vector.multi_reduction <add>, %256, %cst_88 [1] : vector<7x7xf32> to vector<7xf32>
    %258 = vector.shape_cast %257 : vector<7xf32> to vector<7x1xf32>
    %259 = tpu.reciprocal %258 {approx = true} : vector<7x1xf32> -> vector<7x1xf32>
    %260 = vector.broadcast %259 : vector<7x1xf32> to vector<7x7xf32>
    %261 = arith.mulf %256, %260 : vector<7x7xf32>
    %cst_89 = arith.constant 0.000000e+00 : f32
    %262 = vector.shape_cast %5 : vector<1x7xi1> to vector<1x7xi1>
    %263 = vector.broadcast %262 : vector<1x7xi1> to vector<7x7xi1>
    %264 = vector.broadcast %cst_89 : f32 to vector<7x7xf32>
    %265 = arith.select %263, %264, %261 : vector<7x7xi1>, vector<7x7xf32>
    %266 = vector.extract_strided_slice %80 {offsets = [0, 24], sizes = [7, 8], strides = [1, 1]} : vector<7x32xf32> to vector<7x8xf32>
    %cst_90 = arith.constant dense<0.000000e+00> : vector<7x8xf32>
    %267 = tpu.matmul %265, %266, %cst_90 {dimension_numbers = #tpu.dot_dimension_numbers<[1], [0], [0], [1], [0, 0, 1, 1], [], []>} : vector<7x7xf32>, vector<7x8xf32>, vector<7x8xf32> -> vector<7x8xf32>
    %268 = vector.extract_strided_slice %97 {offsets = [24, 0], sizes = [8, 32], strides = [1, 1]} : vector<32x32xf32> to vector<8x32xf32>
    %cst_91 = arith.constant dense<0.000000e+00> : vector<7x32xf32>
    %269 = tpu.matmul %267, %268, %cst_91 {dimension_numbers = #tpu.dot_dimension_numbers<[1], [0], [0], [1], [0, 0, 1, 1], [], []>} : vector<7x8xf32>, vector<8x32xf32>, vector<7x32xf32> -> vector<7x32xf32>
    %270 = arith.addf %227, %269 : vector<7x32xf32>
    %271 = arith.addf %50, %270 : vector<7x32xf32>
    %c0_92 = arith.constant 0 : index
    %c0_93 = arith.constant 0 : index
    %272 = vector.load %arg16[%c0_92, %c0_93] : memref<1x32xf32, #tpu.memory_space<vmem>>, vector<1x32xf32>
    %273 = vector.broadcast %272 : vector<1x32xf32> to vector<7x32xf32>
    %274 = arith.addf %271, %273 : vector<7x32xf32>
    %cst_94 = arith.constant dense<0.000000e+00> : vector<7xf32>
    %275 = vector.multi_reduction <add>, %274, %cst_94 [1] : vector<7x32xf32> to vector<7xf32>
    %276 = vector.shape_cast %275 : vector<7xf32> to vector<7x1xf32>
    %cst_95 = arith.constant 3.200000e+01 : f32
    %277 = vector.broadcast %cst_95 : f32 to vector<7x1xf32>
    %278 = arith.divf %276, %277 : vector<7x1xf32>
    %279 = vector.broadcast %278 : vector<7x1xf32> to vector<7x32xf32>
    %280 = arith.subf %274, %279 : vector<7x32xf32>
    %281 = arith.mulf %280, %280 : vector<7x32xf32>
    %cst_96 = arith.constant dense<0.000000e+00> : vector<7xf32>
    %282 = vector.multi_reduction <add>, %281, %cst_96 [1] : vector<7x32xf32> to vector<7xf32>
    %283 = vector.shape_cast %282 : vector<7xf32> to vector<7x1xf32>
    %cst_97 = arith.constant 3.200000e+01 : f32
    %284 = vector.broadcast %cst_97 : f32 to vector<7x1xf32>
    %285 = arith.divf %283, %284 : vector<7x1xf32>
    %cst_98 = arith.constant 9.99999996E-13 : f32
    %286 = vector.broadcast %cst_98 : f32 to vector<7x1xf32>
    %287 = arith.addf %285, %286 : vector<7x1xf32>
    %288 = math.rsqrt %287 : vector<7x1xf32>
    %289 = vector.broadcast %288 : vector<7x1xf32> to vector<7x32xf32>
    %290 = arith.mulf %280, %289 : vector<7x32xf32>
    %291 = vector.extract_strided_slice %6 {offsets = [2, 0], sizes = [1, 32], strides = [1, 1]} : vector<5x32xf32> to vector<1x32xf32>
    %292 = vector.broadcast %291 : vector<1x32xf32> to vector<7x32xf32>
    %293 = arith.mulf %290, %292 : vector<7x32xf32>
    %294 = vector.extract_strided_slice %7 {offsets = [2, 0], sizes = [1, 32], strides = [1, 1]} : vector<5x32xf32> to vector<1x32xf32>
    %295 = vector.broadcast %294 : vector<1x32xf32> to vector<7x32xf32>
    %296 = arith.addf %293, %295 : vector<7x32xf32>
    %c0_99 = arith.constant 0 : index
    %c0_100 = arith.constant 0 : index
    %297 = vector.load %arg17[%c0_99, %c0_100] : memref<32x64xf32, #tpu.memory_space<vmem>>, vector<32x64xf32>
    %cst_101 = arith.constant dense<0.000000e+00> : vector<7x64xf32>
    %298 = tpu.matmul %296, %297, %cst_101 {dimension_numbers = #tpu.dot_dimension_numbers<[1], [0], [0], [1], [0, 0, 1, 1], [], []>} : vector<7x32xf32>, vector<32x64xf32>, vector<7x64xf32> -> vector<7x64xf32>
    %c0_102 = arith.constant 0 : index
    %c0_103 = arith.constant 0 : index
    %299 = vector.load %arg18[%c0_102, %c0_103] : memref<1x64xf32, #tpu.memory_space<vmem>>, vector<1x64xf32>
    %300 = vector.broadcast %299 : vector<1x64xf32> to vector<7x64xf32>
    %301 = arith.addf %298, %300 : vector<7x64xf32>
    %302 = vector.extract_strided_slice %301 {offsets = [0, 0], sizes = [7, 32], strides = [1, 1]} : vector<7x64xf32> to vector<7x32xf32>
    %303 = vector.extract_strided_slice %301 {offsets = [0, 32], sizes = [7, 32], strides = [1, 1]} : vector<7x64xf32> to vector<7x32xf32>
    %cst_104 = arith.constant 0.000000e+00 : f32
    %304 = vector.broadcast %cst_104 : f32 to vector<7x32xf32>
    %305 = arith.subf %304, %303 : vector<7x32xf32>
    %306 = math.exp %305 : vector<7x32xf32>
    %cst_105 = arith.constant 1.000000e+00 : f32
    %307 = vector.broadcast %cst_105 : f32 to vector<7x32xf32>
    %308 = arith.addf %307, %306 : vector<7x32xf32>
    %cst_106 = arith.constant 1.000000e+00 : f32
    %309 = vector.broadcast %cst_106 : f32 to vector<7x32xf32>
    %310 = arith.divf %309, %308 : vector<7x32xf32>
    %311 = arith.mulf %302, %310 : vector<7x32xf32>
    %312 = vector.shape_cast %311 : vector<7x32xf32> to vector<1x7x32xf32>
    %c0_107 = arith.constant 0 : index
    %c0_108 = arith.constant 0 : index
    %c0_109 = arith.constant 0 : index
    %313 = vector.load %arg19[%c0_107, %c0_108, %c0_109] : memref<7x7x32xf32, #tpu.memory_space<vmem>>, vector<7x7x32xf32>
    %314 = vector.broadcast %312 : vector<1x7x32xf32> to vector<7x7x32xf32>
    %315 = arith.mulf %314, %313 : vector<7x7x32xf32>
    %cst_110 = arith.constant dense<0.000000e+00> : vector<7x32xf32>
    %316 = vector.multi_reduction <add>, %315, %cst_110 [1] : vector<7x7x32xf32> to vector<7x32xf32>
    %c0_111 = arith.constant 0 : index
    %c0_112 = arith.constant 0 : index
    %317 = vector.load %arg20[%c0_111, %c0_112] : memref<1x32xf32, #tpu.memory_space<vmem>>, vector<1x32xf32>
    %318 = vector.broadcast %317 : vector<1x32xf32> to vector<7x32xf32>
    %319 = arith.mulf %316, %318 : vector<7x32xf32>
    %c0_113 = arith.constant 0 : index
    %c0_114 = arith.constant 0 : index
    %320 = vector.load %arg21[%c0_113, %c0_114] : memref<1x32xf32, #tpu.memory_space<vmem>>, vector<1x32xf32>
    %321 = vector.broadcast %320 : vector<1x32xf32> to vector<7x32xf32>
    %322 = arith.addf %319, %321 : vector<7x32xf32>
    %cst_115 = arith.constant 0.000000e+00 : f32
    %323 = vector.broadcast %cst_115 : f32 to vector<7x32xf32>
    %324 = arith.subf %323, %322 : vector<7x32xf32>
    %325 = math.exp %324 : vector<7x32xf32>
    %cst_116 = arith.constant 1.000000e+00 : f32
    %326 = vector.broadcast %cst_116 : f32 to vector<7x32xf32>
    %327 = arith.addf %326, %325 : vector<7x32xf32>
    %cst_117 = arith.constant 1.000000e+00 : f32
    %328 = vector.broadcast %cst_117 : f32 to vector<7x32xf32>
    %329 = arith.divf %328, %327 : vector<7x32xf32>
    %330 = arith.mulf %322, %329 : vector<7x32xf32>
    %c0_118 = arith.constant 0 : index
    %c0_119 = arith.constant 0 : index
    %331 = vector.load %arg22[%c0_118, %c0_119] : memref<32x32xf32, #tpu.memory_space<vmem>>, vector<32x32xf32>
    %cst_120 = arith.constant dense<0.000000e+00> : vector<7x32xf32>
    %332 = tpu.matmul %330, %331, %cst_120 {dimension_numbers = #tpu.dot_dimension_numbers<[1], [0], [0], [1], [0, 0, 1, 1], [], []>} : vector<7x32xf32>, vector<32x32xf32>, vector<7x32xf32> -> vector<7x32xf32>
    %333 = arith.addf %274, %332 : vector<7x32xf32>
    %c0_121 = arith.constant 0 : index
    %c0_122 = arith.constant 0 : index
    %334 = vector.load %arg23[%c0_121, %c0_122] : memref<1x32xf32, #tpu.memory_space<vmem>>, vector<1x32xf32>
    %335 = vector.broadcast %334 : vector<1x32xf32> to vector<7x32xf32>
    %336 = arith.addf %333, %335 : vector<7x32xf32>
    %cst_123 = arith.constant dense<0.000000e+00> : vector<7xf32>
    %337 = vector.multi_reduction <add>, %336, %cst_123 [1] : vector<7x32xf32> to vector<7xf32>
    %338 = vector.shape_cast %337 : vector<7xf32> to vector<7x1xf32>
    %cst_124 = arith.constant 3.200000e+01 : f32
    %339 = vector.broadcast %cst_124 : f32 to vector<7x1xf32>
    %340 = arith.divf %338, %339 : vector<7x1xf32>
    %341 = vector.broadcast %340 : vector<7x1xf32> to vector<7x32xf32>
    %342 = arith.subf %336, %341 : vector<7x32xf32>
    %343 = arith.mulf %342, %342 : vector<7x32xf32>
    %cst_125 = arith.constant dense<0.000000e+00> : vector<7xf32>
    %344 = vector.multi_reduction <add>, %343, %cst_125 [1] : vector<7x32xf32> to vector<7xf32>
    %345 = vector.shape_cast %344 : vector<7xf32> to vector<7x1xf32>
    %cst_126 = arith.constant 3.200000e+01 : f32
    %346 = vector.broadcast %cst_126 : f32 to vector<7x1xf32>
    %347 = arith.divf %345, %346 : vector<7x1xf32>
    %cst_127 = arith.constant 9.99999996E-13 : f32
    %348 = vector.broadcast %cst_127 : f32 to vector<7x1xf32>
    %349 = arith.addf %347, %348 : vector<7x1xf32>
    %350 = math.rsqrt %349 : vector<7x1xf32>
    %351 = vector.broadcast %350 : vector<7x1xf32> to vector<7x32xf32>
    %352 = arith.mulf %342, %351 : vector<7x32xf32>
    %353 = vector.extract_strided_slice %6 {offsets = [3, 0], sizes = [1, 32], strides = [1, 1]} : vector<5x32xf32> to vector<1x32xf32>
    %354 = vector.broadcast %353 : vector<1x32xf32> to vector<7x32xf32>
    %355 = arith.mulf %352, %354 : vector<7x32xf32>
    %356 = vector.extract_strided_slice %7 {offsets = [3, 0], sizes = [1, 32], strides = [1, 1]} : vector<5x32xf32> to vector<1x32xf32>
    %357 = vector.broadcast %356 : vector<1x32xf32> to vector<7x32xf32>
    %358 = arith.addf %355, %357 : vector<7x32xf32>
    %c0_128 = arith.constant 0 : index
    %c0_129 = arith.constant 0 : index
    %359 = vector.load %arg24[%c0_128, %c0_129] : memref<32x64xf32, #tpu.memory_space<vmem>>, vector<32x64xf32>
    %cst_130 = arith.constant dense<0.000000e+00> : vector<7x64xf32>
    %360 = tpu.matmul %358, %359, %cst_130 {dimension_numbers = #tpu.dot_dimension_numbers<[1], [0], [0], [1], [0, 0, 1, 1], [], []>} : vector<7x32xf32>, vector<32x64xf32>, vector<7x64xf32> -> vector<7x64xf32>
    %c0_131 = arith.constant 0 : index
    %c0_132 = arith.constant 0 : index
    %361 = vector.load %arg25[%c0_131, %c0_132] : memref<1x64xf32, #tpu.memory_space<vmem>>, vector<1x64xf32>
    %362 = vector.broadcast %361 : vector<1x64xf32> to vector<7x64xf32>
    %363 = arith.addf %360, %362 : vector<7x64xf32>
    %cst_133 = arith.constant 0.000000e+00 : f32
    %364 = vector.broadcast %cst_133 : f32 to vector<7x64xf32>
    %365 = arith.subf %364, %363 : vector<7x64xf32>
    %366 = math.exp %365 : vector<7x64xf32>
    %cst_134 = arith.constant 1.000000e+00 : f32
    %367 = vector.broadcast %cst_134 : f32 to vector<7x64xf32>
    %368 = arith.addf %367, %366 : vector<7x64xf32>
    %cst_135 = arith.constant 1.000000e+00 : f32
    %369 = vector.broadcast %cst_135 : f32 to vector<7x64xf32>
    %370 = arith.divf %369, %368 : vector<7x64xf32>
    %371 = arith.mulf %363, %370 : vector<7x64xf32>
    %c0_136 = arith.constant 0 : index
    %c0_137 = arith.constant 0 : index
    %372 = vector.load %arg26[%c0_136, %c0_137] : memref<64x32xf32, #tpu.memory_space<vmem>>, vector<64x32xf32>
    %cst_138 = arith.constant dense<0.000000e+00> : vector<7x32xf32>
    %373 = tpu.matmul %371, %372, %cst_138 {dimension_numbers = #tpu.dot_dimension_numbers<[1], [0], [0], [1], [0, 0, 1, 1], [], []>} : vector<7x64xf32>, vector<64x32xf32>, vector<7x32xf32> -> vector<7x32xf32>
    %c0_139 = arith.constant 0 : index
    %c0_140 = arith.constant 0 : index
    %374 = vector.load %arg27[%c0_139, %c0_140] : memref<1x32xf32, #tpu.memory_space<vmem>>, vector<1x32xf32>
    %375 = vector.broadcast %374 : vector<1x32xf32> to vector<7x32xf32>
    %376 = arith.addf %373, %375 : vector<7x32xf32>
    %cst_141 = arith.constant 5.000000e-01 : f32
    %377 = vector.broadcast %cst_141 : f32 to vector<7x32xf32>
    %378 = arith.mulf %377, %376 : vector<7x32xf32>
    %379 = arith.addf %336, %378 : vector<7x32xf32>
    %cst_142 = arith.constant dense<0.000000e+00> : vector<7xf32>
    %380 = vector.multi_reduction <add>, %379, %cst_142 [1] : vector<7x32xf32> to vector<7xf32>
    %381 = vector.shape_cast %380 : vector<7xf32> to vector<7x1xf32>
    %cst_143 = arith.constant 3.200000e+01 : f32
    %382 = vector.broadcast %cst_143 : f32 to vector<7x1xf32>
    %383 = arith.divf %381, %382 : vector<7x1xf32>
    %384 = vector.broadcast %383 : vector<7x1xf32> to vector<7x32xf32>
    %385 = arith.subf %379, %384 : vector<7x32xf32>
    %386 = arith.mulf %385, %385 : vector<7x32xf32>
    %cst_144 = arith.constant dense<0.000000e+00> : vector<7xf32>
    %387 = vector.multi_reduction <add>, %386, %cst_144 [1] : vector<7x32xf32> to vector<7xf32>
    %388 = vector.shape_cast %387 : vector<7xf32> to vector<7x1xf32>
    %cst_145 = arith.constant 3.200000e+01 : f32
    %389 = vector.broadcast %cst_145 : f32 to vector<7x1xf32>
    %390 = arith.divf %388, %389 : vector<7x1xf32>
    %cst_146 = arith.constant 9.99999996E-13 : f32
    %391 = vector.broadcast %cst_146 : f32 to vector<7x1xf32>
    %392 = arith.addf %390, %391 : vector<7x1xf32>
    %393 = math.rsqrt %392 : vector<7x1xf32>
    %394 = vector.broadcast %393 : vector<7x1xf32> to vector<7x32xf32>
    %395 = arith.mulf %385, %394 : vector<7x32xf32>
    %396 = vector.extract_strided_slice %6 {offsets = [4, 0], sizes = [1, 32], strides = [1, 1]} : vector<5x32xf32> to vector<1x32xf32>
    %397 = vector.broadcast %396 : vector<1x32xf32> to vector<7x32xf32>
    %398 = arith.mulf %395, %397 : vector<7x32xf32>
    %399 = vector.extract_strided_slice %7 {offsets = [4, 0], sizes = [1, 32], strides = [1, 1]} : vector<5x32xf32> to vector<1x32xf32>
    %400 = vector.broadcast %399 : vector<1x32xf32> to vector<7x32xf32>
    %401 = arith.addf %398, %400 : vector<7x32xf32>
    %c0_147 = arith.constant 0 : index
    %c0_148 = arith.constant 0 : index
    %c0_149 = arith.constant 0 : index
    %402 = vector.load %arg28[%c0_147, %c0_148, %c0_149] : memref<1x7x32xf32, #tpu.memory_space<vmem>>, vector<1x7x32xf32>
    %403 = vector.shape_cast %402 : vector<1x7x32xf32> to vector<7x32xf32>
    %404 = vector.shape_cast %401 : vector<7x32xf32> to vector<1x7x32xf32>
    tpu.vector_store %arg28[%c0_147, %c0_148, %c0_149], %404 {strides = array<i32>} : memref<1x7x32xf32, #tpu.memory_space<vmem>>, vector<1x7x32xf32>,
    return
  }
  func.func @transform_0(%arg0: i32) -> (i32, i32, i32) {
    %c0_i32 = arith.constant 0 : i32
    %c0_i32_0 = arith.constant 0 : i32
    %c0_i32_1 = arith.constant 0 : i32
    return %arg0, %c0_i32, %c0_i32_0 : i32, i32, i32
  }
  func.func @transform_1(%arg0: i32) -> (i32, i32, i32) {
    %c0_i32 = arith.constant 0 : i32
    %c0_i32_0 = arith.constant 0 : i32
    %c0_i32_1 = arith.constant 0 : i32
    return %arg0, %c0_i32, %c0_i32_0 : i32, i32, i32
  }
  func.func @transform_2(%arg0: i32) -> (i32, i32) {
    %c0_i32 = arith.constant 0 : i32
    %c0_i32_0 = arith.constant 0 : i32
    %c0_i32_1 = arith.constant 0 : i32
    return %c0_i32, %c0_i32_0 : i32, i32
  }
  func.func @transform_3(%arg0: i32) -> (i32, i32) {
    %c0_i32 = arith.constant 0 : i32
    %c0_i32_0 = arith.constant 0 : i32
    %c0_i32_1 = arith.constant 0 : i32
    return %c0_i32, %c0_i32_0 : i32, i32
  }
  func.func @transform_4(%arg0: i32) -> (i32, i32) {
    %c0_i32 = arith.constant 0 : i32
    %c0_i32_0 = arith.constant 0 : i32
    %c0_i32_1 = arith.constant 0 : i32
    return %c0_i32, %c0_i32_0 : i32, i32
  }
  func.func @transform_5(%arg0: i32) -> (i32, i32) {
    %c0_i32 = arith.constant 0 : i32
    %c0_i32_0 = arith.constant 0 : i32
    %c0_i32_1 = arith.constant 0 : i32
    return %c0_i32, %c0_i32_0 : i32, i32
  }
  func.func @transform_6(%arg0: i32) -> (i32, i32) {
    %c0_i32 = arith.constant 0 : i32
    %c0_i32_0 = arith.constant 0 : i32
    %c0_i32_1 = arith.constant 0 : i32
    return %c0_i32, %c0_i32_0 : i32, i32
  }
  func.func @transform_7(%arg0: i32) -> (i32, i32) {
    %c0_i32 = arith.constant 0 : i32
    %c0_i32_0 = arith.constant 0 : i32
    %c0_i32_1 = arith.constant 0 : i32
    return %c0_i32, %c0_i32_0 : i32, i32
  }
  func.func @transform_8(%arg0: i32) -> (i32, i32) {
    %c0_i32 = arith.constant 0 : i32
    %c0_i32_0 = arith.constant 0 : i32
    %c0_i32_1 = arith.constant 0 : i32
    return %c0_i32, %c0_i32_0 : i32, i32
  }
  func.func @transform_9(%arg0: i32) -> (i32, i32) {
    %c0_i32 = arith.constant 0 : i32
    %c0_i32_0 = arith.constant 0 : i32
    %c0_i32_1 = arith.constant 0 : i32
    return %c0_i32, %c0_i32_0 : i32, i32
  }
  func.func @transform_10(%arg0: i32) -> (i32, i32) {
    %c0_i32 = arith.constant 0 : i32
    %c0_i32_0 = arith.constant 0 : i32
    %c0_i32_1 = arith.constant 0 : i32
    return %c0_i32, %c0_i32_0 : i32, i32
  }
  func.func @transform_11(%arg0: i32) -> (i32, i32) {
    %c0_i32 = arith.constant 0 : i32
    %c0_i32_0 = arith.constant 0 : i32
    %c0_i32_1 = arith.constant 0 : i32
    return %c0_i32, %c0_i32_0 : i32, i32
  }
  func.func @transform_12(%arg0: i32) -> (i32, i32, i32) {
    %c0_i32 = arith.constant 0 : i32
    %c0_i32_0 = arith.constant 0 : i32
    %c0_i32_1 = arith.constant 0 : i32
    %c0_i32_2 = arith.constant 0 : i32
    return %c0_i32, %c0_i32_0, %c0_i32_1 : i32, i32, i32
  }
  func.func @transform_13(%arg0: i32) -> (i32, i32, i32) {
    %c0_i32 = arith.constant 0 : i32
    %c0_i32_0 = arith.constant 0 : i32
    %c0_i32_1 = arith.constant 0 : i32
    %c0_i32_2 = arith.constant 0 : i32
    return %c0_i32, %c0_i32_0, %c0_i32_1 : i32, i32, i32
  }
  func.func @transform_14(%arg0: i32) -> (i32, i32) {
    %c0_i32 = arith.constant 0 : i32
    %c0_i32_0 = arith.constant 0 : i32
    %c0_i32_1 = arith.constant 0 : i32
    return %c0_i32, %c0_i32_0 : i32, i32
  }
  func.func @transform_15(%arg0: i32) -> (i32, i32) {
    %c0_i32 = arith.constant 0 : i32
    %c0_i32_0 = arith.constant 0 : i32
    %c0_i32_1 = arith.constant 0 : i32
    return %c0_i32, %c0_i32_0 : i32, i32
  }
  func.func @transform_16(%arg0: i32) -> (i32, i32) {
    %c0_i32 = arith.constant 0 : i32
    %c0_i32_0 = arith.constant 0 : i32
    %c0_i32_1 = arith.constant 0 : i32
    return %c0_i32, %c0_i32_0 : i32, i32
  }
  func.func @transform_17(%arg0: i32) -> (i32, i32) {
    %c0_i32 = arith.constant 0 : i32
    %c0_i32_0 = arith.constant 0 : i32
    %c0_i32_1 = arith.constant 0 : i32
    return %c0_i32, %c0_i32_0 : i32, i32
  }
  func.func @transform_18(%arg0: i32) -> (i32, i32, i32) {
    %c0_i32 = arith.constant 0 : i32
    %c0_i32_0 = arith.constant 0 : i32
    %c0_i32_1 = arith.constant 0 : i32
    %c0_i32_2 = arith.constant 0 : i32
    return %c0_i32, %c0_i32_0, %c0_i32_1 : i32, i32, i32
  }
  func.func @transform_19(%arg0: i32) -> (i32, i32) {
    %c0_i32 = arith.constant 0 : i32
    %c0_i32_0 = arith.constant 0 : i32
    %c0_i32_1 = arith.constant 0 : i32
    return %c0_i32, %c0_i32_0 : i32, i32
  }
  func.func @transform_20(%arg0: i32) -> (i32, i32) {
    %c0_i32 = arith.constant 0 : i32
    %c0_i32_0 = arith.constant 0 : i32
    %c0_i32_1 = arith.constant 0 : i32
    return %c0_i32, %c0_i32_0 : i32, i32
  }
  func.func @transform_21(%arg0: i32) -> (i32, i32) {
    %c0_i32 = arith.constant 0 : i32
    %c0_i32_0 = arith.constant 0 : i32
    %c0_i32_1 = arith.constant 0 : i32
    return %c0_i32, %c0_i32_0 : i32, i32
  }
  func.func @transform_22(%arg0: i32) -> (i32, i32) {
    %c0_i32 = arith.constant 0 : i32
    %c0_i32_0 = arith.constant 0 : i32
    %c0_i32_1 = arith.constant 0 : i32
    return %c0_i32, %c0_i32_0 : i32, i32
  }
  func.func @transform_23(%arg0: i32) -> (i32, i32) {
    %c0_i32 = arith.constant 0 : i32
    %c0_i32_0 = arith.constant 0 : i32
    %c0_i32_1 = arith.constant 0 : i32
    return %c0_i32, %c0_i32_0 : i32, i32
  }
  func.func @transform_24(%arg0: i32) -> (i32, i32) {
    %c0_i32 = arith.constant 0 : i32
    %c0_i32_0 = arith.constant 0 : i32
    %c0_i32_1 = arith.constant 0 : i32
    return %c0_i32, %c0_i32_0 : i32, i32
  }
  func.func @transform_25(%arg0: i32) -> (i32, i32) {
    %c0_i32 = arith.constant 0 : i32
    %c0_i32_0 = arith.constant 0 : i32
    %c0_i32_1 = arith.constant 0 : i32
    return %c0_i32, %c0_i32_0 : i32, i32
  }
  func.func @transform_26(%arg0: i32) -> (i32, i32) {
    %c0_i32 = arith.constant 0 : i32
    %c0_i32_0 = arith.constant 0 : i32
    %c0_i32_1 = arith.constant 0 : i32
    return %c0_i32, %c0_i32_0 : i32, i32
  }
  func.func @transform_27(%arg0: i32) -> (i32, i32, i32) {
    %c0_i32 = arith.constant 0 : i32
    %c0_i32_0 = arith.constant 0 : i32
    %c0_i32_1 = arith.constant 0 : i32
    return %arg0, %c0_i32, %c0_i32_0 : i32, i32, i32
  }
}

module attributes {stable_mosaic.version = 11 : i64} {
  func.func @_block_kernel(%arg0: i32, %arg1: memref<1x7x32xf32, #tpu.memory_space<vmem>>, %arg2: memref<1x1x7xf32, #tpu.memory_space<vmem>>, %arg3: memref<6x32xf32, #tpu.memory_space<vmem>>, %arg4: memref<6x32xf32, #tpu.memory_space<vmem>>, %arg5: memref<32x64xf32, #tpu.memory_space<vmem>>, %arg6: memref<1x64xf32, #tpu.memory_space<vmem>>, %arg7: memref<64x32xf32, #tpu.memory_space<vmem>>, %arg8: memref<1x32xf32, #tpu.memory_space<vmem>>, %arg9: memref<32x96xf32, #tpu.memory_space<vmem>>, %arg10: memref<1x96xf32, #tpu.memory_space<vmem>>, %arg11: memref<1x32xf32, #tpu.memory_space<vmem>>, %arg12: memref<1x32xf32, #tpu.memory_space<vmem>>, %arg13: memref<7x7x32xf32, #tpu.memory_space<vmem>>, %arg14: memref<7x7x32xf32, #tpu.memory_space<vmem>>, %arg15: memref<32x32xf32, #tpu.memory_space<vmem>>, %arg16: memref<1x32xf32, #tpu.memory_space<vmem>>, %arg17: memref<32x64xf32, #tpu.memory_space<vmem>>, %arg18: memref<1x64xf32, #tpu.memory_space<vmem>>, %arg19: memref<7x7x32xf32, #tpu.memory_space<vmem>>, %arg20: memref<1x32xf32, #tpu.memory_space<vmem>>, %arg21: memref<1x32xf32, #tpu.memory_space<vmem>>, %arg22: memref<32x32xf32, #tpu.memory_space<vmem>>, %arg23: memref<1x32xf32, #tpu.memory_space<vmem>>, %arg24: memref<32x64xf32, #tpu.memory_space<vmem>>, %arg25: memref<1x64xf32, #tpu.memory_space<vmem>>, %arg26: memref<64x32xf32, #tpu.memory_space<vmem>>, %arg27: memref<1x32xf32, #tpu.memory_space<vmem>>, %arg28: memref<1x7x32xf32, #tpu.memory_space<vmem>>) attributes {dimension_semantics = [#tpu.dimension_semantics<parallel>], iteration_bounds = array<i64: 2>, scalar_prefetch = 0 : i64, scratch_operands = 0 : i64, tpu.core_type = #tpu.core_type<tc>, window_params = [{transform_indices = @transform_0, window_bounds = array<i64: 1, 7, 32>}, {transform_indices = @transform_1, window_bounds = array<i64: 1, 1, 7>}, {pipeline_mode = #tpu.pipeline_mode<synchronous>, transform_indices = @transform_2, window_bounds = array<i64: 6, 32>}, {pipeline_mode = #tpu.pipeline_mode<synchronous>, transform_indices = @transform_3, window_bounds = array<i64: 6, 32>}, {pipeline_mode = #tpu.pipeline_mode<synchronous>, transform_indices = @transform_4, window_bounds = array<i64: 32, 64>}, {pipeline_mode = #tpu.pipeline_mode<synchronous>, transform_indices = @transform_5, window_bounds = array<i64: 1, 64>}, {pipeline_mode = #tpu.pipeline_mode<synchronous>, transform_indices = @transform_6, window_bounds = array<i64: 64, 32>}, {pipeline_mode = #tpu.pipeline_mode<synchronous>, transform_indices = @transform_7, window_bounds = array<i64: 1, 32>}, {pipeline_mode = #tpu.pipeline_mode<synchronous>, transform_indices = @transform_8, window_bounds = array<i64: 32, 96>}, {pipeline_mode = #tpu.pipeline_mode<synchronous>, transform_indices = @transform_9, window_bounds = array<i64: 1, 96>}, {pipeline_mode = #tpu.pipeline_mode<synchronous>, transform_indices = @transform_10, window_bounds = array<i64: 1, 32>}, {pipeline_mode = #tpu.pipeline_mode<synchronous>, transform_indices = @transform_11, window_bounds = array<i64: 1, 32>}, {pipeline_mode = #tpu.pipeline_mode<synchronous>, transform_indices = @transform_12, window_bounds = array<i64: 7, 7, 32>}, {pipeline_mode = #tpu.pipeline_mode<synchronous>, transform_indices = @transform_13, window_bounds = array<i64: 7, 7, 32>}, {pipeline_mode = #tpu.pipeline_mode<synchronous>, transform_indices = @transform_14, window_bounds = array<i64: 32, 32>}, {pipeline_mode = #tpu.pipeline_mode<synchronous>, transform_indices = @transform_15, window_bounds = array<i64: 1, 32>}, {pipeline_mode = #tpu.pipeline_mode<synchronous>, transform_indices = @transform_16, window_bounds = array<i64: 32, 64>}, {pipeline_mode = #tpu.pipeline_mode<synchronous>, transform_indices = @transform_17, window_bounds = array<i64: 1, 64>}, {pipeline_mode = #tpu.pipeline_mode<synchronous>, transform_indices = @transform_18, window_bounds = array<i64: 7, 7, 32>}, {pipeline_mode = #tpu.pipeline_mode<synchronous>, transform_indices = @transform_19, window_bounds = array<i64: 1, 32>}, {pipeline_mode = #tpu.pipeline_mode<synchronous>, transform_indices = @transform_20, window_bounds = array<i64: 1, 32>}, {pipeline_mode = #tpu.pipeline_mode<synchronous>, transform_indices = @transform_21, window_bounds = array<i64: 32, 32>}, {pipeline_mode = #tpu.pipeline_mode<synchronous>, transform_indices = @transform_22, window_bounds = array<i64: 1, 32>}, {pipeline_mode = #tpu.pipeline_mode<synchronous>, transform_indices = @transform_23, window_bounds = array<i64: 32, 64>}, {pipeline_mode = #tpu.pipeline_mode<synchronous>, transform_indices = @transform_24, window_bounds = array<i64: 1, 64>}, {pipeline_mode = #tpu.pipeline_mode<synchronous>, transform_indices = @transform_25, window_bounds = array<i64: 64, 32>}, {pipeline_mode = #tpu.pipeline_mode<synchronous>, transform_indices = @transform_26, window_bounds = array<i64: 1, 32>}, {transform_indices = @transform_27, window_bounds = array<i64: 1, 7, 32>}]} {
    %c0 = arith.constant 0 : index
    %c0_0 = arith.constant 0 : index
    %c0_1 = arith.constant 0 : index
    %0 = vector.load %arg1[%c0, %c0_0, %c0_1] : memref<1x7x32xf32, #tpu.memory_space<vmem>>, vector<1x7x32xf32>
    %1 = vector.shape_cast %0 : vector<1x7x32xf32> to vector<7x32xf32>
    %c0_2 = arith.constant 0 : index
    %c0_3 = arith.constant 0 : index
    %c0_4 = arith.constant 0 : index
    %2 = vector.load %arg2[%c0_2, %c0_3, %c0_4] : memref<1x1x7xf32, #tpu.memory_space<vmem>>, vector<1x1x7xf32>
    %3 = vector.shape_cast %2 : vector<1x1x7xf32> to vector<1x7xf32>
    %cst = arith.constant 5.000000e-01 : f32
    %4 = vector.broadcast %cst : f32 to vector<1x7xf32>
    %5 = arith.cmpf olt, %3, %4 : vector<1x7xf32>
    %c0_5 = arith.constant 0 : index
    %c0_6 = arith.constant 0 : index
    %6 = vector.load %arg3[%c0_5, %c0_6] : memref<6x32xf32, #tpu.memory_space<vmem>>, vector<6x32xf32>
    %c0_7 = arith.constant 0 : index
    %c0_8 = arith.constant 0 : index
    %7 = vector.load %arg4[%c0_7, %c0_8] : memref<6x32xf32, #tpu.memory_space<vmem>>, vector<6x32xf32>
    %cst_9 = arith.constant dense<0.000000e+00> : vector<7xf32>
    %8 = vector.multi_reduction <add>, %1, %cst_9 [1] : vector<7x32xf32> to vector<7xf32>
    %9 = vector.shape_cast %8 : vector<7xf32> to vector<7x1xf32>
    %cst_10 = arith.constant 3.200000e+01 : f32
    %10 = vector.broadcast %cst_10 : f32 to vector<7x1xf32>
    %11 = arith.divf %9, %10 : vector<7x1xf32>
    %12 = vector.broadcast %11 : vector<7x1xf32> to vector<7x32xf32>
    %13 = arith.subf %1, %12 : vector<7x32xf32>
    %14 = arith.mulf %13, %13 : vector<7x32xf32>
    %cst_11 = arith.constant dense<0.000000e+00> : vector<7xf32>
    %15 = vector.multi_reduction <add>, %14, %cst_11 [1] : vector<7x32xf32> to vector<7xf32>
    %16 = vector.shape_cast %15 : vector<7xf32> to vector<7x1xf32>
    %cst_12 = arith.constant 3.200000e+01 : f32
    %17 = vector.broadcast %cst_12 : f32 to vector<7x1xf32>
    %18 = arith.divf %16, %17 : vector<7x1xf32>
    %cst_13 = arith.constant 9.99999996E-13 : f32
    %19 = vector.broadcast %cst_13 : f32 to vector<7x1xf32>
    %20 = arith.addf %18, %19 : vector<7x1xf32>
    %21 = math.rsqrt %20 : vector<7x1xf32>
    %22 = vector.broadcast %21 : vector<7x1xf32> to vector<7x32xf32>
    %23 = arith.mulf %13, %22 : vector<7x32xf32>
    %24 = vector.extract_strided_slice %6 {offsets = [0, 0], sizes = [1, 32], strides = [1, 1]} : vector<6x32xf32> to vector<1x32xf32>
    %25 = vector.broadcast %24 : vector<1x32xf32> to vector<7x32xf32>
    %26 = arith.mulf %23, %25 : vector<7x32xf32>
    %27 = vector.extract_strided_slice %7 {offsets = [0, 0], sizes = [1, 32], strides = [1, 1]} : vector<6x32xf32> to vector<1x32xf32>
    %28 = vector.broadcast %27 : vector<1x32xf32> to vector<7x32xf32>
    %29 = arith.addf %26, %28 : vector<7x32xf32>
    %c0_14 = arith.constant 0 : index
    %c0_15 = arith.constant 0 : index
    %30 = vector.load %arg5[%c0_14, %c0_15] : memref<32x64xf32, #tpu.memory_space<vmem>>, vector<32x64xf32>
    %cst_16 = arith.constant dense<0.000000e+00> : vector<7x64xf32>
    %31 = tpu.matmul %29, %30, %cst_16 {dimension_numbers = #tpu.dot_dimension_numbers<[1], [0], [0], [1], [0, 0, 1, 1], [], []>} : vector<7x32xf32>, vector<32x64xf32>, vector<7x64xf32> -> vector<7x64xf32>
    %c0_17 = arith.constant 0 : index
    %c0_18 = arith.constant 0 : index
    %32 = vector.load %arg6[%c0_17, %c0_18] : memref<1x64xf32, #tpu.memory_space<vmem>>, vector<1x64xf32>
    %33 = vector.broadcast %32 : vector<1x64xf32> to vector<7x64xf32>
    %34 = arith.addf %31, %33 : vector<7x64xf32>
    %cst_19 = arith.constant 0.000000e+00 : f32
    %35 = vector.broadcast %cst_19 : f32 to vector<7x64xf32>
    %36 = arith.subf %35, %34 : vector<7x64xf32>
    %37 = math.exp %36 : vector<7x64xf32>
    %cst_20 = arith.constant 1.000000e+00 : f32
    %38 = vector.broadcast %cst_20 : f32 to vector<7x64xf32>
    %39 = arith.addf %38, %37 : vector<7x64xf32>
    %cst_21 = arith.constant 1.000000e+00 : f32
    %40 = vector.broadcast %cst_21 : f32 to vector<7x64xf32>
    %41 = arith.divf %40, %39 : vector<7x64xf32>
    %42 = arith.mulf %34, %41 : vector<7x64xf32>
    %c0_22 = arith.constant 0 : index
    %c0_23 = arith.constant 0 : index
    %43 = vector.load %arg7[%c0_22, %c0_23] : memref<64x32xf32, #tpu.memory_space<vmem>>, vector<64x32xf32>
    %cst_24 = arith.constant dense<0.000000e+00> : vector<7x32xf32>
    %44 = tpu.matmul %42, %43, %cst_24 {dimension_numbers = #tpu.dot_dimension_numbers<[1], [0], [0], [1], [0, 0, 1, 1], [], []>} : vector<7x64xf32>, vector<64x32xf32>, vector<7x32xf32> -> vector<7x32xf32>
    %c0_25 = arith.constant 0 : index
    %c0_26 = arith.constant 0 : index
    %45 = vector.load %arg8[%c0_25, %c0_26] : memref<1x32xf32, #tpu.memory_space<vmem>>, vector<1x32xf32>
    %46 = vector.broadcast %45 : vector<1x32xf32> to vector<7x32xf32>
    %47 = arith.addf %44, %46 : vector<7x32xf32>
    %cst_27 = arith.constant 5.000000e-01 : f32
    %48 = vector.broadcast %cst_27 : f32 to vector<7x32xf32>
    %49 = arith.mulf %48, %47 : vector<7x32xf32>
    %50 = arith.addf %1, %49 : vector<7x32xf32>
    %cst_28 = arith.constant dense<0.000000e+00> : vector<7xf32>
    %51 = vector.multi_reduction <add>, %50, %cst_28 [1] : vector<7x32xf32> to vector<7xf32>
    %52 = vector.shape_cast %51 : vector<7xf32> to vector<7x1xf32>
    %cst_29 = arith.constant 3.200000e+01 : f32
    %53 = vector.broadcast %cst_29 : f32 to vector<7x1xf32>
    %54 = arith.divf %52, %53 : vector<7x1xf32>
    %55 = vector.broadcast %54 : vector<7x1xf32> to vector<7x32xf32>
    %56 = arith.subf %50, %55 : vector<7x32xf32>
    %57 = arith.mulf %56, %56 : vector<7x32xf32>
    %cst_30 = arith.constant dense<0.000000e+00> : vector<7xf32>
    %58 = vector.multi_reduction <add>, %57, %cst_30 [1] : vector<7x32xf32> to vector<7xf32>
    %59 = vector.shape_cast %58 : vector<7xf32> to vector<7x1xf32>
    %cst_31 = arith.constant 3.200000e+01 : f32
    %60 = vector.broadcast %cst_31 : f32 to vector<7x1xf32>
    %61 = arith.divf %59, %60 : vector<7x1xf32>
    %cst_32 = arith.constant 9.99999996E-13 : f32
    %62 = vector.broadcast %cst_32 : f32 to vector<7x1xf32>
    %63 = arith.addf %61, %62 : vector<7x1xf32>
    %64 = math.rsqrt %63 : vector<7x1xf32>
    %65 = vector.broadcast %64 : vector<7x1xf32> to vector<7x32xf32>
    %66 = arith.mulf %56, %65 : vector<7x32xf32>
    %67 = vector.extract_strided_slice %6 {offsets = [1, 0], sizes = [1, 32], strides = [1, 1]} : vector<6x32xf32> to vector<1x32xf32>
    %68 = vector.broadcast %67 : vector<1x32xf32> to vector<7x32xf32>
    %69 = arith.mulf %66, %68 : vector<7x32xf32>
    %70 = vector.extract_strided_slice %7 {offsets = [1, 0], sizes = [1, 32], strides = [1, 1]} : vector<6x32xf32> to vector<1x32xf32>
    %71 = vector.broadcast %70 : vector<1x32xf32> to vector<7x32xf32>
    %72 = arith.addf %69, %71 : vector<7x32xf32>
    %c0_33 = arith.constant 0 : index
    %c0_34 = arith.constant 0 : index
    %73 = vector.load %arg9[%c0_33, %c0_34] : memref<32x96xf32, #tpu.memory_space<vmem>>, vector<32x96xf32>
    %cst_35 = arith.constant dense<0.000000e+00> : vector<7x96xf32>
    %74 = tpu.matmul %72, %73, %cst_35 {dimension_numbers = #tpu.dot_dimension_numbers<[1], [0], [0], [1], [0, 0, 1, 1], [], []>} : vector<7x32xf32>, vector<32x96xf32>, vector<7x96xf32> -> vector<7x96xf32>
    %c0_36 = arith.constant 0 : index
    %c0_37 = arith.constant 0 : index
    %75 = vector.load %arg10[%c0_36, %c0_37] : memref<1x96xf32, #tpu.memory_space<vmem>>, vector<1x96xf32>
    %76 = vector.broadcast %75 : vector<1x96xf32> to vector<7x96xf32>
    %77 = arith.addf %74, %76 : vector<7x96xf32>
    %78 = vector.extract_strided_slice %77 {offsets = [0, 0], sizes = [7, 32], strides = [1, 1]} : vector<7x96xf32> to vector<7x32xf32>
    %79 = vector.extract_strided_slice %77 {offsets = [0, 32], sizes = [7, 32], strides = [1, 1]} : vector<7x96xf32> to vector<7x32xf32>
    %80 = vector.extract_strided_slice %77 {offsets = [0, 64], sizes = [7, 32], strides = [1, 1]} : vector<7x96xf32> to vector<7x32xf32>
    %c0_38 = arith.constant 0 : index
    %c0_39 = arith.constant 0 : index
    %81 = vector.load %arg11[%c0_38, %c0_39] : memref<1x32xf32, #tpu.memory_space<vmem>>, vector<1x32xf32>
    %82 = vector.broadcast %81 : vector<1x32xf32> to vector<7x32xf32>
    %83 = arith.addf %78, %82 : vector<7x32xf32>
    %c0_40 = arith.constant 0 : index
    %c0_41 = arith.constant 0 : index
    %84 = vector.load %arg12[%c0_40, %c0_41] : memref<1x32xf32, #tpu.memory_space<vmem>>, vector<1x32xf32>
    %85 = vector.broadcast %84 : vector<1x32xf32> to vector<7x32xf32>
    %86 = arith.addf %78, %85 : vector<7x32xf32>
    %87 = tpu.iota {dimensions = array<i32: 0>} : vector<7x7xi32>
    %88 = tpu.iota {dimensions = array<i32: 1>} : vector<7x7xi32>
    %c1_i32 = arith.constant 1 : i32
    %89 = vector.broadcast %c1_i32 : i32 to vector<7x7xi32>
    %90 = arith.addi %87, %89 : vector<7x7xi32>
    %91 = arith.cmpi eq, %88, %90 : vector<7x7xi32>
    %92 = arith.extui %91 : vector<7x7xi1> to vector<7x7xi32>
    %93 = arith.sitofp %92 : vector<7x7xi32> to vector<7x7xf32>
    %cst_42 = arith.constant dense<0.000000e+00> : vector<7x32xf32>
    %94 = tpu.matmul %93, %86, %cst_42 {dimension_numbers = #tpu.dot_dimension_numbers<[1], [0], [0], [1], [0, 0, 1, 1], [], []>} : vector<7x7xf32>, vector<7x32xf32>, vector<7x32xf32> -> vector<7x32xf32>
    %c0_43 = arith.constant 0 : index
    %c0_44 = arith.constant 0 : index
    %c0_45 = arith.constant 0 : index
    %95 = vector.load %arg13[%c0_43, %c0_44, %c0_45] : memref<7x7x32xf32, #tpu.memory_space<vmem>>, vector<7x7x32xf32>
    %c0_46 = arith.constant 0 : index
    %c0_47 = arith.constant 0 : index
    %c0_48 = arith.constant 0 : index
    %96 = vector.load %arg14[%c0_46, %c0_47, %c0_48] : memref<7x7x32xf32, #tpu.memory_space<vmem>>, vector<7x7x32xf32>
    %c0_49 = arith.constant 0 : index
    %c0_50 = arith.constant 0 : index
    %97 = vector.load %arg15[%c0_49, %c0_50] : memref<32x32xf32, #tpu.memory_space<vmem>>, vector<32x32xf32>
    %cst_51 = arith.constant 0.000000e+00 : f32
    %98 = vector.broadcast %cst_51 : f32 to vector<7x32xf32>
    %99 = vector.extract_strided_slice %83 {offsets = [0, 0], sizes = [7, 8], strides = [1, 1]} : vector<7x32xf32> to vector<7x8xf32>
    %100 = vector.extract_strided_slice %79 {offsets = [0, 0], sizes = [7, 8], strides = [1, 1]} : vector<7x32xf32> to vector<7x8xf32>
    "tpu.trace_start"() <{level = 10 : i32, message = "td,sd->ts"}> : () -> ()
    %cst_52 = arith.constant dense<0.000000e+00> : vector<7x7xf32>
    %101 = tpu.matmul %99, %100, %cst_52 {dimension_numbers = #tpu.dot_dimension_numbers<[1], [1], [0], [0], [0, 0, 1, 0], [], []>} : vector<7x8xf32>, vector<7x8xf32>, vector<7x7xf32> -> vector<7x7xf32>
    "tpu.trace_stop"() : () -> ()
    %102 = vector.extract_strided_slice %86 {offsets = [0, 0], sizes = [7, 8], strides = [1, 1]} : vector<7x32xf32> to vector<7x8xf32>
    %103 = vector.shape_cast %102 : vector<7x8xf32> to vector<1x7x8xf32>
    %104 = vector.extract_strided_slice %95 {offsets = [0, 0, 0], sizes = [7, 7, 8], strides = [1, 1, 1]} : vector<7x7x32xf32> to vector<7x7x8xf32>
    %105 = vector.broadcast %103 : vector<1x7x8xf32> to vector<7x7x8xf32>
    %106 = arith.mulf %105, %104 : vector<7x7x8xf32>
    %cst_53 = arith.constant dense<0.000000e+00> : vector<7x7xf32>
    %107 = vector.multi_reduction <add>, %106, %cst_53 [2] : vector<7x7x8xf32> to vector<7x7xf32>
    %108 = vector.extract_strided_slice %94 {offsets = [0, 0], sizes = [7, 8], strides = [1, 1]} : vector<7x32xf32> to vector<7x8xf32>
    %109 = vector.shape_cast %108 : vector<7x8xf32> to vector<1x7x8xf32>
    %110 = vector.extract_strided_slice %96 {offsets = [0, 0, 0], sizes = [7, 7, 8], strides = [1, 1, 1]} : vector<7x7x32xf32> to vector<7x7x8xf32>
    %111 = vector.broadcast %109 : vector<1x7x8xf32> to vector<7x7x8xf32>
    %112 = arith.mulf %111, %110 : vector<7x7x8xf32>
    %cst_54 = arith.constant dense<0.000000e+00> : vector<7x7xf32>
    %113 = vector.multi_reduction <add>, %112, %cst_54 [2] : vector<7x7x8xf32> to vector<7x7xf32>
    %114 = arith.addf %107, %113 : vector<7x7xf32>
    %115 = tpu.transpose %114, [1, 0] : vector<7x7xf32> -> vector<7x7xf32>
    %116 = arith.addf %101, %115 : vector<7x7xf32>
    %cst_55 = arith.constant 0.353553385 : f32
    %117 = vector.broadcast %cst_55 : f32 to vector<7x7xf32>
    %118 = arith.mulf %116, %117 : vector<7x7xf32>
    %cst_56 = arith.constant -3.40282347E+38 : f32
    %119 = vector.shape_cast %5 : vector<1x7xi1> to vector<1x7xi1>
    %120 = vector.broadcast %119 : vector<1x7xi1> to vector<7x7xi1>
    %121 = vector.broadcast %cst_56 : f32 to vector<7x7xf32>
    %122 = arith.select %120, %121, %118 : vector<7x7xi1>, vector<7x7xf32>
    %cst_57 = arith.constant dense<0xFF800000> : vector<7xf32>
    %123 = vector.multi_reduction <maximumf>, %122, %cst_57 [1] : vector<7x7xf32> to vector<7xf32>
    %124 = vector.shape_cast %123 : vector<7xf32> to vector<7x1xf32>
    %125 = vector.broadcast %124 : vector<7x1xf32> to vector<7x7xf32>
    %126 = arith.subf %122, %125 : vector<7x7xf32>
    %127 = math.exp %126 : vector<7x7xf32>
    %cst_58 = arith.constant dense<0.000000e+00> : vector<7xf32>
    %128 = vector.multi_reduction <add>, %127, %cst_58 [1] : vector<7x7xf32> to vector<7xf32>
    %129 = vector.shape_cast %128 : vector<7xf32> to vector<7x1xf32>
    %130 = tpu.reciprocal %129 {approx = true} : vector<7x1xf32> -> vector<7x1xf32>
    %131 = vector.broadcast %130 : vector<7x1xf32> to vector<7x7xf32>
    %132 = arith.mulf %127, %131 : vector<7x7xf32>
    %cst_59 = arith.constant 0.000000e+00 : f32
    %133 = vector.shape_cast %5 : vector<1x7xi1> to vector<1x7xi1>
    %134 = vector.broadcast %133 : vector<1x7xi1> to vector<7x7xi1>
    %135 = vector.broadcast %cst_59 : f32 to vector<7x7xf32>
    %136 = arith.select %134, %135, %132 : vector<7x7xi1>, vector<7x7xf32>
    %137 = vector.extract_strided_slice %80 {offsets = [0, 0], sizes = [7, 8], strides = [1, 1]} : vector<7x32xf32> to vector<7x8xf32>
    %cst_60 = arith.constant dense<0.000000e+00> : vector<7x8xf32>
    %138 = tpu.matmul %136, %137, %cst_60 {dimension_numbers = #tpu.dot_dimension_numbers<[1], [0], [0], [1], [0, 0, 1, 1], [], []>} : vector<7x7xf32>, vector<7x8xf32>, vector<7x8xf32> -> vector<7x8xf32>
    %139 = vector.extract_strided_slice %97 {offsets = [0, 0], sizes = [8, 32], strides = [1, 1]} : vector<32x32xf32> to vector<8x32xf32>
    %cst_61 = arith.constant dense<0.000000e+00> : vector<7x32xf32>
    %140 = tpu.matmul %138, %139, %cst_61 {dimension_numbers = #tpu.dot_dimension_numbers<[1], [0], [0], [1], [0, 0, 1, 1], [], []>} : vector<7x8xf32>, vector<8x32xf32>, vector<7x32xf32> -> vector<7x32xf32>
    %141 = arith.addf %98, %140 : vector<7x32xf32>
    %142 = vector.extract_strided_slice %83 {offsets = [0, 8], sizes = [7, 8], strides = [1, 1]} : vector<7x32xf32> to vector<7x8xf32>
    %143 = vector.extract_strided_slice %79 {offsets = [0, 8], sizes = [7, 8], strides = [1, 1]} : vector<7x32xf32> to vector<7x8xf32>
    "tpu.trace_start"() <{level = 10 : i32, message = "td,sd->ts"}> : () -> ()
    %cst_62 = arith.constant dense<0.000000e+00> : vector<7x7xf32>
    %144 = tpu.matmul %142, %143, %cst_62 {dimension_numbers = #tpu.dot_dimension_numbers<[1], [1], [0], [0], [0, 0, 1, 0], [], []>} : vector<7x8xf32>, vector<7x8xf32>, vector<7x7xf32> -> vector<7x7xf32>
    "tpu.trace_stop"() : () -> ()
    %145 = vector.extract_strided_slice %86 {offsets = [0, 8], sizes = [7, 8], strides = [1, 1]} : vector<7x32xf32> to vector<7x8xf32>
    %146 = vector.shape_cast %145 : vector<7x8xf32> to vector<1x7x8xf32>
    %147 = vector.extract_strided_slice %95 {offsets = [0, 0, 8], sizes = [7, 7, 8], strides = [1, 1, 1]} : vector<7x7x32xf32> to vector<7x7x8xf32>
    %148 = vector.broadcast %146 : vector<1x7x8xf32> to vector<7x7x8xf32>
    %149 = arith.mulf %148, %147 : vector<7x7x8xf32>
    %cst_63 = arith.constant dense<0.000000e+00> : vector<7x7xf32>
    %150 = vector.multi_reduction <add>, %149, %cst_63 [2] : vector<7x7x8xf32> to vector<7x7xf32>
    %151 = vector.extract_strided_slice %94 {offsets = [0, 8], sizes = [7, 8], strides = [1, 1]} : vector<7x32xf32> to vector<7x8xf32>
    %152 = vector.shape_cast %151 : vector<7x8xf32> to vector<1x7x8xf32>
    %153 = vector.extract_strided_slice %96 {offsets = [0, 0, 8], sizes = [7, 7, 8], strides = [1, 1, 1]} : vector<7x7x32xf32> to vector<7x7x8xf32>
    %154 = vector.broadcast %152 : vector<1x7x8xf32> to vector<7x7x8xf32>
    %155 = arith.mulf %154, %153 : vector<7x7x8xf32>
    %cst_64 = arith.constant dense<0.000000e+00> : vector<7x7xf32>
    %156 = vector.multi_reduction <add>, %155, %cst_64 [2] : vector<7x7x8xf32> to vector<7x7xf32>
    %157 = arith.addf %150, %156 : vector<7x7xf32>
    %158 = tpu.transpose %157, [1, 0] : vector<7x7xf32> -> vector<7x7xf32>
    %159 = arith.addf %144, %158 : vector<7x7xf32>
    %cst_65 = arith.constant 0.353553385 : f32
    %160 = vector.broadcast %cst_65 : f32 to vector<7x7xf32>
    %161 = arith.mulf %159, %160 : vector<7x7xf32>
    %cst_66 = arith.constant -3.40282347E+38 : f32
    %162 = vector.shape_cast %5 : vector<1x7xi1> to vector<1x7xi1>
    %163 = vector.broadcast %162 : vector<1x7xi1> to vector<7x7xi1>
    %164 = vector.broadcast %cst_66 : f32 to vector<7x7xf32>
    %165 = arith.select %163, %164, %161 : vector<7x7xi1>, vector<7x7xf32>
    %cst_67 = arith.constant dense<0xFF800000> : vector<7xf32>
    %166 = vector.multi_reduction <maximumf>, %165, %cst_67 [1] : vector<7x7xf32> to vector<7xf32>
    %167 = vector.shape_cast %166 : vector<7xf32> to vector<7x1xf32>
    %168 = vector.broadcast %167 : vector<7x1xf32> to vector<7x7xf32>
    %169 = arith.subf %165, %168 : vector<7x7xf32>
    %170 = math.exp %169 : vector<7x7xf32>
    %cst_68 = arith.constant dense<0.000000e+00> : vector<7xf32>
    %171 = vector.multi_reduction <add>, %170, %cst_68 [1] : vector<7x7xf32> to vector<7xf32>
    %172 = vector.shape_cast %171 : vector<7xf32> to vector<7x1xf32>
    %173 = tpu.reciprocal %172 {approx = true} : vector<7x1xf32> -> vector<7x1xf32>
    %174 = vector.broadcast %173 : vector<7x1xf32> to vector<7x7xf32>
    %175 = arith.mulf %170, %174 : vector<7x7xf32>
    %cst_69 = arith.constant 0.000000e+00 : f32
    %176 = vector.shape_cast %5 : vector<1x7xi1> to vector<1x7xi1>
    %177 = vector.broadcast %176 : vector<1x7xi1> to vector<7x7xi1>
    %178 = vector.broadcast %cst_69 : f32 to vector<7x7xf32>
    %179 = arith.select %177, %178, %175 : vector<7x7xi1>, vector<7x7xf32>
    %180 = vector.extract_strided_slice %80 {offsets = [0, 8], sizes = [7, 8], strides = [1, 1]} : vector<7x32xf32> to vector<7x8xf32>
    %cst_70 = arith.constant dense<0.000000e+00> : vector<7x8xf32>
    %181 = tpu.matmul %179, %180, %cst_70 {dimension_numbers = #tpu.dot_dimension_numbers<[1], [0], [0], [1], [0, 0, 1, 1], [], []>} : vector<7x7xf32>, vector<7x8xf32>, vector<7x8xf32> -> vector<7x8xf32>
    %182 = vector.extract_strided_slice %97 {offsets = [8, 0], sizes = [8, 32], strides = [1, 1]} : vector<32x32xf32> to vector<8x32xf32>
    %cst_71 = arith.constant dense<0.000000e+00> : vector<7x32xf32>
    %183 = tpu.matmul %181, %182, %cst_71 {dimension_numbers = #tpu.dot_dimension_numbers<[1], [0], [0], [1], [0, 0, 1, 1], [], []>} : vector<7x8xf32>, vector<8x32xf32>, vector<7x32xf32> -> vector<7x32xf32>
    %184 = arith.addf %141, %183 : vector<7x32xf32>
    %185 = vector.extract_strided_slice %83 {offsets = [0, 16], sizes = [7, 8], strides = [1, 1]} : vector<7x32xf32> to vector<7x8xf32>
    %186 = vector.extract_strided_slice %79 {offsets = [0, 16], sizes = [7, 8], strides = [1, 1]} : vector<7x32xf32> to vector<7x8xf32>
    "tpu.trace_start"() <{level = 10 : i32, message = "td,sd->ts"}> : () -> ()
    %cst_72 = arith.constant dense<0.000000e+00> : vector<7x7xf32>
    %187 = tpu.matmul %185, %186, %cst_72 {dimension_numbers = #tpu.dot_dimension_numbers<[1], [1], [0], [0], [0, 0, 1, 0], [], []>} : vector<7x8xf32>, vector<7x8xf32>, vector<7x7xf32> -> vector<7x7xf32>
    "tpu.trace_stop"() : () -> ()
    %188 = vector.extract_strided_slice %86 {offsets = [0, 16], sizes = [7, 8], strides = [1, 1]} : vector<7x32xf32> to vector<7x8xf32>
    %189 = vector.shape_cast %188 : vector<7x8xf32> to vector<1x7x8xf32>
    %190 = vector.extract_strided_slice %95 {offsets = [0, 0, 16], sizes = [7, 7, 8], strides = [1, 1, 1]} : vector<7x7x32xf32> to vector<7x7x8xf32>
    %191 = vector.broadcast %189 : vector<1x7x8xf32> to vector<7x7x8xf32>
    %192 = arith.mulf %191, %190 : vector<7x7x8xf32>
    %cst_73 = arith.constant dense<0.000000e+00> : vector<7x7xf32>
    %193 = vector.multi_reduction <add>, %192, %cst_73 [2] : vector<7x7x8xf32> to vector<7x7xf32>
    %194 = vector.extract_strided_slice %94 {offsets = [0, 16], sizes = [7, 8], strides = [1, 1]} : vector<7x32xf32> to vector<7x8xf32>
    %195 = vector.shape_cast %194 : vector<7x8xf32> to vector<1x7x8xf32>
    %196 = vector.extract_strided_slice %96 {offsets = [0, 0, 16], sizes = [7, 7, 8], strides = [1, 1, 1]} : vector<7x7x32xf32> to vector<7x7x8xf32>
    %197 = vector.broadcast %195 : vector<1x7x8xf32> to vector<7x7x8xf32>
    %198 = arith.mulf %197, %196 : vector<7x7x8xf32>
    %cst_74 = arith.constant dense<0.000000e+00> : vector<7x7xf32>
    %199 = vector.multi_reduction <add>, %198, %cst_74 [2] : vector<7x7x8xf32> to vector<7x7xf32>
    %200 = arith.addf %193, %199 : vector<7x7xf32>
    %201 = tpu.transpose %200, [1, 0] : vector<7x7xf32> -> vector<7x7xf32>
    %202 = arith.addf %187, %201 : vector<7x7xf32>
    %cst_75 = arith.constant 0.353553385 : f32
    %203 = vector.broadcast %cst_75 : f32 to vector<7x7xf32>
    %204 = arith.mulf %202, %203 : vector<7x7xf32>
    %cst_76 = arith.constant -3.40282347E+38 : f32
    %205 = vector.shape_cast %5 : vector<1x7xi1> to vector<1x7xi1>
    %206 = vector.broadcast %205 : vector<1x7xi1> to vector<7x7xi1>
    %207 = vector.broadcast %cst_76 : f32 to vector<7x7xf32>
    %208 = arith.select %206, %207, %204 : vector<7x7xi1>, vector<7x7xf32>
    %cst_77 = arith.constant dense<0xFF800000> : vector<7xf32>
    %209 = vector.multi_reduction <maximumf>, %208, %cst_77 [1] : vector<7x7xf32> to vector<7xf32>
    %210 = vector.shape_cast %209 : vector<7xf32> to vector<7x1xf32>
    %211 = vector.broadcast %210 : vector<7x1xf32> to vector<7x7xf32>
    %212 = arith.subf %208, %211 : vector<7x7xf32>
    %213 = math.exp %212 : vector<7x7xf32>
    %cst_78 = arith.constant dense<0.000000e+00> : vector<7xf32>
    %214 = vector.multi_reduction <add>, %213, %cst_78 [1] : vector<7x7xf32> to vector<7xf32>
    %215 = vector.shape_cast %214 : vector<7xf32> to vector<7x1xf32>
    %216 = tpu.reciprocal %215 {approx = true} : vector<7x1xf32> -> vector<7x1xf32>
    %217 = vector.broadcast %216 : vector<7x1xf32> to vector<7x7xf32>
    %218 = arith.mulf %213, %217 : vector<7x7xf32>
    %cst_79 = arith.constant 0.000000e+00 : f32
    %219 = vector.shape_cast %5 : vector<1x7xi1> to vector<1x7xi1>
    %220 = vector.broadcast %219 : vector<1x7xi1> to vector<7x7xi1>
    %221 = vector.broadcast %cst_79 : f32 to vector<7x7xf32>
    %222 = arith.select %220, %221, %218 : vector<7x7xi1>, vector<7x7xf32>
    %223 = vector.extract_strided_slice %80 {offsets = [0, 16], sizes = [7, 8], strides = [1, 1]} : vector<7x32xf32> to vector<7x8xf32>
    %cst_80 = arith.constant dense<0.000000e+00> : vector<7x8xf32>
    %224 = tpu.matmul %222, %223, %cst_80 {dimension_numbers = #tpu.dot_dimension_numbers<[1], [0], [0], [1], [0, 0, 1, 1], [], []>} : vector<7x7xf32>, vector<7x8xf32>, vector<7x8xf32> -> vector<7x8xf32>
    %225 = vector.extract_strided_slice %97 {offsets = [16, 0], sizes = [8, 32], strides = [1, 1]} : vector<32x32xf32> to vector<8x32xf32>
    %cst_81 = arith.constant dense<0.000000e+00> : vector<7x32xf32>
    %226 = tpu.matmul %224, %225, %cst_81 {dimension_numbers = #tpu.dot_dimension_numbers<[1], [0], [0], [1], [0, 0, 1, 1], [], []>} : vector<7x8xf32>, vector<8x32xf32>, vector<7x32xf32> -> vector<7x32xf32>
    %227 = arith.addf %184, %226 : vector<7x32xf32>
    %228 = vector.extract_strided_slice %83 {offsets = [0, 24], sizes = [7, 8], strides = [1, 1]} : vector<7x32xf32> to vector<7x8xf32>
    %229 = vector.extract_strided_slice %79 {offsets = [0, 24], sizes = [7, 8], strides = [1, 1]} : vector<7x32xf32> to vector<7x8xf32>
    "tpu.trace_start"() <{level = 10 : i32, message = "td,sd->ts"}> : () -> ()
    %cst_82 = arith.constant dense<0.000000e+00> : vector<7x7xf32>
    %230 = tpu.matmul %228, %229, %cst_82 {dimension_numbers = #tpu.dot_dimension_numbers<[1], [1], [0], [0], [0, 0, 1, 0], [], []>} : vector<7x8xf32>, vector<7x8xf32>, vector<7x7xf32> -> vector<7x7xf32>
    "tpu.trace_stop"() : () -> ()
    %231 = vector.extract_strided_slice %86 {offsets = [0, 24], sizes = [7, 8], strides = [1, 1]} : vector<7x32xf32> to vector<7x8xf32>
    %232 = vector.shape_cast %231 : vector<7x8xf32> to vector<1x7x8xf32>
    %233 = vector.extract_strided_slice %95 {offsets = [0, 0, 24], sizes = [7, 7, 8], strides = [1, 1, 1]} : vector<7x7x32xf32> to vector<7x7x8xf32>
    %234 = vector.broadcast %232 : vector<1x7x8xf32> to vector<7x7x8xf32>
    %235 = arith.mulf %234, %233 : vector<7x7x8xf32>
    %cst_83 = arith.constant dense<0.000000e+00> : vector<7x7xf32>
    %236 = vector.multi_reduction <add>, %235, %cst_83 [2] : vector<7x7x8xf32> to vector<7x7xf32>
    %237 = vector.extract_strided_slice %94 {offsets = [0, 24], sizes = [7, 8], strides = [1, 1]} : vector<7x32xf32> to vector<7x8xf32>
    %238 = vector.shape_cast %237 : vector<7x8xf32> to vector<1x7x8xf32>
    %239 = vector.extract_strided_slice %96 {offsets = [0, 0, 24], sizes = [7, 7, 8], strides = [1, 1, 1]} : vector<7x7x32xf32> to vector<7x7x8xf32>
    %240 = vector.broadcast %238 : vector<1x7x8xf32> to vector<7x7x8xf32>
    %241 = arith.mulf %240, %239 : vector<7x7x8xf32>
    %cst_84 = arith.constant dense<0.000000e+00> : vector<7x7xf32>
    %242 = vector.multi_reduction <add>, %241, %cst_84 [2] : vector<7x7x8xf32> to vector<7x7xf32>
    %243 = arith.addf %236, %242 : vector<7x7xf32>
    %244 = tpu.transpose %243, [1, 0] : vector<7x7xf32> -> vector<7x7xf32>
    %245 = arith.addf %230, %244 : vector<7x7xf32>
    %cst_85 = arith.constant 0.353553385 : f32
    %246 = vector.broadcast %cst_85 : f32 to vector<7x7xf32>
    %247 = arith.mulf %245, %246 : vector<7x7xf32>
    %cst_86 = arith.constant -3.40282347E+38 : f32
    %248 = vector.shape_cast %5 : vector<1x7xi1> to vector<1x7xi1>
    %249 = vector.broadcast %248 : vector<1x7xi1> to vector<7x7xi1>
    %250 = vector.broadcast %cst_86 : f32 to vector<7x7xf32>
    %251 = arith.select %249, %250, %247 : vector<7x7xi1>, vector<7x7xf32>
    %cst_87 = arith.constant dense<0xFF800000> : vector<7xf32>
    %252 = vector.multi_reduction <maximumf>, %251, %cst_87 [1] : vector<7x7xf32> to vector<7xf32>
    %253 = vector.shape_cast %252 : vector<7xf32> to vector<7x1xf32>
    %254 = vector.broadcast %253 : vector<7x1xf32> to vector<7x7xf32>
    %255 = arith.subf %251, %254 : vector<7x7xf32>
    %256 = math.exp %255 : vector<7x7xf32>
    %cst_88 = arith.constant dense<0.000000e+00> : vector<7xf32>
    %257 = vector.multi_reduction <add>, %256, %cst_88 [1] : vector<7x7xf32> to vector<7xf32>
    %258 = vector.shape_cast %257 : vector<7xf32> to vector<7x1xf32>
    %259 = tpu.reciprocal %258 {approx = true} : vector<7x1xf32> -> vector<7x1xf32>
    %260 = vector.broadcast %259 : vector<7x1xf32> to vector<7x7xf32>
    %261 = arith.mulf %256, %260 : vector<7x7xf32>
    %cst_89 = arith.constant 0.000000e+00 : f32
    %262 = vector.shape_cast %5 : vector<1x7xi1> to vector<1x7xi1>
    %263 = vector.broadcast %262 : vector<1x7xi1> to vector<7x7xi1>
    %264 = vector.broadcast %cst_89 : f32 to vector<7x7xf32>
    %265 = arith.select %263, %264, %261 : vector<7x7xi1>, vector<7x7xf32>
    %266 = vector.extract_strided_slice %80 {offsets = [0, 24], sizes = [7, 8], strides = [1, 1]} : vector<7x32xf32> to vector<7x8xf32>
    %cst_90 = arith.constant dense<0.000000e+00> : vector<7x8xf32>
    %267 = tpu.matmul %265, %266, %cst_90 {dimension_numbers = #tpu.dot_dimension_numbers<[1], [0], [0], [1], [0, 0, 1, 1], [], []>} : vector<7x7xf32>, vector<7x8xf32>, vector<7x8xf32> -> vector<7x8xf32>
    %268 = vector.extract_strided_slice %97 {offsets = [24, 0], sizes = [8, 32], strides = [1, 1]} : vector<32x32xf32> to vector<8x32xf32>
    %cst_91 = arith.constant dense<0.000000e+00> : vector<7x32xf32>
    %269 = tpu.matmul %267, %268, %cst_91 {dimension_numbers = #tpu.dot_dimension_numbers<[1], [0], [0], [1], [0, 0, 1, 1], [], []>} : vector<7x8xf32>, vector<8x32xf32>, vector<7x32xf32> -> vector<7x32xf32>
    %270 = arith.addf %227, %269 : vector<7x32xf32>
    %271 = arith.addf %50, %270 : vector<7x32xf32>
    %c0_92 = arith.constant 0 : index
    %c0_93 = arith.constant 0 : index
    %272 = vector.load %arg16[%c0_92, %c0_93] : memref<1x32xf32, #tpu.memory_space<vmem>>, vector<1x32xf32>
    %273 = vector.broadcast %272 : vector<1x32xf32> to vector<7x32xf32>
    %274 = arith.addf %271, %273 : vector<7x32xf32>
    %cst_94 = arith.constant dense<0.000000e+00> : vector<7xf32>
    %275 = vector.multi_reduction <add>, %274, %cst_94 [1] : vector<7x32xf32> to vector<7xf32>
    %276 = vector.shape_cast %275 : vector<7xf32> to vector<7x1xf32>
    %cst_95 = arith.constant 3.200000e+01 : f32
    %277 = vector.broadcast %cst_95 : f32 to vector<7x1xf32>
    %278 = arith.divf %276, %277 : vector<7x1xf32>
    %279 = vector.broadcast %278 : vector<7x1xf32> to vector<7x32xf32>
    %280 = arith.subf %274, %279 : vector<7x32xf32>
    %281 = arith.mulf %280, %280 : vector<7x32xf32>
    %cst_96 = arith.constant dense<0.000000e+00> : vector<7xf32>
    %282 = vector.multi_reduction <add>, %281, %cst_96 [1] : vector<7x32xf32> to vector<7xf32>
    %283 = vector.shape_cast %282 : vector<7xf32> to vector<7x1xf32>
    %cst_97 = arith.constant 3.200000e+01 : f32
    %284 = vector.broadcast %cst_97 : f32 to vector<7x1xf32>
    %285 = arith.divf %283, %284 : vector<7x1xf32>
    %cst_98 = arith.constant 9.99999996E-13 : f32
    %286 = vector.broadcast %cst_98 : f32 to vector<7x1xf32>
    %287 = arith.addf %285, %286 : vector<7x1xf32>
    %288 = math.rsqrt %287 : vector<7x1xf32>
    %289 = vector.broadcast %288 : vector<7x1xf32> to vector<7x32xf32>
    %290 = arith.mulf %280, %289 : vector<7x32xf32>
    %291 = vector.extract_strided_slice %6 {offsets = [2, 0], sizes = [1, 32], strides = [1, 1]} : vector<6x32xf32> to vector<1x32xf32>
    %292 = vector.broadcast %291 : vector<1x32xf32> to vector<7x32xf32>
    %293 = arith.mulf %290, %292 : vector<7x32xf32>
    %294 = vector.extract_strided_slice %7 {offsets = [2, 0], sizes = [1, 32], strides = [1, 1]} : vector<6x32xf32> to vector<1x32xf32>
    %295 = vector.broadcast %294 : vector<1x32xf32> to vector<7x32xf32>
    %296 = arith.addf %293, %295 : vector<7x32xf32>
    %c0_99 = arith.constant 0 : index
    %c0_100 = arith.constant 0 : index
    %297 = vector.load %arg17[%c0_99, %c0_100] : memref<32x64xf32, #tpu.memory_space<vmem>>, vector<32x64xf32>
    %cst_101 = arith.constant dense<0.000000e+00> : vector<7x64xf32>
    %298 = tpu.matmul %296, %297, %cst_101 {dimension_numbers = #tpu.dot_dimension_numbers<[1], [0], [0], [1], [0, 0, 1, 1], [], []>} : vector<7x32xf32>, vector<32x64xf32>, vector<7x64xf32> -> vector<7x64xf32>
    %c0_102 = arith.constant 0 : index
    %c0_103 = arith.constant 0 : index
    %299 = vector.load %arg18[%c0_102, %c0_103] : memref<1x64xf32, #tpu.memory_space<vmem>>, vector<1x64xf32>
    %300 = vector.broadcast %299 : vector<1x64xf32> to vector<7x64xf32>
    %301 = arith.addf %298, %300 : vector<7x64xf32>
    %302 = vector.extract_strided_slice %301 {offsets = [0, 0], sizes = [7, 32], strides = [1, 1]} : vector<7x64xf32> to vector<7x32xf32>
    %303 = vector.extract_strided_slice %301 {offsets = [0, 32], sizes = [7, 32], strides = [1, 1]} : vector<7x64xf32> to vector<7x32xf32>
    %cst_104 = arith.constant 0.000000e+00 : f32
    %304 = vector.broadcast %cst_104 : f32 to vector<7x32xf32>
    %305 = arith.subf %304, %303 : vector<7x32xf32>
    %306 = math.exp %305 : vector<7x32xf32>
    %cst_105 = arith.constant 1.000000e+00 : f32
    %307 = vector.broadcast %cst_105 : f32 to vector<7x32xf32>
    %308 = arith.addf %307, %306 : vector<7x32xf32>
    %cst_106 = arith.constant 1.000000e+00 : f32
    %309 = vector.broadcast %cst_106 : f32 to vector<7x32xf32>
    %310 = arith.divf %309, %308 : vector<7x32xf32>
    %311 = arith.mulf %302, %310 : vector<7x32xf32>
    %312 = vector.shape_cast %311 : vector<7x32xf32> to vector<1x7x32xf32>
    %c0_107 = arith.constant 0 : index
    %c0_108 = arith.constant 0 : index
    %c0_109 = arith.constant 0 : index
    %313 = vector.load %arg19[%c0_107, %c0_108, %c0_109] : memref<7x7x32xf32, #tpu.memory_space<vmem>>, vector<7x7x32xf32>
    %314 = vector.broadcast %312 : vector<1x7x32xf32> to vector<7x7x32xf32>
    %315 = arith.mulf %314, %313 : vector<7x7x32xf32>
    %cst_110 = arith.constant dense<0.000000e+00> : vector<7x32xf32>
    %316 = vector.multi_reduction <add>, %315, %cst_110 [1] : vector<7x7x32xf32> to vector<7x32xf32>
    %c0_111 = arith.constant 0 : index
    %c0_112 = arith.constant 0 : index
    %317 = vector.load %arg20[%c0_111, %c0_112] : memref<1x32xf32, #tpu.memory_space<vmem>>, vector<1x32xf32>
    %318 = vector.broadcast %317 : vector<1x32xf32> to vector<7x32xf32>
    %319 = arith.mulf %316, %318 : vector<7x32xf32>
    %c0_113 = arith.constant 0 : index
    %c0_114 = arith.constant 0 : index
    %320 = vector.load %arg21[%c0_113, %c0_114] : memref<1x32xf32, #tpu.memory_space<vmem>>, vector<1x32xf32>
    %321 = vector.broadcast %320 : vector<1x32xf32> to vector<7x32xf32>
    %322 = arith.addf %319, %321 : vector<7x32xf32>
    %cst_115 = arith.constant 0.000000e+00 : f32
    %323 = vector.broadcast %cst_115 : f32 to vector<7x32xf32>
    %324 = arith.subf %323, %322 : vector<7x32xf32>
    %325 = math.exp %324 : vector<7x32xf32>
    %cst_116 = arith.constant 1.000000e+00 : f32
    %326 = vector.broadcast %cst_116 : f32 to vector<7x32xf32>
    %327 = arith.addf %326, %325 : vector<7x32xf32>
    %cst_117 = arith.constant 1.000000e+00 : f32
    %328 = vector.broadcast %cst_117 : f32 to vector<7x32xf32>
    %329 = arith.divf %328, %327 : vector<7x32xf32>
    %330 = arith.mulf %322, %329 : vector<7x32xf32>
    %c0_118 = arith.constant 0 : index
    %c0_119 = arith.constant 0 : index
    %331 = vector.load %arg22[%c0_118, %c0_119] : memref<32x32xf32, #tpu.memory_space<vmem>>, vector<32x32xf32>
    %cst_120 = arith.constant dense<0.000000e+00> : vector<7x32xf32>
    %332 = tpu.matmul %330, %331, %cst_120 {dimension_numbers = #tpu.dot_dimension_numbers<[1], [0], [0], [1], [0, 0, 1, 1], [], []>} : vector<7x32xf32>, vector<32x32xf32>, vector<7x32xf32> -> vector<7x32xf32>
    %333 = arith.addf %274, %332 : vector<7x32xf32>
    %c0_121 = arith.constant 0 : index
    %c0_122 = arith.constant 0 : index
    %334 = vector.load %arg23[%c0_121, %c0_122] : memref<1x32xf32, #tpu.memory_space<vmem>>, vector<1x32xf32>
    %335 = vector.broadcast %334 : vector<1x32xf32> to vector<7x32xf32>
    %336 = arith.addf %333, %335 : vector<7x32xf32>
    %cst_123 = arith.constant dense<0.000000e+00> : vector<7xf32>
    %337 = vector.multi_reduction <add>, %336, %cst_123 [1] : vector<7x32xf32> to vector<7xf32>
    %338 = vector.shape_cast %337 : vector<7xf32> to vector<7x1xf32>
    %cst_124 = arith.constant 3.200000e+01 : f32
    %339 = vector.broadcast %cst_124 : f32 to vector<7x1xf32>
    %340 = arith.divf %338, %339 : vector<7x1xf32>
    %341 = vector.broadcast %340 : vector<7x1xf32> to vector<7x32xf32>
    %342 = arith.subf %336, %341 : vector<7x32xf32>
    %343 = arith.mulf %342, %342 : vector<7x32xf32>
    %cst_125 = arith.constant dense<0.000000e+00> : vector<7xf32>
    %344 = vector.multi_reduction <add>, %343, %cst_125 [1] : vector<7x32xf32> to vector<7xf32>
    %345 = vector.shape_cast %344 : vector<7xf32> to vector<7x1xf32>
    %cst_126 = arith.constant 3.200000e+01 : f32
    %346 = vector.broadcast %cst_126 : f32 to vector<7x1xf32>
    %347 = arith.divf %345, %346 : vector<7x1xf32>
    %cst_127 = arith.constant 9.99999996E-13 : f32
    %348 = vector.broadcast %cst_127 : f32 to vector<7x1xf32>
    %349 = arith.addf %347, %348 : vector<7x1xf32>
    %350 = math.rsqrt %349 : vector<7x1xf32>
    %351 = vector.broadcast %350 : vector<7x1xf32> to vector<7x32xf32>
    %352 = arith.mulf %342, %351 : vector<7x32xf32>
    %353 = vector.extract_strided_slice %6 {offsets = [3, 0], sizes = [1, 32], strides = [1, 1]} : vector<6x32xf32> to vector<1x32xf32>
    %354 = vector.broadcast %353 : vector<1x32xf32> to vector<7x32xf32>
    %355 = arith.mulf %352, %354 : vector<7x32xf32>
    %356 = vector.extract_strided_slice %7 {offsets = [3, 0], sizes = [1, 32], strides = [1, 1]} : vector<6x32xf32> to vector<1x32xf32>
    %357 = vector.broadcast %356 : vector<1x32xf32> to vector<7x32xf32>
    %358 = arith.addf %355, %357 : vector<7x32xf32>
    %c0_128 = arith.constant 0 : index
    %c0_129 = arith.constant 0 : index
    %359 = vector.load %arg24[%c0_128, %c0_129] : memref<32x64xf32, #tpu.memory_space<vmem>>, vector<32x64xf32>
    %cst_130 = arith.constant dense<0.000000e+00> : vector<7x64xf32>
    %360 = tpu.matmul %358, %359, %cst_130 {dimension_numbers = #tpu.dot_dimension_numbers<[1], [0], [0], [1], [0, 0, 1, 1], [], []>} : vector<7x32xf32>, vector<32x64xf32>, vector<7x64xf32> -> vector<7x64xf32>
    %c0_131 = arith.constant 0 : index
    %c0_132 = arith.constant 0 : index
    %361 = vector.load %arg25[%c0_131, %c0_132] : memref<1x64xf32, #tpu.memory_space<vmem>>, vector<1x64xf32>
    %362 = vector.broadcast %361 : vector<1x64xf32> to vector<7x64xf32>
    %363 = arith.addf %360, %362 : vector<7x64xf32>
    %cst_133 = arith.constant 0.000000e+00 : f32
    %364 = vector.broadcast %cst_133 : f32 to vector<7x64xf32>
    %365 = arith.subf %364, %363 : vector<7x64xf32>
    %366 = math.exp %365 : vector<7x64xf32>
    %cst_134 = arith.constant 1.000000e+00 : f32
    %367 = vector.broadcast %cst_134 : f32 to vector<7x64xf32>
    %368 = arith.addf %367, %366 : vector<7x64xf32>
    %cst_135 = arith.constant 1.000000e+00 : f32
    %369 = vector.broadcast %cst_135 : f32 to vector<7x64xf32>
    %370 = arith.divf %369, %368 : vector<7x64xf32>
    %371 = arith.mulf %363, %370 : vector<7x64xf32>
    %c0_136 = arith.constant 0 : index
    %c0_137 = arith.constant 0 : index
    %372 = vector.load %arg26[%c0_136, %c0_137] : memref<64x32xf32, #tpu.memory_space<vmem>>, vector<64x32xf32>
    %cst_138 = arith.constant dense<0.000000e+00> : vector<7x32xf32>
    %373 = tpu.matmul %371, %372, %cst_138 {dimension_numbers = #tpu.dot_dimension_numbers<[1], [0], [0], [1], [0, 0, 1, 1], [], []>} : vector<7x64xf32>, vector<64x32xf32>, vector<7x32xf32> -> vector<7x32xf32>
    %c0_139 = arith.constant 0 : index
    %c0_140 = arith.constant 0 : index
    %374 = vector.load %arg27[%c0_139, %c0_140] : memref<1x32xf32, #tpu.memory_space<vmem>>, vector<1x32xf32>
    %375 = vector.broadcast %374 : vector<1x32xf32> to vector<7x32xf32>
    %376 = arith.addf %373, %375 : vector<7x32xf32>
    %cst_141 = arith.constant 5.000000e-01 : f32
    %377 = vector.broadcast %cst_141 : f32 to vector<7x32xf32>
    %378 = arith.mulf %377, %376 : vector<7x32xf32>
    %379 = arith.addf %336, %378 : vector<7x32xf32>
    %cst_142 = arith.constant dense<0.000000e+00> : vector<7xf32>
    %380 = vector.multi_reduction <add>, %379, %cst_142 [1] : vector<7x32xf32> to vector<7xf32>
    %381 = vector.shape_cast %380 : vector<7xf32> to vector<7x1xf32>
    %cst_143 = arith.constant 3.200000e+01 : f32
    %382 = vector.broadcast %cst_143 : f32 to vector<7x1xf32>
    %383 = arith.divf %381, %382 : vector<7x1xf32>
    %384 = vector.broadcast %383 : vector<7x1xf32> to vector<7x32xf32>
    %385 = arith.subf %379, %384 : vector<7x32xf32>
    %386 = arith.mulf %385, %385 : vector<7x32xf32>
    %cst_144 = arith.constant dense<0.000000e+00> : vector<7xf32>
    %387 = vector.multi_reduction <add>, %386, %cst_144 [1] : vector<7x32xf32> to vector<7xf32>
    %388 = vector.shape_cast %387 : vector<7xf32> to vector<7x1xf32>
    %cst_145 = arith.constant 3.200000e+01 : f32
    %389 = vector.broadcast %cst_145 : f32 to vector<7x1xf32>
    %390 = arith.divf %388, %389 : vector<7x1xf32>
    %cst_146 = arith.constant 9.99999996E-13 : f32
    %391 = vector.broadcast %cst_146 : f32 to vector<7x1xf32>
    %392 = arith.addf %390, %391 : vector<7x1xf32>
    %393 = math.rsqrt %392 : vector<7x1xf32>
    %394 = vector.broadcast %393 : vector<7x1xf32> to vector<7x32xf32>
    %395 = arith.mulf %385, %394 : vector<7x32xf32>
    %396 = vector.extract_strided_slice %6 {offsets = [4, 0], sizes = [1, 32], strides = [1, 1]} : vector<6x32xf32> to vector<1x32xf32>
    %397 = vector.broadcast %396 : vector<1x32xf32> to vector<7x32xf32>
    %398 = arith.mulf %395, %397 : vector<7x32xf32>
    %399 = vector.extract_strided_slice %7 {offsets = [4, 0], sizes = [1, 32], strides = [1, 1]} : vector<6x32xf32> to vector<1x32xf32>
    %400 = vector.broadcast %399 : vector<1x32xf32> to vector<7x32xf32>
    %401 = arith.addf %398, %400 : vector<7x32xf32>
    %cst_147 = arith.constant dense<0.000000e+00> : vector<7xf32>
    %402 = vector.multi_reduction <add>, %401, %cst_147 [1] : vector<7x32xf32> to vector<7xf32>
    %403 = vector.shape_cast %402 : vector<7xf32> to vector<7x1xf32>
    %cst_148 = arith.constant 3.200000e+01 : f32
    %404 = vector.broadcast %cst_148 : f32 to vector<7x1xf32>
    %405 = arith.divf %403, %404 : vector<7x1xf32>
    %406 = vector.broadcast %405 : vector<7x1xf32> to vector<7x32xf32>
    %407 = arith.subf %401, %406 : vector<7x32xf32>
    %408 = arith.mulf %407, %407 : vector<7x32xf32>
    %cst_149 = arith.constant dense<0.000000e+00> : vector<7xf32>
    %409 = vector.multi_reduction <add>, %408, %cst_149 [1] : vector<7x32xf32> to vector<7xf32>
    %410 = vector.shape_cast %409 : vector<7xf32> to vector<7x1xf32>
    %cst_150 = arith.constant 3.200000e+01 : f32
    %411 = vector.broadcast %cst_150 : f32 to vector<7x1xf32>
    %412 = arith.divf %410, %411 : vector<7x1xf32>
    %cst_151 = arith.constant 9.99999996E-13 : f32
    %413 = vector.broadcast %cst_151 : f32 to vector<7x1xf32>
    %414 = arith.addf %412, %413 : vector<7x1xf32>
    %415 = math.rsqrt %414 : vector<7x1xf32>
    %416 = vector.broadcast %415 : vector<7x1xf32> to vector<7x32xf32>
    %417 = arith.mulf %407, %416 : vector<7x32xf32>
    %418 = vector.extract_strided_slice %6 {offsets = [5, 0], sizes = [1, 32], strides = [1, 1]} : vector<6x32xf32> to vector<1x32xf32>
    %419 = vector.broadcast %418 : vector<1x32xf32> to vector<7x32xf32>
    %420 = arith.mulf %417, %419 : vector<7x32xf32>
    %421 = vector.extract_strided_slice %7 {offsets = [5, 0], sizes = [1, 32], strides = [1, 1]} : vector<6x32xf32> to vector<1x32xf32>
    %422 = vector.broadcast %421 : vector<1x32xf32> to vector<7x32xf32>
    %423 = arith.addf %420, %422 : vector<7x32xf32>
    %c0_152 = arith.constant 0 : index
    %c0_153 = arith.constant 0 : index
    %c0_154 = arith.constant 0 : index
    %424 = vector.load %arg28[%c0_152, %c0_153, %c0_154] : memref<1x7x32xf32, #tpu.memory_space<vmem>>, vector<1x7x32xf32>
    %425 = vector.shape_cast %424 : vector<1x7x32xf32> to vector<7x32xf32>
    %426 = vector.shape_cast %423 : vector<7x32xf32> to vector<1x7x32xf32>
    tpu.vector_store %arg28[%c0_152, %c0_153, %c0_154], %426 {strides = array<i32>} : memref<1x7x32xf32, #tpu.memory_space<vmem>>, vector<1x7x32xf32>,
    return
  }
  func.func @transform_0(%arg0: i32) -> (i32, i32, i32) {
    %c0_i32 = arith.constant 0 : i32
    %c0_i32_0 = arith.constant 0 : i32
    %c0_i32_1 = arith.constant 0 : i32
    return %arg0, %c0_i32, %c0_i32_0 : i32, i32, i32
  }
  func.func @transform_1(%arg0: i32) -> (i32, i32, i32) {
    %c0_i32 = arith.constant 0 : i32
    %c0_i32_0 = arith.constant 0 : i32
    %c0_i32_1 = arith.constant 0 : i32
    return %arg0, %c0_i32, %c0_i32_0 : i32, i32, i32
  }
  func.func @transform_2(%arg0: i32) -> (i32, i32) {
    %c0_i32 = arith.constant 0 : i32
    %c0_i32_0 = arith.constant 0 : i32
    %c0_i32_1 = arith.constant 0 : i32
    return %c0_i32, %c0_i32_0 : i32, i32
  }
  func.func @transform_3(%arg0: i32) -> (i32, i32) {
    %c0_i32 = arith.constant 0 : i32
    %c0_i32_0 = arith.constant 0 : i32
    %c0_i32_1 = arith.constant 0 : i32
    return %c0_i32, %c0_i32_0 : i32, i32
  }
  func.func @transform_4(%arg0: i32) -> (i32, i32) {
    %c0_i32 = arith.constant 0 : i32
    %c0_i32_0 = arith.constant 0 : i32
    %c0_i32_1 = arith.constant 0 : i32
    return %c0_i32, %c0_i32_0 : i32, i32
  }
  func.func @transform_5(%arg0: i32) -> (i32, i32) {
    %c0_i32 = arith.constant 0 : i32
    %c0_i32_0 = arith.constant 0 : i32
    %c0_i32_1 = arith.constant 0 : i32
    return %c0_i32, %c0_i32_0 : i32, i32
  }
  func.func @transform_6(%arg0: i32) -> (i32, i32) {
    %c0_i32 = arith.constant 0 : i32
    %c0_i32_0 = arith.constant 0 : i32
    %c0_i32_1 = arith.constant 0 : i32
    return %c0_i32, %c0_i32_0 : i32, i32
  }
  func.func @transform_7(%arg0: i32) -> (i32, i32) {
    %c0_i32 = arith.constant 0 : i32
    %c0_i32_0 = arith.constant 0 : i32
    %c0_i32_1 = arith.constant 0 : i32
    return %c0_i32, %c0_i32_0 : i32, i32
  }
  func.func @transform_8(%arg0: i32) -> (i32, i32) {
    %c0_i32 = arith.constant 0 : i32
    %c0_i32_0 = arith.constant 0 : i32
    %c0_i32_1 = arith.constant 0 : i32
    return %c0_i32, %c0_i32_0 : i32, i32
  }
  func.func @transform_9(%arg0: i32) -> (i32, i32) {
    %c0_i32 = arith.constant 0 : i32
    %c0_i32_0 = arith.constant 0 : i32
    %c0_i32_1 = arith.constant 0 : i32
    return %c0_i32, %c0_i32_0 : i32, i32
  }
  func.func @transform_10(%arg0: i32) -> (i32, i32) {
    %c0_i32 = arith.constant 0 : i32
    %c0_i32_0 = arith.constant 0 : i32
    %c0_i32_1 = arith.constant 0 : i32
    return %c0_i32, %c0_i32_0 : i32, i32
  }
  func.func @transform_11(%arg0: i32) -> (i32, i32) {
    %c0_i32 = arith.constant 0 : i32
    %c0_i32_0 = arith.constant 0 : i32
    %c0_i32_1 = arith.constant 0 : i32
    return %c0_i32, %c0_i32_0 : i32, i32
  }
  func.func @transform_12(%arg0: i32) -> (i32, i32, i32) {
    %c0_i32 = arith.constant 0 : i32
    %c0_i32_0 = arith.constant 0 : i32
    %c0_i32_1 = arith.constant 0 : i32
    %c0_i32_2 = arith.constant 0 : i32
    return %c0_i32, %c0_i32_0, %c0_i32_1 : i32, i32, i32
  }
  func.func @transform_13(%arg0: i32) -> (i32, i32, i32) {
    %c0_i32 = arith.constant 0 : i32
    %c0_i32_0 = arith.constant 0 : i32
    %c0_i32_1 = arith.constant 0 : i32
    %c0_i32_2 = arith.constant 0 : i32
    return %c0_i32, %c0_i32_0, %c0_i32_1 : i32, i32, i32
  }
  func.func @transform_14(%arg0: i32) -> (i32, i32) {
    %c0_i32 = arith.constant 0 : i32
    %c0_i32_0 = arith.constant 0 : i32
    %c0_i32_1 = arith.constant 0 : i32
    return %c0_i32, %c0_i32_0 : i32, i32
  }
  func.func @transform_15(%arg0: i32) -> (i32, i32) {
    %c0_i32 = arith.constant 0 : i32
    %c0_i32_0 = arith.constant 0 : i32
    %c0_i32_1 = arith.constant 0 : i32
    return %c0_i32, %c0_i32_0 : i32, i32
  }
  func.func @transform_16(%arg0: i32) -> (i32, i32) {
    %c0_i32 = arith.constant 0 : i32
    %c0_i32_0 = arith.constant 0 : i32
    %c0_i32_1 = arith.constant 0 : i32
    return %c0_i32, %c0_i32_0 : i32, i32
  }
  func.func @transform_17(%arg0: i32) -> (i32, i32) {
    %c0_i32 = arith.constant 0 : i32
    %c0_i32_0 = arith.constant 0 : i32
    %c0_i32_1 = arith.constant 0 : i32
    return %c0_i32, %c0_i32_0 : i32, i32
  }
  func.func @transform_18(%arg0: i32) -> (i32, i32, i32) {
    %c0_i32 = arith.constant 0 : i32
    %c0_i32_0 = arith.constant 0 : i32
    %c0_i32_1 = arith.constant 0 : i32
    %c0_i32_2 = arith.constant 0 : i32
    return %c0_i32, %c0_i32_0, %c0_i32_1 : i32, i32, i32
  }
  func.func @transform_19(%arg0: i32) -> (i32, i32) {
    %c0_i32 = arith.constant 0 : i32
    %c0_i32_0 = arith.constant 0 : i32
    %c0_i32_1 = arith.constant 0 : i32
    return %c0_i32, %c0_i32_0 : i32, i32
  }
  func.func @transform_20(%arg0: i32) -> (i32, i32) {
    %c0_i32 = arith.constant 0 : i32
    %c0_i32_0 = arith.constant 0 : i32
    %c0_i32_1 = arith.constant 0 : i32
    return %c0_i32, %c0_i32_0 : i32, i32
  }
  func.func @transform_21(%arg0: i32) -> (i32, i32) {
    %c0_i32 = arith.constant 0 : i32
    %c0_i32_0 = arith.constant 0 : i32
    %c0_i32_1 = arith.constant 0 : i32
    return %c0_i32, %c0_i32_0 : i32, i32
  }
  func.func @transform_22(%arg0: i32) -> (i32, i32) {
    %c0_i32 = arith.constant 0 : i32
    %c0_i32_0 = arith.constant 0 : i32
    %c0_i32_1 = arith.constant 0 : i32
    return %c0_i32, %c0_i32_0 : i32, i32
  }
  func.func @transform_23(%arg0: i32) -> (i32, i32) {
    %c0_i32 = arith.constant 0 : i32
    %c0_i32_0 = arith.constant 0 : i32
    %c0_i32_1 = arith.constant 0 : i32
    return %c0_i32, %c0_i32_0 : i32, i32
  }
  func.func @transform_24(%arg0: i32) -> (i32, i32) {
    %c0_i32 = arith.constant 0 : i32
    %c0_i32_0 = arith.constant 0 : i32
    %c0_i32_1 = arith.constant 0 : i32
    return %c0_i32, %c0_i32_0 : i32, i32
  }
  func.func @transform_25(%arg0: i32) -> (i32, i32) {
    %c0_i32 = arith.constant 0 : i32
    %c0_i32_0 = arith.constant 0 : i32
    %c0_i32_1 = arith.constant 0 : i32
    return %c0_i32, %c0_i32_0 : i32, i32
  }
  func.func @transform_26(%arg0: i32) -> (i32, i32) {
    %c0_i32 = arith.constant 0 : i32
    %c0_i32_0 = arith.constant 0 : i32
    %c0_i32_1 = arith.constant 0 : i32
    return %c0_i32, %c0_i32_0 : i32, i32
  }
  func.func @transform_27(%arg0: i32) -> (i32, i32, i32) {
    %c0_i32 = arith.constant 0 : i32
    %c0_i32_0 = arith.constant 0 : i32
    %c0_i32_1 = arith.constant 0 : i32
    return %arg0, %c0_i32, %c0_i32_0 : i32, i32, i32
  }
}

</mosaic_0001>

<llo_original>
// kernel: espnet_forward.5
$region0: #{espnet_forward.5}
  #allocation0 [shape = 'u32[]', space=smem, size = 0x4, offset = 0x4, fixed_abs, tag = 'smem constant byte address 0x4 - core index']
  #allocation1 [shape = 'u32[144,128]{1,0:T(1,128)}', space=vmem, size = 0x12000, scoped, tag = 'internal scratch']
  %s0 = inlined_call_operand.vmem [shape: f32[210,9], index: 0, kind: input, shape index: {}]
  %s1 = inlined_call_operand.hbm [shape: f32[9,32], index: 1, kind: input, shape index: {}]
  %s2 = inlined_call_operand.hbm [shape: f32[1,32], index: 2, kind: input, shape index: {}]
  %s3 = inlined_call_operand.vmem [shape: f32[210,32], index: 3, kind: output, shape index: {}]
  %s4 = sld [smem:[#allocation0]]
  $region30: #{espnet_forward.5} parent=0
    _
  %s6 = ssub.s32 1, %s4
  %s7 = scalar_select 0, %s6, %s4
  $region1: #{espnet_forward.5} parent=0
    #allocation2 [shape = 'u8[8192]{0}', space=vmem, size = 0x2000, scoped, tag = 'input window, operand 1, single buffered']
    #allocation3 [shape = 's32[1]{0}', space=sflag, size = 0x4, scoped, tag = 'scoped memory for espnet_forward.5']
    #allocation4 [shape = 'u8[512]{0}', space=vmem, size = 0x400, scoped, tag = 'input window, operand 2, single buffered']
    #allocation5 [shape = 's32[1]{0}', space=sflag, size = 0x4, scoped, tag = 'scoped memory for espnet_forward.5']
    %8 = vsyncpa [#allocation3], 0
    %9 = vsyncpa [#allocation5], 0
    // Predicated region
    $region2: #{espnet_forward.5} parent=1 // pred_check
      _
    $region3: #{espnet_forward.5} parent=1 // pred_check_branch
      %11 = sbr.rel (0) target = $region5
    $region4: #{espnet_forward.5} parent=1 // pred_region
      _
    $region5: #{espnet_forward.5} parent=1 // pred_fallthru
      _
    // Predicated region
    $region6: #{espnet_forward.5} parent=1 // pred_check
      _
    $region7: #{espnet_forward.5} parent=1 // pred_check_branch
      %13 = sbr.rel (0) target = $region9
    $region8: #{espnet_forward.5} parent=1 // pred_region
      %s15 = ssub.s32 256, 256
      %16 = vsyncadd [#allocation3], %s15
      %s17 = sshll.u32 [#allocation2], 4
      %s18 = int_to_ptr.vmem [resolvable:$true] %s17
      %23 = dma.hbm_to_vmem [thread:$0]  %s1, 256, %s18, [#allocation3], 128, 128, 8
    $region9: #{espnet_forward.5} parent=1 // pred_fallthru
      _
    // Predicated region
    $region10: #{espnet_forward.5} parent=1 // pred_check
      _
    $region11: #{espnet_forward.5} parent=1 // pred_check_branch
      %25 = sbr.rel (0) target = $region13
    $region12: #{espnet_forward.5} parent=1 // pred_region
      %s27 = ssub.s32 16, 16
      %28 = vsyncadd [#allocation5], %s27
      %s30 = sshll.u32 [#allocation4], 4
      %s31 = int_to_ptr.vmem [resolvable:$true] %s30
      %33 = dma.hbm_to_vmem [thread:$0]  %s2, 16, %s31, [#allocation5]
    $region13: #{espnet_forward.5} parent=1 // pred_fallthru
      _
    // Predicated region
    $region14: #{espnet_forward.5} parent=1 // pred_check
      _
    $region15: #{espnet_forward.5} parent=1 // pred_check_branch
      %35 = sbr.rel (0) target = $region17
    $region16: #{espnet_forward.5} parent=1 // pred_region
      %36 = dma.done [#allocation3], 256
    $region17: #{espnet_forward.5} parent=1 // pred_fallthru
      _
    // Predicated region
    $region18: #{espnet_forward.5} parent=1 // pred_check
      _
    $region19: #{espnet_forward.5} parent=1 // pred_check_branch
      %38 = sbr.rel (0) target = $region21
    $region20: #{espnet_forward.5} parent=1 // pred_region
      %39 = dma.done [#allocation5], 16
    $region21: #{espnet_forward.5} parent=1 // pred_fallthru
      _
    %v40 = vld [vmem:[%s0] sm:$0xff]
    %v41 = vld [vmem:[%s0 + $0x8] sm:$0xff]
    %v42 = vld [vmem:[%s0 + $0x10] sm:$0xff]
    %v43 = vld [vmem:[%s0 + $0x18] sm:$0xff]
    %v44 = vld [vmem:[%s0 + $0x20] sm:$0xff]
    %v45 = vld [vmem:[%s0 + $0x28] sm:$0xff]
    %v46 = vld [vmem:[%s0 + $0x30] sm:$0xff]
    %v47 = vld [vmem:[%s0 + $0x38] sm:$0xff]
    %v48 = vld [vmem:[%s0 + $0x40] sm:$0xff]
    %v49 = vld [vmem:[%s0 + $0x48] sm:$0xff]
    %v50 = vld [vmem:[%s0 + $0x50] sm:$0xff]
    %v51 = vld [vmem:[%s0 + $0x58] sm:$0xff]
    %v52 = vld [vmem:[%s0 + $0x60] sm:$0xff]
    %v53 = vld [vmem:[%s0 + $0x68] sm:$0xff]
    %v54 = vld [vmem:[%s0 + $0x70] sm:$0xff]
    %v55 = vld [vmem:[%s0 + $0x78] sm:$0xff]
    %v56 = vld [vmem:[%s0 + $0x80] sm:$0xff]
    %v57 = vld [vmem:[%s0 + $0x88] sm:$0xff]
    %v58 = vld [vmem:[%s0 + $0x90] sm:$0xff]
    %v59 = vld [vmem:[%s0 + $0x98] sm:$0xff]
    %v60 = vld [vmem:[%s0 + $0xa0] sm:$0xff]
    %v61 = vld [vmem:[%s0 + $0xa8] sm:$0xff]
    %v62 = vld [vmem:[%s0 + $0xb0] sm:$0xff]
    %v63 = vld [vmem:[%s0 + $0xb8] sm:$0xff]
    %v64 = vld [vmem:[%s0 + $0xc0] sm:$0xff]
    %v65 = vld [vmem:[%s0 + $0xc8] sm:$0xff]
    %v66 = vld [vmem:[%s0 + $0xd0] sm:$0x3]
    %v67 = vld [vmem:[#allocation2] sm:$0xff]
    %v68 = vld [vmem:[#allocation2 + $0x8] sm:$0x1]
    %v69 = vld [vmem:[#allocation4] sm:$0x1]
    %v71 = vlaneseq
    %v72 = vshrl.u32 %v71, 7
    %v73 = vsub.s32 0, %v72
    %v74 = vrot.slane %v69, %v73
    %vm76 = vcmask 72704
    %v78 = vsel %vm76, %v40, 0
    %v81 = vsel %vm76, %v41, 0
    %v84 = vsel %vm76, %v42, 0
    %v87 = vsel %vm76, %v43, 0
    %v90 = vsel %vm76, %v44, 0
    %v93 = vsel %vm76, %v45, 0
    %v96 = vsel %vm76, %v46, 0
    %v99 = vsel %vm76, %v47, 0
    %v102 = vsel %vm76, %v48, 0
    %v105 = vsel %vm76, %v49, 0
    %v108 = vsel %vm76, %v50, 0
    %v111 = vsel %vm76, %v51, 0
    %v114 = vsel %vm76, %v52, 0
    %v117 = vsel %vm76, %v53, 0
    %v120 = vsel %vm76, %v54, 0
    %v123 = vsel %vm76, %v55, 0
    %v126 = vsel %vm76, %v56, 0
    %v129 = vsel %vm76, %v57, 0
    %v132 = vsel %vm76, %v58, 0
    %v135 = vsel %vm76, %v59, 0
    %v138 = vsel %vm76, %v60, 0
    %v141 = vsel %vm76, %v61, 0
    %v144 = vsel %vm76, %v62, 0
    %v147 = vsel %vm76, %v63, 0
    %v150 = vsel %vm76, %v64, 0
    %v153 = vsel %vm76, %v65, 0
    %v156 = vsel %vm76, %v66, 0
    %vm158 = vcmask 1040384
    %v160 = vsel %vm158, %v68, 0
    %162 = vmatprep.subr.mxu0 0.0
    %163 = vmatpush1.msra.mxu0 0.0
    %164 = vmatprep.subr.mxu0 0.0
    %165 = vmatpush1.msra.mxu0 0.0
    %166 = vmatprep.subr.mxu0 0.0
    %167 = vmatpush1.msra.mxu0 0.0
    %168 = vmatprep.subr.mxu0 0.0
    %169 = vmatpush1.msra.mxu0 0.0
    %170 = vmatprep.subr.mxu0 0.0
    %171 = vmatpush1.msra.mxu0 0.0
    %172 = vmatprep.subr.mxu0 0.0
    %173 = vmatpush1.msra.mxu0 0.0
    %174 = vmatprep.subr.mxu0 0.0
    %175 = vmatpush1.msra.mxu0 0.0
    %176 = vmatprep.subr.mxu0 0.0
    %177 = vmatpush1.msra.mxu0 0.0
    %178 = vmatprep.subr.mxu0 0.0
    %179 = vmatpush1.msra.mxu0 0.0
    %180 = vmatprep.subr.mxu0 0.0
    %181 = vmatpush1.msra.mxu0 0.0
    %182 = vmatprep.subr.mxu0 0.0
    %183 = vmatpush1.msra.mxu0 0.0
    %184 = vmatprep.subr.mxu0 0.0
    %185 = vmatpush1.msra.mxu0 0.0
    %186 = vmatprep.subr.mxu0 0.0
    %187 = vmatpush1.msra.mxu0 0.0
    %188 = vmatprep.subr.mxu0 0.0
    %189 = vmatpush1.msra.mxu0 0.0
    %190 = vmatprep.subr.mxu0 0.0
    %191 = vmatpush1.msra.mxu0 %v160
    %192 = vmatprep.subr.mxu0 0.0
    %193 = vmatpush1.msra.mxu0 %v67
    %194 = vmatprep.subr.mxu0 0.0
    %195 = vmatpush2.msra.mxu0 0.0
    %196 = vmatprep.subr.mxu0 0.0
    %197 = vmatpush2.msra.mxu0 0.0
    %198 = vmatprep.subr.mxu0 0.0
    %199 = vmatpush2.msra.mxu0 0.0
    %200 = vmatprep.subr.mxu0 0.0
    %201 = vmatpush2.msra.mxu0 0.0
    %202 = vmatprep.subr.mxu0 0.0
    %203 = vmatpush2.msra.mxu0 0.0
    %204 = vmatprep.subr.mxu0 0.0
    %205 = vmatpush2.msra.mxu0 0.0
    %206 = vmatprep.subr.mxu0 0.0
    %207 = vmatpush2.msra.mxu0 0.0
    %208 = vmatprep.subr.mxu0 0.0
    %209 = vmatpush2.msra.mxu0 0.0
    %210 = vmatprep.subr.mxu0 0.0
    %211 = vmatpush2.msra.mxu0 0.0
    %212 = vmatprep.subr.mxu0 0.0
    %213 = vmatpush2.msra.mxu0 0.0
    %214 = vmatprep.subr.mxu0 0.0
    %215 = vmatpush2.msra.mxu0 0.0
    %216 = vmatprep.subr.mxu0 0.0
    %217 = vmatpush2.msra.mxu0 0.0
    %218 = vmatprep.subr.mxu0 0.0
    %219 = vmatpush2.msra.mxu0 0.0
    %220 = vmatprep.subr.mxu0 0.0
    %221 = vmatpush2.msra.mxu0 0.0
    %222 = vmatprep.subr.mxu0 0.0
    %223 = vmatpush2.msra.mxu0 0.0
    %224 = vmatprep.subr.mxu0 0.0
    %225 = vmatpush2.msra.mxu0 0.0
    %226 = vmatprep.mubr.f32.mxu0 0.0
    %227 = vmatmul.mubr.f32.gmra.mxu0 %v78
    %v228 = vpop.f32.mrf.mxu0
    %v229 = vadd.f32 %v74, %v228
    %v230 = vpop.f32.mrf.mxu0
    %231 = vmatprep.mubr.f32.mxu0 0.0
    %232 = vmatmul.mubr.f32.gmra.mxu0 %v81
    %v233 = vpop.f32.mrf.mxu0
    %v234 = vadd.f32 %v74, %v233
    %v235 = vpop.f32.mrf.mxu0
    %236 = vmatprep.mubr.f32.mxu0 0.0
    %237 = vmatmul.mubr.f32.gmra.mxu0 %v84
    %v238 = vpop.f32.mrf.mxu0
    %v239 = vadd.f32 %v74, %v238
    %v240 = vpop.f32.mrf.mxu0
    %241 = vmatprep.mubr.f32.mxu0 0.0
    %242 = vmatmul.mubr.f32.gmra.mxu0 %v87
    %v243 = vpop.f32.mrf.mxu0
    %v244 = vadd.f32 %v74, %v243
    %v245 = vpop.f32.mrf.mxu0
    %246 = vmatprep.mubr.f32.mxu0 0.0
    %247 = vmatmul.mubr.f32.gmra.mxu0 %v90
    %v248 = vpop.f32.mrf.mxu0
    %v249 = vadd.f32 %v74, %v248
    %v250 = vpop.f32.mrf.mxu0
    %251 = vmatprep.mubr.f32.mxu0 0.0
    %252 = vmatmul.mubr.f32.gmra.mxu0 %v93
    %v253 = vpop.f32.mrf.mxu0
    %v254 = vadd.f32 %v74, %v253
    %v255 = vpop.f32.mrf.mxu0
    %256 = vmatprep.mubr.f32.mxu0 0.0
    %257 = vmatmul.mubr.f32.gmra.mxu0 %v96
    %v258 = vpop.f32.mrf.mxu0
    %v259 = vadd.f32 %v74, %v258
    %v260 = vpop.f32.mrf.mxu0
    %261 = vmatprep.mubr.f32.mxu0 0.0
    %262 = vmatmul.mubr.f32.gmra.mxu0 %v99
    %v263 = vpop.f32.mrf.mxu0
    %v264 = vadd.f32 %v74, %v263
    %v265 = vpop.f32.mrf.mxu0
    %266 = vmatprep.mubr.f32.mxu0 0.0
    %267 = vmatmul.mubr.f32.gmra.mxu0 %v102
    %v268 = vpop.f32.mrf.mxu0
    %v269 = vadd.f32 %v74, %v268
    %v270 = vpop.f32.mrf.mxu0
    %271 = vmatprep.mubr.f32.mxu0 0.0
    %272 = vmatmul.mubr.f32.gmra.mxu0 %v105
    %v273 = vpop.f32.mrf.mxu0
    %v274 = vadd.f32 %v74, %v273
    %v275 = vpop.f32.mrf.mxu0
    %276 = vmatprep.mubr.f32.mxu0 0.0
    %277 = vmatmul.mubr.f32.gmra.mxu0 %v108
    %v278 = vpop.f32.mrf.mxu0
    %v279 = vadd.f32 %v74, %v278
    %v280 = vpop.f32.mrf.mxu0
    %281 = vmatprep.mubr.f32.mxu0 0.0
    %282 = vmatmul.mubr.f32.gmra.mxu0 %v111
    %v283 = vpop.f32.mrf.mxu0
    %v284 = vadd.f32 %v74, %v283
    %v285 = vpop.f32.mrf.mxu0
    %286 = vmatprep.mubr.f32.mxu0 0.0
    %287 = vmatmul.mubr.f32.gmra.mxu0 %v114
    %v288 = vpop.f32.mrf.mxu0
    %v289 = vadd.f32 %v74, %v288
    %v290 = vpop.f32.mrf.mxu0
    %291 = vmatprep.mubr.f32.mxu0 0.0
    %292 = vmatmul.mubr.f32.gmra.mxu0 %v117
    %v293 = vpop.f32.mrf.mxu0
    %v294 = vadd.f32 %v74, %v293
    %v295 = vpop.f32.mrf.mxu0
    %296 = vmatprep.mubr.f32.mxu0 0.0
    %297 = vmatmul.mubr.f32.gmra.mxu0 %v120
    %v298 = vpop.f32.mrf.mxu0
    %v299 = vadd.f32 %v74, %v298
    %v300 = vpop.f32.mrf.mxu0
    %301 = vmatprep.mubr.f32.mxu0 0.0
    %302 = vmatmul.mubr.f32.gmra.mxu0 %v123
    %v303 = vpop.f32.mrf.mxu0
    %v304 = vadd.f32 %v74, %v303
    %v305 = vpop.f32.mrf.mxu0
    %306 = vmatprep.mubr.f32.mxu0 0.0
    %307 = vmatmul.mubr.f32.gmra.mxu0 %v126
    %v308 = vpop.f32.mrf.mxu0
    %v309 = vadd.f32 %v74, %v308
    %v310 = vpop.f32.mrf.mxu0
    %311 = vmatprep.mubr.f32.mxu0 0.0
    %312 = vmatmul.mubr.f32.gmra.mxu0 %v129
    %v313 = vpop.f32.mrf.mxu0
    %v314 = vadd.f32 %v74, %v313
    %v315 = vpop.f32.mrf.mxu0
    %316 = vmatprep.mubr.f32.mxu0 0.0
    %317 = vmatmul.mubr.f32.gmra.mxu0 %v132
    %v318 = vpop.f32.mrf.mxu0
    %v319 = vadd.f32 %v74, %v318
    %v320 = vpop.f32.mrf.mxu0
    %321 = vmatprep.mubr.f32.mxu0 0.0
    %322 = vmatmul.mubr.f32.gmra.mxu0 %v135
    %v323 = vpop.f32.mrf.mxu0
    %v324 = vadd.f32 %v74, %v323
    %v325 = vpop.f32.mrf.mxu0
    %326 = vmatprep.mubr.f32.mxu0 0.0
    %327 = vmatmul.mubr.f32.gmra.mxu0 %v138
    %v328 = vpop.f32.mrf.mxu0
    %v329 = vadd.f32 %v74, %v328
    %v330 = vpop.f32.mrf.mxu0
    %331 = vmatprep.mubr.f32.mxu0 0.0
    %332 = vmatmul.mubr.f32.gmra.mxu0 %v141
    %v333 = vpop.f32.mrf.mxu0
    %v334 = vadd.f32 %v74, %v333
    %v335 = vpop.f32.mrf.mxu0
    %336 = vmatprep.mubr.f32.mxu0 0.0
    %337 = vmatmul.mubr.f32.gmra.mxu0 %v144
    %v338 = vpop.f32.mrf.mxu0
    %v339 = vadd.f32 %v74, %v338
    %v340 = vpop.f32.mrf.mxu0
    %341 = vmatprep.mubr.f32.mxu0 0.0
    %342 = vmatmul.mubr.f32.gmra.mxu0 %v147
    %v343 = vpop.f32.mrf.mxu0
    %v344 = vadd.f32 %v74, %v343
    %v345 = vpop.f32.mrf.mxu0
    %346 = vmatprep.mubr.f32.mxu0 0.0
    %347 = vmatmul.mubr.f32.gmra.mxu0 %v150
    %v348 = vpop.f32.mrf.mxu0
    %v349 = vadd.f32 %v74, %v348
    %v350 = vpop.f32.mrf.mxu0
    %351 = vmatprep.mubr.f32.mxu0 0.0
    %352 = vmatmul.mubr.f32.gmra.mxu0 %v153
    %v353 = vpop.f32.mrf.mxu0
    %v354 = vadd.f32 %v74, %v353
    %v355 = vpop.f32.mrf.mxu0
    %356 = vmatprep.mubr.f32.mxu0 0.0
    %357 = vmatmul.mubr.f32.gmra.mxu0 %v156
    %v358 = vpop.f32.mrf.mxu0
    %v359 = vadd.f32 %v74, %v358
    %v360 = vpop.f32.mrf.mxu0
    %361 = vdwg.mxu0
    %v362 = vmax.f32 %v229, 0.0
    %v363 = vmax.f32 %v234, 0.0
    %v364 = vmax.f32 %v239, 0.0
    %v365 = vmax.f32 %v244, 0.0
    %v366 = vmax.f32 %v249, 0.0
    %v367 = vmax.f32 %v254, 0.0
    %v368 = vmax.f32 %v259, 0.0
    %v369 = vmax.f32 %v264, 0.0
    %v370 = vmax.f32 %v269, 0.0
    %v371 = vmax.f32 %v274, 0.0
    %v372 = vmax.f32 %v279, 0.0
    %v373 = vmax.f32 %v284, 0.0
    %v374 = vmax.f32 %v289, 0.0
    %v375 = vmax.f32 %v294, 0.0
    %v376 = vmax.f32 %v299, 0.0
    %v377 = vmax.f32 %v304, 0.0
    %v378 = vmax.f32 %v309, 0.0
    %v379 = vmax.f32 %v314, 0.0
    %v380 = vmax.f32 %v319, 0.0
    %v381 = vmax.f32 %v324, 0.0
    %v382 = vmax.f32 %v329, 0.0
    %v383 = vmax.f32 %v334, 0.0
    %v384 = vmax.f32 %v339, 0.0
    %v385 = vmax.f32 %v344, 0.0
    %v386 = vmax.f32 %v349, 0.0
    %v387 = vmax.f32 %v354, 0.0
    %v388 = vmax.f32 %v359, 0.0
    %vm389 = vcmask 261120
    %390 = vst.msk [vmem:[%s3] sm:$0xff] %vm389, %v362
    %391 = vst.msk [vmem:[%s3 + $0x8] sm:$0xff] %vm389, %v363
    %392 = vst.msk [vmem:[%s3 + $0x10] sm:$0xff] %vm389, %v364
    %393 = vst.msk [vmem:[%s3 + $0x18] sm:$0xff] %vm389, %v365
    %394 = vst.msk [vmem:[%s3 + $0x20] sm:$0xff] %vm389, %v366
    %395 = vst.msk [vmem:[%s3 + $0x28] sm:$0xff] %vm389, %v367
    %396 = vst.msk [vmem:[%s3 + $0x30] sm:$0xff] %vm389, %v368
    %397 = vst.msk [vmem:[%s3 + $0x38] sm:$0xff] %vm389, %v369
    %398 = vst.msk [vmem:[%s3 + $0x40] sm:$0xff] %vm389, %v370
    %399 = vst.msk [vmem:[%s3 + $0x48] sm:$0xff] %vm389, %v371
    %400 = vst.msk [vmem:[%s3 + $0x50] sm:$0xff] %vm389, %v372
    %401 = vst.msk [vmem:[%s3 + $0x58] sm:$0xff] %vm389, %v373
    %402 = vst.msk [vmem:[%s3 + $0x60] sm:$0xff] %vm389, %v374
    %403 = vst.msk [vmem:[%s3 + $0x68] sm:$0xff] %vm389, %v375
    %404 = vst.msk [vmem:[%s3 + $0x70] sm:$0xff] %vm389, %v376
    %405 = vst.msk [vmem:[%s3 + $0x78] sm:$0xff] %vm389, %v377
    %406 = vst.msk [vmem:[%s3 + $0x80] sm:$0xff] %vm389, %v378
    %407 = vst.msk [vmem:[%s3 + $0x88] sm:$0xff] %vm389, %v379
    %408 = vst.msk [vmem:[%s3 + $0x90] sm:$0xff] %vm389, %v380
    %409 = vst.msk [vmem:[%s3 + $0x98] sm:$0xff] %vm389, %v381
    %410 = vst.msk [vmem:[%s3 + $0xa0] sm:$0xff] %vm389, %v382
    %411 = vst.msk [vmem:[%s3 + $0xa8] sm:$0xff] %vm389, %v383
    %412 = vst.msk [vmem:[%s3 + $0xb0] sm:$0xff] %vm389, %v384
    %413 = vst.msk [vmem:[%s3 + $0xb8] sm:$0xff] %vm389, %v385
    %414 = vst.msk [vmem:[%s3 + $0xc0] sm:$0xff] %vm389, %v386
    %415 = vst.msk [vmem:[%s3 + $0xc8] sm:$0xff] %vm389, %v387
    %vm416 = vcmask 254976
    %417 = vst.msk [vmem:[%s3 + $0xd0] sm:$0x3] %vm416, %v388
    // Predicated region
    $region22: #{espnet_forward.5} parent=1 // pred_check
      _
    $region23: #{espnet_forward.5} parent=1 // pred_check_branch
      %419 = sbr.rel (0) target = $region25
    $region24: #{espnet_forward.5} parent=1 // pred_region
      _
    $region25: #{espnet_forward.5} parent=1 // pred_fallthru
      _
    // Predicated region
    $region26: #{espnet_forward.5} parent=1 // pred_check
      _
    $region27: #{espnet_forward.5} parent=1 // pred_check_branch
      %421 = sbr.rel (0) target = $region29
    $region28: #{espnet_forward.5} parent=1 // pred_region
      _
    $region29: #{espnet_forward.5} parent=1 // pred_fallthru
      _
    %422 = vsyncpa [#allocation3], 1
    %423 = vsyncpa [#allocation5], 1

// kernel: espnet_forward.6
$region0: #{espnet_forward.6}
  #allocation0 [shape = 'u32[]', space=smem, size = 0x4, offset = 0x4, fixed_abs, tag = 'smem constant byte address 0x4 - core index']
  #allocation1 [shape = 'u32[144,128]{1,0:T(1,128)}', space=vmem, size = 0x12000, scoped, tag = 'internal scratch']
  %s0 = inlined_call_operand.vmem [shape: f32[42,288], index: 0, kind: input, shape index: {}]
  %s1 = inlined_call_operand.vmem [shape: f32[288,32], index: 1, kind: input, shape index: {}]
  %s2 = inlined_call_operand.vmem [shape: f32[1,32], index: 2, kind: input, shape index: {}]
  %s3 = inlined_call_operand.vmem [shape: f32[42,32], index: 3, kind: output, shape index: {}]
  %s4 = sld [smem:[#allocation0]]
  $region22: #{espnet_forward.6} parent=0
    _
  %s6 = ssub.s32 1, %s4
  %s7 = scalar_select 0, %s6, %s4
  // Predicated region
  $region2: #{espnet_forward.6} parent=0 // pred_check
    _
  $region3: #{espnet_forward.6} parent=0 // pred_check_branch
    %9 = sbr.rel (0) target = $region5
  $region4: #{espnet_forward.6} parent=0 // pred_region
    _
  $region5: #{espnet_forward.6} parent=0 // pred_fallthru
    _
  // Predicated region
  $region6: #{espnet_forward.6} parent=0 // pred_check
    _
  $region7: #{espnet_forward.6} parent=0 // pred_check_branch
    %11 = sbr.rel (0) target = $region9
  $region8: #{espnet_forward.6} parent=0 // pred_region
    _
  $region9: #{espnet_forward.6} parent=0 // pred_fallthru
    _
  // Predicated region
  $region10: #{espnet_forward.6} parent=0 // pred_check
    _
  $region11: #{espnet_forward.6} parent=0 // pred_check_branch
    %13 = sbr.rel (0) target = $region13
  $region12: #{espnet_forward.6} parent=0 // pred_region
    _
  $region13: #{espnet_forward.6} parent=0 // pred_fallthru
    _
  %v14 = vld [vmem:[%s0] sm:$0xff]
  %v15 = vld [vmem:[%s0 + $0x8] sm:$0xff]
  %v16 = vld [vmem:[%s0 + $0x10] sm:$0xff]
  %v17 = vld [vmem:[%s0 + $0x18] sm:$0xff]
  %v18 = vld [vmem:[%s0 + $0x20] sm:$0xff]
  %v19 = vld [vmem:[%s0 + $0x28] sm:$0xff]
  %v20 = vld [vmem:[%s0 + $0x30] sm:$0xff]
  %v21 = vld [vmem:[%s0 + $0x38] sm:$0xff]
  %v22 = vld [vmem:[%s0 + $0x40] sm:$0xff]
  %v23 = vld [vmem:[%s0 + $0x48] sm:$0xff]
  %v24 = vld [vmem:[%s0 + $0x50] sm:$0xff]
  %v25 = vld [vmem:[%s0 + $0x58] sm:$0xff]
  %v26 = vld [vmem:[%s0 + $0x60] sm:$0xff]
  %v27 = vld [vmem:[%s0 + $0x68] sm:$0xff]
  %v28 = vld [vmem:[%s0 + $0x70] sm:$0xff]
  %v29 = vld [vmem:[%s0 + $0x78] sm:$0x3]
  %v30 = vld [vmem:[%s0 + $0x80] sm:$0x3]
  %v31 = vld [vmem:[%s0 + $0x88] sm:$0x3]
  %v32 = vld [vmem:[%s1] sm:$0xff]
  %v33 = vld [vmem:[%s1 + $0x8] sm:$0xff]
  %v34 = vld [vmem:[%s1 + $0x10] sm:$0xff]
  %v35 = vld [vmem:[%s1 + $0x18] sm:$0xff]
  %v36 = vld [vmem:[%s1 + $0x20] sm:$0xff]
  %v37 = vld [vmem:[%s1 + $0x28] sm:$0xff]
  %v38 = vld [vmem:[%s1 + $0x30] sm:$0xff]
  %v39 = vld [vmem:[%s1 + $0x38] sm:$0xff]
  %v40 = vld [vmem:[%s1 + $0x40] sm:$0xff]
  %v41 = vld [vmem:[%s1 + $0x48] sm:$0xff]
  %v42 = vld [vmem:[%s1 + $0x50] sm:$0xff]
  %v43 = vld [vmem:[%s1 + $0x58] sm:$0xff]
  %v44 = vld [vmem:[%s1 + $0x60] sm:$0xff]
  %v45 = vld [vmem:[%s1 + $0x68] sm:$0xff]
  %v46 = vld [vmem:[%s1 + $0x70] sm:$0xff]
  %v47 = vld [vmem:[%s1 + $0x78] sm:$0xff]
  %v48 = vld [vmem:[%s1 + $0x80] sm:$0xff]
  %v49 = vld [vmem:[%s1 + $0x88] sm:$0xff]
  %v50 = vld [vmem:[%s1 + $0x90] sm:$0xff]
  %v51 = vld [vmem:[%s1 + $0x98] sm:$0xff]
  %v52 = vld [vmem:[%s1 + $0xa0] sm:$0xff]
  %v53 = vld [vmem:[%s1 + $0xa8] sm:$0xff]
  %v54 = vld [vmem:[%s1 + $0xb0] sm:$0xff]
  %v55 = vld [vmem:[%s1 + $0xb8] sm:$0xff]
  %v56 = vld [vmem:[%s1 + $0xc0] sm:$0xff]
  %v57 = vld [vmem:[%s1 + $0xc8] sm:$0xff]
  %v58 = vld [vmem:[%s1 + $0xd0] sm:$0xff]
  %v59 = vld [vmem:[%s1 + $0xd8] sm:$0xff]
  %v60 = vld [vmem:[%s1 + $0xe0] sm:$0xff]
  %v61 = vld [vmem:[%s1 + $0xe8] sm:$0xff]
  %v62 = vld [vmem:[%s1 + $0xf0] sm:$0xff]
  %v63 = vld [vmem:[%s1 + $0xf8] sm:$0xff]
  %v64 = vld [vmem:[%s1 + $0x100] sm:$0xff]
  %v65 = vld [vmem:[%s1 + $0x108] sm:$0xff]
  %v66 = vld [vmem:[%s1 + $0x110] sm:$0xff]
  %v67 = vld [vmem:[%s1 + $0x118] sm:$0xff]
  %v68 = vld [vmem:[%s2] sm:$0x1]
  %v70 = vlaneseq
  %v71 = vshrl.u32 %v70, 7
  %v72 = vsub.s32 0, %v71
  %v73 = vrot.slane %v68, %v72
  %vm75 = vcmask 261120
  %v77 = vsel %vm75, %v16, 0
  %v80 = vsel %vm75, %v19, 0
  %v83 = vsel %vm75, %v22, 0
  %v86 = vsel %vm75, %v25, 0
  %v89 = vsel %vm75, %v28, 0
  %v92 = vsel %vm75, %v31, 0
  %94 = vmatprep.subr.mxu0 0.0
  %95 = vmatpush1.msra.mxu0 %v47
  %96 = vmatprep.subr.mxu0 0.0
  %97 = vmatpush1.msra.mxu0 %v46
  %98 = vmatprep.subr.mxu0 0.0
  %99 = vmatpush1.msra.mxu0 %v45
  %100 = vmatprep.subr.mxu0 0.0
  %101 = vmatpush1.msra.mxu0 %v44
  %102 = vmatprep.subr.mxu0 0.0
  %103 = vmatpush1.msra.mxu0 %v43
  %104 = vmatprep.subr.mxu0 0.0
  %105 = vmatpush1.msra.mxu0 %v42
  %106 = vmatprep.subr.mxu0 0.0
  %107 = vmatpush1.msra.mxu0 %v41
  %108 = vmatprep.subr.mxu0 0.0
  %109 = vmatpush1.msra.mxu0 %v40
  %110 = vmatprep.subr.mxu0 0.0
  %111 = vmatpush1.msra.mxu0 %v39
  %112 = vmatprep.subr.mxu0 0.0
  %113 = vmatpush1.msra.mxu0 %v38
  %114 = vmatprep.subr.mxu0 0.0
  %115 = vmatpush1.msra.mxu0 %v37
  %116 = vmatprep.subr.mxu0 0.0
  %117 = vmatpush1.msra.mxu0 %v36
  %118 = vmatprep.subr.mxu0 0.0
  %119 = vmatpush1.msra.mxu0 %v35
  %120 = vmatprep.subr.mxu0 0.0
  %121 = vmatpush1.msra.mxu0 %v34
  %122 = vmatprep.subr.mxu0 0.0
  %123 = vmatpush1.msra.mxu0 %v33
  %124 = vmatprep.subr.mxu0 0.0
  %125 = vmatpush1.msra.mxu0 %v32
  %126 = vmatprep.subr.mxu0 0.0
  %127 = vmatpush2.msra.mxu0 %v63
  %128 = vmatprep.subr.mxu0 0.0
  %129 = vmatpush2.msra.mxu0 %v62
  %130 = vmatprep.subr.mxu0 0.0
  %131 = vmatpush2.msra.mxu0 %v61
  %132 = vmatprep.subr.mxu0 0.0
  %133 = vmatpush2.msra.mxu0 %v60
  %134 = vmatprep.subr.mxu0 0.0
  %135 = vmatpush2.msra.mxu0 %v59
  %136 = vmatprep.subr.mxu0 0.0
  %137 = vmatpush2.msra.mxu0 %v58
  %138 = vmatprep.subr.mxu0 0.0
  %139 = vmatpush2.msra.mxu0 %v57
  %140 = vmatprep.subr.mxu0 0.0
  %141 = vmatpush2.msra.mxu0 %v56
  %142 = vmatprep.subr.mxu0 0.0
  %143 = vmatpush2.msra.mxu0 %v55
  %144 = vmatprep.subr.mxu0 0.0
  %145 = vmatpush2.msra.mxu0 %v54
  %146 = vmatprep.subr.mxu0 0.0
  %147 = vmatpush2.msra.mxu0 %v53
  %148 = vmatprep.subr.mxu0 0.0
  %149 = vmatpush2.msra.mxu0 %v52
  %150 = vmatprep.subr.mxu0 0.0
  %151 = vmatpush2.msra.mxu0 %v51
  %152 = vmatprep.subr.mxu0 0.0
  %153 = vmatpush2.msra.mxu0 %v50
  %154 = vmatprep.subr.mxu0 0.0
  %155 = vmatpush2.msra.mxu0 %v49
  %156 = vmatprep.subr.mxu0 0.0
  %157 = vmatpush2.msra.mxu0 %v48
  %158 = vmatprep.mubr.f32.mxu0 %v15
  %159 = vmatmul.mubr.f32.gmra.mxu0 %v14
  %v160 = vpop.f32.mrf.mxu0
  %v161 = vadd.f32 %v73, %v160
  %v162 = vpop.f32.mrf.mxu0
  %163 = vmatprep.mubr.f32.mxu0 %v18
  %164 = vmatmul.mubr.f32.gmra.mxu0 %v17
  %v165 = vpop.f32.mrf.mxu0
  %v166 = vadd.f32 %v73, %v165
  %v167 = vpop.f32.mrf.mxu0
  %168 = vmatprep.mubr.f32.mxu0 %v21
  %169 = vmatmul.mubr.f32.gmra.mxu0 %v20
  %v170 = vpop.f32.mrf.mxu0
  %v171 = vadd.f32 %v73, %v170
  %v172 = vpop.f32.mrf.mxu0
  %173 = vmatprep.mubr.f32.mxu0 %v24
  %174 = vmatmul.mubr.f32.gmra.mxu0 %v23
  %v175 = vpop.f32.mrf.mxu0
  %v176 = vadd.f32 %v73, %v175
  %v177 = vpop.f32.mrf.mxu0
  %178 = vmatprep.mubr.f32.mxu0 %v27
  %179 = vmatmul.mubr.f32.gmra.mxu0 %v26
  %v180 = vpop.f32.mrf.mxu0
  %v181 = vadd.f32 %v73, %v180
  %v182 = vpop.f32.mrf.mxu0
  %183 = vmatprep.mubr.f32.mxu0 %v30
  %184 = vmatmul.mubr.f32.gmra.mxu0 %v29
  %v185 = vpop.f32.mrf.mxu0
  %v186 = vadd.f32 %v73, %v185
  %v187 = vpop.f32.mrf.mxu0
  %188 = vdwg.mxu0
  %189 = vmatprep.subr.mxu0 0.0
  %190 = vmatpush1.msra.mxu0 0.0
  %191 = vmatprep.subr.mxu0 0.0
  %192 = vmatpush1.msra.mxu0 0.0
  %193 = vmatprep.subr.mxu0 0.0
  %194 = vmatpush1.msra.mxu0 0.0
  %195 = vmatprep.subr.mxu0 0.0
  %196 = vmatpush1.msra.mxu0 0.0
  %197 = vmatprep.subr.mxu0 0.0
  %198 = vmatpush1.msra.mxu0 0.0
  %199 = vmatprep.subr.mxu0 0.0
  %200 = vmatpush1.msra.mxu0 0.0
  %201 = vmatprep.subr.mxu0 0.0
  %202 = vmatpush1.msra.mxu0 0.0
  %203 = vmatprep.subr.mxu0 0.0
  %204 = vmatpush1.msra.mxu0 0.0
  %205 = vmatprep.subr.mxu0 0.0
  %206 = vmatpush1.msra.mxu0 0.0
  %207 = vmatprep.subr.mxu0 0.0
  %208 = vmatpush1.msra.mxu0 0.0
  %209 = vmatprep.subr.mxu0 0.0
  %210 = vmatpush1.msra.mxu0 0.0
  %211 = vmatprep.subr.mxu0 0.0
  %212 = vmatpush1.msra.mxu0 0.0
  %213 = vmatprep.subr.mxu0 0.0
  %214 = vmatpush1.msra.mxu0 %v67
  %215 = vmatprep.subr.mxu0 0.0
  %216 = vmatpush1.msra.mxu0 %v66
  %217 = vmatprep.subr.mxu0 0.0
  %218 = vmatpush1.msra.mxu0 %v65
  %219 = vmatprep.subr.mxu0 0.0
  %220 = vmatpush1.msra.mxu0 %v64
  %221 = vmatprep.subr.mxu0 0.0
  %222 = vmatpush2.msra.mxu0 0.0
  %223 = vmatprep.subr.mxu0 0.0
  %224 = vmatpush2.msra.mxu0 0.0
  %225 = vmatprep.subr.mxu0 0.0
  %226 = vmatpush2.msra.mxu0 0.0
  %227 = vmatprep.subr.mxu0 0.0
  %228 = vmatpush2.msra.mxu0 0.0
  %229 = vmatprep.subr.mxu0 0.0
  %230 = vmatpush2.msra.mxu0 0.0
  %231 = vmatprep.subr.mxu0 0.0
  %232 = vmatpush2.msra.mxu0 0.0
  %233 = vmatprep.subr.mxu0 0.0
  %234 = vmatpush2.msra.mxu0 0.0
  %235 = vmatprep.subr.mxu0 0.0
  %236 = vmatpush2.msra.mxu0 0.0
  %237 = vmatprep.subr.mxu0 0.0
  %238 = vmatpush2.msra.mxu0 0.0
  %239 = vmatprep.subr.mxu0 0.0
  %240 = vmatpush2.msra.mxu0 0.0
  %241 = vmatprep.subr.mxu0 0.0
  %242 = vmatpush2.msra.mxu0 0.0
  %243 = vmatprep.subr.mxu0 0.0
  %244 = vmatpush2.msra.mxu0 0.0
  %245 = vmatprep.subr.mxu0 0.0
  %246 = vmatpush2.msra.mxu0 0.0
  %247 = vmatprep.subr.mxu0 0.0
  %248 = vmatpush2.msra.mxu0 0.0
  %249 = vmatprep.subr.mxu0 0.0
  %250 = vmatpush2.msra.mxu0 0.0
  %251 = vmatprep.subr.mxu0 0.0
  %252 = vmatpush2.msra.mxu0 0.0
  %253 = vmatprep.mubr.f32.mxu0 0.0
  %254 = vmatmul.mubr.f32.gmra.mxu0 %v77
  %v255 = vpop.f32.mrf.mxu0
  %v256 = vadd.f32 %v161, %v255
  %v257 = vpop.f32.mrf.mxu0
  %258 = vmatprep.mubr.f32.mxu0 0.0
  %259 = vmatmul.mubr.f32.gmra.mxu0 %v80
  %v260 = vpop.f32.mrf.mxu0
  %v261 = vadd.f32 %v166, %v260
  %v262 = vpop.f32.mrf.mxu0
  %263 = vmatprep.mubr.f32.mxu0 0.0
  %264 = vmatmul.mubr.f32.gmra.mxu0 %v83
  %v265 = vpop.f32.mrf.mxu0
  %v266 = vadd.f32 %v171, %v265
  %v267 = vpop.f32.mrf.mxu0
  %268 = vmatprep.mubr.f32.mxu0 0.0
  %269 = vmatmul.mubr.f32.gmra.mxu0 %v86
  %v270 = vpop.f32.mrf.mxu0
  %v271 = vadd.f32 %v176, %v270
  %v272 = vpop.f32.mrf.mxu0
  %273 = vmatprep.mubr.f32.mxu0 0.0
  %274 = vmatmul.mubr.f32.gmra.mxu0 %v89
  %v275 = vpop.f32.mrf.mxu0
  %v276 = vadd.f32 %v181, %v275
  %v277 = vpop.f32.mrf.mxu0
  %278 = vmatprep.mubr.f32.mxu0 0.0
  %279 = vmatmul.mubr.f32.gmra.mxu0 %v92
  %v280 = vpop.f32.mrf.mxu0
  %v281 = vadd.f32 %v186, %v280
  %v282 = vpop.f32.mrf.mxu0
  %283 = vdwg.mxu0
  %v284 = vmax.f32 %v256, 0.0
  %v285 = vmax.f32 %v261, 0.0
  %v286 = vmax.f32 %v266, 0.0
  %v287 = vmax.f32 %v271, 0.0
  %v288 = vmax.f32 %v276, 0.0
  %v289 = vmax.f32 %v281, 0.0
  %290 = vst.msk [vmem:[%s3] sm:$0xff] %vm75, %v284
  %291 = vst.msk [vmem:[%s3 + $0x8] sm:$0xff] %vm75, %v285
  %292 = vst.msk [vmem:[%s3 + $0x10] sm:$0xff] %vm75, %v286
  %293 = vst.msk [vmem:[%s3 + $0x18] sm:$0xff] %vm75, %v287
  %294 = vst.msk [vmem:[%s3 + $0x20] sm:$0xff] %vm75, %v288
  %vm295 = vcmask 254976
  %296 = vst.msk [vmem:[%s3 + $0x28] sm:$0x3] %vm295, %v289
  // Predicated region
  $region14: #{espnet_forward.6} parent=0 // pred_check
    _
  $region15: #{espnet_forward.6} parent=0 // pred_check_branch
    %298 = sbr.rel (0) target = $region17
  $region16: #{espnet_forward.6} parent=0 // pred_region
    _
  $region17: #{espnet_forward.6} parent=0 // pred_fallthru
    _
  // Predicated region
  $region18: #{espnet_forward.6} parent=0 // pred_check
    _
  $region19: #{espnet_forward.6} parent=0 // pred_check_branch
    %300 = sbr.rel (0) target = $region21
  $region20: #{espnet_forward.6} parent=0 // pred_region
    _
  $region21: #{espnet_forward.6} parent=0 // pred_fallthru
    _

// kernel: espnet_forward.7
$region0: #{espnet_forward.7}
  #allocation0 [shape = 'u32[]', space=smem, size = 0x4, offset = 0x4, fixed_abs, tag = 'smem constant byte address 0x4 - core index']
  #allocation1 [shape = 'u32[144,128]{1,0:T(1,128)}', space=vmem, size = 0x12000, scoped, tag = 'internal scratch']
  %s0 = inlined_call_operand.vmem [shape: f32[14,96], index: 0, kind: input, shape index: {}]
  %s1 = inlined_call_operand.vmem [shape: f32[96,32], index: 1, kind: input, shape index: {}]
  %s2 = inlined_call_operand.vmem [shape: f32[1,32], index: 2, kind: input, shape index: {}]
  %s3 = inlined_call_operand.vmem [shape: f32[14,32], index: 3, kind: output, shape index: {}]
  %s4 = sld [smem:[#allocation0]]
  $region22: #{espnet_forward.7} parent=0
    _
  %s6 = ssub.s32 1, %s4
  %s7 = scalar_select 0, %s6, %s4
  // Predicated region
  $region2: #{espnet_forward.7} parent=0 // pred_check
    _
  $region3: #{espnet_forward.7} parent=0 // pred_check_branch
    %9 = sbr.rel (0) target = $region5
  $region4: #{espnet_forward.7} parent=0 // pred_region
    _
  $region5: #{espnet_forward.7} parent=0 // pred_fallthru
    _
  // Predicated region
  $region6: #{espnet_forward.7} parent=0 // pred_check
    _
  $region7: #{espnet_forward.7} parent=0 // pred_check_branch
    %11 = sbr.rel (0) target = $region9
  $region8: #{espnet_forward.7} parent=0 // pred_region
    _
  $region9: #{espnet_forward.7} parent=0 // pred_fallthru
    _
  // Predicated region
  $region10: #{espnet_forward.7} parent=0 // pred_check
    _
  $region11: #{espnet_forward.7} parent=0 // pred_check_branch
    %13 = sbr.rel (0) target = $region13
  $region12: #{espnet_forward.7} parent=0 // pred_region
    _
  $region13: #{espnet_forward.7} parent=0 // pred_fallthru
    _
  %v14 = vld [vmem:[%s0] sm:$0xff]
  %v15 = vld [vmem:[%s0 + $0x8] sm:$0x3f]
  %v16 = vld [vmem:[%s1] sm:$0xff]
  %v17 = vld [vmem:[%s1 + $0x8] sm:$0xff]
  %v18 = vld [vmem:[%s1 + $0x10] sm:$0xff]
  %v19 = vld [vmem:[%s1 + $0x18] sm:$0xff]
  %v20 = vld [vmem:[%s1 + $0x20] sm:$0xff]
  %v21 = vld [vmem:[%s1 + $0x28] sm:$0xff]
  %v22 = vld [vmem:[%s1 + $0x30] sm:$0xff]
  %v23 = vld [vmem:[%s1 + $0x38] sm:$0xff]
  %v24 = vld [vmem:[%s1 + $0x40] sm:$0xff]
  %v25 = vld [vmem:[%s1 + $0x48] sm:$0xff]
  %v26 = vld [vmem:[%s1 + $0x50] sm:$0xff]
  %v27 = vld [vmem:[%s1 + $0x58] sm:$0xff]
  %v28 = vld [vmem:[%s2] sm:$0x1]
  %v30 = vlaneseq
  %v31 = vshrl.u32 %v30, 7
  %v32 = vsub.s32 0, %v31
  %v33 = vrot.slane %v28, %v32
  %vm35 = vcmask 785408
  %v37 = vsel %vm35, %v14, 0
  %v40 = vsel %vm35, %v15, 0
  %42 = vmatprep.subr.mxu0 0.0
  %43 = vmatpush1.msra.mxu0 0.0
  %44 = vmatprep.subr.mxu0 0.0
  %45 = vmatpush1.msra.mxu0 0.0
  %46 = vmatprep.subr.mxu0 0.0
  %47 = vmatpush1.msra.mxu0 0.0
  %48 = vmatprep.subr.mxu0 0.0
  %49 = vmatpush1.msra.mxu0 0.0
  %50 = vmatprep.subr.mxu0 0.0
  %51 = vmatpush1.msra.mxu0 %v27
  %52 = vmatprep.subr.mxu0 0.0
  %53 = vmatpush1.msra.mxu0 %v26
  %54 = vmatprep.subr.mxu0 0.0
  %55 = vmatpush1.msra.mxu0 %v25
  %56 = vmatprep.subr.mxu0 0.0
  %57 = vmatpush1.msra.mxu0 %v24
  %58 = vmatprep.subr.mxu0 0.0
  %59 = vmatpush1.msra.mxu0 %v23
  %60 = vmatprep.subr.mxu0 0.0
  %61 = vmatpush1.msra.mxu0 %v22
  %62 = vmatprep.subr.mxu0 0.0
  %63 = vmatpush1.msra.mxu0 %v21
  %64 = vmatprep.subr.mxu0 0.0
  %65 = vmatpush1.msra.mxu0 %v20
  %66 = vmatprep.subr.mxu0 0.0
  %67 = vmatpush1.msra.mxu0 %v19
  %68 = vmatprep.subr.mxu0 0.0
  %69 = vmatpush1.msra.mxu0 %v18
  %70 = vmatprep.subr.mxu0 0.0
  %71 = vmatpush1.msra.mxu0 %v17
  %72 = vmatprep.subr.mxu0 0.0
  %73 = vmatpush1.msra.mxu0 %v16
  %74 = vmatprep.subr.mxu0 0.0
  %75 = vmatpush2.msra.mxu0 0.0
  %76 = vmatprep.subr.mxu0 0.0
  %77 = vmatpush2.msra.mxu0 0.0
  %78 = vmatprep.subr.mxu0 0.0
  %79 = vmatpush2.msra.mxu0 0.0
  %80 = vmatprep.subr.mxu0 0.0
  %81 = vmatpush2.msra.mxu0 0.0
  %82 = vmatprep.subr.mxu0 0.0
  %83 = vmatpush2.msra.mxu0 0.0
  %84 = vmatprep.subr.mxu0 0.0
  %85 = vmatpush2.msra.mxu0 0.0
  %86 = vmatprep.subr.mxu0 0.0
  %87 = vmatpush2.msra.mxu0 0.0
  %88 = vmatprep.subr.mxu0 0.0
  %89 = vmatpush2.msra.mxu0 0.0
  %90 = vmatprep.subr.mxu0 0.0
  %91 = vmatpush2.msra.mxu0 0.0
  %92 = vmatprep.subr.mxu0 0.0
  %93 = vmatpush2.msra.mxu0 0.0
  %94 = vmatprep.subr.mxu0 0.0
  %95 = vmatpush2.msra.mxu0 0.0
  %96 = vmatprep.subr.mxu0 0.0
  %97 = vmatpush2.msra.mxu0 0.0
  %98 = vmatprep.subr.mxu0 0.0
  %99 = vmatpush2.msra.mxu0 0.0
  %100 = vmatprep.subr.mxu0 0.0
  %101 = vmatpush2.msra.mxu0 0.0
  %102 = vmatprep.subr.mxu0 0.0
  %103 = vmatpush2.msra.mxu0 0.0
  %104 = vmatprep.subr.mxu0 0.0
  %105 = vmatpush2.msra.mxu0 0.0
  %106 = vmatprep.mubr.f32.mxu0 0.0
  %107 = vmatmul.mubr.f32.gmra.mxu0 %v37
  %v108 = vpop.f32.mrf.mxu0
  %v109 = vadd.f32 %v33, %v108
  %v110 = vpop.f32.mrf.mxu0
  %111 = vmatprep.mubr.f32.mxu0 0.0
  %112 = vmatmul.mubr.f32.gmra.mxu0 %v40
  %v113 = vpop.f32.mrf.mxu0
  %v114 = vadd.f32 %v33, %v113
  %v115 = vpop.f32.mrf.mxu0
  %116 = vdwg.mxu0
  %vm117 = vcmask 261120
  %118 = vst.msk [vmem:[%s3] sm:$0xff] %vm117, %v109
  %vm119 = vcmask 259072
  %120 = vst.msk [vmem:[%s3 + $0x8] sm:$0x3f] %vm119, %v114
  // Predicated region
  $region14: #{espnet_forward.7} parent=0 // pred_check
    _
  $region15: #{espnet_forward.7} parent=0 // pred_check_branch
    %122 = sbr.rel (0) target = $region17
  $region16: #{espnet_forward.7} parent=0 // pred_region
    _
  $region17: #{espnet_forward.7} parent=0 // pred_fallthru
    _
  // Predicated region
  $region18: #{espnet_forward.7} parent=0 // pred_check
    _
  $region19: #{espnet_forward.7} parent=0 // pred_check_branch
    %124 = sbr.rel (0) target = $region21
  $region20: #{espnet_forward.7} parent=0 // pred_region
    _
  $region21: #{espnet_forward.7} parent=0 // pred_fallthru
    _

// kernel: espnet_forward.8
$region0: #{espnet_forward.8}
  #allocation0 [shape = 'u32[]', space=smem, size = 0x4, offset = 0x4, fixed_abs, tag = 'smem constant byte address 0x4 - core index']
  #allocation1 [shape = 'u32[144,128]{1,0:T(1,128)}', space=vmem, size = 0x12000, scoped, tag = 'internal scratch']
  %s0 = inlined_call_operand.vmem [shape: f32[2,7,32], index: 0, kind: input, shape index: {}]
  %s1 = inlined_call_operand.vmem [shape: f32[2,1,7], index: 1, kind: input, shape index: {}]
  %s2 = inlined_call_operand.vmem [shape: f32[5,32], index: 2, kind: input, shape index: {}]
  %s3 = inlined_call_operand.vmem [shape: f32[5,32], index: 3, kind: input, shape index: {}]
  %s4 = inlined_call_operand.vmem [shape: f32[32,64], index: 4, kind: input, shape index: {}]
  %s5 = inlined_call_operand.vmem [shape: f32[1,64], index: 5, kind: input, shape index: {}]
  %s6 = inlined_call_operand.vmem [shape: f32[64,32], index: 6, kind: input, shape index: {}]
  %s7 = inlined_call_operand.vmem [shape: f32[1,32], index: 7, kind: input, shape index: {}]
  %s8 = inlined_call_operand.vmem [shape: f32[32,96], index: 8, kind: input, shape index: {}]
  %s9 = inlined_call_operand.vmem [shape: f32[1,96], index: 9, kind: input, shape index: {}]
  %s10 = inlined_call_operand.vmem [shape: f32[1,32], index: 10, kind: input, shape index: {}]
  %s11 = inlined_call_operand.vmem [shape: f32[1,32], index: 11, kind: input, shape index: {}]
  %s12 = inlined_call_operand.vmem [shape: f32[7,7,32], index: 12, kind: input, shape index: {}]
  %s13 = inlined_call_operand.vmem [shape: f32[7,7,32], index: 13, kind: input, shape index: {}]
  %s14 = inlined_call_operand.vmem [shape: f32[32,32], index: 14, kind: input, shape index: {}]
  %s15 = inlined_call_operand.vmem [shape: f32[1,32], index: 15, kind: input, shape index: {}]
  %s16 = inlined_call_operand.vmem [shape: f32[32,64], index: 16, kind: input, shape index: {}]
  %s17 = inlined_call_operand.vmem [shape: f32[1,64], index: 17, kind: input, shape index: {}]
  %s18 = inlined_call_operand.vmem [shape: f32[7,7,32], index: 18, kind: input, shape index: {}]
  %s19 = inlined_call_operand.vmem [shape: f32[1,32], index: 19, kind: input, shape index: {}]
  %s20 = inlined_call_operand.vmem [shape: f32[1,32], index: 20, kind: input, shape index: {}]
  %s21 = inlined_call_operand.vmem [shape: f32[32,32], index: 21, kind: input, shape index: {}]
  %s22 = inlined_call_operand.hbm [shape: f32[1,32], index: 22, kind: input, shape index: {}]
  %s23 = inlined_call_operand.vmem [shape: f32[32,64], index: 23, kind: input, shape index: {}]
  %s24 = inlined_call_operand.hbm [shape: f32[1,64], index: 24, kind: input, shape index: {}]
  %s25 = inlined_call_operand.vmem [shape: f32[64,32], index: 25, kind: input, shape index: {}]
  %s26 = inlined_call_operand.hbm [shape: f32[1,32], index: 26, kind: input, shape index: {}]
  %s27 = inlined_call_operand.vmem [shape: f32[2,7,32], index: 27, kind: output, shape index: {}]
  %s28 = sld [smem:[#allocation0]]
  $region153: #{espnet_forward.8} parent=0
    _
  %s30 = ssub.s32 1, %s28
  %s31 = scalar_select 0, %s30, %s28
  $region1: #{espnet_forward.8} parent=0
    #allocation2 [shape = 'u8[512]{0}', space=vmem, size = 0x400, scoped, tag = 'input window, operand 22, single buffered']
    #allocation3 [shape = 's32[2]{0}', space=sflag, size = 0x8, scoped, tag = 'scoped memory for espnet_forward.8']
    #allocation4 [shape = 'u8[512]{0}', space=vmem, size = 0x400, scoped, tag = 'input window, operand 24, single buffered']
    #allocation5 [shape = 's32[1]{0}', space=sflag, size = 0x4, scoped, tag = 'scoped memory for espnet_forward.8']
    #allocation6 [shape = 'u8[512]{0}', space=vmem, size = 0x400, scoped, tag = 'input window, operand 26, single buffered']
    %32 = vsyncpa [#allocation3], 0
    %33 = vsyncpa [#allocation5], 0
    loop: start=0, step=1, limit=4
    $region2: #{espnet_forward.8} parent=1 // loop_pre_header
      _
    $region3: #{espnet_forward.8} parent=1 // loop_header
      %s35 = sphi 0, %s39
      %p36 = scmp.ge.s32.totalorder %s35, 4
      %s45 = sphi 0, %s47
      %s48 = sphi 0, %s45
      %s49 = sphi 0, %s48
      %s65 = sphi 0, %s49
      %s71 = sphi 0, %s73
      %s74 = sphi 0, %s71
      %s75 = sphi 0, %s74
      %s91 = sphi 0, %s75
      %s95 = sphi 0, %s95
      %s97 = sphi 0, %s95
      %s98 = sphi 0, %s97
      %s112 = sphi 0, %s98
      %s116 = sphi 0, %s116
      %s118 = sphi 0, %s116
      %s119 = sphi 0, %s118
      %s133 = sphi 0, %s119
      %s137 = sphi 0, %s137
      %s139 = sphi 0, %s137
      %s140 = sphi 0, %s139
      %s154 = sphi 0, %s140
      %s158 = sphi 0, %s158
      %s160 = sphi 0, %s158
      %s161 = sphi 0, %s160
      %s175 = sphi 0, %s161
      %s179 = sphi 0, %s179
      %s181 = sphi 0, %s179
      %s182 = sphi 0, %s181
      %s196 = sphi 0, %s182
      %s200 = sphi 0, %s200
      %s202 = sphi 0, %s200
      %s203 = sphi 0, %s202
      %s217 = sphi 0, %s203
      %s221 = sphi 0, %s221
      %s223 = sphi 0, %s221
      %s224 = sphi 0, %s223
      %s238 = sphi 0, %s224
      %s242 = sphi 0, %s242
      %s244 = sphi 0, %s242
      %s245 = sphi 0, %s244
      %s259 = sphi 0, %s245
      %s263 = sphi 0, %s263
      %s265 = sphi 0, %s263
      %s266 = sphi 0, %s265
      %s280 = sphi 0, %s266
      %s284 = sphi 0, %s284
      %s286 = sphi 0, %s284
      %s287 = sphi 0, %s286
      %s301 = sphi 0, %s287
      %s305 = sphi 0, %s305
      %s307 = sphi 0, %s305
      %s308 = sphi 0, %s307
      %s322 = sphi 0, %s308
      %s326 = sphi 0, %s326
      %s328 = sphi 0, %s326
      %s329 = sphi 0, %s328
      %s343 = sphi 0, %s329
      %s347 = sphi 0, %s347
      %s349 = sphi 0, %s347
      %s350 = sphi 0, %s349
      %s364 = sphi 0, %s350
      %s368 = sphi 0, %s368
      %s370 = sphi 0, %s368
      %s371 = sphi 0, %s370
      %s385 = sphi 0, %s371
      %s389 = sphi 0, %s389
      %s391 = sphi 0, %s389
      %s392 = sphi 0, %s391
      %s406 = sphi 0, %s392
      %s410 = sphi 0, %s410
      %s412 = sphi 0, %s410
      %s413 = sphi 0, %s412
      %s427 = sphi 0, %s413
      %s431 = sphi 0, %s431
      %s433 = sphi 0, %s431
      %s434 = sphi 0, %s433
      %s448 = sphi 0, %s434
      %s452 = sphi 0, %s452
      %s454 = sphi 0, %s452
      %s455 = sphi 0, %s454
      %s469 = sphi 0, %s455
      %s473 = sphi 0, %s473
      %s475 = sphi 0, %s473
      %s476 = sphi 0, %s475
      %s490 = sphi 0, %s476
      %s494 = sphi 0, %s494
      %s496 = sphi 0, %s494
      %s497 = sphi 0, %s496
      %s511 = sphi 0, %s497
      %s515 = sphi 0, %s515
      %s517 = sphi 0, %s515
      %s518 = sphi 0, %s517
      %s532 = sphi 0, %s518
      %s536 = sphi 0, %s536
      %s538 = sphi 0, %s536
      %s539 = sphi 0, %s538
      %s553 = sphi 0, %s539
      %s557 = sphi 0, %s557
      %s559 = sphi 0, %s557
      %s560 = sphi 0, %s559
      %s574 = sphi 0, %s560
      %s578 = sphi 0, %s578
      %s580 = sphi 0, %s578
      %s581 = sphi 0, %s580
      %s595 = sphi 0, %s581
      %s599 = sphi 0, %s599
      %s601 = sphi 0, %s599
      %s602 = sphi 0, %s601
      %s616 = sphi 0, %s602
      %s622 = sphi 0, %s624
      %s625 = sphi 0, %s622
      %s626 = sphi 0, %s625
      %s642 = sphi 0, %s626
    $region4: #{espnet_forward.8} parent=1 // loop_header_branch
      %38 = sbr.rel (%p36) target = $region8
    $region5: #{espnet_forward.8} parent=1 // loop_body
      %s40 = ssub.s32 %s35, 1
      %s41 = ssub.s32 %s35, 2
      %s42 = sadd.s32 %s35, 1
      %s43 = ssub.s32 %s35, %s42
      %p44 = scmp.eq.s32.totalorder %s43, 0
      %s46 = sadd.s32 %s45, 1
      %s47 = scalar_select %p44, %s45, %s46
      %p50 = pneg %p44
      %p51 = scmp.eq.s32.totalorder %s35, 1
      %p52 = por %p50, %p51
      %p53 = scmp.ne.s32.totalorder %s45, %s48
      %p54 = scmp.eq.s32.totalorder %s35, 0
      %p55 = por %p53, %p54
      %p56 = scmp.ne.s32.totalorder %s45, %s48
      %p57 = scmp.eq.s32.totalorder %s40, 1
      %p58 = por %p56, %p57
      %p59 = scmp.ne.s32.totalorder %s48, %s49
      %p60 = scmp.eq.s32.totalorder %s40, 0
      %p61 = por %p59, %p60
      %p62 = scmp.ne.s32.totalorder %s48, %s49
      %p63 = scmp.eq.s32.totalorder %s41, 1
      %p64 = por %p62, %p63
      %p66 = scmp.ne.s32.totalorder %s49, %s65
      %p67 = scmp.eq.s32.totalorder %s41, 0
      %p68 = por %p66, %p67
      %s69 = ssub.s32 %s35, %s42
      %p70 = scmp.eq.s32.totalorder %s69, 0
      %s72 = sadd.s32 %s71, 1
      %s73 = scalar_select %p70, %s71, %s72
      %p76 = pneg %p70
      %p77 = scmp.eq.s32.totalorder %s35, 1
      %p78 = por %p76, %p77
      %p79 = scmp.ne.s32.totalorder %s71, %s74
      %p80 = scmp.eq.s32.totalorder %s35, 0
      %p81 = por %p79, %p80
      %p82 = scmp.ne.s32.totalorder %s71, %s74
      %p83 = scmp.eq.s32.totalorder %s40, 1
      %p84 = por %p82, %p83
      %p85 = scmp.ne.s32.totalorder %s74, %s75
      %p86 = scmp.eq.s32.totalorder %s40, 0
      %p87 = por %p85, %p86
      %p88 = scmp.ne.s32.totalorder %s74, %s75
      %p89 = scmp.eq.s32.totalorder %s41, 1
      %p90 = por %p88, %p89
      %p92 = scmp.ne.s32.totalorder %s75, %s91
      %p93 = scmp.eq.s32.totalorder %s41, 0
      %p94 = por %p92, %p93
      %s96 = sadd.s32 %s95, 1
      %p99 = scmp.eq.s32.totalorder %s35, 1
      %p100 = scmp.ne.s32.totalorder %s95, %s97
      %p101 = scmp.eq.s32.totalorder %s35, 0
      %p102 = por %p100, %p101
      %p103 = scmp.ne.s32.totalorder %s95, %s97
      %p104 = scmp.eq.s32.totalorder %s40, 1
      %p105 = por %p103, %p104
      %p106 = scmp.ne.s32.totalorder %s97, %s98
      %p107 = scmp.eq.s32.totalorder %s40, 0
      %p108 = por %p106, %p107
      %p109 = scmp.ne.s32.totalorder %s97, %s98
      %p110 = scmp.eq.s32.totalorder %s41, 1
      %p111 = por %p109, %p110
      %p113 = scmp.ne.s32.totalorder %s98, %s112
      %p114 = scmp.eq.s32.totalorder %s41, 0
      %p115 = por %p113, %p114
      %s117 = sadd.s32 %s116, 1
      %p120 = scmp.eq.s32.totalorder %s35, 1
      %p121 = scmp.ne.s32.totalorder %s116, %s118
      %p122 = scmp.eq.s32.totalorder %s35, 0
      %p123 = por %p121, %p122
      %p124 = scmp.ne.s32.totalorder %s116, %s118
      %p125 = scmp.eq.s32.totalorder %s40, 1
      %p126 = por %p124, %p125
      %p127 = scmp.ne.s32.totalorder %s118, %s119
      %p128 = scmp.eq.s32.totalorder %s40, 0
      %p129 = por %p127, %p128
      %p130 = scmp.ne.s32.totalorder %s118, %s119
      %p131 = scmp.eq.s32.totalorder %s41, 1
      %p132 = por %p130, %p131
      %p134 = scmp.ne.s32.totalorder %s119, %s133
      %p135 = scmp.eq.s32.totalorder %s41, 0
      %p136 = por %p134, %p135
      %s138 = sadd.s32 %s137, 1
      %p141 = scmp.eq.s32.totalorder %s35, 1
      %p142 = scmp.ne.s32.totalorder %s137, %s139
      %p143 = scmp.eq.s32.totalorder %s35, 0
      %p144 = por %p142, %p143
      %p145 = scmp.ne.s32.totalorder %s137, %s139
      %p146 = scmp.eq.s32.totalorder %s40, 1
      %p147 = por %p145, %p146
      %p148 = scmp.ne.s32.totalorder %s139, %s140
      %p149 = scmp.eq.s32.totalorder %s40, 0
      %p150 = por %p148, %p149
      %p151 = scmp.ne.s32.totalorder %s139, %s140
      %p152 = scmp.eq.s32.totalorder %s41, 1
      %p153 = por %p151, %p152
      %p155 = scmp.ne.s32.totalorder %s140, %s154
      %p156 = scmp.eq.s32.totalorder %s41, 0
      %p157 = por %p155, %p156
      %s159 = sadd.s32 %s158, 1
      %p162 = scmp.eq.s32.totalorder %s35, 1
      %p163 = scmp.ne.s32.totalorder %s158, %s160
      %p164 = scmp.eq.s32.totalorder %s35, 0
      %p165 = por %p163, %p164
      %p166 = scmp.ne.s32.totalorder %s158, %s160
      %p167 = scmp.eq.s32.totalorder %s40, 1
      %p168 = por %p166, %p167
      %p169 = scmp.ne.s32.totalorder %s160, %s161
      %p170 = scmp.eq.s32.totalorder %s40, 0
      %p171 = por %p169, %p170
      %p172 = scmp.ne.s32.totalorder %s160, %s161
      %p173 = scmp.eq.s32.totalorder %s41, 1
      %p174 = por %p172, %p173
      %p176 = scmp.ne.s32.totalorder %s161, %s175
      %p177 = scmp.eq.s32.totalorder %s41, 0
      %p178 = por %p176, %p177
      %s180 = sadd.s32 %s179, 1
      %p183 = scmp.eq.s32.totalorder %s35, 1
      %p184 = scmp.ne.s32.totalorder %s179, %s181
      %p185 = scmp.eq.s32.totalorder %s35, 0
      %p186 = por %p184, %p185
      %p187 = scmp.ne.s32.totalorder %s179, %s181
      %p188 = scmp.eq.s32.totalorder %s40, 1
      %p189 = por %p187, %p188
      %p190 = scmp.ne.s32.totalorder %s181, %s182
      %p191 = scmp.eq.s32.totalorder %s40, 0
      %p192 = por %p190, %p191
      %p193 = scmp.ne.s32.totalorder %s181, %s182
      %p194 = scmp.eq.s32.totalorder %s41, 1
      %p195 = por %p193, %p194
      %p197 = scmp.ne.s32.totalorder %s182, %s196
      %p198 = scmp.eq.s32.totalorder %s41, 0
      %p199 = por %p197, %p198
      %s201 = sadd.s32 %s200, 1
      %p204 = scmp.eq.s32.totalorder %s35, 1
      %p205 = scmp.ne.s32.totalorder %s200, %s202
      %p206 = scmp.eq.s32.totalorder %s35, 0
      %p207 = por %p205, %p206
      %p208 = scmp.ne.s32.totalorder %s200, %s202
      %p209 = scmp.eq.s32.totalorder %s40, 1
      %p210 = por %p208, %p209
      %p211 = scmp.ne.s32.totalorder %s202, %s203
      %p212 = scmp.eq.s32.totalorder %s40, 0
      %p213 = por %p211, %p212
      %p214 = scmp.ne.s32.totalorder %s202, %s203
      %p215 = scmp.eq.s32.totalorder %s41, 1
      %p216 = por %p214, %p215
      %p218 = scmp.ne.s32.totalorder %s203, %s217
      %p219 = scmp.eq.s32.totalorder %s41, 0
      %p220 = por %p218, %p219
      %s222 = sadd.s32 %s221, 1
      %p225 = scmp.eq.s32.totalorder %s35, 1
      %p226 = scmp.ne.s32.totalorder %s221, %s223
      %p227 = scmp.eq.s32.totalorder %s35, 0
      %p228 = por %p226, %p227
      %p229 = scmp.ne.s32.totalorder %s221, %s223
      %p230 = scmp.eq.s32.totalorder %s40, 1
      %p231 = por %p229, %p230
      %p232 = scmp.ne.s32.totalorder %s223, %s224
      %p233 = scmp.eq.s32.totalorder %s40, 0
      %p234 = por %p232, %p233
      %p235 = scmp.ne.s32.totalorder %s223, %s224
      %p236 = scmp.eq.s32.totalorder %s41, 1
      %p237 = por %p235, %p236
      %p239 = scmp.ne.s32.totalorder %s224, %s238
      %p240 = scmp.eq.s32.totalorder %s41, 0
      %p241 = por %p239, %p240
      %s243 = sadd.s32 %s242, 1
      %p246 = scmp.eq.s32.totalorder %s35, 1
      %p247 = scmp.ne.s32.totalorder %s242, %s244
      %p248 = scmp.eq.s32.totalorder %s35, 0
      %p249 = por %p247, %p248
      %p250 = scmp.ne.s32.totalorder %s242, %s244
      %p251 = scmp.eq.s32.totalorder %s40, 1
      %p252 = por %p250, %p251
      %p253 = scmp.ne.s32.totalorder %s244, %s245
      %p254 = scmp.eq.s32.totalorder %s40, 0
      %p255 = por %p253, %p254
      %p256 = scmp.ne.s32.totalorder %s244, %s245
      %p257 = scmp.eq.s32.totalorder %s41, 1
      %p258 = por %p256, %p257
      %p260 = scmp.ne.s32.totalorder %s245, %s259
      %p261 = scmp.eq.s32.totalorder %s41, 0
      %p262 = por %p260, %p261
      %s264 = sadd.s32 %s263, 1
      %p267 = scmp.eq.s32.totalorder %s35, 1
      %p268 = scmp.ne.s32.totalorder %s263, %s265
      %p269 = scmp.eq.s32.totalorder %s35, 0
      %p270 = por %p268, %p269
      %p271 = scmp.ne.s32.totalorder %s263, %s265
      %p272 = scmp.eq.s32.totalorder %s40, 1
      %p273 = por %p271, %p272
      %p274 = scmp.ne.s32.totalorder %s265, %s266
      %p275 = scmp.eq.s32.totalorder %s40, 0
      %p276 = por %p274, %p275
      %p277 = scmp.ne.s32.totalorder %s265, %s266
      %p278 = scmp.eq.s32.totalorder %s41, 1
      %p279 = por %p277, %p278
      %p281 = scmp.ne.s32.totalorder %s266, %s280
      %p282 = scmp.eq.s32.totalorder %s41, 0
      %p283 = por %p281, %p282
      %s285 = sadd.s32 %s284, 1
      %p288 = scmp.eq.s32.totalorder %s35, 1
      %p289 = scmp.ne.s32.totalorder %s284, %s286
      %p290 = scmp.eq.s32.totalorder %s35, 0
      %p291 = por %p289, %p290
      %p292 = scmp.ne.s32.totalorder %s284, %s286
      %p293 = scmp.eq.s32.totalorder %s40, 1
      %p294 = por %p292, %p293
      %p295 = scmp.ne.s32.totalorder %s286, %s287
      %p296 = scmp.eq.s32.totalorder %s40, 0
      %p297 = por %p295, %p296
      %p298 = scmp.ne.s32.totalorder %s286, %s287
      %p299 = scmp.eq.s32.totalorder %s41, 1
      %p300 = por %p298, %p299
      %p302 = scmp.ne.s32.totalorder %s287, %s301
      %p303 = scmp.eq.s32.totalorder %s41, 0
      %p304 = por %p302, %p303
      %s306 = sadd.s32 %s305, 1
      %p309 = scmp.eq.s32.totalorder %s35, 1
      %p310 = scmp.ne.s32.totalorder %s305, %s307
      %p311 = scmp.eq.s32.totalorder %s35, 0
      %p312 = por %p310, %p311
      %p313 = scmp.ne.s32.totalorder %s305, %s307
      %p314 = scmp.eq.s32.totalorder %s40, 1
      %p315 = por %p313, %p314
      %p316 = scmp.ne.s32.totalorder %s307, %s308
      %p317 = scmp.eq.s32.totalorder %s40, 0
      %p318 = por %p316, %p317
      %p319 = scmp.ne.s32.totalorder %s307, %s308
      %p320 = scmp.eq.s32.totalorder %s41, 1
      %p321 = por %p319, %p320
      %p323 = scmp.ne.s32.totalorder %s308, %s322
      %p324 = scmp.eq.s32.totalorder %s41, 0
      %p325 = por %p323, %p324
      %s327 = sadd.s32 %s326, 1
      %p330 = scmp.eq.s32.totalorder %s35, 1
      %p331 = scmp.ne.s32.totalorder %s326, %s328
      %p332 = scmp.eq.s32.totalorder %s35, 0
      %p333 = por %p331, %p332
      %p334 = scmp.ne.s32.totalorder %s326, %s328
      %p335 = scmp.eq.s32.totalorder %s40, 1
      %p336 = por %p334, %p335
      %p337 = scmp.ne.s32.totalorder %s328, %s329
      %p338 = scmp.eq.s32.totalorder %s40, 0
      %p339 = por %p337, %p338
      %p340 = scmp.ne.s32.totalorder %s328, %s329
      %p341 = scmp.eq.s32.totalorder %s41, 1
      %p342 = por %p340, %p341
      %p344 = scmp.ne.s32.totalorder %s329, %s343
      %p345 = scmp.eq.s32.totalorder %s41, 0
      %p346 = por %p344, %p345
      %s348 = sadd.s32 %s347, 1
      %p351 = scmp.eq.s32.totalorder %s35, 1
      %p352 = scmp.ne.s32.totalorder %s347, %s349
      %p353 = scmp.eq.s32.totalorder %s35, 0
      %p354 = por %p352, %p353
      %p355 = scmp.ne.s32.totalorder %s347, %s349
      %p356 = scmp.eq.s32.totalorder %s40, 1
      %p357 = por %p355, %p356
      %p358 = scmp.ne.s32.totalorder %s349, %s350
      %p359 = scmp.eq.s32.totalorder %s40, 0
      %p360 = por %p358, %p359
      %p361 = scmp.ne.s32.totalorder %s349, %s350
      %p362 = scmp.eq.s32.totalorder %s41, 1
      %p363 = por %p361, %p362
      %p365 = scmp.ne.s32.totalorder %s350, %s364
      %p366 = scmp.eq.s32.totalorder %s41, 0
      %p367 = por %p365, %p366
      %s369 = sadd.s32 %s368, 1
      %p372 = scmp.eq.s32.totalorder %s35, 1
      %p373 = scmp.ne.s32.totalorder %s368, %s370
      %p374 = scmp.eq.s32.totalorder %s35, 0
      %p375 = por %p373, %p374
      %p376 = scmp.ne.s32.totalorder %s368, %s370
      %p377 = scmp.eq.s32.totalorder %s40, 1
      %p378 = por %p376, %p377
      %p379 = scmp.ne.s32.totalorder %s370, %s371
      %p380 = scmp.eq.s32.totalorder %s40, 0
      %p381 = por %p379, %p380
      %p382 = scmp.ne.s32.totalorder %s370, %s371
      %p383 = scmp.eq.s32.totalorder %s41, 1
      %p384 = por %p382, %p383
      %p386 = scmp.ne.s32.totalorder %s371, %s385
      %p387 = scmp.eq.s32.totalorder %s41, 0
      %p388 = por %p386, %p387
      %s390 = sadd.s32 %s389, 1
      %p393 = scmp.eq.s32.totalorder %s35, 1
      %p394 = scmp.ne.s32.totalorder %s389, %s391
      %p395 = scmp.eq.s32.totalorder %s35, 0
      %p396 = por %p394, %p395
      %p397 = scmp.ne.s32.totalorder %s389, %s391
      %p398 = scmp.eq.s32.totalorder %s40, 1
      %p399 = por %p397, %p398
      %p400 = scmp.ne.s32.totalorder %s391, %s392
      %p401 = scmp.eq.s32.totalorder %s40, 0
      %p402 = por %p400, %p401
      %p403 = scmp.ne.s32.totalorder %s391, %s392
      %p404 = scmp.eq.s32.totalorder %s41, 1
      %p405 = por %p403, %p404
      %p407 = scmp.ne.s32.totalorder %s392, %s406
      %p408 = scmp.eq.s32.totalorder %s41, 0
      %p409 = por %p407, %p408
      %s411 = sadd.s32 %s410, 1
      %p414 = scmp.eq.s32.totalorder %s35, 1
      %p415 = scmp.ne.s32.totalorder %s410, %s412
      %p416 = scmp.eq.s32.totalorder %s35, 0
      %p417 = por %p415, %p416
      %p418 = scmp.ne.s32.totalorder %s410, %s412
      %p419 = scmp.eq.s32.totalorder %s40, 1
      %p420 = por %p418, %p419
      %p421 = scmp.ne.s32.totalorder %s412, %s413
      %p422 = scmp.eq.s32.totalorder %s40, 0
      %p423 = por %p421, %p422
      %p424 = scmp.ne.s32.totalorder %s412, %s413
      %p425 = scmp.eq.s32.totalorder %s41, 1
      %p426 = por %p424, %p425
      %p428 = scmp.ne.s32.totalorder %s413, %s427
      %p429 = scmp.eq.s32.totalorder %s41, 0
      %p430 = por %p428, %p429
      %s432 = sadd.s32 %s431, 1
      %p435 = scmp.eq.s32.totalorder %s35, 1
      %p436 = scmp.ne.s32.totalorder %s431, %s433
      %p437 = scmp.eq.s32.totalorder %s35, 0
      %p438 = por %p436, %p437
      %p439 = scmp.ne.s32.totalorder %s431, %s433
      %p440 = scmp.eq.s32.totalorder %s40, 1
      %p441 = por %p439, %p440
      %p442 = scmp.ne.s32.totalorder %s433, %s434
      %p443 = scmp.eq.s32.totalorder %s40, 0
      %p444 = por %p442, %p443
      %p445 = scmp.ne.s32.totalorder %s433, %s434
      %p446 = scmp.eq.s32.totalorder %s41, 1
      %p447 = por %p445, %p446
      %p449 = scmp.ne.s32.totalorder %s434, %s448
      %p450 = scmp.eq.s32.totalorder %s41, 0
      %p451 = por %p449, %p450
      %s453 = sadd.s32 %s452, 1
      %p456 = scmp.eq.s32.totalorder %s35, 1
      %p457 = scmp.ne.s32.totalorder %s452, %s454
      %p458 = scmp.eq.s32.totalorder %s35, 0
      %p459 = por %p457, %p458
      %p460 = scmp.ne.s32.totalorder %s452, %s454
      %p461 = scmp.eq.s32.totalorder %s40, 1
      %p462 = por %p460, %p461
      %p463 = scmp.ne.s32.totalorder %s454, %s455
      %p464 = scmp.eq.s32.totalorder %s40, 0
      %p465 = por %p463, %p464
      %p466 = scmp.ne.s32.totalorder %s454, %s455
      %p467 = scmp.eq.s32.totalorder %s41, 1
      %p468 = por %p466, %p467
      %p470 = scmp.ne.s32.totalorder %s455, %s469
      %p471 = scmp.eq.s32.totalorder %s41, 0
      %p472 = por %p470, %p471
      %s474 = sadd.s32 %s473, 1
      %p477 = scmp.eq.s32.totalorder %s35, 1
      %p478 = scmp.ne.s32.totalorder %s473, %s475
      %p479 = scmp.eq.s32.totalorder %s35, 0
      %p480 = por %p478, %p479
      %p481 = scmp.ne.s32.totalorder %s473, %s475
      %p482 = scmp.eq.s32.totalorder %s40, 1
      %p483 = por %p481, %p482
      %p484 = scmp.ne.s32.totalorder %s475, %s476
      %p485 = scmp.eq.s32.totalorder %s40, 0
      %p486 = por %p484, %p485
      %p487 = scmp.ne.s32.totalorder %s475, %s476
      %p488 = scmp.eq.s32.totalorder %s41, 1
      %p489 = por %p487, %p488
      %p491 = scmp.ne.s32.totalorder %s476, %s490
      %p492 = scmp.eq.s32.totalorder %s41, 0
      %p493 = por %p491, %p492
      %s495 = sadd.s32 %s494, 1
      %p498 = scmp.eq.s32.totalorder %s35, 1
      %p499 = scmp.ne.s32.totalorder %s494, %s496
      %p500 = scmp.eq.s32.totalorder %s35, 0
      %p501 = por %p499, %p500
      %p502 = scmp.ne.s32.totalorder %s494, %s496
      %p503 = scmp.eq.s32.totalorder %s40, 1
      %p504 = por %p502, %p503
      %p505 = scmp.ne.s32.totalorder %s496, %s497
      %p506 = scmp.eq.s32.totalorder %s40, 0
      %p507 = por %p505, %p506
      %p508 = scmp.ne.s32.totalorder %s496, %s497
      %p509 = scmp.eq.s32.totalorder %s41, 1
      %p510 = por %p508, %p509
      %p512 = scmp.ne.s32.totalorder %s497, %s511
      %p513 = scmp.eq.s32.totalorder %s41, 0
      %p514 = por %p512, %p513
      %s516 = sadd.s32 %s515, 1
      %p519 = scmp.eq.s32.totalorder %s35, 1
      %p520 = scmp.ne.s32.totalorder %s515, %s517
      %p521 = scmp.eq.s32.totalorder %s35, 0
      %p522 = por %p520, %p521
      %p523 = scmp.ne.s32.totalorder %s515, %s517
      %p524 = scmp.eq.s32.totalorder %s40, 1
      %p525 = por %p523, %p524
      %p526 = scmp.ne.s32.totalorder %s517, %s518
      %p527 = scmp.eq.s32.totalorder %s40, 0
      %p528 = por %p526, %p527
      %p529 = scmp.ne.s32.totalorder %s517, %s518
      %p530 = scmp.eq.s32.totalorder %s41, 1
      %p531 = por %p529, %p530
      %p533 = scmp.ne.s32.totalorder %s518, %s532
      %p534 = scmp.eq.s32.totalorder %s41, 0
      %p535 = por %p533, %p534
      %s537 = sadd.s32 %s536, 1
      %p540 = scmp.eq.s32.totalorder %s35, 1
      %p541 = scmp.ne.s32.totalorder %s536, %s538
      %p542 = scmp.eq.s32.totalorder %s35, 0
      %p543 = por %p541, %p542
      %p544 = scmp.ne.s32.totalorder %s536, %s538
      %p545 = scmp.eq.s32.totalorder %s40, 1
      %p546 = por %p544, %p545
      %p547 = scmp.ne.s32.totalorder %s538, %s539
      %p548 = scmp.eq.s32.totalorder %s40, 0
      %p549 = por %p547, %p548
      %p550 = scmp.ne.s32.totalorder %s538, %s539
      %p551 = scmp.eq.s32.totalorder %s41, 1
      %p552 = por %p550, %p551
      %p554 = scmp.ne.s32.totalorder %s539, %s553
      %p555 = scmp.eq.s32.totalorder %s41, 0
      %p556 = por %p554, %p555
      %s558 = sadd.s32 %s557, 1
      %p561 = scmp.eq.s32.totalorder %s35, 1
      %p562 = scmp.ne.s32.totalorder %s557, %s559
      %p563 = scmp.eq.s32.totalorder %s35, 0
      %p564 = por %p562, %p563
      %p565 = scmp.ne.s32.totalorder %s557, %s559
      %p566 = scmp.eq.s32.totalorder %s40, 1
      %p567 = por %p565, %p566
      %p568 = scmp.ne.s32.totalorder %s559, %s560
      %p569 = scmp.eq.s32.totalorder %s40, 0
      %p570 = por %p568, %p569
      %p571 = scmp.ne.s32.totalorder %s559, %s560
      %p572 = scmp.eq.s32.totalorder %s41, 1
      %p573 = por %p571, %p572
      %p575 = scmp.ne.s32.totalorder %s560, %s574
      %p576 = scmp.eq.s32.totalorder %s41, 0
      %p577 = por %p575, %p576
      %s579 = sadd.s32 %s578, 1
      %p582 = scmp.eq.s32.totalorder %s35, 1
      %p583 = scmp.ne.s32.totalorder %s578, %s580
      %p584 = scmp.eq.s32.totalorder %s35, 0
      %p585 = por %p583, %p584
      %p586 = scmp.ne.s32.totalorder %s578, %s580
      %p587 = scmp.eq.s32.totalorder %s40, 1
      %p588 = por %p586, %p587
      %p589 = scmp.ne.s32.totalorder %s580, %s581
      %p590 = scmp.eq.s32.totalorder %s40, 0
      %p591 = por %p589, %p590
      %p592 = scmp.ne.s32.totalorder %s580, %s581
      %p593 = scmp.eq.s32.totalorder %s41, 1
      %p594 = por %p592, %p593
      %p596 = scmp.ne.s32.totalorder %s581, %s595
      %p597 = scmp.eq.s32.totalorder %s41, 0
      %p598 = por %p596, %p597
      %s600 = sadd.s32 %s599, 1
      %p603 = scmp.eq.s32.totalorder %s35, 1
      %p604 = scmp.ne.s32.totalorder %s599, %s601
      %p605 = scmp.eq.s32.totalorder %s35, 0
      %p606 = por %p604, %p605
      %p607 = scmp.ne.s32.totalorder %s599, %s601
      %p608 = scmp.eq.s32.totalorder %s40, 1
      %p609 = por %p607, %p608
      %p610 = scmp.ne.s32.totalorder %s601, %s602
      %p611 = scmp.eq.s32.totalorder %s40, 0
      %p612 = por %p610, %p611
      %p613 = scmp.ne.s32.totalorder %s601, %s602
      %p614 = scmp.eq.s32.totalorder %s41, 1
      %p615 = por %p613, %p614
      %p617 = scmp.ne.s32.totalorder %s602, %s616
      %p618 = scmp.eq.s32.totalorder %s41, 0
      %p619 = por %p617, %p618
      %s620 = ssub.s32 %s35, %s42
      %p621 = scmp.eq.s32.totalorder %s620, 0
      %s623 = sadd.s32 %s622, 1
      %s624 = scalar_select %p621, %s622, %s623
      %p627 = pneg %p621
      %p628 = scmp.eq.s32.totalorder %s35, 1
      %p629 = por %p627, %p628
      %p630 = scmp.ne.s32.totalorder %s622, %s625
      %p631 = scmp.eq.s32.totalorder %s35, 0
      %p632 = por %p630, %p631
      %p633 = scmp.ne.s32.totalorder %s622, %s625
      %p634 = scmp.eq.s32.totalorder %s40, 1
      %p635 = por %p633, %p634
      %p636 = scmp.ne.s32.totalorder %s625, %s626
      %p637 = scmp.eq.s32.totalorder %s40, 0
      %p638 = por %p636, %p637
      %p639 = scmp.ne.s32.totalorder %s625, %s626
      %p640 = scmp.eq.s32.totalorder %s41, 1
      %p641 = por %p639, %p640
      %p643 = scmp.ne.s32.totalorder %s626, %s642
      %p644 = scmp.eq.s32.totalorder %s41, 0
      %p645 = por %p643, %p644
      %p646 = scmp.le.s32.totalorder 1, %s35
      %p647 = scmp.lt.s32.totalorder %s35, 3
      %p648 = pnand %p646, %p647
      %p649 = pneg %p648
      // Predicated region
      $region9: #{espnet_forward.8} parent=5 // pred_check
        _
      $region10: #{espnet_forward.8} parent=5 // pred_check_branch
        %651 = sbr.rel (%p648) target = $region12
      $region11: #{espnet_forward.8} parent=5 // pred_region
        %s652 = ssub.s32 %s35, 1
        // Predicated region
        $region13: #{espnet_forward.8} parent=11 // pred_check
          %p653 = pneg %p108
        $region14: #{espnet_forward.8} parent=11 // pred_check_branch
          %655 = sbr.rel (%p653) target = $region16
        $region15: #{espnet_forward.8} parent=11 // pred_region
          _
        $region16: #{espnet_forward.8} parent=11 // pred_fallthru
          _
        // Predicated region
        $region17: #{espnet_forward.8} parent=11 // pred_check
          %p656 = pneg %p129
        $region18: #{espnet_forward.8} parent=11 // pred_check_branch
          %658 = sbr.rel (%p656) target = $region20
        $region19: #{espnet_forward.8} parent=11 // pred_region
          _
        $region20: #{espnet_forward.8} parent=11 // pred_fallthru
          _
        // Predicated region
        $region21: #{espnet_forward.8} parent=11 // pred_check
          %p659 = pneg %p150
        $region22: #{espnet_forward.8} parent=11 // pred_check_branch
          %661 = sbr.rel (%p659) target = $region24
        $region23: #{espnet_forward.8} parent=11 // pred_region
          _
        $region24: #{espnet_forward.8} parent=11 // pred_fallthru
          _
        // Predicated region
        $region25: #{espnet_forward.8} parent=11 // pred_check
          %p662 = pneg %p171
        $region26: #{espnet_forward.8} parent=11 // pred_check_branch
          %664 = sbr.rel (%p662) target = $region28
        $region27: #{espnet_forward.8} parent=11 // pred_region
          _
        $region28: #{espnet_forward.8} parent=11 // pred_fallthru
          _
        // Predicated region
        $region29: #{espnet_forward.8} parent=11 // pred_check
          %p665 = pneg %p192
        $region30: #{espnet_forward.8} parent=11 // pred_check_branch
          %667 = sbr.rel (%p665) target = $region32
        $region31: #{espnet_forward.8} parent=11 // pred_region
          _
        $region32: #{espnet_forward.8} parent=11 // pred_fallthru
          _
        // Predicated region
        $region33: #{espnet_forward.8} parent=11 // pred_check
          %p668 = pneg %p213
        $region34: #{espnet_forward.8} parent=11 // pred_check_branch
          %670 = sbr.rel (%p668) target = $region36
        $region35: #{espnet_forward.8} parent=11 // pred_region
          _
        $region36: #{espnet_forward.8} parent=11 // pred_fallthru
          _
        // Predicated region
        $region37: #{espnet_forward.8} parent=11 // pred_check
          %p671 = pneg %p234
        $region38: #{espnet_forward.8} parent=11 // pred_check_branch
          %673 = sbr.rel (%p671) target = $region40
        $region39: #{espnet_forward.8} parent=11 // pred_region
          _
        $region40: #{espnet_forward.8} parent=11 // pred_fallthru
          _
        // Predicated region
        $region41: #{espnet_forward.8} parent=11 // pred_check
          %p674 = pneg %p255
        $region42: #{espnet_forward.8} parent=11 // pred_check_branch
          %676 = sbr.rel (%p674) target = $region44
        $region43: #{espnet_forward.8} parent=11 // pred_region
          _
        $region44: #{espnet_forward.8} parent=11 // pred_fallthru
          _
        // Predicated region
        $region45: #{espnet_forward.8} parent=11 // pred_check
          %p677 = pneg %p276
        $region46: #{espnet_forward.8} parent=11 // pred_check_branch
          %679 = sbr.rel (%p677) target = $region48
        $region47: #{espnet_forward.8} parent=11 // pred_region
          _
        $region48: #{espnet_forward.8} parent=11 // pred_fallthru
          _
        // Predicated region
        $region49: #{espnet_forward.8} parent=11 // pred_check
          %p680 = pneg %p297
        $region50: #{espnet_forward.8} parent=11 // pred_check_branch
          %682 = sbr.rel (%p680) target = $region52
        $region51: #{espnet_forward.8} parent=11 // pred_region
          _
        $region52: #{espnet_forward.8} parent=11 // pred_fallthru
          _
        // Predicated region
        $region53: #{espnet_forward.8} parent=11 // pred_check
          %p683 = pneg %p318
        $region54: #{espnet_forward.8} parent=11 // pred_check_branch
          %685 = sbr.rel (%p683) target = $region56
        $region55: #{espnet_forward.8} parent=11 // pred_region
          _
        $region56: #{espnet_forward.8} parent=11 // pred_fallthru
          _
        // Predicated region
        $region57: #{espnet_forward.8} parent=11 // pred_check
          %p686 = pneg %p339
        $region58: #{espnet_forward.8} parent=11 // pred_check_branch
          %688 = sbr.rel (%p686) target = $region60
        $region59: #{espnet_forward.8} parent=11 // pred_region
          _
        $region60: #{espnet_forward.8} parent=11 // pred_fallthru
          _
        // Predicated region
        $region61: #{espnet_forward.8} parent=11 // pred_check
          %p689 = pneg %p360
        $region62: #{espnet_forward.8} parent=11 // pred_check_branch
          %691 = sbr.rel (%p689) target = $region64
        $region63: #{espnet_forward.8} parent=11 // pred_region
          _
        $region64: #{espnet_forward.8} parent=11 // pred_fallthru
          _
        // Predicated region
        $region65: #{espnet_forward.8} parent=11 // pred_check
          %p692 = pneg %p381
        $region66: #{espnet_forward.8} parent=11 // pred_check_branch
          %694 = sbr.rel (%p692) target = $region68
        $region67: #{espnet_forward.8} parent=11 // pred_region
          _
        $region68: #{espnet_forward.8} parent=11 // pred_fallthru
          _
        // Predicated region
        $region69: #{espnet_forward.8} parent=11 // pred_check
          %p695 = pneg %p402
        $region70: #{espnet_forward.8} parent=11 // pred_check_branch
          %697 = sbr.rel (%p695) target = $region72
        $region71: #{espnet_forward.8} parent=11 // pred_region
          _
        $region72: #{espnet_forward.8} parent=11 // pred_fallthru
          _
        // Predicated region
        $region73: #{espnet_forward.8} parent=11 // pred_check
          %p698 = pneg %p423
        $region74: #{espnet_forward.8} parent=11 // pred_check_branch
          %700 = sbr.rel (%p698) target = $region76
        $region75: #{espnet_forward.8} parent=11 // pred_region
          _
        $region76: #{espnet_forward.8} parent=11 // pred_fallthru
          _
        // Predicated region
        $region77: #{espnet_forward.8} parent=11 // pred_check
          %p701 = pneg %p444
        $region78: #{espnet_forward.8} parent=11 // pred_check_branch
          %703 = sbr.rel (%p701) target = $region80
        $region79: #{espnet_forward.8} parent=11 // pred_region
          _
        $region80: #{espnet_forward.8} parent=11 // pred_fallthru
          _
        // Predicated region
        $region81: #{espnet_forward.8} parent=11 // pred_check
          %p704 = pneg %p465
        $region82: #{espnet_forward.8} parent=11 // pred_check_branch
          %706 = sbr.rel (%p704) target = $region84
        $region83: #{espnet_forward.8} parent=11 // pred_region
          _
        $region84: #{espnet_forward.8} parent=11 // pred_fallthru
          _
        // Predicated region
        $region85: #{espnet_forward.8} parent=11 // pred_check
          %p707 = pneg %p486
        $region86: #{espnet_forward.8} parent=11 // pred_check_branch
          %709 = sbr.rel (%p707) target = $region88
        $region87: #{espnet_forward.8} parent=11 // pred_region
          _
        $region88: #{espnet_forward.8} parent=11 // pred_fallthru
          _
        // Predicated region
        $region89: #{espnet_forward.8} parent=11 // pred_check
          %p710 = pneg %p507
        $region90: #{espnet_forward.8} parent=11 // pred_check_branch
          %712 = sbr.rel (%p710) target = $region92
        $region91: #{espnet_forward.8} parent=11 // pred_region
          _
        $region92: #{espnet_forward.8} parent=11 // pred_fallthru
          _
        // Predicated region
        $region93: #{espnet_forward.8} parent=11 // pred_check
          %p713 = pneg %p528
        $region94: #{espnet_forward.8} parent=11 // pred_check_branch
          %715 = sbr.rel (%p713) target = $region96
        $region95: #{espnet_forward.8} parent=11 // pred_region
          %s717 = ssub.s32 16, 16
          %718 = vsyncadd [#allocation3], %s717
          %s720 = sshll.u32 [#allocation2], 4
          %s721 = int_to_ptr.vmem [resolvable:$true] %s720
          %723 = dma.hbm_to_vmem [thread:$0]  %s22, 16, %s721, [#allocation3]
        $region96: #{espnet_forward.8} parent=11 // pred_fallthru
          _
        // Predicated region
        $region97: #{espnet_forward.8} parent=11 // pred_check
          %p724 = pneg %p549
        $region98: #{espnet_forward.8} parent=11 // pred_check_branch
          %726 = sbr.rel (%p724) target = $region100
        $region99: #{espnet_forward.8} parent=11 // pred_region
          _
        $region100: #{espnet_forward.8} parent=11 // pred_fallthru
          _
        // Predicated region
        $region101: #{espnet_forward.8} parent=11 // pred_check
          %p727 = pneg %p570
        $region102: #{espnet_forward.8} parent=11 // pred_check_branch
          %729 = sbr.rel (%p727) target = $region104
        $region103: #{espnet_forward.8} parent=11 // pred_region
          %s731 = ssub.s32 16, 16
          %732 = vsyncadd [#allocation5], %s731
          %s734 = sshll.u32 [#allocation4], 4
          %s735 = int_to_ptr.vmem [resolvable:$true] %s734
          %737 = dma.hbm_to_vmem [thread:$0]  %s24, 16, %s735, [#allocation5]
        $region104: #{espnet_forward.8} parent=11 // pred_fallthru
          _
        // Predicated region
        $region105: #{espnet_forward.8} parent=11 // pred_check
          %p738 = pneg %p591
        $region106: #{espnet_forward.8} parent=11 // pred_check_branch
          %740 = sbr.rel (%p738) target = $region108
        $region107: #{espnet_forward.8} parent=11 // pred_region
          _
        $region108: #{espnet_forward.8} parent=11 // pred_fallthru
          _
        // Predicated region
        $region109: #{espnet_forward.8} parent=11 // pred_check
          %p741 = pneg %p612
        $region110: #{espnet_forward.8} parent=11 // pred_check_branch
          %743 = sbr.rel (%p741) target = $region112
        $region111: #{espnet_forward.8} parent=11 // pred_region
          %s745 = ssub.s32 16, 16
          %746 = vsyncadd [#allocation5], %s745
          %s748 = sshll.u32 [#allocation6], 4
          %s749 = int_to_ptr.vmem [resolvable:$true] %s748
          %751 = dma.hbm_to_vmem [thread:$0]  %s26, 16, %s749, [#allocation5]
        $region112: #{espnet_forward.8} parent=11 // pred_fallthru
          _
      $region12: #{espnet_forward.8} parent=5 // pred_fallthru
        _
      %p752 = scmp.lt.s32.totalorder %s35, 2
      // Predicated region
      $region113: #{espnet_forward.8} parent=5 // pred_check
        %p753 = pneg %p752
      $region114: #{espnet_forward.8} parent=5 // pred_check_branch
        %755 = sbr.rel (%p753) target = $region116
      $region115: #{espnet_forward.8} parent=5 // pred_region
        // Predicated region
        $region117: #{espnet_forward.8} parent=115 // pred_check
          %p756 = pneg %p55
        $region118: #{espnet_forward.8} parent=115 // pred_check_branch
          %758 = sbr.rel (%p756) target = $region120
        $region119: #{espnet_forward.8} parent=115 // pred_region
          %p759 = scmp.lt.s32.totalorder %s35, 1
          %s760 = scalar_select %p759, %s35, 1
          %s761 = smul.addr %s760, 8
          %s762 = scalar_lea.vmem %s0, %s761
        $region120: #{espnet_forward.8} parent=115 // pred_fallthru
          _
        // Predicated region
        $region121: #{espnet_forward.8} parent=115 // pred_check
          %p763 = pneg %p81
        $region122: #{espnet_forward.8} parent=115 // pred_check_branch
          %765 = sbr.rel (%p763) target = $region124
        $region123: #{espnet_forward.8} parent=115 // pred_region
          %p766 = scmp.lt.s32.totalorder %s35, 1
          %s767 = scalar_select %p766, %s35, 1
          %s768 = scalar_lea.vmem %s1, %s767
        $region124: #{espnet_forward.8} parent=115 // pred_fallthru
          _
      $region116: #{espnet_forward.8} parent=5 // pred_fallthru
        _
      %p769 = scmp.le.s32.totalorder 1, %s35
      %p770 = scmp.lt.s32.totalorder %s35, 3
      %p771 = pnand %p769, %p770
      %p772 = pneg %p771
      // Predicated region
      $region125: #{espnet_forward.8} parent=5 // pred_check
        _
      $region126: #{espnet_forward.8} parent=5 // pred_check_branch
        %774 = sbr.rel (%p771) target = $region128
      $region127: #{espnet_forward.8} parent=5 // pred_region
        %s775 = ssub.s32 %s35, 1
        // Predicated region
        $region129: #{espnet_forward.8} parent=127 // pred_check
          %p776 = pneg %p528
        $region130: #{espnet_forward.8} parent=127 // pred_check_branch
          %778 = sbr.rel (%p776) target = $region132
        $region131: #{espnet_forward.8} parent=127 // pred_region
          %779 = dma.done [#allocation3], 16
        $region132: #{espnet_forward.8} parent=127 // pred_fallthru
          _
        // Predicated region
        $region133: #{espnet_forward.8} parent=127 // pred_check
          %p780 = pneg %p570
        $region134: #{espnet_forward.8} parent=127 // pred_check_branch
          %782 = sbr.rel (%p780) target = $region136
        $region135: #{espnet_forward.8} parent=127 // pred_region
          %783 = dma.done [#allocation5], 16
        $region136: #{espnet_forward.8} parent=127 // pred_fallthru
          _
        // Predicated region
        $region137: #{espnet_forward.8} parent=127 // pred_check
          %p784 = pneg %p612
        $region138: #{espnet_forward.8} parent=127 // pred_check_branch
          %786 = sbr.rel (%p784) target = $region140
        $region139: #{espnet_forward.8} parent=127 // pred_region
          %787 = dma.done [#allocation5], 16
        $region140: #{espnet_forward.8} parent=127 // pred_fallthru
          _
        %p788 = scmp.lt.s32.totalorder %s40, 1
        %s789 = scalar_select %p788, %s40, 1
        %s790 = smul.addr %s789, 8
        %s791 = scalar_lea.vmem %s0, %s790
        %p792 = pneg %p61
        %p793 = pneg %p58
        %p794 = scmp.lt.s32.totalorder %s40, 1
        %s795 = scalar_select %p794, %s40, 1
        %s796 = scalar_lea.vmem %s1, %s795
        %p797 = pneg %p87
        %p798 = pneg %p84
        %p799 = pneg %p108
        %p800 = pneg %p105
        %p801 = pneg %p129
        %p802 = pneg %p126
        %p803 = pneg %p150
        %p804 = pneg %p147
        %p805 = pneg %p171
        %p806 = pneg %p168
        %p807 = pneg %p192
        %p808 = pneg %p189
        %p809 = pneg %p213
        %p810 = pneg %p210
        %p811 = pneg %p234
        %p812 = pneg %p231
        %p813 = pneg %p255
        %p814 = pneg %p252
        %p815 = pneg %p276
        %p816 = pneg %p273
        %p817 = pneg %p297
        %p818 = pneg %p294
        %p819 = pneg %p318
        %p820 = pneg %p315
        %p821 = pneg %p339
        %p822 = pneg %p336
        %p823 = pneg %p360
        %p824 = pneg %p357
        %p825 = pneg %p381
        %p826 = pneg %p378
        %p827 = pneg %p402
        %p828 = pneg %p399
        %p829 = pneg %p423
        %p830 = pneg %p420
        %p831 = pneg %p444
        %p832 = pneg %p441
        %p833 = pneg %p465
        %p834 = pneg %p462
        %p835 = pneg %p486
        %p836 = pneg %p483
        %p837 = pneg %p507
        %p838 = pneg %p504
        %p839 = pneg %p528
        %p840 = pneg %p525
        %p841 = pneg %p549
        %p842 = pneg %p546
        %p843 = pneg %p570
        %p844 = pneg %p567
        %p845 = pneg %p591
        %p846 = pneg %p588
        %p847 = pneg %p612
        %p848 = pneg %p609
        %p849 = pneg %p638
        %p850 = pneg %p635
        %p851 = scmp.lt.s32.totalorder %s40, 1
        %s852 = scalar_select %p851, %s40, 1
        %s853 = smul.addr %s852, 8
        %s854 = scalar_lea.vmem %s27, %s853
        %p855 = scmp.lt.s32.totalorder %s40, 1
        %s856 = scalar_select %p855, %s40, 1
        %s857 = smul.addr %s856, 8
        %s858 = scalar_lea.vmem %s0, %s857
        %p859 = scmp.lt.s32.totalorder %s40, 1
        %s860 = scalar_select %p859, %s40, 1
        %s861 = scalar_lea.vmem %s1, %s860
        %p862 = scmp.lt.s32.totalorder %s40, 1
        %s863 = scalar_select %p862, %s40, 1
        %s864 = smul.addr %s863, 8
        %s865 = scalar_lea.vmem %s27, %s864
        %v866 = vld [vmem:[%s858] sm:$0x7f]
        %v867 = vld [vmem:[%s861] sm:$0x1]
        %vm868 = vcmp.lt.f32.partialorder %v867, 0.5
        %v869 = vld [vmem:[%s2] sm:$0x1f]
        %v870 = vld [vmem:[%s3] sm:$0x1f]
        %vm871 = vcmask 260096
        %v872 = vsel %vm871, %v866, 0.0
        %873 = vadd.xlane.f32.xlu0 %v872
        %v874 = vpop.xlane.xlu0 %873
        %v875 = vrcp.pop 32.0
        %v876 = vmul.f32 %v874, %v875
        %v877 = vsub.f32 %v866, %v876
        %v878 = vmul.f32 %v877, %v877
        %v879 = vsel %vm871, %v878, 0.0
        %880 = vadd.xlane.f32.xlu0 %v879
        %v881 = vpop.xlane.xlu0 %880
        %v882 = vmul.f32 %v881, %v875
        %v883 = vadd.f32 %v882, 1e-12
        %v884 = vrsqrt.pop %v883
        %v885 = vmul.f32 %v877, %v884
        %v886 = vlaneseq
        %v887 = vshrl.u32 %v886, 7
        %v888 = vsub.s32 0, %v887
        %v889 = vrot.slane %v869, %v888
        %v890 = vmul.f32 %v885, %v889
        %v891 = vlaneseq
        %v892 = vshrl.u32 %v891, 7
        %v893 = vsub.s32 0, %v892
        %v894 = vrot.slane %v870, %v893
        %v895 = vadd.f32 %v890, %v894
        %v896 = vld [vmem:[%s4] sm:$0xff]
        %v897 = vld [vmem:[%s4 + $0x8] sm:$0xff]
        %v898 = vld [vmem:[%s4 + $0x10] sm:$0xff]
        %v899 = vld [vmem:[%s4 + $0x18] sm:$0xff]
        %v900 = vld [vmem:[%s5] sm:$0x1]
        %v902 = vlaneseq
        %v903 = vshrl.u32 %v902, 7
        %v904 = vsub.s32 0, %v903
        %v905 = vrot.slane %v900, %v904
        %vm907 = vcmask 261120
        %v909 = vsel %vm907, %v895, 0
        %911 = vmatprep.subr.mxu0 0.0
        %912 = vmatpush1.msra.mxu0 0.0
        %913 = vmatprep.subr.mxu0 0.0
        %914 = vmatpush1.msra.mxu0 0.0
        %915 = vmatprep.subr.mxu0 0.0
        %916 = vmatpush1.msra.mxu0 0.0
        %917 = vmatprep.subr.mxu0 0.0
        %918 = vmatpush1.msra.mxu0 0.0
        %919 = vmatprep.subr.mxu0 0.0
        %920 = vmatpush1.msra.mxu0 0.0
        %921 = vmatprep.subr.mxu0 0.0
        %922 = vmatpush1.msra.mxu0 0.0
        %923 = vmatprep.subr.mxu0 0.0
        %924 = vmatpush1.msra.mxu0 0.0
        %925 = vmatprep.subr.mxu0 0.0
        %926 = vmatpush1.msra.mxu0 0.0
        %927 = vmatprep.subr.mxu0 0.0
        %928 = vmatpush1.msra.mxu0 0.0
        %929 = vmatprep.subr.mxu0 0.0
        %930 = vmatpush1.msra.mxu0 0.0
        %931 = vmatprep.subr.mxu0 0.0
        %932 = vmatpush1.msra.mxu0 0.0
        %933 = vmatprep.subr.mxu0 0.0
        %934 = vmatpush1.msra.mxu0 0.0
        %935 = vmatprep.subr.mxu0 0.0
        %936 = vmatpush1.msra.mxu0 %v899
        %937 = vmatprep.subr.mxu0 0.0
        %938 = vmatpush1.msra.mxu0 %v898
        %939 = vmatprep.subr.mxu0 0.0
        %940 = vmatpush1.msra.mxu0 %v897
        %941 = vmatprep.subr.mxu0 0.0
        %942 = vmatpush1.msra.mxu0 %v896
        %943 = vmatprep.subr.mxu0 0.0
        %944 = vmatpush2.msra.mxu0 0.0
        %945 = vmatprep.subr.mxu0 0.0
        %946 = vmatpush2.msra.mxu0 0.0
        %947 = vmatprep.subr.mxu0 0.0
        %948 = vmatpush2.msra.mxu0 0.0
        %949 = vmatprep.subr.mxu0 0.0
        %950 = vmatpush2.msra.mxu0 0.0
        %951 = vmatprep.subr.mxu0 0.0
        %952 = vmatpush2.msra.mxu0 0.0
        %953 = vmatprep.subr.mxu0 0.0
        %954 = vmatpush2.msra.mxu0 0.0
        %955 = vmatprep.subr.mxu0 0.0
        %956 = vmatpush2.msra.mxu0 0.0
        %957 = vmatprep.subr.mxu0 0.0
        %958 = vmatpush2.msra.mxu0 0.0
        %959 = vmatprep.subr.mxu0 0.0
        %960 = vmatpush2.msra.mxu0 0.0
        %961 = vmatprep.subr.mxu0 0.0
        %962 = vmatpush2.msra.mxu0 0.0
        %963 = vmatprep.subr.mxu0 0.0
        %964 = vmatpush2.msra.mxu0 0.0
        %965 = vmatprep.subr.mxu0 0.0
        %966 = vmatpush2.msra.mxu0 0.0
        %967 = vmatprep.subr.mxu0 0.0
        %968 = vmatpush2.msra.mxu0 0.0
        %969 = vmatprep.subr.mxu0 0.0
        %970 = vmatpush2.msra.mxu0 0.0
        %971 = vmatprep.subr.mxu0 0.0
        %972 = vmatpush2.msra.mxu0 0.0
        %973 = vmatprep.subr.mxu0 0.0
        %974 = vmatpush2.msra.mxu0 0.0
        %975 = vmatprep.mubr.f32.mxu0 0.0
        %976 = vmatmul.mubr.f32.gmra.mxu0 %v909
        %v977 = vpop.f32.mrf.mxu0
        %v978 = vadd.f32 %v905, %v977
        %v979 = vpop.f32.mrf.mxu0
        %980 = vdwg.mxu0
        %v981 = vsub.f32 0.0, %v978
        %v982 = vmul.f32 %v981, 1.442695
        %v983 = vpow.pop %v982
        %v984 = vadd.f32 %v983, 1.0
        %v985 = vrcp.pop %v984
        %v986 = vmul.f32 1.0, %v985
        %v987 = vmul.f32 %v978, %v986
        %v988 = vld [vmem:[%s6] sm:$0xff]
        %v989 = vld [vmem:[%s6 + $0x8] sm:$0xff]
        %v990 = vld [vmem:[%s6 + $0x10] sm:$0xff]
        %v991 = vld [vmem:[%s6 + $0x18] sm:$0xff]
        %v992 = vld [vmem:[%s6 + $0x20] sm:$0xff]
        %v993 = vld [vmem:[%s6 + $0x28] sm:$0xff]
        %v994 = vld [vmem:[%s6 + $0x30] sm:$0xff]
        %v995 = vld [vmem:[%s6 + $0x38] sm:$0xff]
        %v996 = vld [vmem:[%s7] sm:$0x1]
        %v998 = vlaneseq
        %v999 = vshrl.u32 %v998, 7
        %v1000 = vsub.s32 0, %v999
        %v1001 = vrot.slane %v996, %v1000
        %vm1003 = vcmask 523264
        %v1005 = vsel %vm1003, %v987, 0
        %1007 = vmatprep.subr.mxu0 0.0
        %1008 = vmatpush1.msra.mxu0 0.0
        %1009 = vmatprep.subr.mxu0 0.0
        %1010 = vmatpush1.msra.mxu0 0.0
        %1011 = vmatprep.subr.mxu0 0.0
        %1012 = vmatpush1.msra.mxu0 0.0
        %1013 = vmatprep.subr.mxu0 0.0
        %1014 = vmatpush1.msra.mxu0 0.0
        %1015 = vmatprep.subr.mxu0 0.0
        %1016 = vmatpush1.msra.mxu0 0.0
        %1017 = vmatprep.subr.mxu0 0.0
        %1018 = vmatpush1.msra.mxu0 0.0
        %1019 = vmatprep.subr.mxu0 0.0
        %1020 = vmatpush1.msra.mxu0 0.0
        %1021 = vmatprep.subr.mxu0 0.0
        %1022 = vmatpush1.msra.mxu0 0.0
        %1023 = vmatprep.subr.mxu0 0.0
        %1024 = vmatpush1.msra.mxu0 %v995
        %1025 = vmatprep.subr.mxu0 0.0
        %1026 = vmatpush1.msra.mxu0 %v994
        %1027 = vmatprep.subr.mxu0 0.0
        %1028 = vmatpush1.msra.mxu0 %v993
        %1029 = vmatprep.subr.mxu0 0.0
        %1030 = vmatpush1.msra.mxu0 %v992
        %1031 = vmatprep.subr.mxu0 0.0
        %1032 = vmatpush1.msra.mxu0 %v991
        %1033 = vmatprep.subr.mxu0 0.0
        %1034 = vmatpush1.msra.mxu0 %v990
        %1035 = vmatprep.subr.mxu0 0.0
        %1036 = vmatpush1.msra.mxu0 %v989
        %1037 = vmatprep.subr.mxu0 0.0
        %1038 = vmatpush1.msra.mxu0 %v988
        %1039 = vmatprep.subr.mxu0 0.0
        %1040 = vmatpush2.msra.mxu0 0.0
        %1041 = vmatprep.subr.mxu0 0.0
        %1042 = vmatpush2.msra.mxu0 0.0
        %1043 = vmatprep.subr.mxu0 0.0
        %1044 = vmatpush2.msra.mxu0 0.0
        %1045 = vmatprep.subr.mxu0 0.0
        %1046 = vmatpush2.msra.mxu0 0.0
        %1047 = vmatprep.subr.mxu0 0.0
        %1048 = vmatpush2.msra.mxu0 0.0
        %1049 = vmatprep.subr.mxu0 0.0
        %1050 = vmatpush2.msra.mxu0 0.0
        %1051 = vmatprep.subr.mxu0 0.0
        %1052 = vmatpush2.msra.mxu0 0.0
        %1053 = vmatprep.subr.mxu0 0.0
        %1054 = vmatpush2.msra.mxu0 0.0
        %1055 = vmatprep.subr.mxu0 0.0
        %1056 = vmatpush2.msra.mxu0 0.0
        %1057 = vmatprep.subr.mxu0 0.0
        %1058 = vmatpush2.msra.mxu0 0.0
        %1059 = vmatprep.subr.mxu0 0.0
        %1060 = vmatpush2.msra.mxu0 0.0
        %1061 = vmatprep.subr.mxu0 0.0
        %1062 = vmatpush2.msra.mxu0 0.0
        %1063 = vmatprep.subr.mxu0 0.0
        %1064 = vmatpush2.msra.mxu0 0.0
        %1065 = vmatprep.subr.mxu0 0.0
        %1066 = vmatpush2.msra.mxu0 0.0
        %1067 = vmatprep.subr.mxu0 0.0
        %1068 = vmatpush2.msra.mxu0 0.0
        %1069 = vmatprep.subr.mxu0 0.0
        %1070 = vmatpush2.msra.mxu0 0.0
        %1071 = vmatprep.mubr.f32.mxu0 0.0
        %1072 = vmatmul.mubr.f32.gmra.mxu0 %v1005
        %v1073 = vpop.f32.mrf.mxu0
        %v1074 = vadd.f32 %v1001, %v1073
        %v1075 = vpop.f32.mrf.mxu0
        %1076 = vdwg.mxu0
        %v1077 = vmul.f32 %v1074, 0.5
        %v1078 = vadd.f32 %v866, %v1077
        %v1079 = vsel %vm871, %v1078, 0.0
        %1080 = vadd.xlane.f32.xlu0 %v1079
        %v1081 = vpop.xlane.xlu0 %1080
        %v1082 = vmul.f32 %v1081, %v875
        %v1083 = vsub.f32 %v1078, %v1082
        %v1084 = vmul.f32 %v1083, %v1083
        %v1085 = vsel %vm871, %v1084, 0.0
        %1086 = vadd.xlane.f32.xlu0 %v1085
        %v1087 = vpop.xlane.xlu0 %1086
        %v1088 = vmul.f32 %v1087, %v875
        %v1089 = vadd.f32 %v1088, 1e-12
        %v1090 = vrsqrt.pop %v1089
        %v1091 = vmul.f32 %v1083, %v1090
        %v1092 = vlaneseq
        %v1093 = vshrl.u32 %v1092, 7
        %v1094 = vsub.s32 1, %v1093
        %v1095 = vrot.slane %v869, %v1094
        %v1096 = vmul.f32 %v1091, %v1095
        %v1097 = vlaneseq
        %v1098 = vshrl.u32 %v1097, 7
        %v1099 = vsub.s32 1, %v1098
        %v1100 = vrot.slane %v870, %v1099
        %v1101 = vadd.f32 %v1096, %v1100
        %v1102 = vld [vmem:[%s8] sm:$0xff]
        %v1103 = vld [vmem:[%s8 + $0x8] sm:$0xff]
        %v1104 = vld [vmem:[%s8 + $0x10] sm:$0xff]
        %v1105 = vld [vmem:[%s8 + $0x18] sm:$0xff]
        %v1106 = vld [vmem:[%s9] sm:$0x1]
        %v1108 = vlaneseq
        %v1109 = vshrl.u32 %v1108, 7
        %v1110 = vsub.s32 0, %v1109
        %v1111 = vrot.slane %v1106, %v1110
        %v1114 = vsel %vm907, %v1101, 0
        %1116 = vmatprep.subr.mxu0 0.0
        %1117 = vmatpush1.msra.mxu0 0.0
        %1118 = vmatprep.subr.mxu0 0.0
        %1119 = vmatpush1.msra.mxu0 0.0
        %1120 = vmatprep.subr.mxu0 0.0
        %1121 = vmatpush1.msra.mxu0 0.0
        %1122 = vmatprep.subr.mxu0 0.0
        %1123 = vmatpush1.msra.mxu0 0.0
        %1124 = vmatprep.subr.mxu0 0.0
        %1125 = vmatpush1.msra.mxu0 0.0
        %1126 = vmatprep.subr.mxu0 0.0
        %1127 = vmatpush1.msra.mxu0 0.0
        %1128 = vmatprep.subr.mxu0 0.0
        %1129 = vmatpush1.msra.mxu0 0.0
        %1130 = vmatprep.subr.mxu0 0.0
        %1131 = vmatpush1.msra.mxu0 0.0
        %1132 = vmatprep.subr.mxu0 0.0
        %1133 = vmatpush1.msra.mxu0 0.0
        %1134 = vmatprep.subr.mxu0 0.0
        %1135 = vmatpush1.msra.mxu0 0.0
        %1136 = vmatprep.subr.mxu0 0.0
        %1137 = vmatpush1.msra.mxu0 0.0
        %1138 = vmatprep.subr.mxu0 0.0
        %1139 = vmatpush1.msra.mxu0 0.0
        %1140 = vmatprep.subr.mxu0 0.0
        %1141 = vmatpush1.msra.mxu0 %v1105
        %1142 = vmatprep.subr.mxu0 0.0
        %1143 = vmatpush1.msra.mxu0 %v1104
        %1144 = vmatprep.subr.mxu0 0.0
        %1145 = vmatpush1.msra.mxu0 %v1103
        %1146 = vmatprep.subr.mxu0 0.0
        %1147 = vmatpush1.msra.mxu0 %v1102
        %1148 = vmatprep.subr.mxu0 0.0
        %1149 = vmatpush2.msra.mxu0 0.0
        %1150 = vmatprep.subr.mxu0 0.0
        %1151 = vmatpush2.msra.mxu0 0.0
        %1152 = vmatprep.subr.mxu0 0.0
        %1153 = vmatpush2.msra.mxu0 0.0
        %1154 = vmatprep.subr.mxu0 0.0
        %1155 = vmatpush2.msra.mxu0 0.0
        %1156 = vmatprep.subr.mxu0 0.0
        %1157 = vmatpush2.msra.mxu0 0.0
        %1158 = vmatprep.subr.mxu0 0.0
        %1159 = vmatpush2.msra.mxu0 0.0
        %1160 = vmatprep.subr.mxu0 0.0
        %1161 = vmatpush2.msra.mxu0 0.0
        %1162 = vmatprep.subr.mxu0 0.0
        %1163 = vmatpush2.msra.mxu0 0.0
        %1164 = vmatprep.subr.mxu0 0.0
        %1165 = vmatpush2.msra.mxu0 0.0
        %1166 = vmatprep.subr.mxu0 0.0
        %1167 = vmatpush2.msra.mxu0 0.0
        %1168 = vmatprep.subr.mxu0 0.0
        %1169 = vmatpush2.msra.mxu0 0.0
        %1170 = vmatprep.subr.mxu0 0.0
        %1171 = vmatpush2.msra.mxu0 0.0
        %1172 = vmatprep.subr.mxu0 0.0
        %1173 = vmatpush2.msra.mxu0 0.0
        %1174 = vmatprep.subr.mxu0 0.0
        %1175 = vmatpush2.msra.mxu0 0.0
        %1176 = vmatprep.subr.mxu0 0.0
        %1177 = vmatpush2.msra.mxu0 0.0
        %1178 = vmatprep.subr.mxu0 0.0
        %1179 = vmatpush2.msra.mxu0 0.0
        %1180 = vmatprep.mubr.f32.mxu0 0.0
        %1181 = vmatmul.mubr.f32.gmra.mxu0 %v1114
        %v1182 = vpop.f32.mrf.mxu0
        %v1183 = vadd.f32 %v1111, %v1182
        %v1184 = vpop.f32.mrf.mxu0
        %1185 = vdwg.mxu0
        %v1186 = vld [vmem:[%s10] sm:$0x1]
        %v1188 = vlaneseq
        %v1189 = vshrl.u32 %v1188, 7
        %v1190 = vsub.s32 0, %v1189
        %v1191 = vrot.slane %v1186, %v1190
        %v1193 = vadd.f32 %v1183, %v1191
        %v1194 = vld [vmem:[%s11] sm:$0x1]
        %v1196 = vlaneseq
        %v1197 = vshrl.u32 %v1196, 7
        %v1198 = vsub.s32 0, %v1197
        %v1199 = vrot.slane %v1194, %v1198
        %v1201 = vadd.f32 %v1183, %v1199
        %v1202 = vlaneseq
        %v1203 = vshrl.u32 %v1202, 7
        %v1204 = vlaneseq
        %v1205 = vand.u32 %v1204, 127
        %v1206 = vadd.s32 %v1203, 1
        %vm1207 = vcmp.eq.s32.totalorder %v1205, %v1206
        %v1208 = vsel %vm1207, 1, 0
        %v1209 = vcvt.s32.f32 %v1208
        %vm1210 = vcmask 56320
        %v1212 = vsel %vm1210, %v1209, 0
        %vm1214 = vcmask 1046528
        %v1216 = vsel %vm1214, %v1201, 0
        %1218 = vmatprep.subr.mxu0 0.0
        %1219 = vmatpush1.msra.mxu0 0.0
        %1220 = vmatprep.subr.mxu0 0.0
        %1221 = vmatpush1.msra.mxu0 0.0
        %1222 = vmatprep.subr.mxu0 0.0
        %1223 = vmatpush1.msra.mxu0 0.0
        %1224 = vmatprep.subr.mxu0 0.0
        %1225 = vmatpush1.msra.mxu0 0.0
        %1226 = vmatprep.subr.mxu0 0.0
        %1227 = vmatpush1.msra.mxu0 0.0
        %1228 = vmatprep.subr.mxu0 0.0
        %1229 = vmatpush1.msra.mxu0 0.0
        %1230 = vmatprep.subr.mxu0 0.0
        %1231 = vmatpush1.msra.mxu0 0.0
        %1232 = vmatprep.subr.mxu0 0.0
        %1233 = vmatpush1.msra.mxu0 0.0
        %1234 = vmatprep.subr.mxu0 0.0
        %1235 = vmatpush1.msra.mxu0 0.0
        %1236 = vmatprep.subr.mxu0 0.0
        %1237 = vmatpush1.msra.mxu0 0.0
        %1238 = vmatprep.subr.mxu0 0.0
        %1239 = vmatpush1.msra.mxu0 0.0
        %1240 = vmatprep.subr.mxu0 0.0
        %1241 = vmatpush1.msra.mxu0 0.0
        %1242 = vmatprep.subr.mxu0 0.0
        %1243 = vmatpush1.msra.mxu0 0.0
        %1244 = vmatprep.subr.mxu0 0.0
        %1245 = vmatpush1.msra.mxu0 0.0
        %1246 = vmatprep.subr.mxu0 0.0
        %1247 = vmatpush1.msra.mxu0 0.0
        %1248 = vmatprep.subr.mxu0 0.0
        %1249 = vmatpush1.msra.mxu0 %v1216
        %1250 = vmatprep.subr.mxu0 0.0
        %1251 = vmatpush2.msra.mxu0 0.0
        %1252 = vmatprep.subr.mxu0 0.0
        %1253 = vmatpush2.msra.mxu0 0.0
        %1254 = vmatprep.subr.mxu0 0.0
        %1255 = vmatpush2.msra.mxu0 0.0
        %1256 = vmatprep.subr.mxu0 0.0
        %1257 = vmatpush2.msra.mxu0 0.0
        %1258 = vmatprep.subr.mxu0 0.0
        %1259 = vmatpush2.msra.mxu0 0.0
        %1260 = vmatprep.subr.mxu0 0.0
        %1261 = vmatpush2.msra.mxu0 0.0
        %1262 = vmatprep.subr.mxu0 0.0
        %1263 = vmatpush2.msra.mxu0 0.0
        %1264 = vmatprep.subr.mxu0 0.0
        %1265 = vmatpush2.msra.mxu0 0.0
        %1266 = vmatprep.subr.mxu0 0.0
        %1267 = vmatpush2.msra.mxu0 0.0
        %1268 = vmatprep.subr.mxu0 0.0
        %1269 = vmatpush2.msra.mxu0 0.0
        %1270 = vmatprep.subr.mxu0 0.0
        %1271 = vmatpush2.msra.mxu0 0.0
        %1272 = vmatprep.subr.mxu0 0.0
        %1273 = vmatpush2.msra.mxu0 0.0
        %1274 = vmatprep.subr.mxu0 0.0
        %1275 = vmatpush2.msra.mxu0 0.0
        %1276 = vmatprep.subr.mxu0 0.0
        %1277 = vmatpush2.msra.mxu0 0.0
        %1278 = vmatprep.subr.mxu0 0.0
        %1279 = vmatpush2.msra.mxu0 0.0
        %1280 = vmatprep.subr.mxu0 0.0
        %1281 = vmatpush2.msra.mxu0 0.0
        %1282 = vmatprep.mubr.f32.mxu0 0.0
        %1283 = vmatmul.mubr.f32.gmra.mxu0 %v1212
        %v1284 = vpop.f32.mrf.mxu0
        %v1285 = vadd.f32 0.0, %v1284
        %v1286 = vpop.f32.mrf.mxu0
        %1287 = vdwg.mxu0
        %v1288 = vld [vmem:[%s12] sm:$0x7f]
        %v1289 = vld [vmem:[%s12 + $0x8] sm:$0x7f]
        %v1290 = vld [vmem:[%s12 + $0x10] sm:$0x7f]
        %v1291 = vld [vmem:[%s12 + $0x18] sm:$0x7f]
        %v1292 = vld [vmem:[%s12 + $0x20] sm:$0x7f]
        %v1293 = vld [vmem:[%s12 + $0x28] sm:$0x7f]
        %v1294 = vld [vmem:[%s12 + $0x30] sm:$0x7f]
        %v1295 = vld [vmem:[%s13] sm:$0x7f]
        %v1296 = vld [vmem:[%s13 + $0x8] sm:$0x7f]
        %v1297 = vld [vmem:[%s13 + $0x10] sm:$0x7f]
        %v1298 = vld [vmem:[%s13 + $0x18] sm:$0x7f]
        %v1299 = vld [vmem:[%s13 + $0x20] sm:$0x7f]
        %v1300 = vld [vmem:[%s13 + $0x28] sm:$0x7f]
        %v1301 = vld [vmem:[%s13 + $0x30] sm:$0x7f]
        %v1302 = vld [vmem:[%s14] sm:$0xff]
        %v1303 = vld [vmem:[%s14 + $0x8] sm:$0xff]
        %v1304 = vld [vmem:[%s14 + $0x10] sm:$0xff]
        %v1305 = vld [vmem:[%s14 + $0x18] sm:$0xff]
        %v1306 = vmul.f32 %v1201, %v1288
        %v1307 = vmul.f32 %v1201, %v1289
        %v1308 = vmul.f32 %v1201, %v1290
        %v1309 = vmul.f32 %v1201, %v1291
        %v1310 = vmul.f32 %v1201, %v1292
        %v1311 = vmul.f32 %v1201, %v1293
        %v1312 = vmul.f32 %v1201, %v1294
        %vm1313 = vcmask 63488
        %v1314 = vsel %vm1313, %v1306, 0.0
        %1315 = vadd.xlane.f32.xlu0 %v1314
        %v1316 = vpop.xlane.xlu0 %1315
        %v1317 = vsel %vm1313, %v1307, 0.0
        %1318 = vadd.xlane.f32.xlu0 %v1317
        %v1319 = vpop.xlane.xlu0 %1318
        %v1320 = vsel %vm1313, %v1308, 0.0
        %1321 = vadd.xlane.f32.xlu0 %v1320
        %v1322 = vpop.xlane.xlu0 %1321
        %v1323 = vsel %vm1313, %v1309, 0.0
        %1324 = vadd.xlane.f32.xlu0 %v1323
        %v1325 = vpop.xlane.xlu0 %1324
        %v1326 = vsel %vm1313, %v1310, 0.0
        %1327 = vadd.xlane.f32.xlu0 %v1326
        %v1328 = vpop.xlane.xlu0 %1327
        %v1329 = vsel %vm1313, %v1311, 0.0
        %1330 = vadd.xlane.f32.xlu0 %v1329
        %v1331 = vpop.xlane.xlu0 %1330
        %v1332 = vsel %vm1313, %v1312, 0.0
        %1333 = vadd.xlane.f32.xlu0 %v1332
        %v1334 = vpop.xlane.xlu0 %1333
        %v1335 = vmul.f32 %v1285, %v1295
        %v1336 = vmul.f32 %v1285, %v1296
        %v1337 = vmul.f32 %v1285, %v1297
        %v1338 = vmul.f32 %v1285, %v1298
        %v1339 = vmul.f32 %v1285, %v1299
        %v1340 = vmul.f32 %v1285, %v1300
        %v1341 = vmul.f32 %v1285, %v1301
        %v1342 = vsel %vm1313, %v1335, 0.0
        %1343 = vadd.xlane.f32.xlu0 %v1342
        %v1344 = vpop.xlane.xlu0 %1343
        %v1345 = vsel %vm1313, %v1336, 0.0
        %1346 = vadd.xlane.f32.xlu0 %v1345
        %v1347 = vpop.xlane.xlu0 %1346
        %v1348 = vsel %vm1313, %v1337, 0.0
        %1349 = vadd.xlane.f32.xlu0 %v1348
        %v1350 = vpop.xlane.xlu0 %1349
        %v1351 = vsel %vm1313, %v1338, 0.0
        %1352 = vadd.xlane.f32.xlu0 %v1351
        %v1353 = vpop.xlane.xlu0 %1352
        %v1354 = vsel %vm1313, %v1339, 0.0
        %1355 = vadd.xlane.f32.xlu0 %v1354
        %v1356 = vpop.xlane.xlu0 %1355
        %v1357 = vsel %vm1313, %v1340, 0.0
        %1358 = vadd.xlane.f32.xlu0 %v1357
        %v1359 = vpop.xlane.xlu0 %1358
        %v1360 = vsel %vm1313, %v1341, 0.0
        %1361 = vadd.xlane.f32.xlu0 %v1360
        %v1362 = vpop.xlane.xlu0 %1361
        %v1363 = vadd.f32 %v1316, %v1344
        %v1364 = vadd.f32 %v1319, %v1347
        %v1365 = vadd.f32 %v1322, %v1350
        %v1366 = vadd.f32 %v1325, %v1353
        %v1367 = vadd.f32 %v1328, %v1356
        %v1368 = vadd.f32 %v1331, %v1359
        %v1369 = vadd.f32 %v1334, %v1362
        %v1377 = vlaneseq
        %v1378 = vshrl.u32 %v1377, 7
        %v1379 = vsub.s32 %v1205, %v1378
        %v1380 = vrot.slane %v1363, %v1379
        %v1381 = vlaneseq
        %v1382 = vshrl.u32 %v1381, 7
        %v1383 = vsub.s32 %v1205, %v1382
        %v1384 = vrot.slane %v1364, %v1383
        %v1385 = vlaneseq
        %v1386 = vshrl.u32 %v1385, 7
        %v1387 = vsub.s32 %v1205, %v1386
        %v1388 = vrot.slane %v1365, %v1387
        %v1389 = vlaneseq
        %v1390 = vshrl.u32 %v1389, 7
        %v1391 = vsub.s32 %v1205, %v1390
        %v1392 = vrot.slane %v1366, %v1391
        %v1393 = vlaneseq
        %v1394 = vshrl.u32 %v1393, 7
        %v1395 = vsub.s32 %v1205, %v1394
        %v1396 = vrot.slane %v1367, %v1395
        %v1397 = vlaneseq
        %v1398 = vshrl.u32 %v1397, 7
        %v1399 = vsub.s32 %v1205, %v1398
        %v1400 = vrot.slane %v1368, %v1399
        %v1401 = vlaneseq
        %v1402 = vshrl.u32 %v1401, 7
        %v1403 = vsub.s32 %v1205, %v1402
        %v1404 = vrot.slane %v1369, %v1403
        %vm1405 = vcmask 1041409
        %v1406 = vsel %vm1405, %v1384, %v1380
        %vm1407 = vcmask 1042434
        %v1408 = vsel %vm1407, %v1388, %v1406
        %vm1409 = vcmask 1043459
        %v1410 = vsel %vm1409, %v1392, %v1408
        %vm1411 = vcmask 1044484
        %v1412 = vsel %vm1411, %v1396, %v1410
        %vm1413 = vcmask 1045509
        %v1414 = vsel %vm1413, %v1400, %v1412
        %vm1415 = vcmask 1046534
        %v1416 = vsel %vm1415, %v1404, %v1414
        %1418 = vxpose.xlu0.b32.start [1/16] %v1416, 128
        %1419 = vxpose.xlu0.b32.cont [2/16] 0.0, 128
        %1420 = vxpose.xlu0.b32.cont [3/16] 0.0, 128
        %1421 = vxpose.xlu0.b32.cont [4/16] 0.0, 128
        %1422 = vxpose.xlu0.b32.cont [5/16] 0.0, 128
        %1423 = vxpose.xlu0.b32.cont [6/16] 0.0, 128
        %1424 = vxpose.xlu0.b32.cont [7/16] 0.0, 128
        %1425 = vxpose.xlu0.b32.cont [8/16] 0.0, 128
        %1426 = vxpose.xlu0.b32.cont [9/16] 0.0, 128
        %1427 = vxpose.xlu0.b32.cont [10/16] 0.0, 128
        %1428 = vxpose.xlu0.b32.cont [11/16] 0.0, 128
        %1429 = vxpose.xlu0.b32.cont [12/16] 0.0, 128
        %1430 = vxpose.xlu0.b32.cont [13/16] 0.0, 128
        %1431 = vxpose.xlu0.b32.cont [14/16] 0.0, 128
        %1432 = vxpose.xlu0.b32.cont [15/16] 0.0, 128
        %1433 = vxpose.xlu0.b32.end [16/16] 0.0, 128
        %v1434 = vpop.trf.xlu0
        %v1435 = vpop.trf.xlu0
        %v1436 = vpop.trf.xlu0
        %v1437 = vpop.trf.xlu0
        %v1438 = vpop.trf.xlu0
        %v1439 = vpop.trf.xlu0
        %v1440 = vpop.trf.xlu0
        %v1441 = vpop.trf.xlu0
        %v1442 = vpop.trf.xlu0
        %v1443 = vpop.trf.xlu0
        %v1444 = vpop.trf.xlu0
        %v1445 = vpop.trf.xlu0
        %v1446 = vpop.trf.xlu0
        %v1447 = vpop.trf.xlu0
        %v1448 = vpop.trf.xlu0
        %v1449 = vpop.trf.xlu0
        %1451 = vrot.lane.b32.xlu0 %v1183, 96
        %v1452 = vpop.permute.xlu0 %1451
        %vm1453 = vcmask 64512
        %v1455 = vsel %vm1453, %v1193, 0
        %v1457 = vsel %vm1453, %v1452, 0
        %1459 = vmatprep.subr.mxu0 0.0
        %1460 = vmatpush1.xpose.msra.mxu0 0.0
        %1461 = vmatprep.subr.mxu0 0.0
        %1462 = vmatpush1.xpose.msra.mxu0 0.0
        %1463 = vmatprep.subr.mxu0 0.0
        %1464 = vmatpush1.xpose.msra.mxu0 0.0
        %1465 = vmatprep.subr.mxu0 0.0
        %1466 = vmatpush1.xpose.msra.mxu0 0.0
        %1467 = vmatprep.subr.mxu0 0.0
        %1468 = vmatpush1.xpose.msra.mxu0 0.0
        %1469 = vmatprep.subr.mxu0 0.0
        %1470 = vmatpush1.xpose.msra.mxu0 0.0
        %1471 = vmatprep.subr.mxu0 0.0
        %1472 = vmatpush1.xpose.msra.mxu0 0.0
        %1473 = vmatprep.subr.mxu0 0.0
        %1474 = vmatpush1.xpose.msra.mxu0 0.0
        %1475 = vmatprep.subr.mxu0 0.0
        %1476 = vmatpush1.xpose.msra.mxu0 0.0
        %1477 = vmatprep.subr.mxu0 0.0
        %1478 = vmatpush1.xpose.msra.mxu0 0.0
        %1479 = vmatprep.subr.mxu0 0.0
        %1480 = vmatpush1.xpose.msra.mxu0 0.0
        %1481 = vmatprep.subr.mxu0 0.0
        %1482 = vmatpush1.xpose.msra.mxu0 0.0
        %1483 = vmatprep.subr.mxu0 0.0
        %1484 = vmatpush1.xpose.msra.mxu0 0.0
        %1485 = vmatprep.subr.mxu0 0.0
        %1486 = vmatpush1.xpose.msra.mxu0 0.0
        %1487 = vmatprep.subr.mxu0 0.0
        %1488 = vmatpush1.xpose.msra.mxu0 0.0
        %1489 = vmatprep.subr.mxu0 0.0
        %1490 = vmatpush1.xpose.msra.mxu0 %v1457
        %1491 = vmatprep.subr.mxu0 0.0
        %1492 = vmatpush2.xpose.msra.mxu0 0.0
        %1493 = vmatprep.subr.mxu0 0.0
        %1494 = vmatpush2.xpose.msra.mxu0 0.0
        %1495 = vmatprep.subr.mxu0 0.0
        %1496 = vmatpush2.xpose.msra.mxu0 0.0
        %1497 = vmatprep.subr.mxu0 0.0
        %1498 = vmatpush2.xpose.msra.mxu0 0.0
        %1499 = vmatprep.subr.mxu0 0.0
        %1500 = vmatpush2.xpose.msra.mxu0 0.0
        %1501 = vmatprep.subr.mxu0 0.0
        %1502 = vmatpush2.xpose.msra.mxu0 0.0
        %1503 = vmatprep.subr.mxu0 0.0
        %1504 = vmatpush2.xpose.msra.mxu0 0.0
        %1505 = vmatprep.subr.mxu0 0.0
        %1506 = vmatpush2.xpose.msra.mxu0 0.0
        %1507 = vmatprep.subr.mxu0 0.0
        %1508 = vmatpush2.xpose.msra.mxu0 0.0
        %1509 = vmatprep.subr.mxu0 0.0
        %1510 = vmatpush2.xpose.msra.mxu0 0.0
        %1511 = vmatprep.subr.mxu0 0.0
        %1512 = vmatpush2.xpose.msra.mxu0 0.0
        %1513 = vmatprep.subr.mxu0 0.0
        %1514 = vmatpush2.xpose.msra.mxu0 0.0
        %1515 = vmatprep.subr.mxu0 0.0
        %1516 = vmatpush2.xpose.msra.mxu0 0.0
        %1517 = vmatprep.subr.mxu0 0.0
        %1518 = vmatpush2.xpose.msra.mxu0 0.0
        %1519 = vmatprep.subr.mxu0 0.0
        %1520 = vmatpush2.xpose.msra.mxu0 0.0
        %1521 = vmatprep.subr.mxu0 0.0
        %1522 = vmatpush2.xpose.msra.mxu0 0.0
        %1523 = vmatprep.mubr.f32.mxu0 0.0
        %1524 = vmatmul.mubr.f32.gmra.mxu0 %v1455
        %v1525 = vpop.f32.mrf.mxu0
        %v1526 = vadd.f32 %v1434, %v1525
        %v1527 = vpop.f32.mrf.mxu0
        %1528 = vdwg.mxu0
        %v1529 = vmul.f32 %v1526, 0.35355338
        %v1530 = vsel %vm868, 1, 0
        %v1531 = vlaneseq
        %v1532 = vshrl.u32 %v1531, 7
        %v1533 = vsub.s32 0, %v1532
        %v1534 = vrot.slane %v1530, %v1533
        %vm1535 = vcmp.eq.s32.totalorder %v1534, 1
        %v1536 = vsel %vm1535, -3.4028235e+38, %v1529
        %vm1537 = vcmask 55296
        %v1538 = vsel %vm1537, %v1536, -inf
        %1539 = vmax.xlane.f32.xlu0 %v1538
        %v1540 = vpop.xlane.xlu0 %1539
        %v1541 = vsub.f32 %v1536, %v1540
        %v1542 = vmul.f32 %v1541, 1.442695
        %v1543 = vpow.pop %v1542
        %v1544 = vsel %vm1537, %v1543, 0.0
        %1545 = vadd.xlane.f32.xlu0 %v1544
        %v1546 = vpop.xlane.xlu0 %1545
        %v1547 = vrcp.pop %v1546
        %v1548 = vmul.f32 %v1543, %v1547
        %v1549 = vsel %vm1535, 0.0, %v1548
        %1550 = vrot.lane.b32.xlu0 %v1183, 64
        %v1551 = vpop.permute.xlu0 %1550
        %v1553 = vsel %vm1210, %v1549, 0
        %v1555 = vsel %vm1214, %v1551, 0
        %1557 = vmatprep.subr.mxu0 0.0
        %1558 = vmatpush1.msra.mxu0 0.0
        %1559 = vmatprep.subr.mxu0 0.0
        %1560 = vmatpush1.msra.mxu0 0.0
        %1561 = vmatprep.subr.mxu0 0.0
        %1562 = vmatpush1.msra.mxu0 0.0
        %1563 = vmatprep.subr.mxu0 0.0
        %1564 = vmatpush1.msra.mxu0 0.0
        %1565 = vmatprep.subr.mxu0 0.0
        %1566 = vmatpush1.msra.mxu0 0.0
        %1567 = vmatprep.subr.mxu0 0.0
        %1568 = vmatpush1.msra.mxu0 0.0
        %1569 = vmatprep.subr.mxu0 0.0
        %1570 = vmatpush1.msra.mxu0 0.0
        %1571 = vmatprep.subr.mxu0 0.0
        %1572 = vmatpush1.msra.mxu0 0.0
        %1573 = vmatprep.subr.mxu0 0.0
        %1574 = vmatpush1.msra.mxu0 0.0
        %1575 = vmatprep.subr.mxu0 0.0
        %1576 = vmatpush1.msra.mxu0 0.0
        %1577 = vmatprep.subr.mxu0 0.0
        %1578 = vmatpush1.msra.mxu0 0.0
        %1579 = vmatprep.subr.mxu0 0.0
        %1580 = vmatpush1.msra.mxu0 0.0
        %1581 = vmatprep.subr.mxu0 0.0
        %1582 = vmatpush1.msra.mxu0 0.0
        %1583 = vmatprep.subr.mxu0 0.0
        %1584 = vmatpush1.msra.mxu0 0.0
        %1585 = vmatprep.subr.mxu0 0.0
        %1586 = vmatpush1.msra.mxu0 0.0
        %1587 = vmatprep.subr.mxu0 0.0
        %1588 = vmatpush1.msra.mxu0 %v1555
        %1589 = vmatprep.subr.mxu0 0.0
        %1590 = vmatpush2.msra.mxu0 0.0
        %1591 = vmatprep.subr.mxu0 0.0
        %1592 = vmatpush2.msra.mxu0 0.0
        %1593 = vmatprep.subr.mxu0 0.0
        %1594 = vmatpush2.msra.mxu0 0.0
        %1595 = vmatprep.subr.mxu0 0.0
        %1596 = vmatpush2.msra.mxu0 0.0
        %1597 = vmatprep.subr.mxu0 0.0
        %1598 = vmatpush2.msra.mxu0 0.0
        %1599 = vmatprep.subr.mxu0 0.0
        %1600 = vmatpush2.msra.mxu0 0.0
        %1601 = vmatprep.subr.mxu0 0.0
        %1602 = vmatpush2.msra.mxu0 0.0
        %1603 = vmatprep.subr.mxu0 0.0
        %1604 = vmatpush2.msra.mxu0 0.0
        %1605 = vmatprep.subr.mxu0 0.0
        %1606 = vmatpush2.msra.mxu0 0.0
        %1607 = vmatprep.subr.mxu0 0.0
        %1608 = vmatpush2.msra.mxu0 0.0
        %1609 = vmatprep.subr.mxu0 0.0
        %1610 = vmatpush2.msra.mxu0 0.0
        %1611 = vmatprep.subr.mxu0 0.0
        %1612 = vmatpush2.msra.mxu0 0.0
        %1613 = vmatprep.subr.mxu0 0.0
        %1614 = vmatpush2.msra.mxu0 0.0
        %1615 = vmatprep.subr.mxu0 0.0
        %1616 = vmatpush2.msra.mxu0 0.0
        %1617 = vmatprep.subr.mxu0 0.0
        %1618 = vmatpush2.msra.mxu0 0.0
        %1619 = vmatprep.subr.mxu0 0.0
        %1620 = vmatpush2.msra.mxu0 0.0
        %1621 = vmatprep.mubr.f32.mxu0 0.0
        %1622 = vmatmul.mubr.f32.gmra.mxu0 %v1553
        %v1623 = vpop.f32.mrf.mxu0
        %v1624 = vadd.f32 0.0, %v1623
        %v1625 = vpop.f32.mrf.mxu0
        %1626 = vdwg.mxu0
        %1634 = vrot.lane.b32.xlu0 %v1306, 120
        %v1635 = vpop.permute.xlu0 %1634
        %1636 = vrot.lane.b32.xlu0 %v1307, 120
        %v1637 = vpop.permute.xlu0 %1636
        %1638 = vrot.lane.b32.xlu0 %v1308, 120
        %v1639 = vpop.permute.xlu0 %1638
        %1640 = vrot.lane.b32.xlu0 %v1309, 120
        %v1641 = vpop.permute.xlu0 %1640
        %1642 = vrot.lane.b32.xlu0 %v1310, 120
        %v1643 = vpop.permute.xlu0 %1642
        %1644 = vrot.lane.b32.xlu0 %v1311, 120
        %v1645 = vpop.permute.xlu0 %1644
        %1646 = vrot.lane.b32.xlu0 %v1312, 120
        %v1647 = vpop.permute.xlu0 %1646
        %v1655 = vsel %vm1313, %v1635, 0.0
        %1656 = vadd.xlane.f32.xlu0 %v1655
        %v1657 = vpop.xlane.xlu0 %1656
        %v1658 = vsel %vm1313, %v1637, 0.0
        %1659 = vadd.xlane.f32.xlu0 %v1658
        %v1660 = vpop.xlane.xlu0 %1659
        %v1661 = vsel %vm1313, %v1639, 0.0
        %1662 = vadd.xlane.f32.xlu0 %v1661
        %v1663 = vpop.xlane.xlu0 %1662
        %v1664 = vsel %vm1313, %v1641, 0.0
        %1665 = vadd.xlane.f32.xlu0 %v1664
        %v1666 = vpop.xlane.xlu0 %1665
        %v1667 = vsel %vm1313, %v1643, 0.0
        %1668 = vadd.xlane.f32.xlu0 %v1667
        %v1669 = vpop.xlane.xlu0 %1668
        %v1670 = vsel %vm1313, %v1645, 0.0
        %1671 = vadd.xlane.f32.xlu0 %v1670
        %v1672 = vpop.xlane.xlu0 %1671
        %v1673 = vsel %vm1313, %v1647, 0.0
        %1674 = vadd.xlane.f32.xlu0 %v1673
        %v1675 = vpop.xlane.xlu0 %1674
        %1683 = vrot.lane.b32.xlu0 %v1335, 120
        %v1684 = vpop.permute.xlu0 %1683
        %1685 = vrot.lane.b32.xlu0 %v1336, 120
        %v1686 = vpop.permute.xlu0 %1685
        %1687 = vrot.lane.b32.xlu0 %v1337, 120
        %v1688 = vpop.permute.xlu0 %1687
        %1689 = vrot.lane.b32.xlu0 %v1338, 120
        %v1690 = vpop.permute.xlu0 %1689
        %1691 = vrot.lane.b32.xlu0 %v1339, 120
        %v1692 = vpop.permute.xlu0 %1691
        %1693 = vrot.lane.b32.xlu0 %v1340, 120
        %v1694 = vpop.permute.xlu0 %1693
        %1695 = vrot.lane.b32.xlu0 %v1341, 120
        %v1696 = vpop.permute.xlu0 %1695
        %v1704 = vsel %vm1313, %v1684, 0.0
        %1705 = vadd.xlane.f32.xlu0 %v1704
        %v1706 = vpop.xlane.xlu0 %1705
        %v1707 = vsel %vm1313, %v1686, 0.0
        %1708 = vadd.xlane.f32.xlu0 %v1707
        %v1709 = vpop.xlane.xlu0 %1708
        %v1710 = vsel %vm1313, %v1688, 0.0
        %1711 = vadd.xlane.f32.xlu0 %v1710
        %v1712 = vpop.xlane.xlu0 %1711
        %v1713 = vsel %vm1313, %v1690, 0.0
        %1714 = vadd.xlane.f32.xlu0 %v1713
        %v1715 = vpop.xlane.xlu0 %1714
        %v1716 = vsel %vm1313, %v1692, 0.0
        %1717 = vadd.xlane.f32.xlu0 %v1716
        %v1718 = vpop.xlane.xlu0 %1717
        %v1719 = vsel %vm1313, %v1694, 0.0
        %1720 = vadd.xlane.f32.xlu0 %v1719
        %v1721 = vpop.xlane.xlu0 %1720
        %v1722 = vsel %vm1313, %v1696, 0.0
        %1723 = vadd.xlane.f32.xlu0 %v1722
        %v1724 = vpop.xlane.xlu0 %1723
        %v1725 = vadd.f32 %v1657, %v1706
        %v1726 = vadd.f32 %v1660, %v1709
        %v1727 = vadd.f32 %v1663, %v1712
        %v1728 = vadd.f32 %v1666, %v1715
        %v1729 = vadd.f32 %v1669, %v1718
        %v1730 = vadd.f32 %v1672, %v1721
        %v1731 = vadd.f32 %v1675, %v1724
        %v1739 = vlaneseq
        %v1740 = vshrl.u32 %v1739, 7
        %v1741 = vsub.s32 %v1205, %v1740
        %v1742 = vrot.slane %v1725, %v1741
        %v1743 = vlaneseq
        %v1744 = vshrl.u32 %v1743, 7
        %v1745 = vsub.s32 %v1205, %v1744
        %v1746 = vrot.slane %v1726, %v1745
        %v1747 = vlaneseq
        %v1748 = vshrl.u32 %v1747, 7
        %v1749 = vsub.s32 %v1205, %v1748
        %v1750 = vrot.slane %v1727, %v1749
        %v1751 = vlaneseq
        %v1752 = vshrl.u32 %v1751, 7
        %v1753 = vsub.s32 %v1205, %v1752
        %v1754 = vrot.slane %v1728, %v1753
        %v1755 = vlaneseq
        %v1756 = vshrl.u32 %v1755, 7
        %v1757 = vsub.s32 %v1205, %v1756
        %v1758 = vrot.slane %v1729, %v1757
        %v1759 = vlaneseq
        %v1760 = vshrl.u32 %v1759, 7
        %v1761 = vsub.s32 %v1205, %v1760
        %v1762 = vrot.slane %v1730, %v1761
        %v1763 = vlaneseq
        %v1764 = vshrl.u32 %v1763, 7
        %v1765 = vsub.s32 %v1205, %v1764
        %v1766 = vrot.slane %v1731, %v1765
        %v1767 = vsel %vm1405, %v1746, %v1742
        %v1768 = vsel %vm1407, %v1750, %v1767
        %v1769 = vsel %vm1409, %v1754, %v1768
        %v1770 = vsel %vm1411, %v1758, %v1769
        %v1771 = vsel %vm1413, %v1762, %v1770
        %v1772 = vsel %vm1415, %v1766, %v1771
        %1774 = vxpose.xlu0.b32.start [1/16] %v1772, 128
        %1775 = vxpose.xlu0.b32.cont [2/16] 0.0, 128
        %1776 = vxpose.xlu0.b32.cont [3/16] 0.0, 128
        %1777 = vxpose.xlu0.b32.cont [4/16] 0.0, 128
        %1778 = vxpose.xlu0.b32.cont [5/16] 0.0, 128
        %1779 = vxpose.xlu0.b32.cont [6/16] 0.0, 128
        %1780 = vxpose.xlu0.b32.cont [7/16] 0.0, 128
        %1781 = vxpose.xlu0.b32.cont [8/16] 0.0, 128
        %1782 = vxpose.xlu0.b32.cont [9/16] 0.0, 128
        %1783 = vxpose.xlu0.b32.cont [10/16] 0.0, 128
        %1784 = vxpose.xlu0.b32.cont [11/16] 0.0, 128
        %1785 = vxpose.xlu0.b32.cont [12/16] 0.0, 128
        %1786 = vxpose.xlu0.b32.cont [13/16] 0.0, 128
        %1787 = vxpose.xlu0.b32.cont [14/16] 0.0, 128
        %1788 = vxpose.xlu0.b32.cont [15/16] 0.0, 128
        %1789 = vxpose.xlu0.b32.end [16/16] 0.0, 128
        %v1790 = vpop.trf.xlu0
        %v1791 = vpop.trf.xlu0
        %v1792 = vpop.trf.xlu0
        %v1793 = vpop.trf.xlu0
        %v1794 = vpop.trf.xlu0
        %v1795 = vpop.trf.xlu0
        %v1796 = vpop.trf.xlu0
        %v1797 = vpop.trf.xlu0
        %v1798 = vpop.trf.xlu0
        %v1799 = vpop.trf.xlu0
        %v1800 = vpop.trf.xlu0
        %v1801 = vpop.trf.xlu0
        %v1802 = vpop.trf.xlu0
        %v1803 = vpop.trf.xlu0
        %v1804 = vpop.trf.xlu0
        %v1805 = vpop.trf.xlu0
        %1806 = vrot.lane.b32.xlu0 %v1193, 120
        %v1807 = vpop.permute.xlu0 %1806
        %1808 = vrot.lane.b32.xlu0 %v1183, 88
        %v1809 = vpop.permute.xlu0 %1808
        %v1810 = vsel %vm1453, %v1807, 0
        %v1812 = vsel %vm1453, %v1809, 0
        %1814 = vmatprep.subr.mxu0 0.0
        %1815 = vmatpush1.xpose.msra.mxu0 0.0
        %1816 = vmatprep.subr.mxu0 0.0
        %1817 = vmatpush1.xpose.msra.mxu0 0.0
        %1818 = vmatprep.subr.mxu0 0.0
        %1819 = vmatpush1.xpose.msra.mxu0 0.0
        %1820 = vmatprep.subr.mxu0 0.0
        %1821 = vmatpush1.xpose.msra.mxu0 0.0
        %1822 = vmatprep.subr.mxu0 0.0
        %1823 = vmatpush1.xpose.msra.mxu0 0.0
        %1824 = vmatprep.subr.mxu0 0.0
        %1825 = vmatpush1.xpose.msra.mxu0 0.0
        %1826 = vmatprep.subr.mxu0 0.0
        %1827 = vmatpush1.xpose.msra.mxu0 0.0
        %1828 = vmatprep.subr.mxu0 0.0
        %1829 = vmatpush1.xpose.msra.mxu0 0.0
        %1830 = vmatprep.subr.mxu0 0.0
        %1831 = vmatpush1.xpose.msra.mxu0 0.0
        %1832 = vmatprep.subr.mxu0 0.0
        %1833 = vmatpush1.xpose.msra.mxu0 0.0
        %1834 = vmatprep.subr.mxu0 0.0
        %1835 = vmatpush1.xpose.msra.mxu0 0.0
        %1836 = vmatprep.subr.mxu0 0.0
        %1837 = vmatpush1.xpose.msra.mxu0 0.0
        %1838 = vmatprep.subr.mxu0 0.0
        %1839 = vmatpush1.xpose.msra.mxu0 0.0
        %1840 = vmatprep.subr.mxu0 0.0
        %1841 = vmatpush1.xpose.msra.mxu0 0.0
        %1842 = vmatprep.subr.mxu0 0.0
        %1843 = vmatpush1.xpose.msra.mxu0 0.0
        %1844 = vmatprep.subr.mxu0 0.0
        %1845 = vmatpush1.xpose.msra.mxu0 %v1812
        %1846 = vmatprep.subr.mxu0 0.0
        %1847 = vmatpush2.xpose.msra.mxu0 0.0
        %1848 = vmatprep.subr.mxu0 0.0
        %1849 = vmatpush2.xpose.msra.mxu0 0.0
        %1850 = vmatprep.subr.mxu0 0.0
        %1851 = vmatpush2.xpose.msra.mxu0 0.0
        %1852 = vmatprep.subr.mxu0 0.0
        %1853 = vmatpush2.xpose.msra.mxu0 0.0
        %1854 = vmatprep.subr.mxu0 0.0
        %1855 = vmatpush2.xpose.msra.mxu0 0.0
        %1856 = vmatprep.subr.mxu0 0.0
        %1857 = vmatpush2.xpose.msra.mxu0 0.0
        %1858 = vmatprep.subr.mxu0 0.0
        %1859 = vmatpush2.xpose.msra.mxu0 0.0
        %1860 = vmatprep.subr.mxu0 0.0
        %1861 = vmatpush2.xpose.msra.mxu0 0.0
        %1862 = vmatprep.subr.mxu0 0.0
        %1863 = vmatpush2.xpose.msra.mxu0 0.0
        %1864 = vmatprep.subr.mxu0 0.0
        %1865 = vmatpush2.xpose.msra.mxu0 0.0
        %1866 = vmatprep.subr.mxu0 0.0
        %1867 = vmatpush2.xpose.msra.mxu0 0.0
        %1868 = vmatprep.subr.mxu0 0.0
        %1869 = vmatpush2.xpose.msra.mxu0 0.0
        %1870 = vmatprep.subr.mxu0 0.0
        %1871 = vmatpush2.xpose.msra.mxu0 0.0
        %1872 = vmatprep.subr.mxu0 0.0
        %1873 = vmatpush2.xpose.msra.mxu0 0.0
        %1874 = vmatprep.subr.mxu0 0.0
        %1875 = vmatpush2.xpose.msra.mxu0 0.0
        %1876 = vmatprep.subr.mxu0 0.0
        %1877 = vmatpush2.xpose.msra.mxu0 0.0
        %1878 = vmatprep.mubr.f32.mxu0 0.0
        %1879 = vmatmul.mubr.f32.gmra.mxu0 %v1810
        %v1880 = vpop.f32.mrf.mxu0
        %v1881 = vadd.f32 %v1790, %v1880
        %v1882 = vpop.f32.mrf.mxu0
        %1883 = vdwg.mxu0
        %v1884 = vmul.f32 %v1881, 0.35355338
        %v1885 = vsel %vm1535, -3.4028235e+38, %v1884
        %v1886 = vsel %vm1537, %v1885, -inf
        %1887 = vmax.xlane.f32.xlu0 %v1886
        %v1888 = vpop.xlane.xlu0 %1887
        %v1889 = vsub.f32 %v1885, %v1888
        %v1890 = vmul.f32 %v1889, 1.442695
        %v1891 = vpow.pop %v1890
        %v1892 = vsel %vm1537, %v1891, 0.0
        %1893 = vadd.xlane.f32.xlu0 %v1892
        %v1894 = vpop.xlane.xlu0 %1893
        %v1895 = vrcp.pop %v1894
        %v1896 = vmul.f32 %v1891, %v1895
        %v1897 = vsel %vm1535, 0.0, %v1896
        %1898 = vrot.lane.b32.xlu0 %v1183, 56
        %v1899 = vpop.permute.xlu0 %1898
        %v1901 = vsel %vm1210, %v1897, 0
        %v1903 = vsel %vm1214, %v1899, 0
        %1905 = vmatprep.subr.mxu0 0.0
        %1906 = vmatpush1.msra.mxu0 0.0
        %1907 = vmatprep.subr.mxu0 0.0
        %1908 = vmatpush1.msra.mxu0 0.0
        %1909 = vmatprep.subr.mxu0 0.0
        %1910 = vmatpush1.msra.mxu0 0.0
        %1911 = vmatprep.subr.mxu0 0.0
        %1912 = vmatpush1.msra.mxu0 0.0
        %1913 = vmatprep.subr.mxu0 0.0
        %1914 = vmatpush1.msra.mxu0 0.0
        %1915 = vmatprep.subr.mxu0 0.0
        %1916 = vmatpush1.msra.mxu0 0.0
        %1917 = vmatprep.subr.mxu0 0.0
        %1918 = vmatpush1.msra.mxu0 0.0
        %1919 = vmatprep.subr.mxu0 0.0
        %1920 = vmatpush1.msra.mxu0 0.0
        %1921 = vmatprep.subr.mxu0 0.0
        %1922 = vmatpush1.msra.mxu0 0.0
        %1923 = vmatprep.subr.mxu0 0.0
        %1924 = vmatpush1.msra.mxu0 0.0
        %1925 = vmatprep.subr.mxu0 0.0
        %1926 = vmatpush1.msra.mxu0 0.0
        %1927 = vmatprep.subr.mxu0 0.0
        %1928 = vmatpush1.msra.mxu0 0.0
        %1929 = vmatprep.subr.mxu0 0.0
        %1930 = vmatpush1.msra.mxu0 0.0
        %1931 = vmatprep.subr.mxu0 0.0
        %1932 = vmatpush1.msra.mxu0 0.0
        %1933 = vmatprep.subr.mxu0 0.0
        %1934 = vmatpush1.msra.mxu0 0.0
        %1935 = vmatprep.subr.mxu0 0.0
        %1936 = vmatpush1.msra.mxu0 %v1903
        %1937 = vmatprep.subr.mxu0 0.0
        %1938 = vmatpush2.msra.mxu0 0.0
        %1939 = vmatprep.subr.mxu0 0.0
        %1940 = vmatpush2.msra.mxu0 0.0
        %1941 = vmatprep.subr.mxu0 0.0
        %1942 = vmatpush2.msra.mxu0 0.0
        %1943 = vmatprep.subr.mxu0 0.0
        %1944 = vmatpush2.msra.mxu0 0.0
        %1945 = vmatprep.subr.mxu0 0.0
        %1946 = vmatpush2.msra.mxu0 0.0
        %1947 = vmatprep.subr.mxu0 0.0
        %1948 = vmatpush2.msra.mxu0 0.0
        %1949 = vmatprep.subr.mxu0 0.0
        %1950 = vmatpush2.msra.mxu0 0.0
        %1951 = vmatprep.subr.mxu0 0.0
        %1952 = vmatpush2.msra.mxu0 0.0
        %1953 = vmatprep.subr.mxu0 0.0
        %1954 = vmatpush2.msra.mxu0 0.0
        %1955 = vmatprep.subr.mxu0 0.0
        %1956 = vmatpush2.msra.mxu0 0.0
        %1957 = vmatprep.subr.mxu0 0.0
        %1958 = vmatpush2.msra.mxu0 0.0
        %1959 = vmatprep.subr.mxu0 0.0
        %1960 = vmatpush2.msra.mxu0 0.0
        %1961 = vmatprep.subr.mxu0 0.0
        %1962 = vmatpush2.msra.mxu0 0.0
        %1963 = vmatprep.subr.mxu0 0.0
        %1964 = vmatpush2.msra.mxu0 0.0
        %1965 = vmatprep.subr.mxu0 0.0
        %1966 = vmatpush2.msra.mxu0 0.0
        %1967 = vmatprep.subr.mxu0 0.0
        %1968 = vmatpush2.msra.mxu0 0.0
        %1969 = vmatprep.mubr.f32.mxu0 0.0
        %1970 = vmatmul.mubr.f32.gmra.mxu0 %v1901
        %v1971 = vpop.f32.mrf.mxu0
        %v1972 = vadd.f32 0.0, %v1971
        %v1973 = vpop.f32.mrf.mxu0
        %1974 = vdwg.mxu0
        %v1976 = vsel %vm1453, %v1972, 0
        %1978 = vmatprep.subr.mxu0 0.0
        %1979 = vmatpush1.msra.mxu0 0.0
        %1980 = vmatprep.subr.mxu0 0.0
        %1981 = vmatpush1.msra.mxu0 0.0
        %1982 = vmatprep.subr.mxu0 0.0
        %1983 = vmatpush1.msra.mxu0 0.0
        %1984 = vmatprep.subr.mxu0 0.0
        %1985 = vmatpush1.msra.mxu0 0.0
        %1986 = vmatprep.subr.mxu0 0.0
        %1987 = vmatpush1.msra.mxu0 0.0
        %1988 = vmatprep.subr.mxu0 0.0
        %1989 = vmatpush1.msra.mxu0 0.0
        %1990 = vmatprep.subr.mxu0 0.0
        %1991 = vmatpush1.msra.mxu0 0.0
        %1992 = vmatprep.subr.mxu0 0.0
        %1993 = vmatpush1.msra.mxu0 0.0
        %1994 = vmatprep.subr.mxu0 0.0
        %1995 = vmatpush1.msra.mxu0 0.0
        %1996 = vmatprep.subr.mxu0 0.0
        %1997 = vmatpush1.msra.mxu0 0.0
        %1998 = vmatprep.subr.mxu0 0.0
        %1999 = vmatpush1.msra.mxu0 0.0
        %2000 = vmatprep.subr.mxu0 0.0
        %2001 = vmatpush1.msra.mxu0 0.0
        %2002 = vmatprep.subr.mxu0 0.0
        %2003 = vmatpush1.msra.mxu0 0.0
        %2004 = vmatprep.subr.mxu0 0.0
        %2005 = vmatpush1.msra.mxu0 0.0
        %2006 = vmatprep.subr.mxu0 0.0
        %2007 = vmatpush1.msra.mxu0 0.0
        %2008 = vmatprep.subr.mxu0 0.0
        %2009 = vmatpush1.msra.mxu0 %v1303
        %2010 = vmatprep.subr.mxu0 0.0
        %2011 = vmatpush2.msra.mxu0 0.0
        %2012 = vmatprep.subr.mxu0 0.0
        %2013 = vmatpush2.msra.mxu0 0.0
        %2014 = vmatprep.subr.mxu0 0.0
        %2015 = vmatpush2.msra.mxu0 0.0
        %2016 = vmatprep.subr.mxu0 0.0
        %2017 = vmatpush2.msra.mxu0 0.0
        %2018 = vmatprep.subr.mxu0 0.0
        %2019 = vmatpush2.msra.mxu0 0.0
        %2020 = vmatprep.subr.mxu0 0.0
        %2021 = vmatpush2.msra.mxu0 0.0
        %2022 = vmatprep.subr.mxu0 0.0
        %2023 = vmatpush2.msra.mxu0 0.0
        %2024 = vmatprep.subr.mxu0 0.0
        %2025 = vmatpush2.msra.mxu0 0.0
        %2026 = vmatprep.subr.mxu0 0.0
        %2027 = vmatpush2.msra.mxu0 0.0
        %2028 = vmatprep.subr.mxu0 0.0
        %2029 = vmatpush2.msra.mxu0 0.0
        %2030 = vmatprep.subr.mxu0 0.0
        %2031 = vmatpush2.msra.mxu0 0.0
        %2032 = vmatprep.subr.mxu0 0.0
        %2033 = vmatpush2.msra.mxu0 0.0
        %2034 = vmatprep.subr.mxu0 0.0
        %2035 = vmatpush2.msra.mxu0 0.0
        %2036 = vmatprep.subr.mxu0 0.0
        %2037 = vmatpush2.msra.mxu0 0.0
        %2038 = vmatprep.subr.mxu0 0.0
        %2039 = vmatpush2.msra.mxu0 0.0
        %2040 = vmatprep.subr.mxu0 0.0
        %2041 = vmatpush2.msra.mxu0 0.0
        %2042 = vmatprep.mubr.f32.mxu0 0.0
        %2043 = vmatmul.mubr.f32.gmra.mxu0 %v1976
        %v2044 = vpop.f32.mrf.mxu0
        %v2045 = vadd.f32 0.0, %v2044
        %v2046 = vpop.f32.mrf.mxu0
        %2047 = vdwg.mxu0
        %v2049 = vsel %vm1453, %v1624, 0
        %2051 = vmatprep.subr.mxu0 0.0
        %2052 = vmatpush1.msra.mxu0 0.0
        %2053 = vmatprep.subr.mxu0 0.0
        %2054 = vmatpush1.msra.mxu0 0.0
        %2055 = vmatprep.subr.mxu0 0.0
        %2056 = vmatpush1.msra.mxu0 0.0
        %2057 = vmatprep.subr.mxu0 0.0
        %2058 = vmatpush1.msra.mxu0 0.0
        %2059 = vmatprep.subr.mxu0 0.0
        %2060 = vmatpush1.msra.mxu0 0.0
        %2061 = vmatprep.subr.mxu0 0.0
        %2062 = vmatpush1.msra.mxu0 0.0
        %2063 = vmatprep.subr.mxu0 0.0
        %2064 = vmatpush1.msra.mxu0 0.0
        %2065 = vmatprep.subr.mxu0 0.0
        %2066 = vmatpush1.msra.mxu0 0.0
        %2067 = vmatprep.subr.mxu0 0.0
        %2068 = vmatpush1.msra.mxu0 0.0
        %2069 = vmatprep.subr.mxu0 0.0
        %2070 = vmatpush1.msra.mxu0 0.0
        %2071 = vmatprep.subr.mxu0 0.0
        %2072 = vmatpush1.msra.mxu0 0.0
        %2073 = vmatprep.subr.mxu0 0.0
        %2074 = vmatpush1.msra.mxu0 0.0
        %2075 = vmatprep.subr.mxu0 0.0
        %2076 = vmatpush1.msra.mxu0 0.0
        %2077 = vmatprep.subr.mxu0 0.0
        %2078 = vmatpush1.msra.mxu0 0.0
        %2079 = vmatprep.subr.mxu0 0.0
        %2080 = vmatpush1.msra.mxu0 0.0
        %2081 = vmatprep.subr.mxu0 0.0
        %2082 = vmatpush1.msra.mxu0 %v1302
        %2083 = vmatprep.subr.mxu0 0.0
        %2084 = vmatpush2.msra.mxu0 0.0
        %2085 = vmatprep.subr.mxu0 0.0
        %2086 = vmatpush2.msra.mxu0 0.0
        %2087 = vmatprep.subr.mxu0 0.0
        %2088 = vmatpush2.msra.mxu0 0.0
        %2089 = vmatprep.subr.mxu0 0.0
        %2090 = vmatpush2.msra.mxu0 0.0
        %2091 = vmatprep.subr.mxu0 0.0
        %2092 = vmatpush2.msra.mxu0 0.0
        %2093 = vmatprep.subr.mxu0 0.0
        %2094 = vmatpush2.msra.mxu0 0.0
        %2095 = vmatprep.subr.mxu0 0.0
        %2096 = vmatpush2.msra.mxu0 0.0
        %2097 = vmatprep.subr.mxu0 0.0
        %2098 = vmatpush2.msra.mxu0 0.0
        %2099 = vmatprep.subr.mxu0 0.0
        %2100 = vmatpush2.msra.mxu0 0.0
        %2101 = vmatprep.subr.mxu0 0.0
        %2102 = vmatpush2.msra.mxu0 0.0
        %2103 = vmatprep.subr.mxu0 0.0
        %2104 = vmatpush2.msra.mxu0 0.0
        %2105 = vmatprep.subr.mxu0 0.0
        %2106 = vmatpush2.msra.mxu0 0.0
        %2107 = vmatprep.subr.mxu0 0.0
        %2108 = vmatpush2.msra.mxu0 0.0
        %2109 = vmatprep.subr.mxu0 0.0
        %2110 = vmatpush2.msra.mxu0 0.0
        %2111 = vmatprep.subr.mxu0 0.0
        %2112 = vmatpush2.msra.mxu0 0.0
        %2113 = vmatprep.subr.mxu0 0.0
        %2114 = vmatpush2.msra.mxu0 0.0
        %2115 = vmatprep.mubr.f32.mxu0 0.0
        %2116 = vmatmul.mubr.f32.gmra.mxu0 %v2049
        %v2117 = vpop.f32.mrf.mxu0
        %v2118 = vadd.f32 %v2045, %v2117
        %v2119 = vpop.f32.mrf.mxu0
        %2120 = vdwg.mxu0
        %2121 = vrot.lane.b32.xlu0 %v1306, 112
        %v2122 = vpop.permute.xlu0 %2121
        %2123 = vrot.lane.b32.xlu0 %v1307, 112
        %v2124 = vpop.permute.xlu0 %2123
        %2125 = vrot.lane.b32.xlu0 %v1308, 112
        %v2126 = vpop.permute.xlu0 %2125
        %2127 = vrot.lane.b32.xlu0 %v1309, 112
        %v2128 = vpop.permute.xlu0 %2127
        %2129 = vrot.lane.b32.xlu0 %v1310, 112
        %v2130 = vpop.permute.xlu0 %2129
        %2131 = vrot.lane.b32.xlu0 %v1311, 112
        %v2132 = vpop.permute.xlu0 %2131
        %2133 = vrot.lane.b32.xlu0 %v1312, 112
        %v2134 = vpop.permute.xlu0 %2133
        %v2142 = vsel %vm1313, %v2122, 0.0
        %2143 = vadd.xlane.f32.xlu0 %v2142
        %v2144 = vpop.xlane.xlu0 %2143
        %v2145 = vsel %vm1313, %v2124, 0.0
        %2146 = vadd.xlane.f32.xlu0 %v2145
        %v2147 = vpop.xlane.xlu0 %2146
        %v2148 = vsel %vm1313, %v2126, 0.0
        %2149 = vadd.xlane.f32.xlu0 %v2148
        %v2150 = vpop.xlane.xlu0 %2149
        %v2151 = vsel %vm1313, %v2128, 0.0
        %2152 = vadd.xlane.f32.xlu0 %v2151
        %v2153 = vpop.xlane.xlu0 %2152
        %v2154 = vsel %vm1313, %v2130, 0.0
        %2155 = vadd.xlane.f32.xlu0 %v2154
        %v2156 = vpop.xlane.xlu0 %2155
        %v2157 = vsel %vm1313, %v2132, 0.0
        %2158 = vadd.xlane.f32.xlu0 %v2157
        %v2159 = vpop.xlane.xlu0 %2158
        %v2160 = vsel %vm1313, %v2134, 0.0
        %2161 = vadd.xlane.f32.xlu0 %v2160
        %v2162 = vpop.xlane.xlu0 %2161
        %2163 = vrot.lane.b32.xlu0 %v1335, 112
        %v2164 = vpop.permute.xlu0 %2163
        %2165 = vrot.lane.b32.xlu0 %v1336, 112
        %v2166 = vpop.permute.xlu0 %2165
        %2167 = vrot.lane.b32.xlu0 %v1337, 112
        %v2168 = vpop.permute.xlu0 %2167
        %2169 = vrot.lane.b32.xlu0 %v1338, 112
        %v2170 = vpop.permute.xlu0 %2169
        %2171 = vrot.lane.b32.xlu0 %v1339, 112
        %v2172 = vpop.permute.xlu0 %2171
        %2173 = vrot.lane.b32.xlu0 %v1340, 112
        %v2174 = vpop.permute.xlu0 %2173
        %2175 = vrot.lane.b32.xlu0 %v1341, 112
        %v2176 = vpop.permute.xlu0 %2175
        %v2184 = vsel %vm1313, %v2164, 0.0
        %2185 = vadd.xlane.f32.xlu0 %v2184
        %v2186 = vpop.xlane.xlu0 %2185
        %v2187 = vsel %vm1313, %v2166, 0.0
        %2188 = vadd.xlane.f32.xlu0 %v2187
        %v2189 = vpop.xlane.xlu0 %2188
        %v2190 = vsel %vm1313, %v2168, 0.0
        %2191 = vadd.xlane.f32.xlu0 %v2190
        %v2192 = vpop.xlane.xlu0 %2191
        %v2193 = vsel %vm1313, %v2170, 0.0
        %2194 = vadd.xlane.f32.xlu0 %v2193
        %v2195 = vpop.xlane.xlu0 %2194
        %v2196 = vsel %vm1313, %v2172, 0.0
        %2197 = vadd.xlane.f32.xlu0 %v2196
        %v2198 = vpop.xlane.xlu0 %2197
        %v2199 = vsel %vm1313, %v2174, 0.0
        %2200 = vadd.xlane.f32.xlu0 %v2199
        %v2201 = vpop.xlane.xlu0 %2200
        %v2202 = vsel %vm1313, %v2176, 0.0
        %2203 = vadd.xlane.f32.xlu0 %v2202
        %v2204 = vpop.xlane.xlu0 %2203
        %v2205 = vadd.f32 %v2144, %v2186
        %v2206 = vadd.f32 %v2147, %v2189
        %v2207 = vadd.f32 %v2150, %v2192
        %v2208 = vadd.f32 %v2153, %v2195
        %v2209 = vadd.f32 %v2156, %v2198
        %v2210 = vadd.f32 %v2159, %v2201
        %v2211 = vadd.f32 %v2162, %v2204
        %v2219 = vlaneseq
        %v2220 = vshrl.u32 %v2219, 7
        %v2221 = vsub.s32 %v1205, %v2220
        %v2222 = vrot.slane %v2205, %v2221
        %v2223 = vlaneseq
        %v2224 = vshrl.u32 %v2223, 7
        %v2225 = vsub.s32 %v1205, %v2224
        %v2226 = vrot.slane %v2206, %v2225
        %v2227 = vlaneseq
        %v2228 = vshrl.u32 %v2227, 7
        %v2229 = vsub.s32 %v1205, %v2228
        %v2230 = vrot.slane %v2207, %v2229
        %v2231 = vlaneseq
        %v2232 = vshrl.u32 %v2231, 7
        %v2233 = vsub.s32 %v1205, %v2232
        %v2234 = vrot.slane %v2208, %v2233
        %v2235 = vlaneseq
        %v2236 = vshrl.u32 %v2235, 7
        %v2237 = vsub.s32 %v1205, %v2236
        %v2238 = vrot.slane %v2209, %v2237
        %v2239 = vlaneseq
        %v2240 = vshrl.u32 %v2239, 7
        %v2241 = vsub.s32 %v1205, %v2240
        %v2242 = vrot.slane %v2210, %v2241
        %v2243 = vlaneseq
        %v2244 = vshrl.u32 %v2243, 7
        %v2245 = vsub.s32 %v1205, %v2244
        %v2246 = vrot.slane %v2211, %v2245
        %v2247 = vsel %vm1405, %v2226, %v2222
        %v2248 = vsel %vm1407, %v2230, %v2247
        %v2249 = vsel %vm1409, %v2234, %v2248
        %v2250 = vsel %vm1411, %v2238, %v2249
        %v2251 = vsel %vm1413, %v2242, %v2250
        %v2252 = vsel %vm1415, %v2246, %v2251
        %2254 = vxpose.xlu0.b32.start [1/16] %v2252, 128
        %2255 = vxpose.xlu0.b32.cont [2/16] 0.0, 128
        %2256 = vxpose.xlu0.b32.cont [3/16] 0.0, 128
        %2257 = vxpose.xlu0.b32.cont [4/16] 0.0, 128
        %2258 = vxpose.xlu0.b32.cont [5/16] 0.0, 128
        %2259 = vxpose.xlu0.b32.cont [6/16] 0.0, 128
        %2260 = vxpose.xlu0.b32.cont [7/16] 0.0, 128
        %2261 = vxpose.xlu0.b32.cont [8/16] 0.0, 128
        %2262 = vxpose.xlu0.b32.cont [9/16] 0.0, 128
        %2263 = vxpose.xlu0.b32.cont [10/16] 0.0, 128
        %2264 = vxpose.xlu0.b32.cont [11/16] 0.0, 128
        %2265 = vxpose.xlu0.b32.cont [12/16] 0.0, 128
        %2266 = vxpose.xlu0.b32.cont [13/16] 0.0, 128
        %2267 = vxpose.xlu0.b32.cont [14/16] 0.0, 128
        %2268 = vxpose.xlu0.b32.cont [15/16] 0.0, 128
        %2269 = vxpose.xlu0.b32.end [16/16] 0.0, 128
        %v2270 = vpop.trf.xlu0
        %v2271 = vpop.trf.xlu0
        %v2272 = vpop.trf.xlu0
        %v2273 = vpop.trf.xlu0
        %v2274 = vpop.trf.xlu0
        %v2275 = vpop.trf.xlu0
        %v2276 = vpop.trf.xlu0
        %v2277 = vpop.trf.xlu0
        %v2278 = vpop.trf.xlu0
        %v2279 = vpop.trf.xlu0
        %v2280 = vpop.trf.xlu0
        %v2281 = vpop.trf.xlu0
        %v2282 = vpop.trf.xlu0
        %v2283 = vpop.trf.xlu0
        %v2284 = vpop.trf.xlu0
        %v2285 = vpop.trf.xlu0
        %2286 = vrot.lane.b32.xlu0 %v1193, 112
        %v2287 = vpop.permute.xlu0 %2286
        %2288 = vrot.lane.b32.xlu0 %v1183, 80
        %v2289 = vpop.permute.xlu0 %2288
        %v2290 = vsel %vm1453, %v2287, 0
        %v2292 = vsel %vm1453, %v2289, 0
        %2294 = vmatprep.subr.mxu0 0.0
        %2295 = vmatpush1.xpose.msra.mxu0 0.0
        %2296 = vmatprep.subr.mxu0 0.0
        %2297 = vmatpush1.xpose.msra.mxu0 0.0
        %2298 = vmatprep.subr.mxu0 0.0
        %2299 = vmatpush1.xpose.msra.mxu0 0.0
        %2300 = vmatprep.subr.mxu0 0.0
        %2301 = vmatpush1.xpose.msra.mxu0 0.0
        %2302 = vmatprep.subr.mxu0 0.0
        %2303 = vmatpush1.xpose.msra.mxu0 0.0
        %2304 = vmatprep.subr.mxu0 0.0
        %2305 = vmatpush1.xpose.msra.mxu0 0.0
        %2306 = vmatprep.subr.mxu0 0.0
        %2307 = vmatpush1.xpose.msra.mxu0 0.0
        %2308 = vmatprep.subr.mxu0 0.0
        %2309 = vmatpush1.xpose.msra.mxu0 0.0
        %2310 = vmatprep.subr.mxu0 0.0
        %2311 = vmatpush1.xpose.msra.mxu0 0.0
        %2312 = vmatprep.subr.mxu0 0.0
        %2313 = vmatpush1.xpose.msra.mxu0 0.0
        %2314 = vmatprep.subr.mxu0 0.0
        %2315 = vmatpush1.xpose.msra.mxu0 0.0
        %2316 = vmatprep.subr.mxu0 0.0
        %2317 = vmatpush1.xpose.msra.mxu0 0.0
        %2318 = vmatprep.subr.mxu0 0.0
        %2319 = vmatpush1.xpose.msra.mxu0 0.0
        %2320 = vmatprep.subr.mxu0 0.0
        %2321 = vmatpush1.xpose.msra.mxu0 0.0
        %2322 = vmatprep.subr.mxu0 0.0
        %2323 = vmatpush1.xpose.msra.mxu0 0.0
        %2324 = vmatprep.subr.mxu0 0.0
        %2325 = vmatpush1.xpose.msra.mxu0 %v2292
        %2326 = vmatprep.subr.mxu0 0.0
        %2327 = vmatpush2.xpose.msra.mxu0 0.0
        %2328 = vmatprep.subr.mxu0 0.0
        %2329 = vmatpush2.xpose.msra.mxu0 0.0
        %2330 = vmatprep.subr.mxu0 0.0
        %2331 = vmatpush2.xpose.msra.mxu0 0.0
        %2332 = vmatprep.subr.mxu0 0.0
        %2333 = vmatpush2.xpose.msra.mxu0 0.0
        %2334 = vmatprep.subr.mxu0 0.0
        %2335 = vmatpush2.xpose.msra.mxu0 0.0
        %2336 = vmatprep.subr.mxu0 0.0
        %2337 = vmatpush2.xpose.msra.mxu0 0.0
        %2338 = vmatprep.subr.mxu0 0.0
        %2339 = vmatpush2.xpose.msra.mxu0 0.0
        %2340 = vmatprep.subr.mxu0 0.0
        %2341 = vmatpush2.xpose.msra.mxu0 0.0
        %2342 = vmatprep.subr.mxu0 0.0
        %2343 = vmatpush2.xpose.msra.mxu0 0.0
        %2344 = vmatprep.subr.mxu0 0.0
        %2345 = vmatpush2.xpose.msra.mxu0 0.0
        %2346 = vmatprep.subr.mxu0 0.0
        %2347 = vmatpush2.xpose.msra.mxu0 0.0
        %2348 = vmatprep.subr.mxu0 0.0
        %2349 = vmatpush2.xpose.msra.mxu0 0.0
        %2350 = vmatprep.subr.mxu0 0.0
        %2351 = vmatpush2.xpose.msra.mxu0 0.0
        %2352 = vmatprep.subr.mxu0 0.0
        %2353 = vmatpush2.xpose.msra.mxu0 0.0
        %2354 = vmatprep.subr.mxu0 0.0
        %2355 = vmatpush2.xpose.msra.mxu0 0.0
        %2356 = vmatprep.subr.mxu0 0.0
        %2357 = vmatpush2.xpose.msra.mxu0 0.0
        %2358 = vmatprep.mubr.f32.mxu0 0.0
        %2359 = vmatmul.mubr.f32.gmra.mxu0 %v2290
        %v2360 = vpop.f32.mrf.mxu0
        %v2361 = vadd.f32 %v2270, %v2360
        %v2362 = vpop.f32.mrf.mxu0
        %2363 = vdwg.mxu0
        %v2364 = vmul.f32 %v2361, 0.35355338
        %v2365 = vsel %vm1535, -3.4028235e+38, %v2364
        %v2366 = vsel %vm1537, %v2365, -inf
        %2367 = vmax.xlane.f32.xlu0 %v2366
        %v2368 = vpop.xlane.xlu0 %2367
        %v2369 = vsub.f32 %v2365, %v2368
        %v2370 = vmul.f32 %v2369, 1.442695
        %v2371 = vpow.pop %v2370
        %v2372 = vsel %vm1537, %v2371, 0.0
        %2373 = vadd.xlane.f32.xlu0 %v2372
        %v2374 = vpop.xlane.xlu0 %2373
        %v2375 = vrcp.pop %v2374
        %v2376 = vmul.f32 %v2371, %v2375
        %v2377 = vsel %vm1535, 0.0, %v2376
        %2378 = vrot.lane.b32.xlu0 %v1183, 48
        %v2379 = vpop.permute.xlu0 %2378
        %v2381 = vsel %vm1210, %v2377, 0
        %v2383 = vsel %vm1214, %v2379, 0
        %2385 = vmatprep.subr.mxu0 0.0
        %2386 = vmatpush1.msra.mxu0 0.0
        %2387 = vmatprep.subr.mxu0 0.0
        %2388 = vmatpush1.msra.mxu0 0.0
        %2389 = vmatprep.subr.mxu0 0.0
        %2390 = vmatpush1.msra.mxu0 0.0
        %2391 = vmatprep.subr.mxu0 0.0
        %2392 = vmatpush1.msra.mxu0 0.0
        %2393 = vmatprep.subr.mxu0 0.0
        %2394 = vmatpush1.msra.mxu0 0.0
        %2395 = vmatprep.subr.mxu0 0.0
        %2396 = vmatpush1.msra.mxu0 0.0
        %2397 = vmatprep.subr.mxu0 0.0
        %2398 = vmatpush1.msra.mxu0 0.0
        %2399 = vmatprep.subr.mxu0 0.0
        %2400 = vmatpush1.msra.mxu0 0.0
        %2401 = vmatprep.subr.mxu0 0.0
        %2402 = vmatpush1.msra.mxu0 0.0
        %2403 = vmatprep.subr.mxu0 0.0
        %2404 = vmatpush1.msra.mxu0 0.0
        %2405 = vmatprep.subr.mxu0 0.0
        %2406 = vmatpush1.msra.mxu0 0.0
        %2407 = vmatprep.subr.mxu0 0.0
        %2408 = vmatpush1.msra.mxu0 0.0
        %2409 = vmatprep.subr.mxu0 0.0
        %2410 = vmatpush1.msra.mxu0 0.0
        %2411 = vmatprep.subr.mxu0 0.0
        %2412 = vmatpush1.msra.mxu0 0.0
        %2413 = vmatprep.subr.mxu0 0.0
        %2414 = vmatpush1.msra.mxu0 0.0
        %2415 = vmatprep.subr.mxu0 0.0
        %2416 = vmatpush1.msra.mxu0 %v2383
        %2417 = vmatprep.subr.mxu0 0.0
        %2418 = vmatpush2.msra.mxu0 0.0
        %2419 = vmatprep.subr.mxu0 0.0
        %2420 = vmatpush2.msra.mxu0 0.0
        %2421 = vmatprep.subr.mxu0 0.0
        %2422 = vmatpush2.msra.mxu0 0.0
        %2423 = vmatprep.subr.mxu0 0.0
        %2424 = vmatpush2.msra.mxu0 0.0
        %2425 = vmatprep.subr.mxu0 0.0
        %2426 = vmatpush2.msra.mxu0 0.0
        %2427 = vmatprep.subr.mxu0 0.0
        %2428 = vmatpush2.msra.mxu0 0.0
        %2429 = vmatprep.subr.mxu0 0.0
        %2430 = vmatpush2.msra.mxu0 0.0
        %2431 = vmatprep.subr.mxu0 0.0
        %2432 = vmatpush2.msra.mxu0 0.0
        %2433 = vmatprep.subr.mxu0 0.0
        %2434 = vmatpush2.msra.mxu0 0.0
        %2435 = vmatprep.subr.mxu0 0.0
        %2436 = vmatpush2.msra.mxu0 0.0
        %2437 = vmatprep.subr.mxu0 0.0
        %2438 = vmatpush2.msra.mxu0 0.0
        %2439 = vmatprep.subr.mxu0 0.0
        %2440 = vmatpush2.msra.mxu0 0.0
        %2441 = vmatprep.subr.mxu0 0.0
        %2442 = vmatpush2.msra.mxu0 0.0
        %2443 = vmatprep.subr.mxu0 0.0
        %2444 = vmatpush2.msra.mxu0 0.0
        %2445 = vmatprep.subr.mxu0 0.0
        %2446 = vmatpush2.msra.mxu0 0.0
        %2447 = vmatprep.subr.mxu0 0.0
        %2448 = vmatpush2.msra.mxu0 0.0
        %2449 = vmatprep.mubr.f32.mxu0 0.0
        %2450 = vmatmul.mubr.f32.gmra.mxu0 %v2381
        %v2451 = vpop.f32.mrf.mxu0
        %v2452 = vadd.f32 0.0, %v2451
        %v2453 = vpop.f32.mrf.mxu0
        %2454 = vdwg.mxu0
        %v2456 = vsel %vm1453, %v2452, 0
        %2458 = vmatprep.subr.mxu0 0.0
        %2459 = vmatpush1.msra.mxu0 0.0
        %2460 = vmatprep.subr.mxu0 0.0
        %2461 = vmatpush1.msra.mxu0 0.0
        %2462 = vmatprep.subr.mxu0 0.0
        %2463 = vmatpush1.msra.mxu0 0.0
        %2464 = vmatprep.subr.mxu0 0.0
        %2465 = vmatpush1.msra.mxu0 0.0
        %2466 = vmatprep.subr.mxu0 0.0
        %2467 = vmatpush1.msra.mxu0 0.0
        %2468 = vmatprep.subr.mxu0 0.0
        %2469 = vmatpush1.msra.mxu0 0.0
        %2470 = vmatprep.subr.mxu0 0.0
        %2471 = vmatpush1.msra.mxu0 0.0
        %2472 = vmatprep.subr.mxu0 0.0
        %2473 = vmatpush1.msra.mxu0 0.0
        %2474 = vmatprep.subr.mxu0 0.0
        %2475 = vmatpush1.msra.mxu0 0.0
        %2476 = vmatprep.subr.mxu0 0.0
        %2477 = vmatpush1.msra.mxu0 0.0
        %2478 = vmatprep.subr.mxu0 0.0
        %2479 = vmatpush1.msra.mxu0 0.0
        %2480 = vmatprep.subr.mxu0 0.0
        %2481 = vmatpush1.msra.mxu0 0.0
        %2482 = vmatprep.subr.mxu0 0.0
        %2483 = vmatpush1.msra.mxu0 0.0
        %2484 = vmatprep.subr.mxu0 0.0
        %2485 = vmatpush1.msra.mxu0 0.0
        %2486 = vmatprep.subr.mxu0 0.0
        %2487 = vmatpush1.msra.mxu0 0.0
        %2488 = vmatprep.subr.mxu0 0.0
        %2489 = vmatpush1.msra.mxu0 %v1304
        %2490 = vmatprep.subr.mxu0 0.0
        %2491 = vmatpush2.msra.mxu0 0.0
        %2492 = vmatprep.subr.mxu0 0.0
        %2493 = vmatpush2.msra.mxu0 0.0
        %2494 = vmatprep.subr.mxu0 0.0
        %2495 = vmatpush2.msra.mxu0 0.0
        %2496 = vmatprep.subr.mxu0 0.0
        %2497 = vmatpush2.msra.mxu0 0.0
        %2498 = vmatprep.subr.mxu0 0.0
        %2499 = vmatpush2.msra.mxu0 0.0
        %2500 = vmatprep.subr.mxu0 0.0
        %2501 = vmatpush2.msra.mxu0 0.0
        %2502 = vmatprep.subr.mxu0 0.0
        %2503 = vmatpush2.msra.mxu0 0.0
        %2504 = vmatprep.subr.mxu0 0.0
        %2505 = vmatpush2.msra.mxu0 0.0
        %2506 = vmatprep.subr.mxu0 0.0
        %2507 = vmatpush2.msra.mxu0 0.0
        %2508 = vmatprep.subr.mxu0 0.0
        %2509 = vmatpush2.msra.mxu0 0.0
        %2510 = vmatprep.subr.mxu0 0.0
        %2511 = vmatpush2.msra.mxu0 0.0
        %2512 = vmatprep.subr.mxu0 0.0
        %2513 = vmatpush2.msra.mxu0 0.0
        %2514 = vmatprep.subr.mxu0 0.0
        %2515 = vmatpush2.msra.mxu0 0.0
        %2516 = vmatprep.subr.mxu0 0.0
        %2517 = vmatpush2.msra.mxu0 0.0
        %2518 = vmatprep.subr.mxu0 0.0
        %2519 = vmatpush2.msra.mxu0 0.0
        %2520 = vmatprep.subr.mxu0 0.0
        %2521 = vmatpush2.msra.mxu0 0.0
        %2522 = vmatprep.mubr.f32.mxu0 0.0
        %2523 = vmatmul.mubr.f32.gmra.mxu0 %v2456
        %v2524 = vpop.f32.mrf.mxu0
        %v2525 = vadd.f32 0.0, %v2524
        %v2526 = vpop.f32.mrf.mxu0
        %2527 = vdwg.mxu0
        %v2528 = vadd.f32 %v2118, %v2525
        %2529 = vrot.lane.b32.xlu0 %v1306, 104
        %v2530 = vpop.permute.xlu0 %2529
        %2531 = vrot.lane.b32.xlu0 %v1307, 104
        %v2532 = vpop.permute.xlu0 %2531
        %2533 = vrot.lane.b32.xlu0 %v1308, 104
        %v2534 = vpop.permute.xlu0 %2533
        %2535 = vrot.lane.b32.xlu0 %v1309, 104
        %v2536 = vpop.permute.xlu0 %2535
        %2537 = vrot.lane.b32.xlu0 %v1310, 104
        %v2538 = vpop.permute.xlu0 %2537
        %2539 = vrot.lane.b32.xlu0 %v1311, 104
        %v2540 = vpop.permute.xlu0 %2539
        %2541 = vrot.lane.b32.xlu0 %v1312, 104
        %v2542 = vpop.permute.xlu0 %2541
        %v2550 = vsel %vm1313, %v2530, 0.0
        %2551 = vadd.xlane.f32.xlu0 %v2550
        %v2552 = vpop.xlane.xlu0 %2551
        %v2553 = vsel %vm1313, %v2532, 0.0
        %2554 = vadd.xlane.f32.xlu0 %v2553
        %v2555 = vpop.xlane.xlu0 %2554
        %v2556 = vsel %vm1313, %v2534, 0.0
        %2557 = vadd.xlane.f32.xlu0 %v2556
        %v2558 = vpop.xlane.xlu0 %2557
        %v2559 = vsel %vm1313, %v2536, 0.0
        %2560 = vadd.xlane.f32.xlu0 %v2559
        %v2561 = vpop.xlane.xlu0 %2560
        %v2562 = vsel %vm1313, %v2538, 0.0
        %2563 = vadd.xlane.f32.xlu0 %v2562
        %v2564 = vpop.xlane.xlu0 %2563
        %v2565 = vsel %vm1313, %v2540, 0.0
        %2566 = vadd.xlane.f32.xlu0 %v2565
        %v2567 = vpop.xlane.xlu0 %2566
        %v2568 = vsel %vm1313, %v2542, 0.0
        %2569 = vadd.xlane.f32.xlu0 %v2568
        %v2570 = vpop.xlane.xlu0 %2569
        %2571 = vrot.lane.b32.xlu0 %v1335, 104
        %v2572 = vpop.permute.xlu0 %2571
        %2573 = vrot.lane.b32.xlu0 %v1336, 104
        %v2574 = vpop.permute.xlu0 %2573
        %2575 = vrot.lane.b32.xlu0 %v1337, 104
        %v2576 = vpop.permute.xlu0 %2575
        %2577 = vrot.lane.b32.xlu0 %v1338, 104
        %v2578 = vpop.permute.xlu0 %2577
        %2579 = vrot.lane.b32.xlu0 %v1339, 104
        %v2580 = vpop.permute.xlu0 %2579
        %2581 = vrot.lane.b32.xlu0 %v1340, 104
        %v2582 = vpop.permute.xlu0 %2581
        %2583 = vrot.lane.b32.xlu0 %v1341, 104
        %v2584 = vpop.permute.xlu0 %2583
        %v2592 = vsel %vm1313, %v2572, 0.0
        %2593 = vadd.xlane.f32.xlu0 %v2592
        %v2594 = vpop.xlane.xlu0 %2593
        %v2595 = vsel %vm1313, %v2574, 0.0
        %2596 = vadd.xlane.f32.xlu0 %v2595
        %v2597 = vpop.xlane.xlu0 %2596
        %v2598 = vsel %vm1313, %v2576, 0.0
        %2599 = vadd.xlane.f32.xlu0 %v2598
        %v2600 = vpop.xlane.xlu0 %2599
        %v2601 = vsel %vm1313, %v2578, 0.0
        %2602 = vadd.xlane.f32.xlu0 %v2601
        %v2603 = vpop.xlane.xlu0 %2602
        %v2604 = vsel %vm1313, %v2580, 0.0
        %2605 = vadd.xlane.f32.xlu0 %v2604
        %v2606 = vpop.xlane.xlu0 %2605
        %v2607 = vsel %vm1313, %v2582, 0.0
        %2608 = vadd.xlane.f32.xlu0 %v2607
        %v2609 = vpop.xlane.xlu0 %2608
        %v2610 = vsel %vm1313, %v2584, 0.0
        %2611 = vadd.xlane.f32.xlu0 %v2610
        %v2612 = vpop.xlane.xlu0 %2611
        %v2613 = vadd.f32 %v2552, %v2594
        %v2614 = vadd.f32 %v2555, %v2597
        %v2615 = vadd.f32 %v2558, %v2600
        %v2616 = vadd.f32 %v2561, %v2603
        %v2617 = vadd.f32 %v2564, %v2606
        %v2618 = vadd.f32 %v2567, %v2609
        %v2619 = vadd.f32 %v2570, %v2612
        %v2627 = vlaneseq
        %v2628 = vshrl.u32 %v2627, 7
        %v2629 = vsub.s32 %v1205, %v2628
        %v2630 = vrot.slane %v2613, %v2629
        %v2631 = vlaneseq
        %v2632 = vshrl.u32 %v2631, 7
        %v2633 = vsub.s32 %v1205, %v2632
        %v2634 = vrot.slane %v2614, %v2633
        %v2635 = vlaneseq
        %v2636 = vshrl.u32 %v2635, 7
        %v2637 = vsub.s32 %v1205, %v2636
        %v2638 = vrot.slane %v2615, %v2637
        %v2639 = vlaneseq
        %v2640 = vshrl.u32 %v2639, 7
        %v2641 = vsub.s32 %v1205, %v2640
        %v2642 = vrot.slane %v2616, %v2641
        %v2643 = vlaneseq
        %v2644 = vshrl.u32 %v2643, 7
        %v2645 = vsub.s32 %v1205, %v2644
        %v2646 = vrot.slane %v2617, %v2645
        %v2647 = vlaneseq
        %v2648 = vshrl.u32 %v2647, 7
        %v2649 = vsub.s32 %v1205, %v2648
        %v2650 = vrot.slane %v2618, %v2649
        %v2651 = vlaneseq
        %v2652 = vshrl.u32 %v2651, 7
        %v2653 = vsub.s32 %v1205, %v2652
        %v2654 = vrot.slane %v2619, %v2653
        %v2655 = vsel %vm1405, %v2634, %v2630
        %v2656 = vsel %vm1407, %v2638, %v2655
        %v2657 = vsel %vm1409, %v2642, %v2656
        %v2658 = vsel %vm1411, %v2646, %v2657
        %v2659 = vsel %vm1413, %v2650, %v2658
        %v2660 = vsel %vm1415, %v2654, %v2659
        %2662 = vxpose.xlu0.b32.start [1/16] %v2660, 128
        %2663 = vxpose.xlu0.b32.cont [2/16] 0.0, 128
        %2664 = vxpose.xlu0.b32.cont [3/16] 0.0, 128
        %2665 = vxpose.xlu0.b32.cont [4/16] 0.0, 128
        %2666 = vxpose.xlu0.b32.cont [5/16] 0.0, 128
        %2667 = vxpose.xlu0.b32.cont [6/16] 0.0, 128
        %2668 = vxpose.xlu0.b32.cont [7/16] 0.0, 128
        %2669 = vxpose.xlu0.b32.cont [8/16] 0.0, 128
        %2670 = vxpose.xlu0.b32.cont [9/16] 0.0, 128
        %2671 = vxpose.xlu0.b32.cont [10/16] 0.0, 128
        %2672 = vxpose.xlu0.b32.cont [11/16] 0.0, 128
        %2673 = vxpose.xlu0.b32.cont [12/16] 0.0, 128
        %2674 = vxpose.xlu0.b32.cont [13/16] 0.0, 128
        %2675 = vxpose.xlu0.b32.cont [14/16] 0.0, 128
        %2676 = vxpose.xlu0.b32.cont [15/16] 0.0, 128
        %2677 = vxpose.xlu0.b32.end [16/16] 0.0, 128
        %v2678 = vpop.trf.xlu0
        %v2679 = vpop.trf.xlu0
        %v2680 = vpop.trf.xlu0
        %v2681 = vpop.trf.xlu0
        %v2682 = vpop.trf.xlu0
        %v2683 = vpop.trf.xlu0
        %v2684 = vpop.trf.xlu0
        %v2685 = vpop.trf.xlu0
        %v2686 = vpop.trf.xlu0
        %v2687 = vpop.trf.xlu0
        %v2688 = vpop.trf.xlu0
        %v2689 = vpop.trf.xlu0
        %v2690 = vpop.trf.xlu0
        %v2691 = vpop.trf.xlu0
        %v2692 = vpop.trf.xlu0
        %v2693 = vpop.trf.xlu0
        %2694 = vrot.lane.b32.xlu0 %v1193, 104
        %v2695 = vpop.permute.xlu0 %2694
        %2696 = vrot.lane.b32.xlu0 %v1183, 72
        %v2697 = vpop.permute.xlu0 %2696
        %v2698 = vsel %vm1453, %v2695, 0
        %v2700 = vsel %vm1453, %v2697, 0
        %2702 = vmatprep.subr.mxu0 0.0
        %2703 = vmatpush1.xpose.msra.mxu0 0.0
        %2704 = vmatprep.subr.mxu0 0.0
        %2705 = vmatpush1.xpose.msra.mxu0 0.0
        %2706 = vmatprep.subr.mxu0 0.0
        %2707 = vmatpush1.xpose.msra.mxu0 0.0
        %2708 = vmatprep.subr.mxu0 0.0
        %2709 = vmatpush1.xpose.msra.mxu0 0.0
        %2710 = vmatprep.subr.mxu0 0.0
        %2711 = vmatpush1.xpose.msra.mxu0 0.0
        %2712 = vmatprep.subr.mxu0 0.0
        %2713 = vmatpush1.xpose.msra.mxu0 0.0
        %2714 = vmatprep.subr.mxu0 0.0
        %2715 = vmatpush1.xpose.msra.mxu0 0.0
        %2716 = vmatprep.subr.mxu0 0.0
        %2717 = vmatpush1.xpose.msra.mxu0 0.0
        %2718 = vmatprep.subr.mxu0 0.0
        %2719 = vmatpush1.xpose.msra.mxu0 0.0
        %2720 = vmatprep.subr.mxu0 0.0
        %2721 = vmatpush1.xpose.msra.mxu0 0.0
        %2722 = vmatprep.subr.mxu0 0.0
        %2723 = vmatpush1.xpose.msra.mxu0 0.0
        %2724 = vmatprep.subr.mxu0 0.0
        %2725 = vmatpush1.xpose.msra.mxu0 0.0
        %2726 = vmatprep.subr.mxu0 0.0
        %2727 = vmatpush1.xpose.msra.mxu0 0.0
        %2728 = vmatprep.subr.mxu0 0.0
        %2729 = vmatpush1.xpose.msra.mxu0 0.0
        %2730 = vmatprep.subr.mxu0 0.0
        %2731 = vmatpush1.xpose.msra.mxu0 0.0
        %2732 = vmatprep.subr.mxu0 0.0
        %2733 = vmatpush1.xpose.msra.mxu0 %v2700
        %2734 = vmatprep.subr.mxu0 0.0
        %2735 = vmatpush2.xpose.msra.mxu0 0.0
        %2736 = vmatprep.subr.mxu0 0.0
        %2737 = vmatpush2.xpose.msra.mxu0 0.0
        %2738 = vmatprep.subr.mxu0 0.0
        %2739 = vmatpush2.xpose.msra.mxu0 0.0
        %2740 = vmatprep.subr.mxu0 0.0
        %2741 = vmatpush2.xpose.msra.mxu0 0.0
        %2742 = vmatprep.subr.mxu0 0.0
        %2743 = vmatpush2.xpose.msra.mxu0 0.0
        %2744 = vmatprep.subr.mxu0 0.0
        %2745 = vmatpush2.xpose.msra.mxu0 0.0
        %2746 = vmatprep.subr.mxu0 0.0
        %2747 = vmatpush2.xpose.msra.mxu0 0.0
        %2748 = vmatprep.subr.mxu0 0.0
        %2749 = vmatpush2.xpose.msra.mxu0 0.0
        %2750 = vmatprep.subr.mxu0 0.0
        %2751 = vmatpush2.xpose.msra.mxu0 0.0
        %2752 = vmatprep.subr.mxu0 0.0
        %2753 = vmatpush2.xpose.msra.mxu0 0.0
        %2754 = vmatprep.subr.mxu0 0.0
        %2755 = vmatpush2.xpose.msra.mxu0 0.0
        %2756 = vmatprep.subr.mxu0 0.0
        %2757 = vmatpush2.xpose.msra.mxu0 0.0
        %2758 = vmatprep.subr.mxu0 0.0
        %2759 = vmatpush2.xpose.msra.mxu0 0.0
        %2760 = vmatprep.subr.mxu0 0.0
        %2761 = vmatpush2.xpose.msra.mxu0 0.0
        %2762 = vmatprep.subr.mxu0 0.0
        %2763 = vmatpush2.xpose.msra.mxu0 0.0
        %2764 = vmatprep.subr.mxu0 0.0
        %2765 = vmatpush2.xpose.msra.mxu0 0.0
        %2766 = vmatprep.mubr.f32.mxu0 0.0
        %2767 = vmatmul.mubr.f32.gmra.mxu0 %v2698
        %v2768 = vpop.f32.mrf.mxu0
        %v2769 = vadd.f32 %v2678, %v2768
        %v2770 = vpop.f32.mrf.mxu0
        %2771 = vdwg.mxu0
        %v2772 = vmul.f32 %v2769, 0.35355338
        %v2773 = vsel %vm1535, -3.4028235e+38, %v2772
        %v2774 = vsel %vm1537, %v2773, -inf
        %2775 = vmax.xlane.f32.xlu0 %v2774
        %v2776 = vpop.xlane.xlu0 %2775
        %v2777 = vsub.f32 %v2773, %v2776
        %v2778 = vmul.f32 %v2777, 1.442695
        %v2779 = vpow.pop %v2778
        %v2780 = vsel %vm1537, %v2779, 0.0
        %2781 = vadd.xlane.f32.xlu0 %v2780
        %v2782 = vpop.xlane.xlu0 %2781
        %v2783 = vrcp.pop %v2782
        %v2784 = vmul.f32 %v2779, %v2783
        %v2785 = vsel %vm1535, 0.0, %v2784
        %2786 = vrot.lane.b32.xlu0 %v1183, 40
        %v2787 = vpop.permute.xlu0 %2786
        %v2789 = vsel %vm1210, %v2785, 0
        %v2791 = vsel %vm1214, %v2787, 0
        %2793 = vmatprep.subr.mxu0 0.0
        %2794 = vmatpush1.msra.mxu0 0.0
        %2795 = vmatprep.subr.mxu0 0.0
        %2796 = vmatpush1.msra.mxu0 0.0
        %2797 = vmatprep.subr.mxu0 0.0
        %2798 = vmatpush1.msra.mxu0 0.0
        %2799 = vmatprep.subr.mxu0 0.0
        %2800 = vmatpush1.msra.mxu0 0.0
        %2801 = vmatprep.subr.mxu0 0.0
        %2802 = vmatpush1.msra.mxu0 0.0
        %2803 = vmatprep.subr.mxu0 0.0
        %2804 = vmatpush1.msra.mxu0 0.0
        %2805 = vmatprep.subr.mxu0 0.0
        %2806 = vmatpush1.msra.mxu0 0.0
        %2807 = vmatprep.subr.mxu0 0.0
        %2808 = vmatpush1.msra.mxu0 0.0
        %2809 = vmatprep.subr.mxu0 0.0
        %2810 = vmatpush1.msra.mxu0 0.0
        %2811 = vmatprep.subr.mxu0 0.0
        %2812 = vmatpush1.msra.mxu0 0.0
        %2813 = vmatprep.subr.mxu0 0.0
        %2814 = vmatpush1.msra.mxu0 0.0
        %2815 = vmatprep.subr.mxu0 0.0
        %2816 = vmatpush1.msra.mxu0 0.0
        %2817 = vmatprep.subr.mxu0 0.0
        %2818 = vmatpush1.msra.mxu0 0.0
        %2819 = vmatprep.subr.mxu0 0.0
        %2820 = vmatpush1.msra.mxu0 0.0
        %2821 = vmatprep.subr.mxu0 0.0
        %2822 = vmatpush1.msra.mxu0 0.0
        %2823 = vmatprep.subr.mxu0 0.0
        %2824 = vmatpush1.msra.mxu0 %v2791
        %2825 = vmatprep.subr.mxu0 0.0
        %2826 = vmatpush2.msra.mxu0 0.0
        %2827 = vmatprep.subr.mxu0 0.0
        %2828 = vmatpush2.msra.mxu0 0.0
        %2829 = vmatprep.subr.mxu0 0.0
        %2830 = vmatpush2.msra.mxu0 0.0
        %2831 = vmatprep.subr.mxu0 0.0
        %2832 = vmatpush2.msra.mxu0 0.0
        %2833 = vmatprep.subr.mxu0 0.0
        %2834 = vmatpush2.msra.mxu0 0.0
        %2835 = vmatprep.subr.mxu0 0.0
        %2836 = vmatpush2.msra.mxu0 0.0
        %2837 = vmatprep.subr.mxu0 0.0
        %2838 = vmatpush2.msra.mxu0 0.0
        %2839 = vmatprep.subr.mxu0 0.0
        %2840 = vmatpush2.msra.mxu0 0.0
        %2841 = vmatprep.subr.mxu0 0.0
        %2842 = vmatpush2.msra.mxu0 0.0
        %2843 = vmatprep.subr.mxu0 0.0
        %2844 = vmatpush2.msra.mxu0 0.0
        %2845 = vmatprep.subr.mxu0 0.0
        %2846 = vmatpush2.msra.mxu0 0.0
        %2847 = vmatprep.subr.mxu0 0.0
        %2848 = vmatpush2.msra.mxu0 0.0
        %2849 = vmatprep.subr.mxu0 0.0
        %2850 = vmatpush2.msra.mxu0 0.0
        %2851 = vmatprep.subr.mxu0 0.0
        %2852 = vmatpush2.msra.mxu0 0.0
        %2853 = vmatprep.subr.mxu0 0.0
        %2854 = vmatpush2.msra.mxu0 0.0
        %2855 = vmatprep.subr.mxu0 0.0
        %2856 = vmatpush2.msra.mxu0 0.0
        %2857 = vmatprep.mubr.f32.mxu0 0.0
        %2858 = vmatmul.mubr.f32.gmra.mxu0 %v2789
        %v2859 = vpop.f32.mrf.mxu0
        %v2860 = vadd.f32 0.0, %v2859
        %v2861 = vpop.f32.mrf.mxu0
        %2862 = vdwg.mxu0
        %v2864 = vsel %vm1453, %v2860, 0
        %2866 = vmatprep.subr.mxu0 0.0
        %2867 = vmatpush1.msra.mxu0 0.0
        %2868 = vmatprep.subr.mxu0 0.0
        %2869 = vmatpush1.msra.mxu0 0.0
        %2870 = vmatprep.subr.mxu0 0.0
        %2871 = vmatpush1.msra.mxu0 0.0
        %2872 = vmatprep.subr.mxu0 0.0
        %2873 = vmatpush1.msra.mxu0 0.0
        %2874 = vmatprep.subr.mxu0 0.0
        %2875 = vmatpush1.msra.mxu0 0.0
        %2876 = vmatprep.subr.mxu0 0.0
        %2877 = vmatpush1.msra.mxu0 0.0
        %2878 = vmatprep.subr.mxu0 0.0
        %2879 = vmatpush1.msra.mxu0 0.0
        %2880 = vmatprep.subr.mxu0 0.0
        %2881 = vmatpush1.msra.mxu0 0.0
        %2882 = vmatprep.subr.mxu0 0.0
        %2883 = vmatpush1.msra.mxu0 0.0
        %2884 = vmatprep.subr.mxu0 0.0
        %2885 = vmatpush1.msra.mxu0 0.0
        %2886 = vmatprep.subr.mxu0 0.0
        %2887 = vmatpush1.msra.mxu0 0.0
        %2888 = vmatprep.subr.mxu0 0.0
        %2889 = vmatpush1.msra.mxu0 0.0
        %2890 = vmatprep.subr.mxu0 0.0
        %2891 = vmatpush1.msra.mxu0 0.0
        %2892 = vmatprep.subr.mxu0 0.0
        %2893 = vmatpush1.msra.mxu0 0.0
        %2894 = vmatprep.subr.mxu0 0.0
        %2895 = vmatpush1.msra.mxu0 0.0
        %2896 = vmatprep.subr.mxu0 0.0
        %2897 = vmatpush1.msra.mxu0 %v1305
        %2898 = vmatprep.subr.mxu0 0.0
        %2899 = vmatpush2.msra.mxu0 0.0
        %2900 = vmatprep.subr.mxu0 0.0
        %2901 = vmatpush2.msra.mxu0 0.0
        %2902 = vmatprep.subr.mxu0 0.0
        %2903 = vmatpush2.msra.mxu0 0.0
        %2904 = vmatprep.subr.mxu0 0.0
        %2905 = vmatpush2.msra.mxu0 0.0
        %2906 = vmatprep.subr.mxu0 0.0
        %2907 = vmatpush2.msra.mxu0 0.0
        %2908 = vmatprep.subr.mxu0 0.0
        %2909 = vmatpush2.msra.mxu0 0.0
        %2910 = vmatprep.subr.mxu0 0.0
        %2911 = vmatpush2.msra.mxu0 0.0
        %2912 = vmatprep.subr.mxu0 0.0
        %2913 = vmatpush2.msra.mxu0 0.0
        %2914 = vmatprep.subr.mxu0 0.0
        %2915 = vmatpush2.msra.mxu0 0.0
        %2916 = vmatprep.subr.mxu0 0.0
        %2917 = vmatpush2.msra.mxu0 0.0
        %2918 = vmatprep.subr.mxu0 0.0
        %2919 = vmatpush2.msra.mxu0 0.0
        %2920 = vmatprep.subr.mxu0 0.0
        %2921 = vmatpush2.msra.mxu0 0.0
        %2922 = vmatprep.subr.mxu0 0.0
        %2923 = vmatpush2.msra.mxu0 0.0
        %2924 = vmatprep.subr.mxu0 0.0
        %2925 = vmatpush2.msra.mxu0 0.0
        %2926 = vmatprep.subr.mxu0 0.0
        %2927 = vmatpush2.msra.mxu0 0.0
        %2928 = vmatprep.subr.mxu0 0.0
        %2929 = vmatpush2.msra.mxu0 0.0
        %2930 = vmatprep.mubr.f32.mxu0 0.0
        %2931 = vmatmul.mubr.f32.gmra.mxu0 %v2864
        %v2932 = vpop.f32.mrf.mxu0
        %v2933 = vadd.f32 0.0, %v2932
        %v2934 = vpop.f32.mrf.mxu0
        %2935 = vdwg.mxu0
        %v2936 = vadd.f32 %v2528, %v2933
        %v2937 = vadd.f32 %v1078, %v2936
        %v2938 = vld [vmem:[%s15] sm:$0x1]
        %v2940 = vlaneseq
        %v2941 = vshrl.u32 %v2940, 7
        %v2942 = vsub.s32 0, %v2941
        %v2943 = vrot.slane %v2938, %v2942
        %v2945 = vadd.f32 %v2937, %v2943
        %v2946 = vsel %vm871, %v2945, 0.0
        %2947 = vadd.xlane.f32.xlu0 %v2946
        %v2948 = vpop.xlane.xlu0 %2947
        %v2949 = vmul.f32 %v2948, %v875
        %v2950 = vsub.f32 %v2945, %v2949
        %v2951 = vmul.f32 %v2950, %v2950
        %v2952 = vsel %vm871, %v2951, 0.0
        %2953 = vadd.xlane.f32.xlu0 %v2952
        %v2954 = vpop.xlane.xlu0 %2953
        %v2955 = vmul.f32 %v2954, %v875
        %v2956 = vadd.f32 %v2955, 1e-12
        %v2957 = vrsqrt.pop %v2956
        %v2958 = vmul.f32 %v2950, %v2957
        %v2959 = vlaneseq
        %v2960 = vshrl.u32 %v2959, 7
        %v2961 = vsub.s32 2, %v2960
        %v2962 = vrot.slane %v869, %v2961
        %v2963 = vmul.f32 %v2958, %v2962
        %v2964 = vlaneseq
        %v2965 = vshrl.u32 %v2964, 7
        %v2966 = vsub.s32 2, %v2965
        %v2967 = vrot.slane %v870, %v2966
        %v2968 = vadd.f32 %v2963, %v2967
        %v2969 = vld [vmem:[%s16] sm:$0xff]
        %v2970 = vld [vmem:[%s16 + $0x8] sm:$0xff]
        %v2971 = vld [vmem:[%s16 + $0x10] sm:$0xff]
        %v2972 = vld [vmem:[%s16 + $0x18] sm:$0xff]
        %v2973 = vld [vmem:[%s17] sm:$0x1]
        %v2975 = vlaneseq
        %v2976 = vshrl.u32 %v2975, 7
        %v2977 = vsub.s32 0, %v2976
        %v2978 = vrot.slane %v2973, %v2977
        %v2981 = vsel %vm907, %v2968, 0
        %2983 = vmatprep.subr.mxu0 0.0
        %2984 = vmatpush1.msra.mxu0 0.0
        %2985 = vmatprep.subr.mxu0 0.0
        %2986 = vmatpush1.msra.mxu0 0.0
        %2987 = vmatprep.subr.mxu0 0.0
        %2988 = vmatpush1.msra.mxu0 0.0
        %2989 = vmatprep.subr.mxu0 0.0
        %2990 = vmatpush1.msra.mxu0 0.0
        %2991 = vmatprep.subr.mxu0 0.0
        %2992 = vmatpush1.msra.mxu0 0.0
        %2993 = vmatprep.subr.mxu0 0.0
        %2994 = vmatpush1.msra.mxu0 0.0
        %2995 = vmatprep.subr.mxu0 0.0
        %2996 = vmatpush1.msra.mxu0 0.0
        %2997 = vmatprep.subr.mxu0 0.0
        %2998 = vmatpush1.msra.mxu0 0.0
        %2999 = vmatprep.subr.mxu0 0.0
        %3000 = vmatpush1.msra.mxu0 0.0
        %3001 = vmatprep.subr.mxu0 0.0
        %3002 = vmatpush1.msra.mxu0 0.0
        %3003 = vmatprep.subr.mxu0 0.0
        %3004 = vmatpush1.msra.mxu0 0.0
        %3005 = vmatprep.subr.mxu0 0.0
        %3006 = vmatpush1.msra.mxu0 0.0
        %3007 = vmatprep.subr.mxu0 0.0
        %3008 = vmatpush1.msra.mxu0 %v2972
        %3009 = vmatprep.subr.mxu0 0.0
        %3010 = vmatpush1.msra.mxu0 %v2971
        %3011 = vmatprep.subr.mxu0 0.0
        %3012 = vmatpush1.msra.mxu0 %v2970
        %3013 = vmatprep.subr.mxu0 0.0
        %3014 = vmatpush1.msra.mxu0 %v2969
        %3015 = vmatprep.subr.mxu0 0.0
        %3016 = vmatpush2.msra.mxu0 0.0
        %3017 = vmatprep.subr.mxu0 0.0
        %3018 = vmatpush2.msra.mxu0 0.0
        %3019 = vmatprep.subr.mxu0 0.0
        %3020 = vmatpush2.msra.mxu0 0.0
        %3021 = vmatprep.subr.mxu0 0.0
        %3022 = vmatpush2.msra.mxu0 0.0
        %3023 = vmatprep.subr.mxu0 0.0
        %3024 = vmatpush2.msra.mxu0 0.0
        %3025 = vmatprep.subr.mxu0 0.0
        %3026 = vmatpush2.msra.mxu0 0.0
        %3027 = vmatprep.subr.mxu0 0.0
        %3028 = vmatpush2.msra.mxu0 0.0
        %3029 = vmatprep.subr.mxu0 0.0
        %3030 = vmatpush2.msra.mxu0 0.0
        %3031 = vmatprep.subr.mxu0 0.0
        %3032 = vmatpush2.msra.mxu0 0.0
        %3033 = vmatprep.subr.mxu0 0.0
        %3034 = vmatpush2.msra.mxu0 0.0
        %3035 = vmatprep.subr.mxu0 0.0
        %3036 = vmatpush2.msra.mxu0 0.0
        %3037 = vmatprep.subr.mxu0 0.0
        %3038 = vmatpush2.msra.mxu0 0.0
        %3039 = vmatprep.subr.mxu0 0.0
        %3040 = vmatpush2.msra.mxu0 0.0
        %3041 = vmatprep.subr.mxu0 0.0
        %3042 = vmatpush2.msra.mxu0 0.0
        %3043 = vmatprep.subr.mxu0 0.0
        %3044 = vmatpush2.msra.mxu0 0.0
        %3045 = vmatprep.subr.mxu0 0.0
        %3046 = vmatpush2.msra.mxu0 0.0
        %3047 = vmatprep.mubr.f32.mxu0 0.0
        %3048 = vmatmul.mubr.f32.gmra.mxu0 %v2981
        %v3049 = vpop.f32.mrf.mxu0
        %v3050 = vadd.f32 %v2978, %v3049
        %v3051 = vpop.f32.mrf.mxu0
        %3052 = vdwg.mxu0
        %v3053 = vsub.f32 0.0, %v3050
        %v3054 = vmul.f32 %v3053, 1.442695
        %v3055 = vpow.pop %v3054
        %v3056 = vadd.f32 %v3055, 1.0
        %v3057 = vrcp.pop %v3056
        %v3058 = vmul.f32 1.0, %v3057
        %3060 = vrot.lane.b32.xlu0 %v3058, 96
        %v3061 = vpop.permute.xlu0 %3060
        %v3063 = vmul.f32 %v3050, %v3061
        %v3064 = vld [vmem:[%s18] sm:$0x7f]
        %v3065 = vld [vmem:[%s18 + $0x8] sm:$0x7f]
        %v3066 = vld [vmem:[%s18 + $0x10] sm:$0x7f]
        %v3067 = vld [vmem:[%s18 + $0x18] sm:$0x7f]
        %v3068 = vld [vmem:[%s18 + $0x20] sm:$0x7f]
        %v3069 = vld [vmem:[%s18 + $0x28] sm:$0x7f]
        %v3070 = vld [vmem:[%s18 + $0x30] sm:$0x7f]
        %v3071 = vmul.f32 %v3063, %v3064
        %v3072 = vmul.f32 %v3063, %v3065
        %v3073 = vmul.f32 %v3063, %v3066
        %v3074 = vmul.f32 %v3063, %v3067
        %v3075 = vmul.f32 %v3063, %v3068
        %v3076 = vmul.f32 %v3063, %v3069
        %v3077 = vmul.f32 %v3063, %v3070
        %v3078 = vsel %vm871, %v3071, 0.0
        %v3079 = vrot.slane %v3078, 4
        %v3080 = vadd.f32 %v3078, %v3079
        %v3081 = vrot.slane %v3080, 2
        %v3082 = vadd.f32 %v3080, %v3081
        %v3083 = vrot.slane %v3082, 1
        %v3084 = vadd.f32 %v3082, %v3083
        %v3085 = vsel %vm871, %v3072, 0.0
        %v3086 = vrot.slane %v3085, 4
        %v3087 = vadd.f32 %v3085, %v3086
        %v3088 = vrot.slane %v3087, 2
        %v3089 = vadd.f32 %v3087, %v3088
        %v3090 = vrot.slane %v3089, 1
        %v3091 = vadd.f32 %v3089, %v3090
        %v3092 = vsel %vm871, %v3073, 0.0
        %v3093 = vrot.slane %v3092, 4
        %v3094 = vadd.f32 %v3092, %v3093
        %v3095 = vrot.slane %v3094, 2
        %v3096 = vadd.f32 %v3094, %v3095
        %v3097 = vrot.slane %v3096, 1
        %v3098 = vadd.f32 %v3096, %v3097
        %v3099 = vsel %vm871, %v3074, 0.0
        %v3100 = vrot.slane %v3099, 4
        %v3101 = vadd.f32 %v3099, %v3100
        %v3102 = vrot.slane %v3101, 2
        %v3103 = vadd.f32 %v3101, %v3102
        %v3104 = vrot.slane %v3103, 1
        %v3105 = vadd.f32 %v3103, %v3104
        %v3106 = vsel %vm871, %v3075, 0.0
        %v3107 = vrot.slane %v3106, 4
        %v3108 = vadd.f32 %v3106, %v3107
        %v3109 = vrot.slane %v3108, 2
        %v3110 = vadd.f32 %v3108, %v3109
        %v3111 = vrot.slane %v3110, 1
        %v3112 = vadd.f32 %v3110, %v3111
        %v3113 = vsel %vm871, %v3076, 0.0
        %v3114 = vrot.slane %v3113, 4
        %v3115 = vadd.f32 %v3113, %v3114
        %v3116 = vrot.slane %v3115, 2
        %v3117 = vadd.f32 %v3115, %v3116
        %v3118 = vrot.slane %v3117, 1
        %v3119 = vadd.f32 %v3117, %v3118
        %v3120 = vsel %vm871, %v3077, 0.0
        %v3121 = vrot.slane %v3120, 4
        %v3122 = vadd.f32 %v3120, %v3121
        %v3123 = vrot.slane %v3122, 2
        %v3124 = vadd.f32 %v3122, %v3123
        %v3125 = vrot.slane %v3124, 1
        %v3126 = vadd.f32 %v3124, %v3125
        %v3127 = vld [vmem:[%s19] sm:$0x1]
        %v3129 = vlaneseq
        %v3130 = vshrl.u32 %v3129, 7
        %v3131 = vsub.s32 0, %v3130
        %v3132 = vrot.slane %v3127, %v3131
        %v3134 = vmul.f32 %v3084, %v3132
        %v3135 = vmul.f32 %v3091, %v3132
        %v3136 = vmul.f32 %v3098, %v3132
        %v3137 = vmul.f32 %v3105, %v3132
        %v3138 = vmul.f32 %v3112, %v3132
        %v3139 = vmul.f32 %v3119, %v3132
        %v3140 = vmul.f32 %v3126, %v3132
        %v3141 = vld [vmem:[%s20] sm:$0x1]
        %v3143 = vlaneseq
        %v3144 = vshrl.u32 %v3143, 7
        %v3145 = vsub.s32 0, %v3144
        %v3146 = vrot.slane %v3141, %v3145
        %v3148 = vadd.f32 %v3134, %v3146
        %v3149 = vadd.f32 %v3135, %v3146
        %v3150 = vadd.f32 %v3136, %v3146
        %v3151 = vadd.f32 %v3137, %v3146
        %v3152 = vadd.f32 %v3138, %v3146
        %v3153 = vadd.f32 %v3139, %v3146
        %v3154 = vadd.f32 %v3140, %v3146
        %v3155 = vsub.f32 0.0, %v3148
        %v3156 = vsub.f32 0.0, %v3149
        %v3157 = vsub.f32 0.0, %v3150
        %v3158 = vsub.f32 0.0, %v3151
        %v3159 = vsub.f32 0.0, %v3152
        %v3160 = vsub.f32 0.0, %v3153
        %v3161 = vsub.f32 0.0, %v3154
        %v3162 = vmul.f32 %v3155, 1.442695
        %v3163 = vpow.pop %v3162
        %v3164 = vmul.f32 %v3156, 1.442695
        %v3165 = vpow.pop %v3164
        %v3166 = vmul.f32 %v3157, 1.442695
        %v3167 = vpow.pop %v3166
        %v3168 = vmul.f32 %v3158, 1.442695
        %v3169 = vpow.pop %v3168
        %v3170 = vmul.f32 %v3159, 1.442695
        %v3171 = vpow.pop %v3170
        %v3172 = vmul.f32 %v3160, 1.442695
        %v3173 = vpow.pop %v3172
        %v3174 = vmul.f32 %v3161, 1.442695
        %v3175 = vpow.pop %v3174
        %v3176 = vadd.f32 %v3163, 1.0
        %v3177 = vadd.f32 %v3165, 1.0
        %v3178 = vadd.f32 %v3167, 1.0
        %v3179 = vadd.f32 %v3169, 1.0
        %v3180 = vadd.f32 %v3171, 1.0
        %v3181 = vadd.f32 %v3173, 1.0
        %v3182 = vadd.f32 %v3175, 1.0
        %v3183 = vrcp.pop %v3176
        %v3184 = vmul.f32 1.0, %v3183
        %v3185 = vrcp.pop %v3177
        %v3186 = vmul.f32 1.0, %v3185
        %v3187 = vrcp.pop %v3178
        %v3188 = vmul.f32 1.0, %v3187
        %v3189 = vrcp.pop %v3179
        %v3190 = vmul.f32 1.0, %v3189
        %v3191 = vrcp.pop %v3180
        %v3192 = vmul.f32 1.0, %v3191
        %v3193 = vrcp.pop %v3181
        %v3194 = vmul.f32 1.0, %v3193
        %v3195 = vrcp.pop %v3182
        %v3196 = vmul.f32 1.0, %v3195
        %v3197 = vmul.f32 %v3148, %v3184
        %v3198 = vmul.f32 %v3149, %v3186
        %v3199 = vmul.f32 %v3150, %v3188
        %v3200 = vmul.f32 %v3151, %v3190
        %v3201 = vmul.f32 %v3152, %v3192
        %v3202 = vmul.f32 %v3153, %v3194
        %v3203 = vmul.f32 %v3154, %v3196
        %v3204 = vld [vmem:[%s21] sm:$0xff]
        %v3205 = vld [vmem:[%s21 + $0x8] sm:$0xff]
        %v3206 = vld [vmem:[%s21 + $0x10] sm:$0xff]
        %v3207 = vld [vmem:[%s21 + $0x18] sm:$0xff]
        %v3215 = vrot.slane %v3198, 7
        %v3216 = vsel %vm1405, %v3215, %v3197
        %v3217 = vrot.slane %v3199, 6
        %v3218 = vsel %vm1407, %v3217, %v3216
        %v3219 = vrot.slane %v3200, 5
        %v3220 = vsel %vm1409, %v3219, %v3218
        %v3221 = vrot.slane %v3201, 4
        %v3222 = vsel %vm1411, %v3221, %v3220
        %v3223 = vrot.slane %v3202, 3
        %v3224 = vsel %vm1413, %v3223, %v3222
        %v3225 = vrot.slane %v3203, 2
        %v3226 = vsel %vm1415, %v3225, %v3224
        %v3227 = vsel %vm907, %v3226, 0
        %3229 = vmatprep.subr.mxu0 0.0
        %3230 = vmatpush1.msra.mxu0 0.0
        %3231 = vmatprep.subr.mxu0 0.0
        %3232 = vmatpush1.msra.mxu0 0.0
        %3233 = vmatprep.subr.mxu0 0.0
        %3234 = vmatpush1.msra.mxu0 0.0
        %3235 = vmatprep.subr.mxu0 0.0
        %3236 = vmatpush1.msra.mxu0 0.0
        %3237 = vmatprep.subr.mxu0 0.0
        %3238 = vmatpush1.msra.mxu0 0.0
        %3239 = vmatprep.subr.mxu0 0.0
        %3240 = vmatpush1.msra.mxu0 0.0
        %3241 = vmatprep.subr.mxu0 0.0
        %3242 = vmatpush1.msra.mxu0 0.0
        %3243 = vmatprep.subr.mxu0 0.0
        %3244 = vmatpush1.msra.mxu0 0.0
        %3245 = vmatprep.subr.mxu0 0.0
        %3246 = vmatpush1.msra.mxu0 0.0
        %3247 = vmatprep.subr.mxu0 0.0
        %3248 = vmatpush1.msra.mxu0 0.0
        %3249 = vmatprep.subr.mxu0 0.0
        %3250 = vmatpush1.msra.mxu0 0.0
        %3251 = vmatprep.subr.mxu0 0.0
        %3252 = vmatpush1.msra.mxu0 0.0
        %3253 = vmatprep.subr.mxu0 0.0
        %3254 = vmatpush1.msra.mxu0 %v3207
        %3255 = vmatprep.subr.mxu0 0.0
        %3256 = vmatpush1.msra.mxu0 %v3206
        %3257 = vmatprep.subr.mxu0 0.0
        %3258 = vmatpush1.msra.mxu0 %v3205
        %3259 = vmatprep.subr.mxu0 0.0
        %3260 = vmatpush1.msra.mxu0 %v3204
        %3261 = vmatprep.subr.mxu0 0.0
        %3262 = vmatpush2.msra.mxu0 0.0
        %3263 = vmatprep.subr.mxu0 0.0
        %3264 = vmatpush2.msra.mxu0 0.0
        %3265 = vmatprep.subr.mxu0 0.0
        %3266 = vmatpush2.msra.mxu0 0.0
        %3267 = vmatprep.subr.mxu0 0.0
        %3268 = vmatpush2.msra.mxu0 0.0
        %3269 = vmatprep.subr.mxu0 0.0
        %3270 = vmatpush2.msra.mxu0 0.0
        %3271 = vmatprep.subr.mxu0 0.0
        %3272 = vmatpush2.msra.mxu0 0.0
        %3273 = vmatprep.subr.mxu0 0.0
        %3274 = vmatpush2.msra.mxu0 0.0
        %3275 = vmatprep.subr.mxu0 0.0
        %3276 = vmatpush2.msra.mxu0 0.0
        %3277 = vmatprep.subr.mxu0 0.0
        %3278 = vmatpush2.msra.mxu0 0.0
        %3279 = vmatprep.subr.mxu0 0.0
        %3280 = vmatpush2.msra.mxu0 0.0
        %3281 = vmatprep.subr.mxu0 0.0
        %3282 = vmatpush2.msra.mxu0 0.0
        %3283 = vmatprep.subr.mxu0 0.0
        %3284 = vmatpush2.msra.mxu0 0.0
        %3285 = vmatprep.subr.mxu0 0.0
        %3286 = vmatpush2.msra.mxu0 0.0
        %3287 = vmatprep.subr.mxu0 0.0
        %3288 = vmatpush2.msra.mxu0 0.0
        %3289 = vmatprep.subr.mxu0 0.0
        %3290 = vmatpush2.msra.mxu0 0.0
        %3291 = vmatprep.subr.mxu0 0.0
        %3292 = vmatpush2.msra.mxu0 0.0
        %3293 = vmatprep.mubr.f32.mxu0 0.0
        %3294 = vmatmul.mubr.f32.gmra.mxu0 %v3227
        %v3295 = vpop.f32.mrf.mxu0
        %v3296 = vadd.f32 0.0, %v3295
        %v3297 = vpop.f32.mrf.mxu0
        %3298 = vdwg.mxu0
        %v3299 = vadd.f32 %v2945, %v3296
        %v3300 = vld [vmem:[#allocation2] sm:$0x1]
        %v3302 = vlaneseq
        %v3303 = vshrl.u32 %v3302, 7
        %v3304 = vsub.s32 0, %v3303
        %v3305 = vrot.slane %v3300, %v3304
        %v3307 = vadd.f32 %v3299, %v3305
        %v3308 = vsel %vm871, %v3307, 0.0
        %3309 = vadd.xlane.f32.xlu0 %v3308
        %v3310 = vpop.xlane.xlu0 %3309
        %v3311 = vmul.f32 %v3310, %v875
        %v3312 = vsub.f32 %v3307, %v3311
        %v3313 = vmul.f32 %v3312, %v3312
        %v3314 = vsel %vm871, %v3313, 0.0
        %3315 = vadd.xlane.f32.xlu0 %v3314
        %v3316 = vpop.xlane.xlu0 %3315
        %v3317 = vmul.f32 %v3316, %v875
        %v3318 = vadd.f32 %v3317, 1e-12
        %v3319 = vrsqrt.pop %v3318
        %v3320 = vmul.f32 %v3312, %v3319
        %v3321 = vlaneseq
        %v3322 = vshrl.u32 %v3321, 7
        %v3323 = vsub.s32 3, %v3322
        %v3324 = vrot.slane %v869, %v3323
        %v3325 = vmul.f32 %v3320, %v3324
        %v3326 = vlaneseq
        %v3327 = vshrl.u32 %v3326, 7
        %v3328 = vsub.s32 3, %v3327
        %v3329 = vrot.slane %v870, %v3328
        %v3330 = vadd.f32 %v3325, %v3329
        %v3331 = vld [vmem:[%s23] sm:$0xff]
        %v3332 = vld [vmem:[%s23 + $0x8] sm:$0xff]
        %v3333 = vld [vmem:[%s23 + $0x10] sm:$0xff]
        %v3334 = vld [vmem:[%s23 + $0x18] sm:$0xff]
        %v3335 = vld [vmem:[#allocation4] sm:$0x1]
        %v3337 = vlaneseq
        %v3338 = vshrl.u32 %v3337, 7
        %v3339 = vsub.s32 0, %v3338
        %v3340 = vrot.slane %v3335, %v3339
        %v3343 = vsel %vm907, %v3330, 0
        %3345 = vmatprep.subr.mxu0 0.0
        %3346 = vmatpush1.msra.mxu0 0.0
        %3347 = vmatprep.subr.mxu0 0.0
        %3348 = vmatpush1.msra.mxu0 0.0
        %3349 = vmatprep.subr.mxu0 0.0
        %3350 = vmatpush1.msra.mxu0 0.0
        %3351 = vmatprep.subr.mxu0 0.0
        %3352 = vmatpush1.msra.mxu0 0.0
        %3353 = vmatprep.subr.mxu0 0.0
        %3354 = vmatpush1.msra.mxu0 0.0
        %3355 = vmatprep.subr.mxu0 0.0
        %3356 = vmatpush1.msra.mxu0 0.0
        %3357 = vmatprep.subr.mxu0 0.0
        %3358 = vmatpush1.msra.mxu0 0.0
        %3359 = vmatprep.subr.mxu0 0.0
        %3360 = vmatpush1.msra.mxu0 0.0
        %3361 = vmatprep.subr.mxu0 0.0
        %3362 = vmatpush1.msra.mxu0 0.0
        %3363 = vmatprep.subr.mxu0 0.0
        %3364 = vmatpush1.msra.mxu0 0.0
        %3365 = vmatprep.subr.mxu0 0.0
        %3366 = vmatpush1.msra.mxu0 0.0
        %3367 = vmatprep.subr.mxu0 0.0
        %3368 = vmatpush1.msra.mxu0 0.0
        %3369 = vmatprep.subr.mxu0 0.0
        %3370 = vmatpush1.msra.mxu0 %v3334
        %3371 = vmatprep.subr.mxu0 0.0
        %3372 = vmatpush1.msra.mxu0 %v3333
        %3373 = vmatprep.subr.mxu0 0.0
        %3374 = vmatpush1.msra.mxu0 %v3332
        %3375 = vmatprep.subr.mxu0 0.0
        %3376 = vmatpush1.msra.mxu0 %v3331
        %3377 = vmatprep.subr.mxu0 0.0
        %3378 = vmatpush2.msra.mxu0 0.0
        %3379 = vmatprep.subr.mxu0 0.0
        %3380 = vmatpush2.msra.mxu0 0.0
        %3381 = vmatprep.subr.mxu0 0.0
        %3382 = vmatpush2.msra.mxu0 0.0
        %3383 = vmatprep.subr.mxu0 0.0
        %3384 = vmatpush2.msra.mxu0 0.0
        %3385 = vmatprep.subr.mxu0 0.0
        %3386 = vmatpush2.msra.mxu0 0.0
        %3387 = vmatprep.subr.mxu0 0.0
        %3388 = vmatpush2.msra.mxu0 0.0
        %3389 = vmatprep.subr.mxu0 0.0
        %3390 = vmatpush2.msra.mxu0 0.0
        %3391 = vmatprep.subr.mxu0 0.0
        %3392 = vmatpush2.msra.mxu0 0.0
        %3393 = vmatprep.subr.mxu0 0.0
        %3394 = vmatpush2.msra.mxu0 0.0
        %3395 = vmatprep.subr.mxu0 0.0
        %3396 = vmatpush2.msra.mxu0 0.0
        %3397 = vmatprep.subr.mxu0 0.0
        %3398 = vmatpush2.msra.mxu0 0.0
        %3399 = vmatprep.subr.mxu0 0.0
        %3400 = vmatpush2.msra.mxu0 0.0
        %3401 = vmatprep.subr.mxu0 0.0
        %3402 = vmatpush2.msra.mxu0 0.0
        %3403 = vmatprep.subr.mxu0 0.0
        %3404 = vmatpush2.msra.mxu0 0.0
        %3405 = vmatprep.subr.mxu0 0.0
        %3406 = vmatpush2.msra.mxu0 0.0
        %3407 = vmatprep.subr.mxu0 0.0
        %3408 = vmatpush2.msra.mxu0 0.0
        %3409 = vmatprep.mubr.f32.mxu0 0.0
        %3410 = vmatmul.mubr.f32.gmra.mxu0 %v3343
        %v3411 = vpop.f32.mrf.mxu0
        %v3412 = vadd.f32 %v3340, %v3411
        %v3413 = vpop.f32.mrf.mxu0
        %3414 = vdwg.mxu0
        %v3415 = vsub.f32 0.0, %v3412
        %v3416 = vmul.f32 %v3415, 1.442695
        %v3417 = vpow.pop %v3416
        %v3418 = vadd.f32 %v3417, 1.0
        %v3419 = vrcp.pop %v3418
        %v3420 = vmul.f32 1.0, %v3419
        %v3421 = vmul.f32 %v3412, %v3420
        %v3422 = vld [vmem:[%s25] sm:$0xff]
        %v3423 = vld [vmem:[%s25 + $0x8] sm:$0xff]
        %v3424 = vld [vmem:[%s25 + $0x10] sm:$0xff]
        %v3425 = vld [vmem:[%s25 + $0x18] sm:$0xff]
        %v3426 = vld [vmem:[%s25 + $0x20] sm:$0xff]
        %v3427 = vld [vmem:[%s25 + $0x28] sm:$0xff]
        %v3428 = vld [vmem:[%s25 + $0x30] sm:$0xff]
        %v3429 = vld [vmem:[%s25 + $0x38] sm:$0xff]
        %v3430 = vld [vmem:[#allocation6] sm:$0x1]
        %v3432 = vlaneseq
        %v3433 = vshrl.u32 %v3432, 7
        %v3434 = vsub.s32 0, %v3433
        %v3435 = vrot.slane %v3430, %v3434
        %v3438 = vsel %vm1003, %v3421, 0
        %3440 = vmatprep.subr.mxu0 0.0
        %3441 = vmatpush1.msra.mxu0 0.0
        %3442 = vmatprep.subr.mxu0 0.0
        %3443 = vmatpush1.msra.mxu0 0.0
        %3444 = vmatprep.subr.mxu0 0.0
        %3445 = vmatpush1.msra.mxu0 0.0
        %3446 = vmatprep.subr.mxu0 0.0
        %3447 = vmatpush1.msra.mxu0 0.0
        %3448 = vmatprep.subr.mxu0 0.0
        %3449 = vmatpush1.msra.mxu0 0.0
        %3450 = vmatprep.subr.mxu0 0.0
        %3451 = vmatpush1.msra.mxu0 0.0
        %3452 = vmatprep.subr.mxu0 0.0
        %3453 = vmatpush1.msra.mxu0 0.0
        %3454 = vmatprep.subr.mxu0 0.0
        %3455 = vmatpush1.msra.mxu0 0.0
        %3456 = vmatprep.subr.mxu0 0.0
        %3457 = vmatpush1.msra.mxu0 %v3429
        %3458 = vmatprep.subr.mxu0 0.0
        %3459 = vmatpush1.msra.mxu0 %v3428
        %3460 = vmatprep.subr.mxu0 0.0
        %3461 = vmatpush1.msra.mxu0 %v3427
        %3462 = vmatprep.subr.mxu0 0.0
        %3463 = vmatpush1.msra.mxu0 %v3426
        %3464 = vmatprep.subr.mxu0 0.0
        %3465 = vmatpush1.msra.mxu0 %v3425
        %3466 = vmatprep.subr.mxu0 0.0
        %3467 = vmatpush1.msra.mxu0 %v3424
        %3468 = vmatprep.subr.mxu0 0.0
        %3469 = vmatpush1.msra.mxu0 %v3423
        %3470 = vmatprep.subr.mxu0 0.0
        %3471 = vmatpush1.msra.mxu0 %v3422
        %3472 = vmatprep.subr.mxu0 0.0
        %3473 = vmatpush2.msra.mxu0 0.0
        %3474 = vmatprep.subr.mxu0 0.0
        %3475 = vmatpush2.msra.mxu0 0.0
        %3476 = vmatprep.subr.mxu0 0.0
        %3477 = vmatpush2.msra.mxu0 0.0
        %3478 = vmatprep.subr.mxu0 0.0
        %3479 = vmatpush2.msra.mxu0 0.0
        %3480 = vmatprep.subr.mxu0 0.0
        %3481 = vmatpush2.msra.mxu0 0.0
        %3482 = vmatprep.subr.mxu0 0.0
        %3483 = vmatpush2.msra.mxu0 0.0
        %3484 = vmatprep.subr.mxu0 0.0
        %3485 = vmatpush2.msra.mxu0 0.0
        %3486 = vmatprep.subr.mxu0 0.0
        %3487 = vmatpush2.msra.mxu0 0.0
        %3488 = vmatprep.subr.mxu0 0.0
        %3489 = vmatpush2.msra.mxu0 0.0
        %3490 = vmatprep.subr.mxu0 0.0
        %3491 = vmatpush2.msra.mxu0 0.0
        %3492 = vmatprep.subr.mxu0 0.0
        %3493 = vmatpush2.msra.mxu0 0.0
        %3494 = vmatprep.subr.mxu0 0.0
        %3495 = vmatpush2.msra.mxu0 0.0
        %3496 = vmatprep.subr.mxu0 0.0
        %3497 = vmatpush2.msra.mxu0 0.0
        %3498 = vmatprep.subr.mxu0 0.0
        %3499 = vmatpush2.msra.mxu0 0.0
        %3500 = vmatprep.subr.mxu0 0.0
        %3501 = vmatpush2.msra.mxu0 0.0
        %3502 = vmatprep.subr.mxu0 0.0
        %3503 = vmatpush2.msra.mxu0 0.0
        %3504 = vmatprep.mubr.f32.mxu0 0.0
        %3505 = vmatmul.mubr.f32.gmra.mxu0 %v3438
        %v3506 = vpop.f32.mrf.mxu0
        %v3507 = vadd.f32 %v3435, %v3506
        %v3508 = vpop.f32.mrf.mxu0
        %3509 = vdwg.mxu0
        %v3510 = vmul.f32 %v3507, 0.5
        %v3511 = vadd.f32 %v3307, %v3510
        %v3512 = vsel %vm871, %v3511, 0.0
        %3513 = vadd.xlane.f32.xlu0 %v3512
        %v3514 = vpop.xlane.xlu0 %3513
        %v3515 = vmul.f32 %v3514, %v875
        %v3516 = vsub.f32 %v3511, %v3515
        %v3517 = vmul.f32 %v3516, %v3516
        %v3518 = vsel %vm871, %v3517, 0.0
        %3519 = vadd.xlane.f32.xlu0 %v3518
        %v3520 = vpop.xlane.xlu0 %3519
        %v3521 = vmul.f32 %v3520, %v875
        %v3522 = vadd.f32 %v3521, 1e-12
        %v3523 = vrsqrt.pop %v3522
        %v3524 = vmul.f32 %v3516, %v3523
        %v3525 = vlaneseq
        %v3526 = vshrl.u32 %v3525, 7
        %v3527 = vsub.s32 4, %v3526
        %v3528 = vrot.slane %v869, %v3527
        %v3529 = vmul.f32 %v3524, %v3528
        %v3530 = vlaneseq
        %v3531 = vshrl.u32 %v3530, 7
        %v3532 = vsub.s32 4, %v3531
        %v3533 = vrot.slane %v870, %v3532
        %v3534 = vadd.f32 %v3529, %v3533
        %3535 = vst.msk [vmem:[%s865] sm:$0x7f] %vm871, %v3534
        %p3536 = scmp.lt.s32.totalorder %s40, 1
        %s3537 = scalar_select %p3536, %s40, 1
        %s3538 = smul.addr %s3537, 8
        %s3539 = scalar_lea.vmem %s27, %s3538
        // Predicated region
        $region141: #{espnet_forward.8} parent=127 // pred_check
          %p3540 = pneg %p635
        $region142: #{espnet_forward.8} parent=127 // pred_check_branch
          %3542 = sbr.rel (%p3540) target = $region144
        $region143: #{espnet_forward.8} parent=127 // pred_region
          _
        $region144: #{espnet_forward.8} parent=127 // pred_fallthru
          _
      $region128: #{espnet_forward.8} parent=5 // pred_fallthru
        _
      %p3543 = scmp.le.s32.totalorder 2, %s35
      // Predicated region
      $region145: #{espnet_forward.8} parent=5 // pred_check
        %p3544 = pneg %p3543
      $region146: #{espnet_forward.8} parent=5 // pred_check_branch
        %3546 = sbr.rel (%p3544) target = $region148
      $region147: #{espnet_forward.8} parent=5 // pred_region
        %s3547 = ssub.s32 %s35, 2
        // Predicated region
        $region149: #{espnet_forward.8} parent=147 // pred_check
          %p3548 = pneg %p641
        $region150: #{espnet_forward.8} parent=147 // pred_check_branch
          %3550 = sbr.rel (%p3548) target = $region152
        $region151: #{espnet_forward.8} parent=147 // pred_region
          %p3551 = scmp.lt.s32.totalorder %s41, 1
          %s3552 = scalar_select %p3551, %s41, 1
          %s3553 = smul.addr %s3552, 8
          %s3554 = scalar_lea.vmem %s27, %s3553
        $region152: #{espnet_forward.8} parent=147 // pred_fallthru
          _
      $region148: #{espnet_forward.8} parent=5 // pred_fallthru
        _
    $region6: #{espnet_forward.8} parent=1 // loop_footer
      %s39 = sadd.s32 1, %s35
    $region7: #{espnet_forward.8} parent=1 // loop_footer_branch
      %34 = sbr.rel target = $region3
    $region8: #{espnet_forward.8} parent=1 // loop_exit
      _
    %3555 = vsyncpa [#allocation3], 1
    %s3556 = scalar_lea.sflag [#allocation3], 1
    %3557 = vsyncpa %s3556, 1
    %3558 = vsyncpa [#allocation5], 1

// kernel: espnet_forward.9
$region0: #{espnet_forward.9}
  #allocation0 [shape = 'u32[]', space=smem, size = 0x4, offset = 0x4, fixed_abs, tag = 'smem constant byte address 0x4 - core index']
  #allocation1 [shape = 'u32[144,128]{1,0:T(1,128)}', space=vmem, size = 0x12000, scoped, tag = 'internal scratch']
  %s0 = inlined_call_operand.vmem [shape: f32[2,7,32], index: 0, kind: input, shape index: {}]
  %s1 = inlined_call_operand.vmem [shape: f32[2,1,7], index: 1, kind: input, shape index: {}]
  %s2 = inlined_call_operand.vmem [shape: f32[6,32], index: 2, kind: input, shape index: {}]
  %s3 = inlined_call_operand.vmem [shape: f32[6,32], index: 3, kind: input, shape index: {}]
  %s4 = inlined_call_operand.vmem [shape: f32[32,64], index: 4, kind: input, shape index: {}]
  %s5 = inlined_call_operand.hbm [shape: f32[1,64], index: 5, kind: input, shape index: {}]
  %s6 = inlined_call_operand.vmem [shape: f32[64,32], index: 6, kind: input, shape index: {}]
  %s7 = inlined_call_operand.hbm [shape: f32[1,32], index: 7, kind: input, shape index: {}]
  %s8 = inlined_call_operand.vmem [shape: f32[32,96], index: 8, kind: input, shape index: {}]
  %s9 = inlined_call_operand.hbm [shape: f32[1,96], index: 9, kind: input, shape index: {}]
  %s10 = inlined_call_operand.hbm [shape: f32[1,32], index: 10, kind: input, shape index: {}]
  %s11 = inlined_call_operand.hbm [shape: f32[1,32], index: 11, kind: input, shape index: {}]
  %s12 = inlined_call_operand.vmem [shape: f32[7,7,32], index: 12, kind: input, shape index: {}]
  %s13 = inlined_call_operand.vmem [shape: f32[7,7,32], index: 13, kind: input, shape index: {}]
  %s14 = inlined_call_operand.vmem [shape: f32[32,32], index: 14, kind: input, shape index: {}]
  %s15 = inlined_call_operand.hbm [shape: f32[1,32], index: 15, kind: input, shape index: {}]
  %s16 = inlined_call_operand.vmem [shape: f32[32,64], index: 16, kind: input, shape index: {}]
  %s17 = inlined_call_operand.hbm [shape: f32[1,64], index: 17, kind: input, shape index: {}]
  %s18 = inlined_call_operand.vmem [shape: f32[7,7,32], index: 18, kind: input, shape index: {}]
  %s19 = inlined_call_operand.hbm [shape: f32[1,32], index: 19, kind: input, shape index: {}]
  %s20 = inlined_call_operand.hbm [shape: f32[1,32], index: 20, kind: input, shape index: {}]
  %s21 = inlined_call_operand.vmem [shape: f32[32,32], index: 21, kind: input, shape index: {}]
  %s22 = inlined_call_operand.hbm [shape: f32[1,32], index: 22, kind: input, shape index: {}]
  %s23 = inlined_call_operand.vmem [shape: f32[32,64], index: 23, kind: input, shape index: {}]
  %s24 = inlined_call_operand.hbm [shape: f32[1,64], index: 24, kind: input, shape index: {}]
  %s25 = inlined_call_operand.vmem [shape: f32[64,32], index: 25, kind: input, shape index: {}]
  %s26 = inlined_call_operand.hbm [shape: f32[1,32], index: 26, kind: input, shape index: {}]
  %s27 = inlined_call_operand.vmem [shape: f32[2,7,32], index: 27, kind: output, shape index: {}]
  %s28 = sld [smem:[#allocation0]]
  $region189: #{espnet_forward.9} parent=0
    _
  %s30 = ssub.s32 1, %s28
  %s31 = scalar_select 0, %s30, %s28
  $region1: #{espnet_forward.9} parent=0
    #allocation2 [shape = 'u8[512]{0}', space=vmem, size = 0x400, scoped, tag = 'input window, operand 5, single buffered']
    #allocation3 [shape = 's32[2]{0}', space=sflag, size = 0x8, scoped, tag = 'scoped memory for espnet_forward.9']
    #allocation4 [shape = 'u8[512]{0}', space=vmem, size = 0x400, scoped, tag = 'input window, operand 7, single buffered']
    #allocation5 [shape = 's32[1]{0}', space=sflag, size = 0x4, scoped, tag = 'scoped memory for espnet_forward.9']
    #allocation6 [shape = 'u8[512]{0}', space=vmem, size = 0x400, scoped, tag = 'input window, operand 9, single buffered']
    #allocation7 [shape = 'u8[512]{0}', space=vmem, size = 0x400, scoped, tag = 'input window, operand 10, single buffered']
    #allocation8 [shape = 's32[1]{0}', space=sflag, size = 0x4, scoped, tag = 'scoped memory for espnet_forward.9']
    #allocation9 [shape = 'u8[512]{0}', space=vmem, size = 0x400, scoped, tag = 'input window, operand 11, single buffered']
    #allocation10 [shape = 'u8[512]{0}', space=vmem, size = 0x400, scoped, tag = 'input window, operand 15, single buffered']
    #allocation11 [shape = 's32[1]{0}', space=sflag, size = 0x4, scoped, tag = 'scoped memory for espnet_forward.9']
    #allocation12 [shape = 'u8[512]{0}', space=vmem, size = 0x400, scoped, tag = 'input window, operand 17, single buffered']
    #allocation13 [shape = 'u8[512]{0}', space=vmem, size = 0x400, scoped, tag = 'input window, operand 19, single buffered']
    #allocation14 [shape = 's32[1]{0}', space=sflag, size = 0x4, scoped, tag = 'scoped memory for espnet_forward.9']
    #allocation15 [shape = 'u8[512]{0}', space=vmem, size = 0x400, scoped, tag = 'input window, operand 20, single buffered']
    #allocation16 [shape = 'u8[512]{0}', space=vmem, size = 0x400, scoped, tag = 'input window, operand 22, single buffered']
    #allocation17 [shape = 's32[1]{0}', space=sflag, size = 0x4, scoped, tag = 'scoped memory for espnet_forward.9']
    #allocation18 [shape = 'u8[512]{0}', space=vmem, size = 0x400, scoped, tag = 'input window, operand 24, single buffered']
    #allocation19 [shape = 'u8[512]{0}', space=vmem, size = 0x400, scoped, tag = 'input window, operand 26, single buffered']
    #allocation20 [shape = 's32[1]{0}', space=sflag, size = 0x4, scoped, tag = 'scoped memory for espnet_forward.9']
    %32 = vsyncpa [#allocation3], 0
    %33 = vsyncpa [#allocation5], 0
    %34 = vsyncpa [#allocation8], 0
    %35 = vsyncpa [#allocation11], 0
    %36 = vsyncpa [#allocation14], 0
    %37 = vsyncpa [#allocation17], 0
    %38 = vsyncpa [#allocation20], 0
    loop: start=0, step=1, limit=4
    $region2: #{espnet_forward.9} parent=1 // loop_pre_header
      _
    $region3: #{espnet_forward.9} parent=1 // loop_header
      %s40 = sphi 0, %s44
      %p41 = scmp.ge.s32.totalorder %s40, 4
      %s50 = sphi 0, %s52
      %s53 = sphi 0, %s50
      %s54 = sphi 0, %s53
      %s70 = sphi 0, %s54
      %s76 = sphi 0, %s78
      %s79 = sphi 0, %s76
      %s80 = sphi 0, %s79
      %s96 = sphi 0, %s80
      %s100 = sphi 0, %s100
      %s102 = sphi 0, %s100
      %s103 = sphi 0, %s102
      %s117 = sphi 0, %s103
      %s121 = sphi 0, %s121
      %s123 = sphi 0, %s121
      %s124 = sphi 0, %s123
      %s138 = sphi 0, %s124
      %s142 = sphi 0, %s142
      %s144 = sphi 0, %s142
      %s145 = sphi 0, %s144
      %s159 = sphi 0, %s145
      %s163 = sphi 0, %s163
      %s165 = sphi 0, %s163
      %s166 = sphi 0, %s165
      %s180 = sphi 0, %s166
      %s184 = sphi 0, %s184
      %s186 = sphi 0, %s184
      %s187 = sphi 0, %s186
      %s201 = sphi 0, %s187
      %s205 = sphi 0, %s205
      %s207 = sphi 0, %s205
      %s208 = sphi 0, %s207
      %s222 = sphi 0, %s208
      %s226 = sphi 0, %s226
      %s228 = sphi 0, %s226
      %s229 = sphi 0, %s228
      %s243 = sphi 0, %s229
      %s247 = sphi 0, %s247
      %s249 = sphi 0, %s247
      %s250 = sphi 0, %s249
      %s264 = sphi 0, %s250
      %s268 = sphi 0, %s268
      %s270 = sphi 0, %s268
      %s271 = sphi 0, %s270
      %s285 = sphi 0, %s271
      %s289 = sphi 0, %s289
      %s291 = sphi 0, %s289
      %s292 = sphi 0, %s291
      %s306 = sphi 0, %s292
      %s310 = sphi 0, %s310
      %s312 = sphi 0, %s310
      %s313 = sphi 0, %s312
      %s327 = sphi 0, %s313
      %s331 = sphi 0, %s331
      %s333 = sphi 0, %s331
      %s334 = sphi 0, %s333
      %s348 = sphi 0, %s334
      %s352 = sphi 0, %s352
      %s354 = sphi 0, %s352
      %s355 = sphi 0, %s354
      %s369 = sphi 0, %s355
      %s373 = sphi 0, %s373
      %s375 = sphi 0, %s373
      %s376 = sphi 0, %s375
      %s390 = sphi 0, %s376
      %s394 = sphi 0, %s394
      %s396 = sphi 0, %s394
      %s397 = sphi 0, %s396
      %s411 = sphi 0, %s397
      %s415 = sphi 0, %s415
      %s417 = sphi 0, %s415
      %s418 = sphi 0, %s417
      %s432 = sphi 0, %s418
      %s436 = sphi 0, %s436
      %s438 = sphi 0, %s436
      %s439 = sphi 0, %s438
      %s453 = sphi 0, %s439
      %s457 = sphi 0, %s457
      %s459 = sphi 0, %s457
      %s460 = sphi 0, %s459
      %s474 = sphi 0, %s460
      %s478 = sphi 0, %s478
      %s480 = sphi 0, %s478
      %s481 = sphi 0, %s480
      %s495 = sphi 0, %s481
      %s499 = sphi 0, %s499
      %s501 = sphi 0, %s499
      %s502 = sphi 0, %s501
      %s516 = sphi 0, %s502
      %s520 = sphi 0, %s520
      %s522 = sphi 0, %s520
      %s523 = sphi 0, %s522
      %s537 = sphi 0, %s523
      %s541 = sphi 0, %s541
      %s543 = sphi 0, %s541
      %s544 = sphi 0, %s543
      %s558 = sphi 0, %s544
      %s562 = sphi 0, %s562
      %s564 = sphi 0, %s562
      %s565 = sphi 0, %s564
      %s579 = sphi 0, %s565
      %s583 = sphi 0, %s583
      %s585 = sphi 0, %s583
      %s586 = sphi 0, %s585
      %s600 = sphi 0, %s586
      %s604 = sphi 0, %s604
      %s606 = sphi 0, %s604
      %s607 = sphi 0, %s606
      %s621 = sphi 0, %s607
      %s627 = sphi 0, %s629
      %s630 = sphi 0, %s627
      %s631 = sphi 0, %s630
      %s647 = sphi 0, %s631
    $region4: #{espnet_forward.9} parent=1 // loop_header_branch
      %43 = sbr.rel (%p41) target = $region8
    $region5: #{espnet_forward.9} parent=1 // loop_body
      %s45 = ssub.s32 %s40, 1
      %s46 = ssub.s32 %s40, 2
      %s47 = sadd.s32 %s40, 1
      %s48 = ssub.s32 %s40, %s47
      %p49 = scmp.eq.s32.totalorder %s48, 0
      %s51 = sadd.s32 %s50, 1
      %s52 = scalar_select %p49, %s50, %s51
      %p55 = pneg %p49
      %p56 = scmp.eq.s32.totalorder %s40, 1
      %p57 = por %p55, %p56
      %p58 = scmp.ne.s32.totalorder %s50, %s53
      %p59 = scmp.eq.s32.totalorder %s40, 0
      %p60 = por %p58, %p59
      %p61 = scmp.ne.s32.totalorder %s50, %s53
      %p62 = scmp.eq.s32.totalorder %s45, 1
      %p63 = por %p61, %p62
      %p64 = scmp.ne.s32.totalorder %s53, %s54
      %p65 = scmp.eq.s32.totalorder %s45, 0
      %p66 = por %p64, %p65
      %p67 = scmp.ne.s32.totalorder %s53, %s54
      %p68 = scmp.eq.s32.totalorder %s46, 1
      %p69 = por %p67, %p68
      %p71 = scmp.ne.s32.totalorder %s54, %s70
      %p72 = scmp.eq.s32.totalorder %s46, 0
      %p73 = por %p71, %p72
      %s74 = ssub.s32 %s40, %s47
      %p75 = scmp.eq.s32.totalorder %s74, 0
      %s77 = sadd.s32 %s76, 1
      %s78 = scalar_select %p75, %s76, %s77
      %p81 = pneg %p75
      %p82 = scmp.eq.s32.totalorder %s40, 1
      %p83 = por %p81, %p82
      %p84 = scmp.ne.s32.totalorder %s76, %s79
      %p85 = scmp.eq.s32.totalorder %s40, 0
      %p86 = por %p84, %p85
      %p87 = scmp.ne.s32.totalorder %s76, %s79
      %p88 = scmp.eq.s32.totalorder %s45, 1
      %p89 = por %p87, %p88
      %p90 = scmp.ne.s32.totalorder %s79, %s80
      %p91 = scmp.eq.s32.totalorder %s45, 0
      %p92 = por %p90, %p91
      %p93 = scmp.ne.s32.totalorder %s79, %s80
      %p94 = scmp.eq.s32.totalorder %s46, 1
      %p95 = por %p93, %p94
      %p97 = scmp.ne.s32.totalorder %s80, %s96
      %p98 = scmp.eq.s32.totalorder %s46, 0
      %p99 = por %p97, %p98
      %s101 = sadd.s32 %s100, 1
      %p104 = scmp.eq.s32.totalorder %s40, 1
      %p105 = scmp.ne.s32.totalorder %s100, %s102
      %p106 = scmp.eq.s32.totalorder %s40, 0
      %p107 = por %p105, %p106
      %p108 = scmp.ne.s32.totalorder %s100, %s102
      %p109 = scmp.eq.s32.totalorder %s45, 1
      %p110 = por %p108, %p109
      %p111 = scmp.ne.s32.totalorder %s102, %s103
      %p112 = scmp.eq.s32.totalorder %s45, 0
      %p113 = por %p111, %p112
      %p114 = scmp.ne.s32.totalorder %s102, %s103
      %p115 = scmp.eq.s32.totalorder %s46, 1
      %p116 = por %p114, %p115
      %p118 = scmp.ne.s32.totalorder %s103, %s117
      %p119 = scmp.eq.s32.totalorder %s46, 0
      %p120 = por %p118, %p119
      %s122 = sadd.s32 %s121, 1
      %p125 = scmp.eq.s32.totalorder %s40, 1
      %p126 = scmp.ne.s32.totalorder %s121, %s123
      %p127 = scmp.eq.s32.totalorder %s40, 0
      %p128 = por %p126, %p127
      %p129 = scmp.ne.s32.totalorder %s121, %s123
      %p130 = scmp.eq.s32.totalorder %s45, 1
      %p131 = por %p129, %p130
      %p132 = scmp.ne.s32.totalorder %s123, %s124
      %p133 = scmp.eq.s32.totalorder %s45, 0
      %p134 = por %p132, %p133
      %p135 = scmp.ne.s32.totalorder %s123, %s124
      %p136 = scmp.eq.s32.totalorder %s46, 1
      %p137 = por %p135, %p136
      %p139 = scmp.ne.s32.totalorder %s124, %s138
      %p140 = scmp.eq.s32.totalorder %s46, 0
      %p141 = por %p139, %p140
      %s143 = sadd.s32 %s142, 1
      %p146 = scmp.eq.s32.totalorder %s40, 1
      %p147 = scmp.ne.s32.totalorder %s142, %s144
      %p148 = scmp.eq.s32.totalorder %s40, 0
      %p149 = por %p147, %p148
      %p150 = scmp.ne.s32.totalorder %s142, %s144
      %p151 = scmp.eq.s32.totalorder %s45, 1
      %p152 = por %p150, %p151
      %p153 = scmp.ne.s32.totalorder %s144, %s145
      %p154 = scmp.eq.s32.totalorder %s45, 0
      %p155 = por %p153, %p154
      %p156 = scmp.ne.s32.totalorder %s144, %s145
      %p157 = scmp.eq.s32.totalorder %s46, 1
      %p158 = por %p156, %p157
      %p160 = scmp.ne.s32.totalorder %s145, %s159
      %p161 = scmp.eq.s32.totalorder %s46, 0
      %p162 = por %p160, %p161
      %s164 = sadd.s32 %s163, 1
      %p167 = scmp.eq.s32.totalorder %s40, 1
      %p168 = scmp.ne.s32.totalorder %s163, %s165
      %p169 = scmp.eq.s32.totalorder %s40, 0
      %p170 = por %p168, %p169
      %p171 = scmp.ne.s32.totalorder %s163, %s165
      %p172 = scmp.eq.s32.totalorder %s45, 1
      %p173 = por %p171, %p172
      %p174 = scmp.ne.s32.totalorder %s165, %s166
      %p175 = scmp.eq.s32.totalorder %s45, 0
      %p176 = por %p174, %p175
      %p177 = scmp.ne.s32.totalorder %s165, %s166
      %p178 = scmp.eq.s32.totalorder %s46, 1
      %p179 = por %p177, %p178
      %p181 = scmp.ne.s32.totalorder %s166, %s180
      %p182 = scmp.eq.s32.totalorder %s46, 0
      %p183 = por %p181, %p182
      %s185 = sadd.s32 %s184, 1
      %p188 = scmp.eq.s32.totalorder %s40, 1
      %p189 = scmp.ne.s32.totalorder %s184, %s186
      %p190 = scmp.eq.s32.totalorder %s40, 0
      %p191 = por %p189, %p190
      %p192 = scmp.ne.s32.totalorder %s184, %s186
      %p193 = scmp.eq.s32.totalorder %s45, 1
      %p194 = por %p192, %p193
      %p195 = scmp.ne.s32.totalorder %s186, %s187
      %p196 = scmp.eq.s32.totalorder %s45, 0
      %p197 = por %p195, %p196
      %p198 = scmp.ne.s32.totalorder %s186, %s187
      %p199 = scmp.eq.s32.totalorder %s46, 1
      %p200 = por %p198, %p199
      %p202 = scmp.ne.s32.totalorder %s187, %s201
      %p203 = scmp.eq.s32.totalorder %s46, 0
      %p204 = por %p202, %p203
      %s206 = sadd.s32 %s205, 1
      %p209 = scmp.eq.s32.totalorder %s40, 1
      %p210 = scmp.ne.s32.totalorder %s205, %s207
      %p211 = scmp.eq.s32.totalorder %s40, 0
      %p212 = por %p210, %p211
      %p213 = scmp.ne.s32.totalorder %s205, %s207
      %p214 = scmp.eq.s32.totalorder %s45, 1
      %p215 = por %p213, %p214
      %p216 = scmp.ne.s32.totalorder %s207, %s208
      %p217 = scmp.eq.s32.totalorder %s45, 0
      %p218 = por %p216, %p217
      %p219 = scmp.ne.s32.totalorder %s207, %s208
      %p220 = scmp.eq.s32.totalorder %s46, 1
      %p221 = por %p219, %p220
      %p223 = scmp.ne.s32.totalorder %s208, %s222
      %p224 = scmp.eq.s32.totalorder %s46, 0
      %p225 = por %p223, %p224
      %s227 = sadd.s32 %s226, 1
      %p230 = scmp.eq.s32.totalorder %s40, 1
      %p231 = scmp.ne.s32.totalorder %s226, %s228
      %p232 = scmp.eq.s32.totalorder %s40, 0
      %p233 = por %p231, %p232
      %p234 = scmp.ne.s32.totalorder %s226, %s228
      %p235 = scmp.eq.s32.totalorder %s45, 1
      %p236 = por %p234, %p235
      %p237 = scmp.ne.s32.totalorder %s228, %s229
      %p238 = scmp.eq.s32.totalorder %s45, 0
      %p239 = por %p237, %p238
      %p240 = scmp.ne.s32.totalorder %s228, %s229
      %p241 = scmp.eq.s32.totalorder %s46, 1
      %p242 = por %p240, %p241
      %p244 = scmp.ne.s32.totalorder %s229, %s243
      %p245 = scmp.eq.s32.totalorder %s46, 0
      %p246 = por %p244, %p245
      %s248 = sadd.s32 %s247, 1
      %p251 = scmp.eq.s32.totalorder %s40, 1
      %p252 = scmp.ne.s32.totalorder %s247, %s249
      %p253 = scmp.eq.s32.totalorder %s40, 0
      %p254 = por %p252, %p253
      %p255 = scmp.ne.s32.totalorder %s247, %s249
      %p256 = scmp.eq.s32.totalorder %s45, 1
      %p257 = por %p255, %p256
      %p258 = scmp.ne.s32.totalorder %s249, %s250
      %p259 = scmp.eq.s32.totalorder %s45, 0
      %p260 = por %p258, %p259
      %p261 = scmp.ne.s32.totalorder %s249, %s250
      %p262 = scmp.eq.s32.totalorder %s46, 1
      %p263 = por %p261, %p262
      %p265 = scmp.ne.s32.totalorder %s250, %s264
      %p266 = scmp.eq.s32.totalorder %s46, 0
      %p267 = por %p265, %p266
      %s269 = sadd.s32 %s268, 1
      %p272 = scmp.eq.s32.totalorder %s40, 1
      %p273 = scmp.ne.s32.totalorder %s268, %s270
      %p274 = scmp.eq.s32.totalorder %s40, 0
      %p275 = por %p273, %p274
      %p276 = scmp.ne.s32.totalorder %s268, %s270
      %p277 = scmp.eq.s32.totalorder %s45, 1
      %p278 = por %p276, %p277
      %p279 = scmp.ne.s32.totalorder %s270, %s271
      %p280 = scmp.eq.s32.totalorder %s45, 0
      %p281 = por %p279, %p280
      %p282 = scmp.ne.s32.totalorder %s270, %s271
      %p283 = scmp.eq.s32.totalorder %s46, 1
      %p284 = por %p282, %p283
      %p286 = scmp.ne.s32.totalorder %s271, %s285
      %p287 = scmp.eq.s32.totalorder %s46, 0
      %p288 = por %p286, %p287
      %s290 = sadd.s32 %s289, 1
      %p293 = scmp.eq.s32.totalorder %s40, 1
      %p294 = scmp.ne.s32.totalorder %s289, %s291
      %p295 = scmp.eq.s32.totalorder %s40, 0
      %p296 = por %p294, %p295
      %p297 = scmp.ne.s32.totalorder %s289, %s291
      %p298 = scmp.eq.s32.totalorder %s45, 1
      %p299 = por %p297, %p298
      %p300 = scmp.ne.s32.totalorder %s291, %s292
      %p301 = scmp.eq.s32.totalorder %s45, 0
      %p302 = por %p300, %p301
      %p303 = scmp.ne.s32.totalorder %s291, %s292
      %p304 = scmp.eq.s32.totalorder %s46, 1
      %p305 = por %p303, %p304
      %p307 = scmp.ne.s32.totalorder %s292, %s306
      %p308 = scmp.eq.s32.totalorder %s46, 0
      %p309 = por %p307, %p308
      %s311 = sadd.s32 %s310, 1
      %p314 = scmp.eq.s32.totalorder %s40, 1
      %p315 = scmp.ne.s32.totalorder %s310, %s312
      %p316 = scmp.eq.s32.totalorder %s40, 0
      %p317 = por %p315, %p316
      %p318 = scmp.ne.s32.totalorder %s310, %s312
      %p319 = scmp.eq.s32.totalorder %s45, 1
      %p320 = por %p318, %p319
      %p321 = scmp.ne.s32.totalorder %s312, %s313
      %p322 = scmp.eq.s32.totalorder %s45, 0
      %p323 = por %p321, %p322
      %p324 = scmp.ne.s32.totalorder %s312, %s313
      %p325 = scmp.eq.s32.totalorder %s46, 1
      %p326 = por %p324, %p325
      %p328 = scmp.ne.s32.totalorder %s313, %s327
      %p329 = scmp.eq.s32.totalorder %s46, 0
      %p330 = por %p328, %p329
      %s332 = sadd.s32 %s331, 1
      %p335 = scmp.eq.s32.totalorder %s40, 1
      %p336 = scmp.ne.s32.totalorder %s331, %s333
      %p337 = scmp.eq.s32.totalorder %s40, 0
      %p338 = por %p336, %p337
      %p339 = scmp.ne.s32.totalorder %s331, %s333
      %p340 = scmp.eq.s32.totalorder %s45, 1
      %p341 = por %p339, %p340
      %p342 = scmp.ne.s32.totalorder %s333, %s334
      %p343 = scmp.eq.s32.totalorder %s45, 0
      %p344 = por %p342, %p343
      %p345 = scmp.ne.s32.totalorder %s333, %s334
      %p346 = scmp.eq.s32.totalorder %s46, 1
      %p347 = por %p345, %p346
      %p349 = scmp.ne.s32.totalorder %s334, %s348
      %p350 = scmp.eq.s32.totalorder %s46, 0
      %p351 = por %p349, %p350
      %s353 = sadd.s32 %s352, 1
      %p356 = scmp.eq.s32.totalorder %s40, 1
      %p357 = scmp.ne.s32.totalorder %s352, %s354
      %p358 = scmp.eq.s32.totalorder %s40, 0
      %p359 = por %p357, %p358
      %p360 = scmp.ne.s32.totalorder %s352, %s354
      %p361 = scmp.eq.s32.totalorder %s45, 1
      %p362 = por %p360, %p361
      %p363 = scmp.ne.s32.totalorder %s354, %s355
      %p364 = scmp.eq.s32.totalorder %s45, 0
      %p365 = por %p363, %p364
      %p366 = scmp.ne.s32.totalorder %s354, %s355
      %p367 = scmp.eq.s32.totalorder %s46, 1
      %p368 = por %p366, %p367
      %p370 = scmp.ne.s32.totalorder %s355, %s369
      %p371 = scmp.eq.s32.totalorder %s46, 0
      %p372 = por %p370, %p371
      %s374 = sadd.s32 %s373, 1
      %p377 = scmp.eq.s32.totalorder %s40, 1
      %p378 = scmp.ne.s32.totalorder %s373, %s375
      %p379 = scmp.eq.s32.totalorder %s40, 0
      %p380 = por %p378, %p379
      %p381 = scmp.ne.s32.totalorder %s373, %s375
      %p382 = scmp.eq.s32.totalorder %s45, 1
      %p383 = por %p381, %p382
      %p384 = scmp.ne.s32.totalorder %s375, %s376
      %p385 = scmp.eq.s32.totalorder %s45, 0
      %p386 = por %p384, %p385
      %p387 = scmp.ne.s32.totalorder %s375, %s376
      %p388 = scmp.eq.s32.totalorder %s46, 1
      %p389 = por %p387, %p388
      %p391 = scmp.ne.s32.totalorder %s376, %s390
      %p392 = scmp.eq.s32.totalorder %s46, 0
      %p393 = por %p391, %p392
      %s395 = sadd.s32 %s394, 1
      %p398 = scmp.eq.s32.totalorder %s40, 1
      %p399 = scmp.ne.s32.totalorder %s394, %s396
      %p400 = scmp.eq.s32.totalorder %s40, 0
      %p401 = por %p399, %p400
      %p402 = scmp.ne.s32.totalorder %s394, %s396
      %p403 = scmp.eq.s32.totalorder %s45, 1
      %p404 = por %p402, %p403
      %p405 = scmp.ne.s32.totalorder %s396, %s397
      %p406 = scmp.eq.s32.totalorder %s45, 0
      %p407 = por %p405, %p406
      %p408 = scmp.ne.s32.totalorder %s396, %s397
      %p409 = scmp.eq.s32.totalorder %s46, 1
      %p410 = por %p408, %p409
      %p412 = scmp.ne.s32.totalorder %s397, %s411
      %p413 = scmp.eq.s32.totalorder %s46, 0
      %p414 = por %p412, %p413
      %s416 = sadd.s32 %s415, 1
      %p419 = scmp.eq.s32.totalorder %s40, 1
      %p420 = scmp.ne.s32.totalorder %s415, %s417
      %p421 = scmp.eq.s32.totalorder %s40, 0
      %p422 = por %p420, %p421
      %p423 = scmp.ne.s32.totalorder %s415, %s417
      %p424 = scmp.eq.s32.totalorder %s45, 1
      %p425 = por %p423, %p424
      %p426 = scmp.ne.s32.totalorder %s417, %s418
      %p427 = scmp.eq.s32.totalorder %s45, 0
      %p428 = por %p426, %p427
      %p429 = scmp.ne.s32.totalorder %s417, %s418
      %p430 = scmp.eq.s32.totalorder %s46, 1
      %p431 = por %p429, %p430
      %p433 = scmp.ne.s32.totalorder %s418, %s432
      %p434 = scmp.eq.s32.totalorder %s46, 0
      %p435 = por %p433, %p434
      %s437 = sadd.s32 %s436, 1
      %p440 = scmp.eq.s32.totalorder %s40, 1
      %p441 = scmp.ne.s32.totalorder %s436, %s438
      %p442 = scmp.eq.s32.totalorder %s40, 0
      %p443 = por %p441, %p442
      %p444 = scmp.ne.s32.totalorder %s436, %s438
      %p445 = scmp.eq.s32.totalorder %s45, 1
      %p446 = por %p444, %p445
      %p447 = scmp.ne.s32.totalorder %s438, %s439
      %p448 = scmp.eq.s32.totalorder %s45, 0
      %p449 = por %p447, %p448
      %p450 = scmp.ne.s32.totalorder %s438, %s439
      %p451 = scmp.eq.s32.totalorder %s46, 1
      %p452 = por %p450, %p451
      %p454 = scmp.ne.s32.totalorder %s439, %s453
      %p455 = scmp.eq.s32.totalorder %s46, 0
      %p456 = por %p454, %p455
      %s458 = sadd.s32 %s457, 1
      %p461 = scmp.eq.s32.totalorder %s40, 1
      %p462 = scmp.ne.s32.totalorder %s457, %s459
      %p463 = scmp.eq.s32.totalorder %s40, 0
      %p464 = por %p462, %p463
      %p465 = scmp.ne.s32.totalorder %s457, %s459
      %p466 = scmp.eq.s32.totalorder %s45, 1
      %p467 = por %p465, %p466
      %p468 = scmp.ne.s32.totalorder %s459, %s460
      %p469 = scmp.eq.s32.totalorder %s45, 0
      %p470 = por %p468, %p469
      %p471 = scmp.ne.s32.totalorder %s459, %s460
      %p472 = scmp.eq.s32.totalorder %s46, 1
      %p473 = por %p471, %p472
      %p475 = scmp.ne.s32.totalorder %s460, %s474
      %p476 = scmp.eq.s32.totalorder %s46, 0
      %p477 = por %p475, %p476
      %s479 = sadd.s32 %s478, 1
      %p482 = scmp.eq.s32.totalorder %s40, 1
      %p483 = scmp.ne.s32.totalorder %s478, %s480
      %p484 = scmp.eq.s32.totalorder %s40, 0
      %p485 = por %p483, %p484
      %p486 = scmp.ne.s32.totalorder %s478, %s480
      %p487 = scmp.eq.s32.totalorder %s45, 1
      %p488 = por %p486, %p487
      %p489 = scmp.ne.s32.totalorder %s480, %s481
      %p490 = scmp.eq.s32.totalorder %s45, 0
      %p491 = por %p489, %p490
      %p492 = scmp.ne.s32.totalorder %s480, %s481
      %p493 = scmp.eq.s32.totalorder %s46, 1
      %p494 = por %p492, %p493
      %p496 = scmp.ne.s32.totalorder %s481, %s495
      %p497 = scmp.eq.s32.totalorder %s46, 0
      %p498 = por %p496, %p497
      %s500 = sadd.s32 %s499, 1
      %p503 = scmp.eq.s32.totalorder %s40, 1
      %p504 = scmp.ne.s32.totalorder %s499, %s501
      %p505 = scmp.eq.s32.totalorder %s40, 0
      %p506 = por %p504, %p505
      %p507 = scmp.ne.s32.totalorder %s499, %s501
      %p508 = scmp.eq.s32.totalorder %s45, 1
      %p509 = por %p507, %p508
      %p510 = scmp.ne.s32.totalorder %s501, %s502
      %p511 = scmp.eq.s32.totalorder %s45, 0
      %p512 = por %p510, %p511
      %p513 = scmp.ne.s32.totalorder %s501, %s502
      %p514 = scmp.eq.s32.totalorder %s46, 1
      %p515 = por %p513, %p514
      %p517 = scmp.ne.s32.totalorder %s502, %s516
      %p518 = scmp.eq.s32.totalorder %s46, 0
      %p519 = por %p517, %p518
      %s521 = sadd.s32 %s520, 1
      %p524 = scmp.eq.s32.totalorder %s40, 1
      %p525 = scmp.ne.s32.totalorder %s520, %s522
      %p526 = scmp.eq.s32.totalorder %s40, 0
      %p527 = por %p525, %p526
      %p528 = scmp.ne.s32.totalorder %s520, %s522
      %p529 = scmp.eq.s32.totalorder %s45, 1
      %p530 = por %p528, %p529
      %p531 = scmp.ne.s32.totalorder %s522, %s523
      %p532 = scmp.eq.s32.totalorder %s45, 0
      %p533 = por %p531, %p532
      %p534 = scmp.ne.s32.totalorder %s522, %s523
      %p535 = scmp.eq.s32.totalorder %s46, 1
      %p536 = por %p534, %p535
      %p538 = scmp.ne.s32.totalorder %s523, %s537
      %p539 = scmp.eq.s32.totalorder %s46, 0
      %p540 = por %p538, %p539
      %s542 = sadd.s32 %s541, 1
      %p545 = scmp.eq.s32.totalorder %s40, 1
      %p546 = scmp.ne.s32.totalorder %s541, %s543
      %p547 = scmp.eq.s32.totalorder %s40, 0
      %p548 = por %p546, %p547
      %p549 = scmp.ne.s32.totalorder %s541, %s543
      %p550 = scmp.eq.s32.totalorder %s45, 1
      %p551 = por %p549, %p550
      %p552 = scmp.ne.s32.totalorder %s543, %s544
      %p553 = scmp.eq.s32.totalorder %s45, 0
      %p554 = por %p552, %p553
      %p555 = scmp.ne.s32.totalorder %s543, %s544
      %p556 = scmp.eq.s32.totalorder %s46, 1
      %p557 = por %p555, %p556
      %p559 = scmp.ne.s32.totalorder %s544, %s558
      %p560 = scmp.eq.s32.totalorder %s46, 0
      %p561 = por %p559, %p560
      %s563 = sadd.s32 %s562, 1
      %p566 = scmp.eq.s32.totalorder %s40, 1
      %p567 = scmp.ne.s32.totalorder %s562, %s564
      %p568 = scmp.eq.s32.totalorder %s40, 0
      %p569 = por %p567, %p568
      %p570 = scmp.ne.s32.totalorder %s562, %s564
      %p571 = scmp.eq.s32.totalorder %s45, 1
      %p572 = por %p570, %p571
      %p573 = scmp.ne.s32.totalorder %s564, %s565
      %p574 = scmp.eq.s32.totalorder %s45, 0
      %p575 = por %p573, %p574
      %p576 = scmp.ne.s32.totalorder %s564, %s565
      %p577 = scmp.eq.s32.totalorder %s46, 1
      %p578 = por %p576, %p577
      %p580 = scmp.ne.s32.totalorder %s565, %s579
      %p581 = scmp.eq.s32.totalorder %s46, 0
      %p582 = por %p580, %p581
      %s584 = sadd.s32 %s583, 1
      %p587 = scmp.eq.s32.totalorder %s40, 1
      %p588 = scmp.ne.s32.totalorder %s583, %s585
      %p589 = scmp.eq.s32.totalorder %s40, 0
      %p590 = por %p588, %p589
      %p591 = scmp.ne.s32.totalorder %s583, %s585
      %p592 = scmp.eq.s32.totalorder %s45, 1
      %p593 = por %p591, %p592
      %p594 = scmp.ne.s32.totalorder %s585, %s586
      %p595 = scmp.eq.s32.totalorder %s45, 0
      %p596 = por %p594, %p595
      %p597 = scmp.ne.s32.totalorder %s585, %s586
      %p598 = scmp.eq.s32.totalorder %s46, 1
      %p599 = por %p597, %p598
      %p601 = scmp.ne.s32.totalorder %s586, %s600
      %p602 = scmp.eq.s32.totalorder %s46, 0
      %p603 = por %p601, %p602
      %s605 = sadd.s32 %s604, 1
      %p608 = scmp.eq.s32.totalorder %s40, 1
      %p609 = scmp.ne.s32.totalorder %s604, %s606
      %p610 = scmp.eq.s32.totalorder %s40, 0
      %p611 = por %p609, %p610
      %p612 = scmp.ne.s32.totalorder %s604, %s606
      %p613 = scmp.eq.s32.totalorder %s45, 1
      %p614 = por %p612, %p613
      %p615 = scmp.ne.s32.totalorder %s606, %s607
      %p616 = scmp.eq.s32.totalorder %s45, 0
      %p617 = por %p615, %p616
      %p618 = scmp.ne.s32.totalorder %s606, %s607
      %p619 = scmp.eq.s32.totalorder %s46, 1
      %p620 = por %p618, %p619
      %p622 = scmp.ne.s32.totalorder %s607, %s621
      %p623 = scmp.eq.s32.totalorder %s46, 0
      %p624 = por %p622, %p623
      %s625 = ssub.s32 %s40, %s47
      %p626 = scmp.eq.s32.totalorder %s625, 0
      %s628 = sadd.s32 %s627, 1
      %s629 = scalar_select %p626, %s627, %s628
      %p632 = pneg %p626
      %p633 = scmp.eq.s32.totalorder %s40, 1
      %p634 = por %p632, %p633
      %p635 = scmp.ne.s32.totalorder %s627, %s630
      %p636 = scmp.eq.s32.totalorder %s40, 0
      %p637 = por %p635, %p636
      %p638 = scmp.ne.s32.totalorder %s627, %s630
      %p639 = scmp.eq.s32.totalorder %s45, 1
      %p640 = por %p638, %p639
      %p641 = scmp.ne.s32.totalorder %s630, %s631
      %p642 = scmp.eq.s32.totalorder %s45, 0
      %p643 = por %p641, %p642
      %p644 = scmp.ne.s32.totalorder %s630, %s631
      %p645 = scmp.eq.s32.totalorder %s46, 1
      %p646 = por %p644, %p645
      %p648 = scmp.ne.s32.totalorder %s631, %s647
      %p649 = scmp.eq.s32.totalorder %s46, 0
      %p650 = por %p648, %p649
      %p651 = scmp.le.s32.totalorder 1, %s40
      %p652 = scmp.lt.s32.totalorder %s40, 3
      %p653 = pnand %p651, %p652
      %p654 = pneg %p653
      // Predicated region
      $region9: #{espnet_forward.9} parent=5 // pred_check
        _
      $region10: #{espnet_forward.9} parent=5 // pred_check_branch
        %656 = sbr.rel (%p653) target = $region12
      $region11: #{espnet_forward.9} parent=5 // pred_region
        %s657 = ssub.s32 %s40, 1
        // Predicated region
        $region13: #{espnet_forward.9} parent=11 // pred_check
          %p658 = pneg %p113
        $region14: #{espnet_forward.9} parent=11 // pred_check_branch
          %660 = sbr.rel (%p658) target = $region16
        $region15: #{espnet_forward.9} parent=11 // pred_region
          _
        $region16: #{espnet_forward.9} parent=11 // pred_fallthru
          _
        // Predicated region
        $region17: #{espnet_forward.9} parent=11 // pred_check
          %p661 = pneg %p134
        $region18: #{espnet_forward.9} parent=11 // pred_check_branch
          %663 = sbr.rel (%p661) target = $region20
        $region19: #{espnet_forward.9} parent=11 // pred_region
          _
        $region20: #{espnet_forward.9} parent=11 // pred_fallthru
          _
        // Predicated region
        $region21: #{espnet_forward.9} parent=11 // pred_check
          %p664 = pneg %p155
        $region22: #{espnet_forward.9} parent=11 // pred_check_branch
          %666 = sbr.rel (%p664) target = $region24
        $region23: #{espnet_forward.9} parent=11 // pred_region
          _
        $region24: #{espnet_forward.9} parent=11 // pred_fallthru
          _
        // Predicated region
        $region25: #{espnet_forward.9} parent=11 // pred_check
          %p667 = pneg %p176
        $region26: #{espnet_forward.9} parent=11 // pred_check_branch
          %669 = sbr.rel (%p667) target = $region28
        $region27: #{espnet_forward.9} parent=11 // pred_region
          %s671 = ssub.s32 16, 16
          %672 = vsyncadd [#allocation3], %s671
          %s674 = sshll.u32 [#allocation2], 4
          %s675 = int_to_ptr.vmem [resolvable:$true] %s674
          %677 = dma.hbm_to_vmem [thread:$0]  %s5, 16, %s675, [#allocation3]
        $region28: #{espnet_forward.9} parent=11 // pred_fallthru
          _
        // Predicated region
        $region29: #{espnet_forward.9} parent=11 // pred_check
          %p678 = pneg %p197
        $region30: #{espnet_forward.9} parent=11 // pred_check_branch
          %680 = sbr.rel (%p678) target = $region32
        $region31: #{espnet_forward.9} parent=11 // pred_region
          _
        $region32: #{espnet_forward.9} parent=11 // pred_fallthru
          _
        // Predicated region
        $region33: #{espnet_forward.9} parent=11 // pred_check
          %p681 = pneg %p218
        $region34: #{espnet_forward.9} parent=11 // pred_check_branch
          %683 = sbr.rel (%p681) target = $region36
        $region35: #{espnet_forward.9} parent=11 // pred_region
          %s685 = ssub.s32 16, 16
          %686 = vsyncadd [#allocation5], %s685
          %s688 = sshll.u32 [#allocation4], 4
          %s689 = int_to_ptr.vmem [resolvable:$true] %s688
          %691 = dma.hbm_to_vmem [thread:$0]  %s7, 16, %s689, [#allocation5]
        $region36: #{espnet_forward.9} parent=11 // pred_fallthru
          _
        // Predicated region
        $region37: #{espnet_forward.9} parent=11 // pred_check
          %p692 = pneg %p239
        $region38: #{espnet_forward.9} parent=11 // pred_check_branch
          %694 = sbr.rel (%p692) target = $region40
        $region39: #{espnet_forward.9} parent=11 // pred_region
          _
        $region40: #{espnet_forward.9} parent=11 // pred_fallthru
          _
        // Predicated region
        $region41: #{espnet_forward.9} parent=11 // pred_check
          %p695 = pneg %p260
        $region42: #{espnet_forward.9} parent=11 // pred_check_branch
          %697 = sbr.rel (%p695) target = $region44
        $region43: #{espnet_forward.9} parent=11 // pred_region
          %s699 = ssub.s32 16, 16
          %700 = vsyncadd [#allocation5], %s699
          %s702 = sshll.u32 [#allocation6], 4
          %s703 = int_to_ptr.vmem [resolvable:$true] %s702
          %705 = dma.hbm_to_vmem [thread:$0]  %s9, 16, %s703, [#allocation5]
        $region44: #{espnet_forward.9} parent=11 // pred_fallthru
          _
        // Predicated region
        $region45: #{espnet_forward.9} parent=11 // pred_check
          %p706 = pneg %p281
        $region46: #{espnet_forward.9} parent=11 // pred_check_branch
          %708 = sbr.rel (%p706) target = $region48
        $region47: #{espnet_forward.9} parent=11 // pred_region
          %s710 = ssub.s32 16, 16
          %711 = vsyncadd [#allocation8], %s710
          %s713 = sshll.u32 [#allocation7], 4
          %s714 = int_to_ptr.vmem [resolvable:$true] %s713
          %716 = dma.hbm_to_vmem [thread:$0]  %s10, 16, %s714, [#allocation8]
        $region48: #{espnet_forward.9} parent=11 // pred_fallthru
          _
        // Predicated region
        $region49: #{espnet_forward.9} parent=11 // pred_check
          %p717 = pneg %p302
        $region50: #{espnet_forward.9} parent=11 // pred_check_branch
          %719 = sbr.rel (%p717) target = $region52
        $region51: #{espnet_forward.9} parent=11 // pred_region
          %s721 = ssub.s32 16, 16
          %722 = vsyncadd [#allocation8], %s721
          %s724 = sshll.u32 [#allocation9], 4
          %s725 = int_to_ptr.vmem [resolvable:$true] %s724
          %727 = dma.hbm_to_vmem [thread:$0]  %s11, 16, %s725, [#allocation8]
        $region52: #{espnet_forward.9} parent=11 // pred_fallthru
          _
        // Predicated region
        $region53: #{espnet_forward.9} parent=11 // pred_check
          %p728 = pneg %p323
        $region54: #{espnet_forward.9} parent=11 // pred_check_branch
          %730 = sbr.rel (%p728) target = $region56
        $region55: #{espnet_forward.9} parent=11 // pred_region
          _
        $region56: #{espnet_forward.9} parent=11 // pred_fallthru
          _
        // Predicated region
        $region57: #{espnet_forward.9} parent=11 // pred_check
          %p731 = pneg %p344
        $region58: #{espnet_forward.9} parent=11 // pred_check_branch
          %733 = sbr.rel (%p731) target = $region60
        $region59: #{espnet_forward.9} parent=11 // pred_region
          _
        $region60: #{espnet_forward.9} parent=11 // pred_fallthru
          _
        // Predicated region
        $region61: #{espnet_forward.9} parent=11 // pred_check
          %p734 = pneg %p365
        $region62: #{espnet_forward.9} parent=11 // pred_check_branch
          %736 = sbr.rel (%p734) target = $region64
        $region63: #{espnet_forward.9} parent=11 // pred_region
          _
        $region64: #{espnet_forward.9} parent=11 // pred_fallthru
          _
        // Predicated region
        $region65: #{espnet_forward.9} parent=11 // pred_check
          %p737 = pneg %p386
        $region66: #{espnet_forward.9} parent=11 // pred_check_branch
          %739 = sbr.rel (%p737) target = $region68
        $region67: #{espnet_forward.9} parent=11 // pred_region
          %s741 = ssub.s32 16, 16
          %742 = vsyncadd [#allocation11], %s741
          %s744 = sshll.u32 [#allocation10], 4
          %s745 = int_to_ptr.vmem [resolvable:$true] %s744
          %747 = dma.hbm_to_vmem [thread:$0]  %s15, 16, %s745, [#allocation11]
        $region68: #{espnet_forward.9} parent=11 // pred_fallthru
          _
        // Predicated region
        $region69: #{espnet_forward.9} parent=11 // pred_check
          %p748 = pneg %p407
        $region70: #{espnet_forward.9} parent=11 // pred_check_branch
          %750 = sbr.rel (%p748) target = $region72
        $region71: #{espnet_forward.9} parent=11 // pred_region
          _
        $region72: #{espnet_forward.9} parent=11 // pred_fallthru
          _
        // Predicated region
        $region73: #{espnet_forward.9} parent=11 // pred_check
          %p751 = pneg %p428
        $region74: #{espnet_forward.9} parent=11 // pred_check_branch
          %753 = sbr.rel (%p751) target = $region76
        $region75: #{espnet_forward.9} parent=11 // pred_region
          %s755 = ssub.s32 16, 16
          %756 = vsyncadd [#allocation11], %s755
          %s758 = sshll.u32 [#allocation12], 4
          %s759 = int_to_ptr.vmem [resolvable:$true] %s758
          %761 = dma.hbm_to_vmem [thread:$0]  %s17, 16, %s759, [#allocation11]
        $region76: #{espnet_forward.9} parent=11 // pred_fallthru
          _
        // Predicated region
        $region77: #{espnet_forward.9} parent=11 // pred_check
          %p762 = pneg %p449
        $region78: #{espnet_forward.9} parent=11 // pred_check_branch
          %764 = sbr.rel (%p762) target = $region80
        $region79: #{espnet_forward.9} parent=11 // pred_region
          _
        $region80: #{espnet_forward.9} parent=11 // pred_fallthru
          _
        // Predicated region
        $region81: #{espnet_forward.9} parent=11 // pred_check
          %p765 = pneg %p470
        $region82: #{espnet_forward.9} parent=11 // pred_check_branch
          %767 = sbr.rel (%p765) target = $region84
        $region83: #{espnet_forward.9} parent=11 // pred_region
          %s769 = ssub.s32 16, 16
          %770 = vsyncadd [#allocation14], %s769
          %s772 = sshll.u32 [#allocation13], 4
          %s773 = int_to_ptr.vmem [resolvable:$true] %s772
          %775 = dma.hbm_to_vmem [thread:$0]  %s19, 16, %s773, [#allocation14]
        $region84: #{espnet_forward.9} parent=11 // pred_fallthru
          _
        // Predicated region
        $region85: #{espnet_forward.9} parent=11 // pred_check
          %p776 = pneg %p491
        $region86: #{espnet_forward.9} parent=11 // pred_check_branch
          %778 = sbr.rel (%p776) target = $region88
        $region87: #{espnet_forward.9} parent=11 // pred_region
          %s780 = ssub.s32 16, 16
          %781 = vsyncadd [#allocation14], %s780
          %s783 = sshll.u32 [#allocation15], 4
          %s784 = int_to_ptr.vmem [resolvable:$true] %s783
          %786 = dma.hbm_to_vmem [thread:$0]  %s20, 16, %s784, [#allocation14]
        $region88: #{espnet_forward.9} parent=11 // pred_fallthru
          _
        // Predicated region
        $region89: #{espnet_forward.9} parent=11 // pred_check
          %p787 = pneg %p512
        $region90: #{espnet_forward.9} parent=11 // pred_check_branch
          %789 = sbr.rel (%p787) target = $region92
        $region91: #{espnet_forward.9} parent=11 // pred_region
          _
        $region92: #{espnet_forward.9} parent=11 // pred_fallthru
          _
        // Predicated region
        $region93: #{espnet_forward.9} parent=11 // pred_check
          %p790 = pneg %p533
        $region94: #{espnet_forward.9} parent=11 // pred_check_branch
          %792 = sbr.rel (%p790) target = $region96
        $region95: #{espnet_forward.9} parent=11 // pred_region
          %s794 = ssub.s32 16, 16
          %795 = vsyncadd [#allocation17], %s794
          %s797 = sshll.u32 [#allocation16], 4
          %s798 = int_to_ptr.vmem [resolvable:$true] %s797
          %800 = dma.hbm_to_vmem [thread:$0]  %s22, 16, %s798, [#allocation17]
        $region96: #{espnet_forward.9} parent=11 // pred_fallthru
          _
        // Predicated region
        $region97: #{espnet_forward.9} parent=11 // pred_check
          %p801 = pneg %p554
        $region98: #{espnet_forward.9} parent=11 // pred_check_branch
          %803 = sbr.rel (%p801) target = $region100
        $region99: #{espnet_forward.9} parent=11 // pred_region
          _
        $region100: #{espnet_forward.9} parent=11 // pred_fallthru
          _
        // Predicated region
        $region101: #{espnet_forward.9} parent=11 // pred_check
          %p804 = pneg %p575
        $region102: #{espnet_forward.9} parent=11 // pred_check_branch
          %806 = sbr.rel (%p804) target = $region104
        $region103: #{espnet_forward.9} parent=11 // pred_region
          %s808 = ssub.s32 16, 16
          %809 = vsyncadd [#allocation17], %s808
          %s811 = sshll.u32 [#allocation18], 4
          %s812 = int_to_ptr.vmem [resolvable:$true] %s811
          %814 = dma.hbm_to_vmem [thread:$0]  %s24, 16, %s812, [#allocation17]
        $region104: #{espnet_forward.9} parent=11 // pred_fallthru
          _
        // Predicated region
        $region105: #{espnet_forward.9} parent=11 // pred_check
          %p815 = pneg %p596
        $region106: #{espnet_forward.9} parent=11 // pred_check_branch
          %817 = sbr.rel (%p815) target = $region108
        $region107: #{espnet_forward.9} parent=11 // pred_region
          _
        $region108: #{espnet_forward.9} parent=11 // pred_fallthru
          _
        // Predicated region
        $region109: #{espnet_forward.9} parent=11 // pred_check
          %p818 = pneg %p617
        $region110: #{espnet_forward.9} parent=11 // pred_check_branch
          %820 = sbr.rel (%p818) target = $region112
        $region111: #{espnet_forward.9} parent=11 // pred_region
          %s822 = ssub.s32 16, 16
          %823 = vsyncadd [#allocation20], %s822
          %s825 = sshll.u32 [#allocation19], 4
          %s826 = int_to_ptr.vmem [resolvable:$true] %s825
          %828 = dma.hbm_to_vmem [thread:$0]  %s26, 16, %s826, [#allocation20]
        $region112: #{espnet_forward.9} parent=11 // pred_fallthru
          _
      $region12: #{espnet_forward.9} parent=5 // pred_fallthru
        _
      %p829 = scmp.lt.s32.totalorder %s40, 2
      // Predicated region
      $region113: #{espnet_forward.9} parent=5 // pred_check
        %p830 = pneg %p829
      $region114: #{espnet_forward.9} parent=5 // pred_check_branch
        %832 = sbr.rel (%p830) target = $region116
      $region115: #{espnet_forward.9} parent=5 // pred_region
        // Predicated region
        $region117: #{espnet_forward.9} parent=115 // pred_check
          %p833 = pneg %p60
        $region118: #{espnet_forward.9} parent=115 // pred_check_branch
          %835 = sbr.rel (%p833) target = $region120
        $region119: #{espnet_forward.9} parent=115 // pred_region
          %p836 = scmp.lt.s32.totalorder %s40, 1
          %s837 = scalar_select %p836, %s40, 1
          %s838 = smul.addr %s837, 8
          %s839 = scalar_lea.vmem %s0, %s838
        $region120: #{espnet_forward.9} parent=115 // pred_fallthru
          _
        // Predicated region
        $region121: #{espnet_forward.9} parent=115 // pred_check
          %p840 = pneg %p86
        $region122: #{espnet_forward.9} parent=115 // pred_check_branch
          %842 = sbr.rel (%p840) target = $region124
        $region123: #{espnet_forward.9} parent=115 // pred_region
          %p843 = scmp.lt.s32.totalorder %s40, 1
          %s844 = scalar_select %p843, %s40, 1
          %s845 = scalar_lea.vmem %s1, %s844
        $region124: #{espnet_forward.9} parent=115 // pred_fallthru
          _
      $region116: #{espnet_forward.9} parent=5 // pred_fallthru
        _
      %p846 = scmp.le.s32.totalorder 1, %s40
      %p847 = scmp.lt.s32.totalorder %s40, 3
      %p848 = pnand %p846, %p847
      %p849 = pneg %p848
      // Predicated region
      $region125: #{espnet_forward.9} parent=5 // pred_check
        _
      $region126: #{espnet_forward.9} parent=5 // pred_check_branch
        %851 = sbr.rel (%p848) target = $region128
      $region127: #{espnet_forward.9} parent=5 // pred_region
        %s852 = ssub.s32 %s40, 1
        // Predicated region
        $region129: #{espnet_forward.9} parent=127 // pred_check
          %p853 = pneg %p176
        $region130: #{espnet_forward.9} parent=127 // pred_check_branch
          %855 = sbr.rel (%p853) target = $region132
        $region131: #{espnet_forward.9} parent=127 // pred_region
          %856 = dma.done [#allocation3], 16
        $region132: #{espnet_forward.9} parent=127 // pred_fallthru
          _
        // Predicated region
        $region133: #{espnet_forward.9} parent=127 // pred_check
          %p857 = pneg %p218
        $region134: #{espnet_forward.9} parent=127 // pred_check_branch
          %859 = sbr.rel (%p857) target = $region136
        $region135: #{espnet_forward.9} parent=127 // pred_region
          %860 = dma.done [#allocation5], 16
        $region136: #{espnet_forward.9} parent=127 // pred_fallthru
          _
        // Predicated region
        $region137: #{espnet_forward.9} parent=127 // pred_check
          %p861 = pneg %p260
        $region138: #{espnet_forward.9} parent=127 // pred_check_branch
          %863 = sbr.rel (%p861) target = $region140
        $region139: #{espnet_forward.9} parent=127 // pred_region
          %864 = dma.done [#allocation5], 16
        $region140: #{espnet_forward.9} parent=127 // pred_fallthru
          _
        // Predicated region
        $region141: #{espnet_forward.9} parent=127 // pred_check
          %p865 = pneg %p281
        $region142: #{espnet_forward.9} parent=127 // pred_check_branch
          %867 = sbr.rel (%p865) target = $region144
        $region143: #{espnet_forward.9} parent=127 // pred_region
          %868 = dma.done [#allocation8], 16
        $region144: #{espnet_forward.9} parent=127 // pred_fallthru
          _
        // Predicated region
        $region145: #{espnet_forward.9} parent=127 // pred_check
          %p869 = pneg %p302
        $region146: #{espnet_forward.9} parent=127 // pred_check_branch
          %871 = sbr.rel (%p869) target = $region148
        $region147: #{espnet_forward.9} parent=127 // pred_region
          %872 = dma.done [#allocation8], 16
        $region148: #{espnet_forward.9} parent=127 // pred_fallthru
          _
        // Predicated region
        $region149: #{espnet_forward.9} parent=127 // pred_check
          %p873 = pneg %p386
        $region150: #{espnet_forward.9} parent=127 // pred_check_branch
          %875 = sbr.rel (%p873) target = $region152
        $region151: #{espnet_forward.9} parent=127 // pred_region
          %876 = dma.done [#allocation11], 16
        $region152: #{espnet_forward.9} parent=127 // pred_fallthru
          _
        // Predicated region
        $region153: #{espnet_forward.9} parent=127 // pred_check
          %p877 = pneg %p428
        $region154: #{espnet_forward.9} parent=127 // pred_check_branch
          %879 = sbr.rel (%p877) target = $region156
        $region155: #{espnet_forward.9} parent=127 // pred_region
          %880 = dma.done [#allocation11], 16
        $region156: #{espnet_forward.9} parent=127 // pred_fallthru
          _
        // Predicated region
        $region157: #{espnet_forward.9} parent=127 // pred_check
          %p881 = pneg %p470
        $region158: #{espnet_forward.9} parent=127 // pred_check_branch
          %883 = sbr.rel (%p881) target = $region160
        $region159: #{espnet_forward.9} parent=127 // pred_region
          %884 = dma.done [#allocation14], 16
        $region160: #{espnet_forward.9} parent=127 // pred_fallthru
          _
        // Predicated region
        $region161: #{espnet_forward.9} parent=127 // pred_check
          %p885 = pneg %p491
        $region162: #{espnet_forward.9} parent=127 // pred_check_branch
          %887 = sbr.rel (%p885) target = $region164
        $region163: #{espnet_forward.9} parent=127 // pred_region
          %888 = dma.done [#allocation14], 16
        $region164: #{espnet_forward.9} parent=127 // pred_fallthru
          _
        // Predicated region
        $region165: #{espnet_forward.9} parent=127 // pred_check
          %p889 = pneg %p533
        $region166: #{espnet_forward.9} parent=127 // pred_check_branch
          %891 = sbr.rel (%p889) target = $region168
        $region167: #{espnet_forward.9} parent=127 // pred_region
          %892 = dma.done [#allocation17], 16
        $region168: #{espnet_forward.9} parent=127 // pred_fallthru
          _
        // Predicated region
        $region169: #{espnet_forward.9} parent=127 // pred_check
          %p893 = pneg %p575
        $region170: #{espnet_forward.9} parent=127 // pred_check_branch
          %895 = sbr.rel (%p893) target = $region172
        $region171: #{espnet_forward.9} parent=127 // pred_region
          %896 = dma.done [#allocation17], 16
        $region172: #{espnet_forward.9} parent=127 // pred_fallthru
          _
        // Predicated region
        $region173: #{espnet_forward.9} parent=127 // pred_check
          %p897 = pneg %p617
        $region174: #{espnet_forward.9} parent=127 // pred_check_branch
          %899 = sbr.rel (%p897) target = $region176
        $region175: #{espnet_forward.9} parent=127 // pred_region
          %900 = dma.done [#allocation20], 16
        $region176: #{espnet_forward.9} parent=127 // pred_fallthru
          _
        %p901 = scmp.lt.s32.totalorder %s45, 1
        %s902 = scalar_select %p901, %s45, 1
        %s903 = smul.addr %s902, 8
        %s904 = scalar_lea.vmem %s0, %s903
        %p905 = pneg %p66
        %p906 = pneg %p63
        %p907 = scmp.lt.s32.totalorder %s45, 1
        %s908 = scalar_select %p907, %s45, 1
        %s909 = scalar_lea.vmem %s1, %s908
        %p910 = pneg %p92
        %p911 = pneg %p89
        %p912 = pneg %p113
        %p913 = pneg %p110
        %p914 = pneg %p134
        %p915 = pneg %p131
        %p916 = pneg %p155
        %p917 = pneg %p152
        %p918 = pneg %p176
        %p919 = pneg %p173
        %p920 = pneg %p197
        %p921 = pneg %p194
        %p922 = pneg %p218
        %p923 = pneg %p215
        %p924 = pneg %p239
        %p925 = pneg %p236
        %p926 = pneg %p260
        %p927 = pneg %p257
        %p928 = pneg %p281
        %p929 = pneg %p278
        %p930 = pneg %p302
        %p931 = pneg %p299
        %p932 = pneg %p323
        %p933 = pneg %p320
        %p934 = pneg %p344
        %p935 = pneg %p341
        %p936 = pneg %p365
        %p937 = pneg %p362
        %p938 = pneg %p386
        %p939 = pneg %p383
        %p940 = pneg %p407
        %p941 = pneg %p404
        %p942 = pneg %p428
        %p943 = pneg %p425
        %p944 = pneg %p449
        %p945 = pneg %p446
        %p946 = pneg %p470
        %p947 = pneg %p467
        %p948 = pneg %p491
        %p949 = pneg %p488
        %p950 = pneg %p512
        %p951 = pneg %p509
        %p952 = pneg %p533
        %p953 = pneg %p530
        %p954 = pneg %p554
        %p955 = pneg %p551
        %p956 = pneg %p575
        %p957 = pneg %p572
        %p958 = pneg %p596
        %p959 = pneg %p593
        %p960 = pneg %p617
        %p961 = pneg %p614
        %p962 = pneg %p643
        %p963 = pneg %p640
        %p964 = scmp.lt.s32.totalorder %s45, 1
        %s965 = scalar_select %p964, %s45, 1
        %s966 = smul.addr %s965, 8
        %s967 = scalar_lea.vmem %s27, %s966
        %p968 = scmp.lt.s32.totalorder %s45, 1
        %s969 = scalar_select %p968, %s45, 1
        %s970 = smul.addr %s969, 8
        %s971 = scalar_lea.vmem %s0, %s970
        %p972 = scmp.lt.s32.totalorder %s45, 1
        %s973 = scalar_select %p972, %s45, 1
        %s974 = scalar_lea.vmem %s1, %s973
        %p975 = scmp.lt.s32.totalorder %s45, 1
        %s976 = scalar_select %p975, %s45, 1
        %s977 = smul.addr %s976, 8
        %s978 = scalar_lea.vmem %s27, %s977
        %v979 = vld [vmem:[%s971] sm:$0x7f]
        %v980 = vld [vmem:[%s974] sm:$0x1]
        %vm981 = vcmp.lt.f32.partialorder %v980, 0.5
        %v982 = vld [vmem:[%s2] sm:$0x3f]
        %v983 = vld [vmem:[%s3] sm:$0x3f]
        %vm984 = vcmask 260096
        %v985 = vsel %vm984, %v979, 0.0
        %986 = vadd.xlane.f32.xlu0 %v985
        %v987 = vpop.xlane.xlu0 %986
        %v988 = vrcp.pop 32.0
        %v989 = vmul.f32 %v987, %v988
        %v990 = vsub.f32 %v979, %v989
        %v991 = vmul.f32 %v990, %v990
        %v992 = vsel %vm984, %v991, 0.0
        %993 = vadd.xlane.f32.xlu0 %v992
        %v994 = vpop.xlane.xlu0 %993
        %v995 = vmul.f32 %v994, %v988
        %v996 = vadd.f32 %v995, 1e-12
        %v997 = vrsqrt.pop %v996
        %v998 = vmul.f32 %v990, %v997
        %v999 = vlaneseq
        %v1000 = vshrl.u32 %v999, 7
        %v1001 = vsub.s32 0, %v1000
        %v1002 = vrot.slane %v982, %v1001
        %v1003 = vmul.f32 %v998, %v1002
        %v1004 = vlaneseq
        %v1005 = vshrl.u32 %v1004, 7
        %v1006 = vsub.s32 0, %v1005
        %v1007 = vrot.slane %v983, %v1006
        %v1008 = vadd.f32 %v1003, %v1007
        %v1009 = vld [vmem:[%s4] sm:$0xff]
        %v1010 = vld [vmem:[%s4 + $0x8] sm:$0xff]
        %v1011 = vld [vmem:[%s4 + $0x10] sm:$0xff]
        %v1012 = vld [vmem:[%s4 + $0x18] sm:$0xff]
        %v1013 = vld [vmem:[#allocation2] sm:$0x1]
        %v1015 = vlaneseq
        %v1016 = vshrl.u32 %v1015, 7
        %v1017 = vsub.s32 0, %v1016
        %v1018 = vrot.slane %v1013, %v1017
        %vm1020 = vcmask 261120
        %v1022 = vsel %vm1020, %v1008, 0
        %1024 = vmatprep.subr.mxu0 0.0
        %1025 = vmatpush1.msra.mxu0 0.0
        %1026 = vmatprep.subr.mxu0 0.0
        %1027 = vmatpush1.msra.mxu0 0.0
        %1028 = vmatprep.subr.mxu0 0.0
        %1029 = vmatpush1.msra.mxu0 0.0
        %1030 = vmatprep.subr.mxu0 0.0
        %1031 = vmatpush1.msra.mxu0 0.0
        %1032 = vmatprep.subr.mxu0 0.0
        %1033 = vmatpush1.msra.mxu0 0.0
        %1034 = vmatprep.subr.mxu0 0.0
        %1035 = vmatpush1.msra.mxu0 0.0
        %1036 = vmatprep.subr.mxu0 0.0
        %1037 = vmatpush1.msra.mxu0 0.0
        %1038 = vmatprep.subr.mxu0 0.0
        %1039 = vmatpush1.msra.mxu0 0.0
        %1040 = vmatprep.subr.mxu0 0.0
        %1041 = vmatpush1.msra.mxu0 0.0
        %1042 = vmatprep.subr.mxu0 0.0
        %1043 = vmatpush1.msra.mxu0 0.0
        %1044 = vmatprep.subr.mxu0 0.0
        %1045 = vmatpush1.msra.mxu0 0.0
        %1046 = vmatprep.subr.mxu0 0.0
        %1047 = vmatpush1.msra.mxu0 0.0
        %1048 = vmatprep.subr.mxu0 0.0
        %1049 = vmatpush1.msra.mxu0 %v1012
        %1050 = vmatprep.subr.mxu0 0.0
        %1051 = vmatpush1.msra.mxu0 %v1011
        %1052 = vmatprep.subr.mxu0 0.0
        %1053 = vmatpush1.msra.mxu0 %v1010
        %1054 = vmatprep.subr.mxu0 0.0
        %1055 = vmatpush1.msra.mxu0 %v1009
        %1056 = vmatprep.subr.mxu0 0.0
        %1057 = vmatpush2.msra.mxu0 0.0
        %1058 = vmatprep.subr.mxu0 0.0
        %1059 = vmatpush2.msra.mxu0 0.0
        %1060 = vmatprep.subr.mxu0 0.0
        %1061 = vmatpush2.msra.mxu0 0.0
        %1062 = vmatprep.subr.mxu0 0.0
        %1063 = vmatpush2.msra.mxu0 0.0
        %1064 = vmatprep.subr.mxu0 0.0
        %1065 = vmatpush2.msra.mxu0 0.0
        %1066 = vmatprep.subr.mxu0 0.0
        %1067 = vmatpush2.msra.mxu0 0.0
        %1068 = vmatprep.subr.mxu0 0.0
        %1069 = vmatpush2.msra.mxu0 0.0
        %1070 = vmatprep.subr.mxu0 0.0
        %1071 = vmatpush2.msra.mxu0 0.0
        %1072 = vmatprep.subr.mxu0 0.0
        %1073 = vmatpush2.msra.mxu0 0.0
        %1074 = vmatprep.subr.mxu0 0.0
        %1075 = vmatpush2.msra.mxu0 0.0
        %1076 = vmatprep.subr.mxu0 0.0
        %1077 = vmatpush2.msra.mxu0 0.0
        %1078 = vmatprep.subr.mxu0 0.0
        %1079 = vmatpush2.msra.mxu0 0.0
        %1080 = vmatprep.subr.mxu0 0.0
        %1081 = vmatpush2.msra.mxu0 0.0
        %1082 = vmatprep.subr.mxu0 0.0
        %1083 = vmatpush2.msra.mxu0 0.0
        %1084 = vmatprep.subr.mxu0 0.0
        %1085 = vmatpush2.msra.mxu0 0.0
        %1086 = vmatprep.subr.mxu0 0.0
        %1087 = vmatpush2.msra.mxu0 0.0
        %1088 = vmatprep.mubr.f32.mxu0 0.0
        %1089 = vmatmul.mubr.f32.gmra.mxu0 %v1022
        %v1090 = vpop.f32.mrf.mxu0
        %v1091 = vadd.f32 %v1018, %v1090
        %v1092 = vpop.f32.mrf.mxu0
        %1093 = vdwg.mxu0
        %v1094 = vsub.f32 0.0, %v1091
        %v1095 = vmul.f32 %v1094, 1.442695
        %v1096 = vpow.pop %v1095
        %v1097 = vadd.f32 %v1096, 1.0
        %v1098 = vrcp.pop %v1097
        %v1099 = vmul.f32 1.0, %v1098
        %v1100 = vmul.f32 %v1091, %v1099
        %v1101 = vld [vmem:[%s6] sm:$0xff]
        %v1102 = vld [vmem:[%s6 + $0x8] sm:$0xff]
        %v1103 = vld [vmem:[%s6 + $0x10] sm:$0xff]
        %v1104 = vld [vmem:[%s6 + $0x18] sm:$0xff]
        %v1105 = vld [vmem:[%s6 + $0x20] sm:$0xff]
        %v1106 = vld [vmem:[%s6 + $0x28] sm:$0xff]
        %v1107 = vld [vmem:[%s6 + $0x30] sm:$0xff]
        %v1108 = vld [vmem:[%s6 + $0x38] sm:$0xff]
        %v1109 = vld [vmem:[#allocation4] sm:$0x1]
        %v1111 = vlaneseq
        %v1112 = vshrl.u32 %v1111, 7
        %v1113 = vsub.s32 0, %v1112
        %v1114 = vrot.slane %v1109, %v1113
        %vm1116 = vcmask 523264
        %v1118 = vsel %vm1116, %v1100, 0
        %1120 = vmatprep.subr.mxu0 0.0
        %1121 = vmatpush1.msra.mxu0 0.0
        %1122 = vmatprep.subr.mxu0 0.0
        %1123 = vmatpush1.msra.mxu0 0.0
        %1124 = vmatprep.subr.mxu0 0.0
        %1125 = vmatpush1.msra.mxu0 0.0
        %1126 = vmatprep.subr.mxu0 0.0
        %1127 = vmatpush1.msra.mxu0 0.0
        %1128 = vmatprep.subr.mxu0 0.0
        %1129 = vmatpush1.msra.mxu0 0.0
        %1130 = vmatprep.subr.mxu0 0.0
        %1131 = vmatpush1.msra.mxu0 0.0
        %1132 = vmatprep.subr.mxu0 0.0
        %1133 = vmatpush1.msra.mxu0 0.0
        %1134 = vmatprep.subr.mxu0 0.0
        %1135 = vmatpush1.msra.mxu0 0.0
        %1136 = vmatprep.subr.mxu0 0.0
        %1137 = vmatpush1.msra.mxu0 %v1108
        %1138 = vmatprep.subr.mxu0 0.0
        %1139 = vmatpush1.msra.mxu0 %v1107
        %1140 = vmatprep.subr.mxu0 0.0
        %1141 = vmatpush1.msra.mxu0 %v1106
        %1142 = vmatprep.subr.mxu0 0.0
        %1143 = vmatpush1.msra.mxu0 %v1105
        %1144 = vmatprep.subr.mxu0 0.0
        %1145 = vmatpush1.msra.mxu0 %v1104
        %1146 = vmatprep.subr.mxu0 0.0
        %1147 = vmatpush1.msra.mxu0 %v1103
        %1148 = vmatprep.subr.mxu0 0.0
        %1149 = vmatpush1.msra.mxu0 %v1102
        %1150 = vmatprep.subr.mxu0 0.0
        %1151 = vmatpush1.msra.mxu0 %v1101
        %1152 = vmatprep.subr.mxu0 0.0
        %1153 = vmatpush2.msra.mxu0 0.0
        %1154 = vmatprep.subr.mxu0 0.0
        %1155 = vmatpush2.msra.mxu0 0.0
        %1156 = vmatprep.subr.mxu0 0.0
        %1157 = vmatpush2.msra.mxu0 0.0
        %1158 = vmatprep.subr.mxu0 0.0
        %1159 = vmatpush2.msra.mxu0 0.0
        %1160 = vmatprep.subr.mxu0 0.0
        %1161 = vmatpush2.msra.mxu0 0.0
        %1162 = vmatprep.subr.mxu0 0.0
        %1163 = vmatpush2.msra.mxu0 0.0
        %1164 = vmatprep.subr.mxu0 0.0
        %1165 = vmatpush2.msra.mxu0 0.0
        %1166 = vmatprep.subr.mxu0 0.0
        %1167 = vmatpush2.msra.mxu0 0.0
        %1168 = vmatprep.subr.mxu0 0.0
        %1169 = vmatpush2.msra.mxu0 0.0
        %1170 = vmatprep.subr.mxu0 0.0
        %1171 = vmatpush2.msra.mxu0 0.0
        %1172 = vmatprep.subr.mxu0 0.0
        %1173 = vmatpush2.msra.mxu0 0.0
        %1174 = vmatprep.subr.mxu0 0.0
        %1175 = vmatpush2.msra.mxu0 0.0
        %1176 = vmatprep.subr.mxu0 0.0
        %1177 = vmatpush2.msra.mxu0 0.0
        %1178 = vmatprep.subr.mxu0 0.0
        %1179 = vmatpush2.msra.mxu0 0.0
        %1180 = vmatprep.subr.mxu0 0.0
        %1181 = vmatpush2.msra.mxu0 0.0
        %1182 = vmatprep.subr.mxu0 0.0
        %1183 = vmatpush2.msra.mxu0 0.0
        %1184 = vmatprep.mubr.f32.mxu0 0.0
        %1185 = vmatmul.mubr.f32.gmra.mxu0 %v1118
        %v1186 = vpop.f32.mrf.mxu0
        %v1187 = vadd.f32 %v1114, %v1186
        %v1188 = vpop.f32.mrf.mxu0
        %1189 = vdwg.mxu0
        %v1190 = vmul.f32 %v1187, 0.5
        %v1191 = vadd.f32 %v979, %v1190
        %v1192 = vsel %vm984, %v1191, 0.0
        %1193 = vadd.xlane.f32.xlu0 %v1192
        %v1194 = vpop.xlane.xlu0 %1193
        %v1195 = vmul.f32 %v1194, %v988
        %v1196 = vsub.f32 %v1191, %v1195
        %v1197 = vmul.f32 %v1196, %v1196
        %v1198 = vsel %vm984, %v1197, 0.0
        %1199 = vadd.xlane.f32.xlu0 %v1198
        %v1200 = vpop.xlane.xlu0 %1199
        %v1201 = vmul.f32 %v1200, %v988
        %v1202 = vadd.f32 %v1201, 1e-12
        %v1203 = vrsqrt.pop %v1202
        %v1204 = vmul.f32 %v1196, %v1203
        %v1205 = vlaneseq
        %v1206 = vshrl.u32 %v1205, 7
        %v1207 = vsub.s32 1, %v1206
        %v1208 = vrot.slane %v982, %v1207
        %v1209 = vmul.f32 %v1204, %v1208
        %v1210 = vlaneseq
        %v1211 = vshrl.u32 %v1210, 7
        %v1212 = vsub.s32 1, %v1211
        %v1213 = vrot.slane %v983, %v1212
        %v1214 = vadd.f32 %v1209, %v1213
        %v1215 = vld [vmem:[%s8] sm:$0xff]
        %v1216 = vld [vmem:[%s8 + $0x8] sm:$0xff]
        %v1217 = vld [vmem:[%s8 + $0x10] sm:$0xff]
        %v1218 = vld [vmem:[%s8 + $0x18] sm:$0xff]
        %v1219 = vld [vmem:[#allocation6] sm:$0x1]
        %v1221 = vlaneseq
        %v1222 = vshrl.u32 %v1221, 7
        %v1223 = vsub.s32 0, %v1222
        %v1224 = vrot.slane %v1219, %v1223
        %v1227 = vsel %vm1020, %v1214, 0
        %1229 = vmatprep.subr.mxu0 0.0
        %1230 = vmatpush1.msra.mxu0 0.0
        %1231 = vmatprep.subr.mxu0 0.0
        %1232 = vmatpush1.msra.mxu0 0.0
        %1233 = vmatprep.subr.mxu0 0.0
        %1234 = vmatpush1.msra.mxu0 0.0
        %1235 = vmatprep.subr.mxu0 0.0
        %1236 = vmatpush1.msra.mxu0 0.0
        %1237 = vmatprep.subr.mxu0 0.0
        %1238 = vmatpush1.msra.mxu0 0.0
        %1239 = vmatprep.subr.mxu0 0.0
        %1240 = vmatpush1.msra.mxu0 0.0
        %1241 = vmatprep.subr.mxu0 0.0
        %1242 = vmatpush1.msra.mxu0 0.0
        %1243 = vmatprep.subr.mxu0 0.0
        %1244 = vmatpush1.msra.mxu0 0.0
        %1245 = vmatprep.subr.mxu0 0.0
        %1246 = vmatpush1.msra.mxu0 0.0
        %1247 = vmatprep.subr.mxu0 0.0
        %1248 = vmatpush1.msra.mxu0 0.0
        %1249 = vmatprep.subr.mxu0 0.0
        %1250 = vmatpush1.msra.mxu0 0.0
        %1251 = vmatprep.subr.mxu0 0.0
        %1252 = vmatpush1.msra.mxu0 0.0
        %1253 = vmatprep.subr.mxu0 0.0
        %1254 = vmatpush1.msra.mxu0 %v1218
        %1255 = vmatprep.subr.mxu0 0.0
        %1256 = vmatpush1.msra.mxu0 %v1217
        %1257 = vmatprep.subr.mxu0 0.0
        %1258 = vmatpush1.msra.mxu0 %v1216
        %1259 = vmatprep.subr.mxu0 0.0
        %1260 = vmatpush1.msra.mxu0 %v1215
        %1261 = vmatprep.subr.mxu0 0.0
        %1262 = vmatpush2.msra.mxu0 0.0
        %1263 = vmatprep.subr.mxu0 0.0
        %1264 = vmatpush2.msra.mxu0 0.0
        %1265 = vmatprep.subr.mxu0 0.0
        %1266 = vmatpush2.msra.mxu0 0.0
        %1267 = vmatprep.subr.mxu0 0.0
        %1268 = vmatpush2.msra.mxu0 0.0
        %1269 = vmatprep.subr.mxu0 0.0
        %1270 = vmatpush2.msra.mxu0 0.0
        %1271 = vmatprep.subr.mxu0 0.0
        %1272 = vmatpush2.msra.mxu0 0.0
        %1273 = vmatprep.subr.mxu0 0.0
        %1274 = vmatpush2.msra.mxu0 0.0
        %1275 = vmatprep.subr.mxu0 0.0
        %1276 = vmatpush2.msra.mxu0 0.0
        %1277 = vmatprep.subr.mxu0 0.0
        %1278 = vmatpush2.msra.mxu0 0.0
        %1279 = vmatprep.subr.mxu0 0.0
        %1280 = vmatpush2.msra.mxu0 0.0
        %1281 = vmatprep.subr.mxu0 0.0
        %1282 = vmatpush2.msra.mxu0 0.0
        %1283 = vmatprep.subr.mxu0 0.0
        %1284 = vmatpush2.msra.mxu0 0.0
        %1285 = vmatprep.subr.mxu0 0.0
        %1286 = vmatpush2.msra.mxu0 0.0
        %1287 = vmatprep.subr.mxu0 0.0
        %1288 = vmatpush2.msra.mxu0 0.0
        %1289 = vmatprep.subr.mxu0 0.0
        %1290 = vmatpush2.msra.mxu0 0.0
        %1291 = vmatprep.subr.mxu0 0.0
        %1292 = vmatpush2.msra.mxu0 0.0
        %1293 = vmatprep.mubr.f32.mxu0 0.0
        %1294 = vmatmul.mubr.f32.gmra.mxu0 %v1227
        %v1295 = vpop.f32.mrf.mxu0
        %v1296 = vadd.f32 %v1224, %v1295
        %v1297 = vpop.f32.mrf.mxu0
        %1298 = vdwg.mxu0
        %v1299 = vld [vmem:[#allocation7] sm:$0x1]
        %v1301 = vlaneseq
        %v1302 = vshrl.u32 %v1301, 7
        %v1303 = vsub.s32 0, %v1302
        %v1304 = vrot.slane %v1299, %v1303
        %v1306 = vadd.f32 %v1296, %v1304
        %v1307 = vld [vmem:[#allocation9] sm:$0x1]
        %v1309 = vlaneseq
        %v1310 = vshrl.u32 %v1309, 7
        %v1311 = vsub.s32 0, %v1310
        %v1312 = vrot.slane %v1307, %v1311
        %v1314 = vadd.f32 %v1296, %v1312
        %v1315 = vlaneseq
        %v1316 = vshrl.u32 %v1315, 7
        %v1317 = vlaneseq
        %v1318 = vand.u32 %v1317, 127
        %v1319 = vadd.s32 %v1316, 1
        %vm1320 = vcmp.eq.s32.totalorder %v1318, %v1319
        %v1321 = vsel %vm1320, 1, 0
        %v1322 = vcvt.s32.f32 %v1321
        %vm1323 = vcmask 56320
        %v1325 = vsel %vm1323, %v1322, 0
        %vm1327 = vcmask 1046528
        %v1329 = vsel %vm1327, %v1314, 0
        %1331 = vmatprep.subr.mxu0 0.0
        %1332 = vmatpush1.msra.mxu0 0.0
        %1333 = vmatprep.subr.mxu0 0.0
        %1334 = vmatpush1.msra.mxu0 0.0
        %1335 = vmatprep.subr.mxu0 0.0
        %1336 = vmatpush1.msra.mxu0 0.0
        %1337 = vmatprep.subr.mxu0 0.0
        %1338 = vmatpush1.msra.mxu0 0.0
        %1339 = vmatprep.subr.mxu0 0.0
        %1340 = vmatpush1.msra.mxu0 0.0
        %1341 = vmatprep.subr.mxu0 0.0
        %1342 = vmatpush1.msra.mxu0 0.0
        %1343 = vmatprep.subr.mxu0 0.0
        %1344 = vmatpush1.msra.mxu0 0.0
        %1345 = vmatprep.subr.mxu0 0.0
        %1346 = vmatpush1.msra.mxu0 0.0
        %1347 = vmatprep.subr.mxu0 0.0
        %1348 = vmatpush1.msra.mxu0 0.0
        %1349 = vmatprep.subr.mxu0 0.0
        %1350 = vmatpush1.msra.mxu0 0.0
        %1351 = vmatprep.subr.mxu0 0.0
        %1352 = vmatpush1.msra.mxu0 0.0
        %1353 = vmatprep.subr.mxu0 0.0
        %1354 = vmatpush1.msra.mxu0 0.0
        %1355 = vmatprep.subr.mxu0 0.0
        %1356 = vmatpush1.msra.mxu0 0.0
        %1357 = vmatprep.subr.mxu0 0.0
        %1358 = vmatpush1.msra.mxu0 0.0
        %1359 = vmatprep.subr.mxu0 0.0
        %1360 = vmatpush1.msra.mxu0 0.0
        %1361 = vmatprep.subr.mxu0 0.0
        %1362 = vmatpush1.msra.mxu0 %v1329
        %1363 = vmatprep.subr.mxu0 0.0
        %1364 = vmatpush2.msra.mxu0 0.0
        %1365 = vmatprep.subr.mxu0 0.0
        %1366 = vmatpush2.msra.mxu0 0.0
        %1367 = vmatprep.subr.mxu0 0.0
        %1368 = vmatpush2.msra.mxu0 0.0
        %1369 = vmatprep.subr.mxu0 0.0
        %1370 = vmatpush2.msra.mxu0 0.0
        %1371 = vmatprep.subr.mxu0 0.0
        %1372 = vmatpush2.msra.mxu0 0.0
        %1373 = vmatprep.subr.mxu0 0.0
        %1374 = vmatpush2.msra.mxu0 0.0
        %1375 = vmatprep.subr.mxu0 0.0
        %1376 = vmatpush2.msra.mxu0 0.0
        %1377 = vmatprep.subr.mxu0 0.0
        %1378 = vmatpush2.msra.mxu0 0.0
        %1379 = vmatprep.subr.mxu0 0.0
        %1380 = vmatpush2.msra.mxu0 0.0
        %1381 = vmatprep.subr.mxu0 0.0
        %1382 = vmatpush2.msra.mxu0 0.0
        %1383 = vmatprep.subr.mxu0 0.0
        %1384 = vmatpush2.msra.mxu0 0.0
        %1385 = vmatprep.subr.mxu0 0.0
        %1386 = vmatpush2.msra.mxu0 0.0
        %1387 = vmatprep.subr.mxu0 0.0
        %1388 = vmatpush2.msra.mxu0 0.0
        %1389 = vmatprep.subr.mxu0 0.0
        %1390 = vmatpush2.msra.mxu0 0.0
        %1391 = vmatprep.subr.mxu0 0.0
        %1392 = vmatpush2.msra.mxu0 0.0
        %1393 = vmatprep.subr.mxu0 0.0
        %1394 = vmatpush2.msra.mxu0 0.0
        %1395 = vmatprep.mubr.f32.mxu0 0.0
        %1396 = vmatmul.mubr.f32.gmra.mxu0 %v1325
        %v1397 = vpop.f32.mrf.mxu0
        %v1398 = vadd.f32 0.0, %v1397
        %v1399 = vpop.f32.mrf.mxu0
        %1400 = vdwg.mxu0
        %v1401 = vld [vmem:[%s12] sm:$0x7f]
        %v1402 = vld [vmem:[%s12 + $0x8] sm:$0x7f]
        %v1403 = vld [vmem:[%s12 + $0x10] sm:$0x7f]
        %v1404 = vld [vmem:[%s12 + $0x18] sm:$0x7f]
        %v1405 = vld [vmem:[%s12 + $0x20] sm:$0x7f]
        %v1406 = vld [vmem:[%s12 + $0x28] sm:$0x7f]
        %v1407 = vld [vmem:[%s12 + $0x30] sm:$0x7f]
        %v1408 = vld [vmem:[%s13] sm:$0x7f]
        %v1409 = vld [vmem:[%s13 + $0x8] sm:$0x7f]
        %v1410 = vld [vmem:[%s13 + $0x10] sm:$0x7f]
        %v1411 = vld [vmem:[%s13 + $0x18] sm:$0x7f]
        %v1412 = vld [vmem:[%s13 + $0x20] sm:$0x7f]
        %v1413 = vld [vmem:[%s13 + $0x28] sm:$0x7f]
        %v1414 = vld [vmem:[%s13 + $0x30] sm:$0x7f]
        %v1415 = vld [vmem:[%s14] sm:$0xff]
        %v1416 = vld [vmem:[%s14 + $0x8] sm:$0xff]
        %v1417 = vld [vmem:[%s14 + $0x10] sm:$0xff]
        %v1418 = vld [vmem:[%s14 + $0x18] sm:$0xff]
        %v1419 = vmul.f32 %v1314, %v1401
        %v1420 = vmul.f32 %v1314, %v1402
        %v1421 = vmul.f32 %v1314, %v1403
        %v1422 = vmul.f32 %v1314, %v1404
        %v1423 = vmul.f32 %v1314, %v1405
        %v1424 = vmul.f32 %v1314, %v1406
        %v1425 = vmul.f32 %v1314, %v1407
        %vm1426 = vcmask 63488
        %v1427 = vsel %vm1426, %v1419, 0.0
        %1428 = vadd.xlane.f32.xlu0 %v1427
        %v1429 = vpop.xlane.xlu0 %1428
        %v1430 = vsel %vm1426, %v1420, 0.0
        %1431 = vadd.xlane.f32.xlu0 %v1430
        %v1432 = vpop.xlane.xlu0 %1431
        %v1433 = vsel %vm1426, %v1421, 0.0
        %1434 = vadd.xlane.f32.xlu0 %v1433
        %v1435 = vpop.xlane.xlu0 %1434
        %v1436 = vsel %vm1426, %v1422, 0.0
        %1437 = vadd.xlane.f32.xlu0 %v1436
        %v1438 = vpop.xlane.xlu0 %1437
        %v1439 = vsel %vm1426, %v1423, 0.0
        %1440 = vadd.xlane.f32.xlu0 %v1439
        %v1441 = vpop.xlane.xlu0 %1440
        %v1442 = vsel %vm1426, %v1424, 0.0
        %1443 = vadd.xlane.f32.xlu0 %v1442
        %v1444 = vpop.xlane.xlu0 %1443
        %v1445 = vsel %vm1426, %v1425, 0.0
        %1446 = vadd.xlane.f32.xlu0 %v1445
        %v1447 = vpop.xlane.xlu0 %1446
        %v1448 = vmul.f32 %v1398, %v1408
        %v1449 = vmul.f32 %v1398, %v1409
        %v1450 = vmul.f32 %v1398, %v1410
        %v1451 = vmul.f32 %v1398, %v1411
        %v1452 = vmul.f32 %v1398, %v1412
        %v1453 = vmul.f32 %v1398, %v1413
        %v1454 = vmul.f32 %v1398, %v1414
        %v1455 = vsel %vm1426, %v1448, 0.0
        %1456 = vadd.xlane.f32.xlu0 %v1455
        %v1457 = vpop.xlane.xlu0 %1456
        %v1458 = vsel %vm1426, %v1449, 0.0
        %1459 = vadd.xlane.f32.xlu0 %v1458
        %v1460 = vpop.xlane.xlu0 %1459
        %v1461 = vsel %vm1426, %v1450, 0.0
        %1462 = vadd.xlane.f32.xlu0 %v1461
        %v1463 = vpop.xlane.xlu0 %1462
        %v1464 = vsel %vm1426, %v1451, 0.0
        %1465 = vadd.xlane.f32.xlu0 %v1464
        %v1466 = vpop.xlane.xlu0 %1465
        %v1467 = vsel %vm1426, %v1452, 0.0
        %1468 = vadd.xlane.f32.xlu0 %v1467
        %v1469 = vpop.xlane.xlu0 %1468
        %v1470 = vsel %vm1426, %v1453, 0.0
        %1471 = vadd.xlane.f32.xlu0 %v1470
        %v1472 = vpop.xlane.xlu0 %1471
        %v1473 = vsel %vm1426, %v1454, 0.0
        %1474 = vadd.xlane.f32.xlu0 %v1473
        %v1475 = vpop.xlane.xlu0 %1474
        %v1476 = vadd.f32 %v1429, %v1457
        %v1477 = vadd.f32 %v1432, %v1460
        %v1478 = vadd.f32 %v1435, %v1463
        %v1479 = vadd.f32 %v1438, %v1466
        %v1480 = vadd.f32 %v1441, %v1469
        %v1481 = vadd.f32 %v1444, %v1472
        %v1482 = vadd.f32 %v1447, %v1475
        %v1490 = vlaneseq
        %v1491 = vshrl.u32 %v1490, 7
        %v1492 = vsub.s32 %v1318, %v1491
        %v1493 = vrot.slane %v1476, %v1492
        %v1494 = vlaneseq
        %v1495 = vshrl.u32 %v1494, 7
        %v1496 = vsub.s32 %v1318, %v1495
        %v1497 = vrot.slane %v1477, %v1496
        %v1498 = vlaneseq
        %v1499 = vshrl.u32 %v1498, 7
        %v1500 = vsub.s32 %v1318, %v1499
        %v1501 = vrot.slane %v1478, %v1500
        %v1502 = vlaneseq
        %v1503 = vshrl.u32 %v1502, 7
        %v1504 = vsub.s32 %v1318, %v1503
        %v1505 = vrot.slane %v1479, %v1504
        %v1506 = vlaneseq
        %v1507 = vshrl.u32 %v1506, 7
        %v1508 = vsub.s32 %v1318, %v1507
        %v1509 = vrot.slane %v1480, %v1508
        %v1510 = vlaneseq
        %v1511 = vshrl.u32 %v1510, 7
        %v1512 = vsub.s32 %v1318, %v1511
        %v1513 = vrot.slane %v1481, %v1512
        %v1514 = vlaneseq
        %v1515 = vshrl.u32 %v1514, 7
        %v1516 = vsub.s32 %v1318, %v1515
        %v1517 = vrot.slane %v1482, %v1516
        %vm1518 = vcmask 1041409
        %v1519 = vsel %vm1518, %v1497, %v1493
        %vm1520 = vcmask 1042434
        %v1521 = vsel %vm1520, %v1501, %v1519
        %vm1522 = vcmask 1043459
        %v1523 = vsel %vm1522, %v1505, %v1521
        %vm1524 = vcmask 1044484
        %v1525 = vsel %vm1524, %v1509, %v1523
        %vm1526 = vcmask 1045509
        %v1527 = vsel %vm1526, %v1513, %v1525
        %vm1528 = vcmask 1046534
        %v1529 = vsel %vm1528, %v1517, %v1527
        %1531 = vxpose.xlu0.b32.start [1/16] %v1529, 128
        %1532 = vxpose.xlu0.b32.cont [2/16] 0.0, 128
        %1533 = vxpose.xlu0.b32.cont [3/16] 0.0, 128
        %1534 = vxpose.xlu0.b32.cont [4/16] 0.0, 128
        %1535 = vxpose.xlu0.b32.cont [5/16] 0.0, 128
        %1536 = vxpose.xlu0.b32.cont [6/16] 0.0, 128
        %1537 = vxpose.xlu0.b32.cont [7/16] 0.0, 128
        %1538 = vxpose.xlu0.b32.cont [8/16] 0.0, 128
        %1539 = vxpose.xlu0.b32.cont [9/16] 0.0, 128
        %1540 = vxpose.xlu0.b32.cont [10/16] 0.0, 128
        %1541 = vxpose.xlu0.b32.cont [11/16] 0.0, 128
        %1542 = vxpose.xlu0.b32.cont [12/16] 0.0, 128
        %1543 = vxpose.xlu0.b32.cont [13/16] 0.0, 128
        %1544 = vxpose.xlu0.b32.cont [14/16] 0.0, 128
        %1545 = vxpose.xlu0.b32.cont [15/16] 0.0, 128
        %1546 = vxpose.xlu0.b32.end [16/16] 0.0, 128
        %v1547 = vpop.trf.xlu0
        %v1548 = vpop.trf.xlu0
        %v1549 = vpop.trf.xlu0
        %v1550 = vpop.trf.xlu0
        %v1551 = vpop.trf.xlu0
        %v1552 = vpop.trf.xlu0
        %v1553 = vpop.trf.xlu0
        %v1554 = vpop.trf.xlu0
        %v1555 = vpop.trf.xlu0
        %v1556 = vpop.trf.xlu0
        %v1557 = vpop.trf.xlu0
        %v1558 = vpop.trf.xlu0
        %v1559 = vpop.trf.xlu0
        %v1560 = vpop.trf.xlu0
        %v1561 = vpop.trf.xlu0
        %v1562 = vpop.trf.xlu0
        %1564 = vrot.lane.b32.xlu0 %v1296, 96
        %v1565 = vpop.permute.xlu0 %1564
        %vm1566 = vcmask 64512
        %v1568 = vsel %vm1566, %v1306, 0
        %v1570 = vsel %vm1566, %v1565, 0
        %1572 = vmatprep.subr.mxu0 0.0
        %1573 = vmatpush1.xpose.msra.mxu0 0.0
        %1574 = vmatprep.subr.mxu0 0.0
        %1575 = vmatpush1.xpose.msra.mxu0 0.0
        %1576 = vmatprep.subr.mxu0 0.0
        %1577 = vmatpush1.xpose.msra.mxu0 0.0
        %1578 = vmatprep.subr.mxu0 0.0
        %1579 = vmatpush1.xpose.msra.mxu0 0.0
        %1580 = vmatprep.subr.mxu0 0.0
        %1581 = vmatpush1.xpose.msra.mxu0 0.0
        %1582 = vmatprep.subr.mxu0 0.0
        %1583 = vmatpush1.xpose.msra.mxu0 0.0
        %1584 = vmatprep.subr.mxu0 0.0
        %1585 = vmatpush1.xpose.msra.mxu0 0.0
        %1586 = vmatprep.subr.mxu0 0.0
        %1587 = vmatpush1.xpose.msra.mxu0 0.0
        %1588 = vmatprep.subr.mxu0 0.0
        %1589 = vmatpush1.xpose.msra.mxu0 0.0
        %1590 = vmatprep.subr.mxu0 0.0
        %1591 = vmatpush1.xpose.msra.mxu0 0.0
        %1592 = vmatprep.subr.mxu0 0.0
        %1593 = vmatpush1.xpose.msra.mxu0 0.0
        %1594 = vmatprep.subr.mxu0 0.0
        %1595 = vmatpush1.xpose.msra.mxu0 0.0
        %1596 = vmatprep.subr.mxu0 0.0
        %1597 = vmatpush1.xpose.msra.mxu0 0.0
        %1598 = vmatprep.subr.mxu0 0.0
        %1599 = vmatpush1.xpose.msra.mxu0 0.0
        %1600 = vmatprep.subr.mxu0 0.0
        %1601 = vmatpush1.xpose.msra.mxu0 0.0
        %1602 = vmatprep.subr.mxu0 0.0
        %1603 = vmatpush1.xpose.msra.mxu0 %v1570
        %1604 = vmatprep.subr.mxu0 0.0
        %1605 = vmatpush2.xpose.msra.mxu0 0.0
        %1606 = vmatprep.subr.mxu0 0.0
        %1607 = vmatpush2.xpose.msra.mxu0 0.0
        %1608 = vmatprep.subr.mxu0 0.0
        %1609 = vmatpush2.xpose.msra.mxu0 0.0
        %1610 = vmatprep.subr.mxu0 0.0
        %1611 = vmatpush2.xpose.msra.mxu0 0.0
        %1612 = vmatprep.subr.mxu0 0.0
        %1613 = vmatpush2.xpose.msra.mxu0 0.0
        %1614 = vmatprep.subr.mxu0 0.0
        %1615 = vmatpush2.xpose.msra.mxu0 0.0
        %1616 = vmatprep.subr.mxu0 0.0
        %1617 = vmatpush2.xpose.msra.mxu0 0.0
        %1618 = vmatprep.subr.mxu0 0.0
        %1619 = vmatpush2.xpose.msra.mxu0 0.0
        %1620 = vmatprep.subr.mxu0 0.0
        %1621 = vmatpush2.xpose.msra.mxu0 0.0
        %1622 = vmatprep.subr.mxu0 0.0
        %1623 = vmatpush2.xpose.msra.mxu0 0.0
        %1624 = vmatprep.subr.mxu0 0.0
        %1625 = vmatpush2.xpose.msra.mxu0 0.0
        %1626 = vmatprep.subr.mxu0 0.0
        %1627 = vmatpush2.xpose.msra.mxu0 0.0
        %1628 = vmatprep.subr.mxu0 0.0
        %1629 = vmatpush2.xpose.msra.mxu0 0.0
        %1630 = vmatprep.subr.mxu0 0.0
        %1631 = vmatpush2.xpose.msra.mxu0 0.0
        %1632 = vmatprep.subr.mxu0 0.0
        %1633 = vmatpush2.xpose.msra.mxu0 0.0
        %1634 = vmatprep.subr.mxu0 0.0
        %1635 = vmatpush2.xpose.msra.mxu0 0.0
        %1636 = vmatprep.mubr.f32.mxu0 0.0
        %1637 = vmatmul.mubr.f32.gmra.mxu0 %v1568
        %v1638 = vpop.f32.mrf.mxu0
        %v1639 = vadd.f32 %v1547, %v1638
        %v1640 = vpop.f32.mrf.mxu0
        %1641 = vdwg.mxu0
        %v1642 = vmul.f32 %v1639, 0.35355338
        %v1643 = vsel %vm981, 1, 0
        %v1644 = vlaneseq
        %v1645 = vshrl.u32 %v1644, 7
        %v1646 = vsub.s32 0, %v1645
        %v1647 = vrot.slane %v1643, %v1646
        %vm1648 = vcmp.eq.s32.totalorder %v1647, 1
        %v1649 = vsel %vm1648, -3.4028235e+38, %v1642
        %vm1650 = vcmask 55296
        %v1651 = vsel %vm1650, %v1649, -inf
        %1652 = vmax.xlane.f32.xlu0 %v1651
        %v1653 = vpop.xlane.xlu0 %1652
        %v1654 = vsub.f32 %v1649, %v1653
        %v1655 = vmul.f32 %v1654, 1.442695
        %v1656 = vpow.pop %v1655
        %v1657 = vsel %vm1650, %v1656, 0.0
        %1658 = vadd.xlane.f32.xlu0 %v1657
        %v1659 = vpop.xlane.xlu0 %1658
        %v1660 = vrcp.pop %v1659
        %v1661 = vmul.f32 %v1656, %v1660
        %v1662 = vsel %vm1648, 0.0, %v1661
        %1663 = vrot.lane.b32.xlu0 %v1296, 64
        %v1664 = vpop.permute.xlu0 %1663
        %v1666 = vsel %vm1323, %v1662, 0
        %v1668 = vsel %vm1327, %v1664, 0
        %1670 = vmatprep.subr.mxu0 0.0
        %1671 = vmatpush1.msra.mxu0 0.0
        %1672 = vmatprep.subr.mxu0 0.0
        %1673 = vmatpush1.msra.mxu0 0.0
        %1674 = vmatprep.subr.mxu0 0.0
        %1675 = vmatpush1.msra.mxu0 0.0
        %1676 = vmatprep.subr.mxu0 0.0
        %1677 = vmatpush1.msra.mxu0 0.0
        %1678 = vmatprep.subr.mxu0 0.0
        %1679 = vmatpush1.msra.mxu0 0.0
        %1680 = vmatprep.subr.mxu0 0.0
        %1681 = vmatpush1.msra.mxu0 0.0
        %1682 = vmatprep.subr.mxu0 0.0
        %1683 = vmatpush1.msra.mxu0 0.0
        %1684 = vmatprep.subr.mxu0 0.0
        %1685 = vmatpush1.msra.mxu0 0.0
        %1686 = vmatprep.subr.mxu0 0.0
        %1687 = vmatpush1.msra.mxu0 0.0
        %1688 = vmatprep.subr.mxu0 0.0
        %1689 = vmatpush1.msra.mxu0 0.0
        %1690 = vmatprep.subr.mxu0 0.0
        %1691 = vmatpush1.msra.mxu0 0.0
        %1692 = vmatprep.subr.mxu0 0.0
        %1693 = vmatpush1.msra.mxu0 0.0
        %1694 = vmatprep.subr.mxu0 0.0
        %1695 = vmatpush1.msra.mxu0 0.0
        %1696 = vmatprep.subr.mxu0 0.0
        %1697 = vmatpush1.msra.mxu0 0.0
        %1698 = vmatprep.subr.mxu0 0.0
        %1699 = vmatpush1.msra.mxu0 0.0
        %1700 = vmatprep.subr.mxu0 0.0
        %1701 = vmatpush1.msra.mxu0 %v1668
        %1702 = vmatprep.subr.mxu0 0.0
        %1703 = vmatpush2.msra.mxu0 0.0
        %1704 = vmatprep.subr.mxu0 0.0
        %1705 = vmatpush2.msra.mxu0 0.0
        %1706 = vmatprep.subr.mxu0 0.0
        %1707 = vmatpush2.msra.mxu0 0.0
        %1708 = vmatprep.subr.mxu0 0.0
        %1709 = vmatpush2.msra.mxu0 0.0
        %1710 = vmatprep.subr.mxu0 0.0
        %1711 = vmatpush2.msra.mxu0 0.0
        %1712 = vmatprep.subr.mxu0 0.0
        %1713 = vmatpush2.msra.mxu0 0.0
        %1714 = vmatprep.subr.mxu0 0.0
        %1715 = vmatpush2.msra.mxu0 0.0
        %1716 = vmatprep.subr.mxu0 0.0
        %1717 = vmatpush2.msra.mxu0 0.0
        %1718 = vmatprep.subr.mxu0 0.0
        %1719 = vmatpush2.msra.mxu0 0.0
        %1720 = vmatprep.subr.mxu0 0.0
        %1721 = vmatpush2.msra.mxu0 0.0
        %1722 = vmatprep.subr.mxu0 0.0
        %1723 = vmatpush2.msra.mxu0 0.0
        %1724 = vmatprep.subr.mxu0 0.0
        %1725 = vmatpush2.msra.mxu0 0.0
        %1726 = vmatprep.subr.mxu0 0.0
        %1727 = vmatpush2.msra.mxu0 0.0
        %1728 = vmatprep.subr.mxu0 0.0
        %1729 = vmatpush2.msra.mxu0 0.0
        %1730 = vmatprep.subr.mxu0 0.0
        %1731 = vmatpush2.msra.mxu0 0.0
        %1732 = vmatprep.subr.mxu0 0.0
        %1733 = vmatpush2.msra.mxu0 0.0
        %1734 = vmatprep.mubr.f32.mxu0 0.0
        %1735 = vmatmul.mubr.f32.gmra.mxu0 %v1666
        %v1736 = vpop.f32.mrf.mxu0
        %v1737 = vadd.f32 0.0, %v1736
        %v1738 = vpop.f32.mrf.mxu0
        %1739 = vdwg.mxu0
        %1747 = vrot.lane.b32.xlu0 %v1419, 120
        %v1748 = vpop.permute.xlu0 %1747
        %1749 = vrot.lane.b32.xlu0 %v1420, 120
        %v1750 = vpop.permute.xlu0 %1749
        %1751 = vrot.lane.b32.xlu0 %v1421, 120
        %v1752 = vpop.permute.xlu0 %1751
        %1753 = vrot.lane.b32.xlu0 %v1422, 120
        %v1754 = vpop.permute.xlu0 %1753
        %1755 = vrot.lane.b32.xlu0 %v1423, 120
        %v1756 = vpop.permute.xlu0 %1755
        %1757 = vrot.lane.b32.xlu0 %v1424, 120
        %v1758 = vpop.permute.xlu0 %1757
        %1759 = vrot.lane.b32.xlu0 %v1425, 120
        %v1760 = vpop.permute.xlu0 %1759
        %v1768 = vsel %vm1426, %v1748, 0.0
        %1769 = vadd.xlane.f32.xlu0 %v1768
        %v1770 = vpop.xlane.xlu0 %1769
        %v1771 = vsel %vm1426, %v1750, 0.0
        %1772 = vadd.xlane.f32.xlu0 %v1771
        %v1773 = vpop.xlane.xlu0 %1772
        %v1774 = vsel %vm1426, %v1752, 0.0
        %1775 = vadd.xlane.f32.xlu0 %v1774
        %v1776 = vpop.xlane.xlu0 %1775
        %v1777 = vsel %vm1426, %v1754, 0.0
        %1778 = vadd.xlane.f32.xlu0 %v1777
        %v1779 = vpop.xlane.xlu0 %1778
        %v1780 = vsel %vm1426, %v1756, 0.0
        %1781 = vadd.xlane.f32.xlu0 %v1780
        %v1782 = vpop.xlane.xlu0 %1781
        %v1783 = vsel %vm1426, %v1758, 0.0
        %1784 = vadd.xlane.f32.xlu0 %v1783
        %v1785 = vpop.xlane.xlu0 %1784
        %v1786 = vsel %vm1426, %v1760, 0.0
        %1787 = vadd.xlane.f32.xlu0 %v1786
        %v1788 = vpop.xlane.xlu0 %1787
        %1796 = vrot.lane.b32.xlu0 %v1448, 120
        %v1797 = vpop.permute.xlu0 %1796
        %1798 = vrot.lane.b32.xlu0 %v1449, 120
        %v1799 = vpop.permute.xlu0 %1798
        %1800 = vrot.lane.b32.xlu0 %v1450, 120
        %v1801 = vpop.permute.xlu0 %1800
        %1802 = vrot.lane.b32.xlu0 %v1451, 120
        %v1803 = vpop.permute.xlu0 %1802
        %1804 = vrot.lane.b32.xlu0 %v1452, 120
        %v1805 = vpop.permute.xlu0 %1804
        %1806 = vrot.lane.b32.xlu0 %v1453, 120
        %v1807 = vpop.permute.xlu0 %1806
        %1808 = vrot.lane.b32.xlu0 %v1454, 120
        %v1809 = vpop.permute.xlu0 %1808
        %v1817 = vsel %vm1426, %v1797, 0.0
        %1818 = vadd.xlane.f32.xlu0 %v1817
        %v1819 = vpop.xlane.xlu0 %1818
        %v1820 = vsel %vm1426, %v1799, 0.0
        %1821 = vadd.xlane.f32.xlu0 %v1820
        %v1822 = vpop.xlane.xlu0 %1821
        %v1823 = vsel %vm1426, %v1801, 0.0
        %1824 = vadd.xlane.f32.xlu0 %v1823
        %v1825 = vpop.xlane.xlu0 %1824
        %v1826 = vsel %vm1426, %v1803, 0.0
        %1827 = vadd.xlane.f32.xlu0 %v1826
        %v1828 = vpop.xlane.xlu0 %1827
        %v1829 = vsel %vm1426, %v1805, 0.0
        %1830 = vadd.xlane.f32.xlu0 %v1829
        %v1831 = vpop.xlane.xlu0 %1830
        %v1832 = vsel %vm1426, %v1807, 0.0
        %1833 = vadd.xlane.f32.xlu0 %v1832
        %v1834 = vpop.xlane.xlu0 %1833
        %v1835 = vsel %vm1426, %v1809, 0.0
        %1836 = vadd.xlane.f32.xlu0 %v1835
        %v1837 = vpop.xlane.xlu0 %1836
        %v1838 = vadd.f32 %v1770, %v1819
        %v1839 = vadd.f32 %v1773, %v1822
        %v1840 = vadd.f32 %v1776, %v1825
        %v1841 = vadd.f32 %v1779, %v1828
        %v1842 = vadd.f32 %v1782, %v1831
        %v1843 = vadd.f32 %v1785, %v1834
        %v1844 = vadd.f32 %v1788, %v1837
        %v1852 = vlaneseq
        %v1853 = vshrl.u32 %v1852, 7
        %v1854 = vsub.s32 %v1318, %v1853
        %v1855 = vrot.slane %v1838, %v1854
        %v1856 = vlaneseq
        %v1857 = vshrl.u32 %v1856, 7
        %v1858 = vsub.s32 %v1318, %v1857
        %v1859 = vrot.slane %v1839, %v1858
        %v1860 = vlaneseq
        %v1861 = vshrl.u32 %v1860, 7
        %v1862 = vsub.s32 %v1318, %v1861
        %v1863 = vrot.slane %v1840, %v1862
        %v1864 = vlaneseq
        %v1865 = vshrl.u32 %v1864, 7
        %v1866 = vsub.s32 %v1318, %v1865
        %v1867 = vrot.slane %v1841, %v1866
        %v1868 = vlaneseq
        %v1869 = vshrl.u32 %v1868, 7
        %v1870 = vsub.s32 %v1318, %v1869
        %v1871 = vrot.slane %v1842, %v1870
        %v1872 = vlaneseq
        %v1873 = vshrl.u32 %v1872, 7
        %v1874 = vsub.s32 %v1318, %v1873
        %v1875 = vrot.slane %v1843, %v1874
        %v1876 = vlaneseq
        %v1877 = vshrl.u32 %v1876, 7
        %v1878 = vsub.s32 %v1318, %v1877
        %v1879 = vrot.slane %v1844, %v1878
        %v1880 = vsel %vm1518, %v1859, %v1855
        %v1881 = vsel %vm1520, %v1863, %v1880
        %v1882 = vsel %vm1522, %v1867, %v1881
        %v1883 = vsel %vm1524, %v1871, %v1882
        %v1884 = vsel %vm1526, %v1875, %v1883
        %v1885 = vsel %vm1528, %v1879, %v1884
        %1887 = vxpose.xlu0.b32.start [1/16] %v1885, 128
        %1888 = vxpose.xlu0.b32.cont [2/16] 0.0, 128
        %1889 = vxpose.xlu0.b32.cont [3/16] 0.0, 128
        %1890 = vxpose.xlu0.b32.cont [4/16] 0.0, 128
        %1891 = vxpose.xlu0.b32.cont [5/16] 0.0, 128
        %1892 = vxpose.xlu0.b32.cont [6/16] 0.0, 128
        %1893 = vxpose.xlu0.b32.cont [7/16] 0.0, 128
        %1894 = vxpose.xlu0.b32.cont [8/16] 0.0, 128
        %1895 = vxpose.xlu0.b32.cont [9/16] 0.0, 128
        %1896 = vxpose.xlu0.b32.cont [10/16] 0.0, 128
        %1897 = vxpose.xlu0.b32.cont [11/16] 0.0, 128
        %1898 = vxpose.xlu0.b32.cont [12/16] 0.0, 128
        %1899 = vxpose.xlu0.b32.cont [13/16] 0.0, 128
        %1900 = vxpose.xlu0.b32.cont [14/16] 0.0, 128
        %1901 = vxpose.xlu0.b32.cont [15/16] 0.0, 128
        %1902 = vxpose.xlu0.b32.end [16/16] 0.0, 128
        %v1903 = vpop.trf.xlu0
        %v1904 = vpop.trf.xlu0
        %v1905 = vpop.trf.xlu0
        %v1906 = vpop.trf.xlu0
        %v1907 = vpop.trf.xlu0
        %v1908 = vpop.trf.xlu0
        %v1909 = vpop.trf.xlu0
        %v1910 = vpop.trf.xlu0
        %v1911 = vpop.trf.xlu0
        %v1912 = vpop.trf.xlu0
        %v1913 = vpop.trf.xlu0
        %v1914 = vpop.trf.xlu0
        %v1915 = vpop.trf.xlu0
        %v1916 = vpop.trf.xlu0
        %v1917 = vpop.trf.xlu0
        %v1918 = vpop.trf.xlu0
        %1919 = vrot.lane.b32.xlu0 %v1306, 120
        %v1920 = vpop.permute.xlu0 %1919
        %1921 = vrot.lane.b32.xlu0 %v1296, 88
        %v1922 = vpop.permute.xlu0 %1921
        %v1923 = vsel %vm1566, %v1920, 0
        %v1925 = vsel %vm1566, %v1922, 0
        %1927 = vmatprep.subr.mxu0 0.0
        %1928 = vmatpush1.xpose.msra.mxu0 0.0
        %1929 = vmatprep.subr.mxu0 0.0
        %1930 = vmatpush1.xpose.msra.mxu0 0.0
        %1931 = vmatprep.subr.mxu0 0.0
        %1932 = vmatpush1.xpose.msra.mxu0 0.0
        %1933 = vmatprep.subr.mxu0 0.0
        %1934 = vmatpush1.xpose.msra.mxu0 0.0
        %1935 = vmatprep.subr.mxu0 0.0
        %1936 = vmatpush1.xpose.msra.mxu0 0.0
        %1937 = vmatprep.subr.mxu0 0.0
        %1938 = vmatpush1.xpose.msra.mxu0 0.0
        %1939 = vmatprep.subr.mxu0 0.0
        %1940 = vmatpush1.xpose.msra.mxu0 0.0
        %1941 = vmatprep.subr.mxu0 0.0
        %1942 = vmatpush1.xpose.msra.mxu0 0.0
        %1943 = vmatprep.subr.mxu0 0.0
        %1944 = vmatpush1.xpose.msra.mxu0 0.0
        %1945 = vmatprep.subr.mxu0 0.0
        %1946 = vmatpush1.xpose.msra.mxu0 0.0
        %1947 = vmatprep.subr.mxu0 0.0
        %1948 = vmatpush1.xpose.msra.mxu0 0.0
        %1949 = vmatprep.subr.mxu0 0.0
        %1950 = vmatpush1.xpose.msra.mxu0 0.0
        %1951 = vmatprep.subr.mxu0 0.0
        %1952 = vmatpush1.xpose.msra.mxu0 0.0
        %1953 = vmatprep.subr.mxu0 0.0
        %1954 = vmatpush1.xpose.msra.mxu0 0.0
        %1955 = vmatprep.subr.mxu0 0.0
        %1956 = vmatpush1.xpose.msra.mxu0 0.0
        %1957 = vmatprep.subr.mxu0 0.0
        %1958 = vmatpush1.xpose.msra.mxu0 %v1925
        %1959 = vmatprep.subr.mxu0 0.0
        %1960 = vmatpush2.xpose.msra.mxu0 0.0
        %1961 = vmatprep.subr.mxu0 0.0
        %1962 = vmatpush2.xpose.msra.mxu0 0.0
        %1963 = vmatprep.subr.mxu0 0.0
        %1964 = vmatpush2.xpose.msra.mxu0 0.0
        %1965 = vmatprep.subr.mxu0 0.0
        %1966 = vmatpush2.xpose.msra.mxu0 0.0
        %1967 = vmatprep.subr.mxu0 0.0
        %1968 = vmatpush2.xpose.msra.mxu0 0.0
        %1969 = vmatprep.subr.mxu0 0.0
        %1970 = vmatpush2.xpose.msra.mxu0 0.0
        %1971 = vmatprep.subr.mxu0 0.0
        %1972 = vmatpush2.xpose.msra.mxu0 0.0
        %1973 = vmatprep.subr.mxu0 0.0
        %1974 = vmatpush2.xpose.msra.mxu0 0.0
        %1975 = vmatprep.subr.mxu0 0.0
        %1976 = vmatpush2.xpose.msra.mxu0 0.0
        %1977 = vmatprep.subr.mxu0 0.0
        %1978 = vmatpush2.xpose.msra.mxu0 0.0
        %1979 = vmatprep.subr.mxu0 0.0
        %1980 = vmatpush2.xpose.msra.mxu0 0.0
        %1981 = vmatprep.subr.mxu0 0.0
        %1982 = vmatpush2.xpose.msra.mxu0 0.0
        %1983 = vmatprep.subr.mxu0 0.0
        %1984 = vmatpush2.xpose.msra.mxu0 0.0
        %1985 = vmatprep.subr.mxu0 0.0
        %1986 = vmatpush2.xpose.msra.mxu0 0.0
        %1987 = vmatprep.subr.mxu0 0.0
        %1988 = vmatpush2.xpose.msra.mxu0 0.0
        %1989 = vmatprep.subr.mxu0 0.0
        %1990 = vmatpush2.xpose.msra.mxu0 0.0
        %1991 = vmatprep.mubr.f32.mxu0 0.0
        %1992 = vmatmul.mubr.f32.gmra.mxu0 %v1923
        %v1993 = vpop.f32.mrf.mxu0
        %v1994 = vadd.f32 %v1903, %v1993
        %v1995 = vpop.f32.mrf.mxu0
        %1996 = vdwg.mxu0
        %v1997 = vmul.f32 %v1994, 0.35355338
        %v1998 = vsel %vm1648, -3.4028235e+38, %v1997
        %v1999 = vsel %vm1650, %v1998, -inf
        %2000 = vmax.xlane.f32.xlu0 %v1999
        %v2001 = vpop.xlane.xlu0 %2000
        %v2002 = vsub.f32 %v1998, %v2001
        %v2003 = vmul.f32 %v2002, 1.442695
        %v2004 = vpow.pop %v2003
        %v2005 = vsel %vm1650, %v2004, 0.0
        %2006 = vadd.xlane.f32.xlu0 %v2005
        %v2007 = vpop.xlane.xlu0 %2006
        %v2008 = vrcp.pop %v2007
        %v2009 = vmul.f32 %v2004, %v2008
        %v2010 = vsel %vm1648, 0.0, %v2009
        %2011 = vrot.lane.b32.xlu0 %v1296, 56
        %v2012 = vpop.permute.xlu0 %2011
        %v2014 = vsel %vm1323, %v2010, 0
        %v2016 = vsel %vm1327, %v2012, 0
        %2018 = vmatprep.subr.mxu0 0.0
        %2019 = vmatpush1.msra.mxu0 0.0
        %2020 = vmatprep.subr.mxu0 0.0
        %2021 = vmatpush1.msra.mxu0 0.0
        %2022 = vmatprep.subr.mxu0 0.0
        %2023 = vmatpush1.msra.mxu0 0.0
        %2024 = vmatprep.subr.mxu0 0.0
        %2025 = vmatpush1.msra.mxu0 0.0
        %2026 = vmatprep.subr.mxu0 0.0
        %2027 = vmatpush1.msra.mxu0 0.0
        %2028 = vmatprep.subr.mxu0 0.0
        %2029 = vmatpush1.msra.mxu0 0.0
        %2030 = vmatprep.subr.mxu0 0.0
        %2031 = vmatpush1.msra.mxu0 0.0
        %2032 = vmatprep.subr.mxu0 0.0
        %2033 = vmatpush1.msra.mxu0 0.0
        %2034 = vmatprep.subr.mxu0 0.0
        %2035 = vmatpush1.msra.mxu0 0.0
        %2036 = vmatprep.subr.mxu0 0.0
        %2037 = vmatpush1.msra.mxu0 0.0
        %2038 = vmatprep.subr.mxu0 0.0
        %2039 = vmatpush1.msra.mxu0 0.0
        %2040 = vmatprep.subr.mxu0 0.0
        %2041 = vmatpush1.msra.mxu0 0.0
        %2042 = vmatprep.subr.mxu0 0.0
        %2043 = vmatpush1.msra.mxu0 0.0
        %2044 = vmatprep.subr.mxu0 0.0
        %2045 = vmatpush1.msra.mxu0 0.0
        %2046 = vmatprep.subr.mxu0 0.0
        %2047 = vmatpush1.msra.mxu0 0.0
        %2048 = vmatprep.subr.mxu0 0.0
        %2049 = vmatpush1.msra.mxu0 %v2016
        %2050 = vmatprep.subr.mxu0 0.0
        %2051 = vmatpush2.msra.mxu0 0.0
        %2052 = vmatprep.subr.mxu0 0.0
        %2053 = vmatpush2.msra.mxu0 0.0
        %2054 = vmatprep.subr.mxu0 0.0
        %2055 = vmatpush2.msra.mxu0 0.0
        %2056 = vmatprep.subr.mxu0 0.0
        %2057 = vmatpush2.msra.mxu0 0.0
        %2058 = vmatprep.subr.mxu0 0.0
        %2059 = vmatpush2.msra.mxu0 0.0
        %2060 = vmatprep.subr.mxu0 0.0
        %2061 = vmatpush2.msra.mxu0 0.0
        %2062 = vmatprep.subr.mxu0 0.0
        %2063 = vmatpush2.msra.mxu0 0.0
        %2064 = vmatprep.subr.mxu0 0.0
        %2065 = vmatpush2.msra.mxu0 0.0
        %2066 = vmatprep.subr.mxu0 0.0
        %2067 = vmatpush2.msra.mxu0 0.0
        %2068 = vmatprep.subr.mxu0 0.0
        %2069 = vmatpush2.msra.mxu0 0.0
        %2070 = vmatprep.subr.mxu0 0.0
        %2071 = vmatpush2.msra.mxu0 0.0
        %2072 = vmatprep.subr.mxu0 0.0
        %2073 = vmatpush2.msra.mxu0 0.0
        %2074 = vmatprep.subr.mxu0 0.0
        %2075 = vmatpush2.msra.mxu0 0.0
        %2076 = vmatprep.subr.mxu0 0.0
        %2077 = vmatpush2.msra.mxu0 0.0
        %2078 = vmatprep.subr.mxu0 0.0
        %2079 = vmatpush2.msra.mxu0 0.0
        %2080 = vmatprep.subr.mxu0 0.0
        %2081 = vmatpush2.msra.mxu0 0.0
        %2082 = vmatprep.mubr.f32.mxu0 0.0
        %2083 = vmatmul.mubr.f32.gmra.mxu0 %v2014
        %v2084 = vpop.f32.mrf.mxu0
        %v2085 = vadd.f32 0.0, %v2084
        %v2086 = vpop.f32.mrf.mxu0
        %2087 = vdwg.mxu0
        %v2089 = vsel %vm1566, %v2085, 0
        %2091 = vmatprep.subr.mxu0 0.0
        %2092 = vmatpush1.msra.mxu0 0.0
        %2093 = vmatprep.subr.mxu0 0.0
        %2094 = vmatpush1.msra.mxu0 0.0
        %2095 = vmatprep.subr.mxu0 0.0
        %2096 = vmatpush1.msra.mxu0 0.0
        %2097 = vmatprep.subr.mxu0 0.0
        %2098 = vmatpush1.msra.mxu0 0.0
        %2099 = vmatprep.subr.mxu0 0.0
        %2100 = vmatpush1.msra.mxu0 0.0
        %2101 = vmatprep.subr.mxu0 0.0
        %2102 = vmatpush1.msra.mxu0 0.0
        %2103 = vmatprep.subr.mxu0 0.0
        %2104 = vmatpush1.msra.mxu0 0.0
        %2105 = vmatprep.subr.mxu0 0.0
        %2106 = vmatpush1.msra.mxu0 0.0
        %2107 = vmatprep.subr.mxu0 0.0
        %2108 = vmatpush1.msra.mxu0 0.0
        %2109 = vmatprep.subr.mxu0 0.0
        %2110 = vmatpush1.msra.mxu0 0.0
        %2111 = vmatprep.subr.mxu0 0.0
        %2112 = vmatpush1.msra.mxu0 0.0
        %2113 = vmatprep.subr.mxu0 0.0
        %2114 = vmatpush1.msra.mxu0 0.0
        %2115 = vmatprep.subr.mxu0 0.0
        %2116 = vmatpush1.msra.mxu0 0.0
        %2117 = vmatprep.subr.mxu0 0.0
        %2118 = vmatpush1.msra.mxu0 0.0
        %2119 = vmatprep.subr.mxu0 0.0
        %2120 = vmatpush1.msra.mxu0 0.0
        %2121 = vmatprep.subr.mxu0 0.0
        %2122 = vmatpush1.msra.mxu0 %v1416
        %2123 = vmatprep.subr.mxu0 0.0
        %2124 = vmatpush2.msra.mxu0 0.0
        %2125 = vmatprep.subr.mxu0 0.0
        %2126 = vmatpush2.msra.mxu0 0.0
        %2127 = vmatprep.subr.mxu0 0.0
        %2128 = vmatpush2.msra.mxu0 0.0
        %2129 = vmatprep.subr.mxu0 0.0
        %2130 = vmatpush2.msra.mxu0 0.0
        %2131 = vmatprep.subr.mxu0 0.0
        %2132 = vmatpush2.msra.mxu0 0.0
        %2133 = vmatprep.subr.mxu0 0.0
        %2134 = vmatpush2.msra.mxu0 0.0
        %2135 = vmatprep.subr.mxu0 0.0
        %2136 = vmatpush2.msra.mxu0 0.0
        %2137 = vmatprep.subr.mxu0 0.0
        %2138 = vmatpush2.msra.mxu0 0.0
        %2139 = vmatprep.subr.mxu0 0.0
        %2140 = vmatpush2.msra.mxu0 0.0
        %2141 = vmatprep.subr.mxu0 0.0
        %2142 = vmatpush2.msra.mxu0 0.0
        %2143 = vmatprep.subr.mxu0 0.0
        %2144 = vmatpush2.msra.mxu0 0.0
        %2145 = vmatprep.subr.mxu0 0.0
        %2146 = vmatpush2.msra.mxu0 0.0
        %2147 = vmatprep.subr.mxu0 0.0
        %2148 = vmatpush2.msra.mxu0 0.0
        %2149 = vmatprep.subr.mxu0 0.0
        %2150 = vmatpush2.msra.mxu0 0.0
        %2151 = vmatprep.subr.mxu0 0.0
        %2152 = vmatpush2.msra.mxu0 0.0
        %2153 = vmatprep.subr.mxu0 0.0
        %2154 = vmatpush2.msra.mxu0 0.0
        %2155 = vmatprep.mubr.f32.mxu0 0.0
        %2156 = vmatmul.mubr.f32.gmra.mxu0 %v2089
        %v2157 = vpop.f32.mrf.mxu0
        %v2158 = vadd.f32 0.0, %v2157
        %v2159 = vpop.f32.mrf.mxu0
        %2160 = vdwg.mxu0
        %v2162 = vsel %vm1566, %v1737, 0
        %2164 = vmatprep.subr.mxu0 0.0
        %2165 = vmatpush1.msra.mxu0 0.0
        %2166 = vmatprep.subr.mxu0 0.0
        %2167 = vmatpush1.msra.mxu0 0.0
        %2168 = vmatprep.subr.mxu0 0.0
        %2169 = vmatpush1.msra.mxu0 0.0
        %2170 = vmatprep.subr.mxu0 0.0
        %2171 = vmatpush1.msra.mxu0 0.0
        %2172 = vmatprep.subr.mxu0 0.0
        %2173 = vmatpush1.msra.mxu0 0.0
        %2174 = vmatprep.subr.mxu0 0.0
        %2175 = vmatpush1.msra.mxu0 0.0
        %2176 = vmatprep.subr.mxu0 0.0
        %2177 = vmatpush1.msra.mxu0 0.0
        %2178 = vmatprep.subr.mxu0 0.0
        %2179 = vmatpush1.msra.mxu0 0.0
        %2180 = vmatprep.subr.mxu0 0.0
        %2181 = vmatpush1.msra.mxu0 0.0
        %2182 = vmatprep.subr.mxu0 0.0
        %2183 = vmatpush1.msra.mxu0 0.0
        %2184 = vmatprep.subr.mxu0 0.0
        %2185 = vmatpush1.msra.mxu0 0.0
        %2186 = vmatprep.subr.mxu0 0.0
        %2187 = vmatpush1.msra.mxu0 0.0
        %2188 = vmatprep.subr.mxu0 0.0
        %2189 = vmatpush1.msra.mxu0 0.0
        %2190 = vmatprep.subr.mxu0 0.0
        %2191 = vmatpush1.msra.mxu0 0.0
        %2192 = vmatprep.subr.mxu0 0.0
        %2193 = vmatpush1.msra.mxu0 0.0
        %2194 = vmatprep.subr.mxu0 0.0
        %2195 = vmatpush1.msra.mxu0 %v1415
        %2196 = vmatprep.subr.mxu0 0.0
        %2197 = vmatpush2.msra.mxu0 0.0
        %2198 = vmatprep.subr.mxu0 0.0
        %2199 = vmatpush2.msra.mxu0 0.0
        %2200 = vmatprep.subr.mxu0 0.0
        %2201 = vmatpush2.msra.mxu0 0.0
        %2202 = vmatprep.subr.mxu0 0.0
        %2203 = vmatpush2.msra.mxu0 0.0
        %2204 = vmatprep.subr.mxu0 0.0
        %2205 = vmatpush2.msra.mxu0 0.0
        %2206 = vmatprep.subr.mxu0 0.0
        %2207 = vmatpush2.msra.mxu0 0.0
        %2208 = vmatprep.subr.mxu0 0.0
        %2209 = vmatpush2.msra.mxu0 0.0
        %2210 = vmatprep.subr.mxu0 0.0
        %2211 = vmatpush2.msra.mxu0 0.0
        %2212 = vmatprep.subr.mxu0 0.0
        %2213 = vmatpush2.msra.mxu0 0.0
        %2214 = vmatprep.subr.mxu0 0.0
        %2215 = vmatpush2.msra.mxu0 0.0
        %2216 = vmatprep.subr.mxu0 0.0
        %2217 = vmatpush2.msra.mxu0 0.0
        %2218 = vmatprep.subr.mxu0 0.0
        %2219 = vmatpush2.msra.mxu0 0.0
        %2220 = vmatprep.subr.mxu0 0.0
        %2221 = vmatpush2.msra.mxu0 0.0
        %2222 = vmatprep.subr.mxu0 0.0
        %2223 = vmatpush2.msra.mxu0 0.0
        %2224 = vmatprep.subr.mxu0 0.0
        %2225 = vmatpush2.msra.mxu0 0.0
        %2226 = vmatprep.subr.mxu0 0.0
        %2227 = vmatpush2.msra.mxu0 0.0
        %2228 = vmatprep.mubr.f32.mxu0 0.0
        %2229 = vmatmul.mubr.f32.gmra.mxu0 %v2162
        %v2230 = vpop.f32.mrf.mxu0
        %v2231 = vadd.f32 %v2158, %v2230
        %v2232 = vpop.f32.mrf.mxu0
        %2233 = vdwg.mxu0
        %2234 = vrot.lane.b32.xlu0 %v1419, 112
        %v2235 = vpop.permute.xlu0 %2234
        %2236 = vrot.lane.b32.xlu0 %v1420, 112
        %v2237 = vpop.permute.xlu0 %2236
        %2238 = vrot.lane.b32.xlu0 %v1421, 112
        %v2239 = vpop.permute.xlu0 %2238
        %2240 = vrot.lane.b32.xlu0 %v1422, 112
        %v2241 = vpop.permute.xlu0 %2240
        %2242 = vrot.lane.b32.xlu0 %v1423, 112
        %v2243 = vpop.permute.xlu0 %2242
        %2244 = vrot.lane.b32.xlu0 %v1424, 112
        %v2245 = vpop.permute.xlu0 %2244
        %2246 = vrot.lane.b32.xlu0 %v1425, 112
        %v2247 = vpop.permute.xlu0 %2246
        %v2255 = vsel %vm1426, %v2235, 0.0
        %2256 = vadd.xlane.f32.xlu0 %v2255
        %v2257 = vpop.xlane.xlu0 %2256
        %v2258 = vsel %vm1426, %v2237, 0.0
        %2259 = vadd.xlane.f32.xlu0 %v2258
        %v2260 = vpop.xlane.xlu0 %2259
        %v2261 = vsel %vm1426, %v2239, 0.0
        %2262 = vadd.xlane.f32.xlu0 %v2261
        %v2263 = vpop.xlane.xlu0 %2262
        %v2264 = vsel %vm1426, %v2241, 0.0
        %2265 = vadd.xlane.f32.xlu0 %v2264
        %v2266 = vpop.xlane.xlu0 %2265
        %v2267 = vsel %vm1426, %v2243, 0.0
        %2268 = vadd.xlane.f32.xlu0 %v2267
        %v2269 = vpop.xlane.xlu0 %2268
        %v2270 = vsel %vm1426, %v2245, 0.0
        %2271 = vadd.xlane.f32.xlu0 %v2270
        %v2272 = vpop.xlane.xlu0 %2271
        %v2273 = vsel %vm1426, %v2247, 0.0
        %2274 = vadd.xlane.f32.xlu0 %v2273
        %v2275 = vpop.xlane.xlu0 %2274
        %2276 = vrot.lane.b32.xlu0 %v1448, 112
        %v2277 = vpop.permute.xlu0 %2276
        %2278 = vrot.lane.b32.xlu0 %v1449, 112
        %v2279 = vpop.permute.xlu0 %2278
        %2280 = vrot.lane.b32.xlu0 %v1450, 112
        %v2281 = vpop.permute.xlu0 %2280
        %2282 = vrot.lane.b32.xlu0 %v1451, 112
        %v2283 = vpop.permute.xlu0 %2282
        %2284 = vrot.lane.b32.xlu0 %v1452, 112
        %v2285 = vpop.permute.xlu0 %2284
        %2286 = vrot.lane.b32.xlu0 %v1453, 112
        %v2287 = vpop.permute.xlu0 %2286
        %2288 = vrot.lane.b32.xlu0 %v1454, 112
        %v2289 = vpop.permute.xlu0 %2288
        %v2297 = vsel %vm1426, %v2277, 0.0
        %2298 = vadd.xlane.f32.xlu0 %v2297
        %v2299 = vpop.xlane.xlu0 %2298
        %v2300 = vsel %vm1426, %v2279, 0.0
        %2301 = vadd.xlane.f32.xlu0 %v2300
        %v2302 = vpop.xlane.xlu0 %2301
        %v2303 = vsel %vm1426, %v2281, 0.0
        %2304 = vadd.xlane.f32.xlu0 %v2303
        %v2305 = vpop.xlane.xlu0 %2304
        %v2306 = vsel %vm1426, %v2283, 0.0
        %2307 = vadd.xlane.f32.xlu0 %v2306
        %v2308 = vpop.xlane.xlu0 %2307
        %v2309 = vsel %vm1426, %v2285, 0.0
        %2310 = vadd.xlane.f32.xlu0 %v2309
        %v2311 = vpop.xlane.xlu0 %2310
        %v2312 = vsel %vm1426, %v2287, 0.0
        %2313 = vadd.xlane.f32.xlu0 %v2312
        %v2314 = vpop.xlane.xlu0 %2313
        %v2315 = vsel %vm1426, %v2289, 0.0
        %2316 = vadd.xlane.f32.xlu0 %v2315
        %v2317 = vpop.xlane.xlu0 %2316
        %v2318 = vadd.f32 %v2257, %v2299
        %v2319 = vadd.f32 %v2260, %v2302
        %v2320 = vadd.f32 %v2263, %v2305
        %v2321 = vadd.f32 %v2266, %v2308
        %v2322 = vadd.f32 %v2269, %v2311
        %v2323 = vadd.f32 %v2272, %v2314
        %v2324 = vadd.f32 %v2275, %v2317
        %v2332 = vlaneseq
        %v2333 = vshrl.u32 %v2332, 7
        %v2334 = vsub.s32 %v1318, %v2333
        %v2335 = vrot.slane %v2318, %v2334
        %v2336 = vlaneseq
        %v2337 = vshrl.u32 %v2336, 7
        %v2338 = vsub.s32 %v1318, %v2337
        %v2339 = vrot.slane %v2319, %v2338
        %v2340 = vlaneseq
        %v2341 = vshrl.u32 %v2340, 7
        %v2342 = vsub.s32 %v1318, %v2341
        %v2343 = vrot.slane %v2320, %v2342
        %v2344 = vlaneseq
        %v2345 = vshrl.u32 %v2344, 7
        %v2346 = vsub.s32 %v1318, %v2345
        %v2347 = vrot.slane %v2321, %v2346
        %v2348 = vlaneseq
        %v2349 = vshrl.u32 %v2348, 7
        %v2350 = vsub.s32 %v1318, %v2349
        %v2351 = vrot.slane %v2322, %v2350
        %v2352 = vlaneseq
        %v2353 = vshrl.u32 %v2352, 7
        %v2354 = vsub.s32 %v1318, %v2353
        %v2355 = vrot.slane %v2323, %v2354
        %v2356 = vlaneseq
        %v2357 = vshrl.u32 %v2356, 7
        %v2358 = vsub.s32 %v1318, %v2357
        %v2359 = vrot.slane %v2324, %v2358
        %v2360 = vsel %vm1518, %v2339, %v2335
        %v2361 = vsel %vm1520, %v2343, %v2360
        %v2362 = vsel %vm1522, %v2347, %v2361
        %v2363 = vsel %vm1524, %v2351, %v2362
        %v2364 = vsel %vm1526, %v2355, %v2363
        %v2365 = vsel %vm1528, %v2359, %v2364
        %2367 = vxpose.xlu0.b32.start [1/16] %v2365, 128
        %2368 = vxpose.xlu0.b32.cont [2/16] 0.0, 128
        %2369 = vxpose.xlu0.b32.cont [3/16] 0.0, 128
        %2370 = vxpose.xlu0.b32.cont [4/16] 0.0, 128
        %2371 = vxpose.xlu0.b32.cont [5/16] 0.0, 128
        %2372 = vxpose.xlu0.b32.cont [6/16] 0.0, 128
        %2373 = vxpose.xlu0.b32.cont [7/16] 0.0, 128
        %2374 = vxpose.xlu0.b32.cont [8/16] 0.0, 128
        %2375 = vxpose.xlu0.b32.cont [9/16] 0.0, 128
        %2376 = vxpose.xlu0.b32.cont [10/16] 0.0, 128
        %2377 = vxpose.xlu0.b32.cont [11/16] 0.0, 128
        %2378 = vxpose.xlu0.b32.cont [12/16] 0.0, 128
        %2379 = vxpose.xlu0.b32.cont [13/16] 0.0, 128
        %2380 = vxpose.xlu0.b32.cont [14/16] 0.0, 128
        %2381 = vxpose.xlu0.b32.cont [15/16] 0.0, 128
        %2382 = vxpose.xlu0.b32.end [16/16] 0.0, 128
        %v2383 = vpop.trf.xlu0
        %v2384 = vpop.trf.xlu0
        %v2385 = vpop.trf.xlu0
        %v2386 = vpop.trf.xlu0
        %v2387 = vpop.trf.xlu0
        %v2388 = vpop.trf.xlu0
        %v2389 = vpop.trf.xlu0
        %v2390 = vpop.trf.xlu0
        %v2391 = vpop.trf.xlu0
        %v2392 = vpop.trf.xlu0
        %v2393 = vpop.trf.xlu0
        %v2394 = vpop.trf.xlu0
        %v2395 = vpop.trf.xlu0
        %v2396 = vpop.trf.xlu0
        %v2397 = vpop.trf.xlu0
        %v2398 = vpop.trf.xlu0
        %2399 = vrot.lane.b32.xlu0 %v1306, 112
        %v2400 = vpop.permute.xlu0 %2399
        %2401 = vrot.lane.b32.xlu0 %v1296, 80
        %v2402 = vpop.permute.xlu0 %2401
        %v2403 = vsel %vm1566, %v2400, 0
        %v2405 = vsel %vm1566, %v2402, 0
        %2407 = vmatprep.subr.mxu0 0.0
        %2408 = vmatpush1.xpose.msra.mxu0 0.0
        %2409 = vmatprep.subr.mxu0 0.0
        %2410 = vmatpush1.xpose.msra.mxu0 0.0
        %2411 = vmatprep.subr.mxu0 0.0
        %2412 = vmatpush1.xpose.msra.mxu0 0.0
        %2413 = vmatprep.subr.mxu0 0.0
        %2414 = vmatpush1.xpose.msra.mxu0 0.0
        %2415 = vmatprep.subr.mxu0 0.0
        %2416 = vmatpush1.xpose.msra.mxu0 0.0
        %2417 = vmatprep.subr.mxu0 0.0
        %2418 = vmatpush1.xpose.msra.mxu0 0.0
        %2419 = vmatprep.subr.mxu0 0.0
        %2420 = vmatpush1.xpose.msra.mxu0 0.0
        %2421 = vmatprep.subr.mxu0 0.0
        %2422 = vmatpush1.xpose.msra.mxu0 0.0
        %2423 = vmatprep.subr.mxu0 0.0
        %2424 = vmatpush1.xpose.msra.mxu0 0.0
        %2425 = vmatprep.subr.mxu0 0.0
        %2426 = vmatpush1.xpose.msra.mxu0 0.0
        %2427 = vmatprep.subr.mxu0 0.0
        %2428 = vmatpush1.xpose.msra.mxu0 0.0
        %2429 = vmatprep.subr.mxu0 0.0
        %2430 = vmatpush1.xpose.msra.mxu0 0.0
        %2431 = vmatprep.subr.mxu0 0.0
        %2432 = vmatpush1.xpose.msra.mxu0 0.0
        %2433 = vmatprep.subr.mxu0 0.0
        %2434 = vmatpush1.xpose.msra.mxu0 0.0
        %2435 = vmatprep.subr.mxu0 0.0
        %2436 = vmatpush1.xpose.msra.mxu0 0.0
        %2437 = vmatprep.subr.mxu0 0.0
        %2438 = vmatpush1.xpose.msra.mxu0 %v2405
        %2439 = vmatprep.subr.mxu0 0.0
        %2440 = vmatpush2.xpose.msra.mxu0 0.0
        %2441 = vmatprep.subr.mxu0 0.0
        %2442 = vmatpush2.xpose.msra.mxu0 0.0
        %2443 = vmatprep.subr.mxu0 0.0
        %2444 = vmatpush2.xpose.msra.mxu0 0.0
        %2445 = vmatprep.subr.mxu0 0.0
        %2446 = vmatpush2.xpose.msra.mxu0 0.0
        %2447 = vmatprep.subr.mxu0 0.0
        %2448 = vmatpush2.xpose.msra.mxu0 0.0
        %2449 = vmatprep.subr.mxu0 0.0
        %2450 = vmatpush2.xpose.msra.mxu0 0.0
        %2451 = vmatprep.subr.mxu0 0.0
        %2452 = vmatpush2.xpose.msra.mxu0 0.0
        %2453 = vmatprep.subr.mxu0 0.0
        %2454 = vmatpush2.xpose.msra.mxu0 0.0
        %2455 = vmatprep.subr.mxu0 0.0
        %2456 = vmatpush2.xpose.msra.mxu0 0.0
        %2457 = vmatprep.subr.mxu0 0.0
        %2458 = vmatpush2.xpose.msra.mxu0 0.0
        %2459 = vmatprep.subr.mxu0 0.0
        %2460 = vmatpush2.xpose.msra.mxu0 0.0
        %2461 = vmatprep.subr.mxu0 0.0
        %2462 = vmatpush2.xpose.msra.mxu0 0.0
        %2463 = vmatprep.subr.mxu0 0.0
        %2464 = vmatpush2.xpose.msra.mxu0 0.0
        %2465 = vmatprep.subr.mxu0 0.0
        %2466 = vmatpush2.xpose.msra.mxu0 0.0
        %2467 = vmatprep.subr.mxu0 0.0
        %2468 = vmatpush2.xpose.msra.mxu0 0.0
        %2469 = vmatprep.subr.mxu0 0.0
        %2470 = vmatpush2.xpose.msra.mxu0 0.0
        %2471 = vmatprep.mubr.f32.mxu0 0.0
        %2472 = vmatmul.mubr.f32.gmra.mxu0 %v2403
        %v2473 = vpop.f32.mrf.mxu0
        %v2474 = vadd.f32 %v2383, %v2473
        %v2475 = vpop.f32.mrf.mxu0
        %2476 = vdwg.mxu0
        %v2477 = vmul.f32 %v2474, 0.35355338
        %v2478 = vsel %vm1648, -3.4028235e+38, %v2477
        %v2479 = vsel %vm1650, %v2478, -inf
        %2480 = vmax.xlane.f32.xlu0 %v2479
        %v2481 = vpop.xlane.xlu0 %2480
        %v2482 = vsub.f32 %v2478, %v2481
        %v2483 = vmul.f32 %v2482, 1.442695
        %v2484 = vpow.pop %v2483
        %v2485 = vsel %vm1650, %v2484, 0.0
        %2486 = vadd.xlane.f32.xlu0 %v2485
        %v2487 = vpop.xlane.xlu0 %2486
        %v2488 = vrcp.pop %v2487
        %v2489 = vmul.f32 %v2484, %v2488
        %v2490 = vsel %vm1648, 0.0, %v2489
        %2491 = vrot.lane.b32.xlu0 %v1296, 48
        %v2492 = vpop.permute.xlu0 %2491
        %v2494 = vsel %vm1323, %v2490, 0
        %v2496 = vsel %vm1327, %v2492, 0
        %2498 = vmatprep.subr.mxu0 0.0
        %2499 = vmatpush1.msra.mxu0 0.0
        %2500 = vmatprep.subr.mxu0 0.0
        %2501 = vmatpush1.msra.mxu0 0.0
        %2502 = vmatprep.subr.mxu0 0.0
        %2503 = vmatpush1.msra.mxu0 0.0
        %2504 = vmatprep.subr.mxu0 0.0
        %2505 = vmatpush1.msra.mxu0 0.0
        %2506 = vmatprep.subr.mxu0 0.0
        %2507 = vmatpush1.msra.mxu0 0.0
        %2508 = vmatprep.subr.mxu0 0.0
        %2509 = vmatpush1.msra.mxu0 0.0
        %2510 = vmatprep.subr.mxu0 0.0
        %2511 = vmatpush1.msra.mxu0 0.0
        %2512 = vmatprep.subr.mxu0 0.0
        %2513 = vmatpush1.msra.mxu0 0.0
        %2514 = vmatprep.subr.mxu0 0.0
        %2515 = vmatpush1.msra.mxu0 0.0
        %2516 = vmatprep.subr.mxu0 0.0
        %2517 = vmatpush1.msra.mxu0 0.0
        %2518 = vmatprep.subr.mxu0 0.0
        %2519 = vmatpush1.msra.mxu0 0.0
        %2520 = vmatprep.subr.mxu0 0.0
        %2521 = vmatpush1.msra.mxu0 0.0
        %2522 = vmatprep.subr.mxu0 0.0
        %2523 = vmatpush1.msra.mxu0 0.0
        %2524 = vmatprep.subr.mxu0 0.0
        %2525 = vmatpush1.msra.mxu0 0.0
        %2526 = vmatprep.subr.mxu0 0.0
        %2527 = vmatpush1.msra.mxu0 0.0
        %2528 = vmatprep.subr.mxu0 0.0
        %2529 = vmatpush1.msra.mxu0 %v2496
        %2530 = vmatprep.subr.mxu0 0.0
        %2531 = vmatpush2.msra.mxu0 0.0
        %2532 = vmatprep.subr.mxu0 0.0
        %2533 = vmatpush2.msra.mxu0 0.0
        %2534 = vmatprep.subr.mxu0 0.0
        %2535 = vmatpush2.msra.mxu0 0.0
        %2536 = vmatprep.subr.mxu0 0.0
        %2537 = vmatpush2.msra.mxu0 0.0
        %2538 = vmatprep.subr.mxu0 0.0
        %2539 = vmatpush2.msra.mxu0 0.0
        %2540 = vmatprep.subr.mxu0 0.0
        %2541 = vmatpush2.msra.mxu0 0.0
        %2542 = vmatprep.subr.mxu0 0.0
        %2543 = vmatpush2.msra.mxu0 0.0
        %2544 = vmatprep.subr.mxu0 0.0
        %2545 = vmatpush2.msra.mxu0 0.0
        %2546 = vmatprep.subr.mxu0 0.0
        %2547 = vmatpush2.msra.mxu0 0.0
        %2548 = vmatprep.subr.mxu0 0.0
        %2549 = vmatpush2.msra.mxu0 0.0
        %2550 = vmatprep.subr.mxu0 0.0
        %2551 = vmatpush2.msra.mxu0 0.0
        %2552 = vmatprep.subr.mxu0 0.0
        %2553 = vmatpush2.msra.mxu0 0.0
        %2554 = vmatprep.subr.mxu0 0.0
        %2555 = vmatpush2.msra.mxu0 0.0
        %2556 = vmatprep.subr.mxu0 0.0
        %2557 = vmatpush2.msra.mxu0 0.0
        %2558 = vmatprep.subr.mxu0 0.0
        %2559 = vmatpush2.msra.mxu0 0.0
        %2560 = vmatprep.subr.mxu0 0.0
        %2561 = vmatpush2.msra.mxu0 0.0
        %2562 = vmatprep.mubr.f32.mxu0 0.0
        %2563 = vmatmul.mubr.f32.gmra.mxu0 %v2494
        %v2564 = vpop.f32.mrf.mxu0
        %v2565 = vadd.f32 0.0, %v2564
        %v2566 = vpop.f32.mrf.mxu0
        %2567 = vdwg.mxu0
        %v2569 = vsel %vm1566, %v2565, 0
        %2571 = vmatprep.subr.mxu0 0.0
        %2572 = vmatpush1.msra.mxu0 0.0
        %2573 = vmatprep.subr.mxu0 0.0
        %2574 = vmatpush1.msra.mxu0 0.0
        %2575 = vmatprep.subr.mxu0 0.0
        %2576 = vmatpush1.msra.mxu0 0.0
        %2577 = vmatprep.subr.mxu0 0.0
        %2578 = vmatpush1.msra.mxu0 0.0
        %2579 = vmatprep.subr.mxu0 0.0
        %2580 = vmatpush1.msra.mxu0 0.0
        %2581 = vmatprep.subr.mxu0 0.0
        %2582 = vmatpush1.msra.mxu0 0.0
        %2583 = vmatprep.subr.mxu0 0.0
        %2584 = vmatpush1.msra.mxu0 0.0
        %2585 = vmatprep.subr.mxu0 0.0
        %2586 = vmatpush1.msra.mxu0 0.0
        %2587 = vmatprep.subr.mxu0 0.0
        %2588 = vmatpush1.msra.mxu0 0.0
        %2589 = vmatprep.subr.mxu0 0.0
        %2590 = vmatpush1.msra.mxu0 0.0
        %2591 = vmatprep.subr.mxu0 0.0
        %2592 = vmatpush1.msra.mxu0 0.0
        %2593 = vmatprep.subr.mxu0 0.0
        %2594 = vmatpush1.msra.mxu0 0.0
        %2595 = vmatprep.subr.mxu0 0.0
        %2596 = vmatpush1.msra.mxu0 0.0
        %2597 = vmatprep.subr.mxu0 0.0
        %2598 = vmatpush1.msra.mxu0 0.0
        %2599 = vmatprep.subr.mxu0 0.0
        %2600 = vmatpush1.msra.mxu0 0.0
        %2601 = vmatprep.subr.mxu0 0.0
        %2602 = vmatpush1.msra.mxu0 %v1417
        %2603 = vmatprep.subr.mxu0 0.0
        %2604 = vmatpush2.msra.mxu0 0.0
        %2605 = vmatprep.subr.mxu0 0.0
        %2606 = vmatpush2.msra.mxu0 0.0
        %2607 = vmatprep.subr.mxu0 0.0
        %2608 = vmatpush2.msra.mxu0 0.0
        %2609 = vmatprep.subr.mxu0 0.0
        %2610 = vmatpush2.msra.mxu0 0.0
        %2611 = vmatprep.subr.mxu0 0.0
        %2612 = vmatpush2.msra.mxu0 0.0
        %2613 = vmatprep.subr.mxu0 0.0
        %2614 = vmatpush2.msra.mxu0 0.0
        %2615 = vmatprep.subr.mxu0 0.0
        %2616 = vmatpush2.msra.mxu0 0.0
        %2617 = vmatprep.subr.mxu0 0.0
        %2618 = vmatpush2.msra.mxu0 0.0
        %2619 = vmatprep.subr.mxu0 0.0
        %2620 = vmatpush2.msra.mxu0 0.0
        %2621 = vmatprep.subr.mxu0 0.0
        %2622 = vmatpush2.msra.mxu0 0.0
        %2623 = vmatprep.subr.mxu0 0.0
        %2624 = vmatpush2.msra.mxu0 0.0
        %2625 = vmatprep.subr.mxu0 0.0
        %2626 = vmatpush2.msra.mxu0 0.0
        %2627 = vmatprep.subr.mxu0 0.0
        %2628 = vmatpush2.msra.mxu0 0.0
        %2629 = vmatprep.subr.mxu0 0.0
        %2630 = vmatpush2.msra.mxu0 0.0
        %2631 = vmatprep.subr.mxu0 0.0
        %2632 = vmatpush2.msra.mxu0 0.0
        %2633 = vmatprep.subr.mxu0 0.0
        %2634 = vmatpush2.msra.mxu0 0.0
        %2635 = vmatprep.mubr.f32.mxu0 0.0
        %2636 = vmatmul.mubr.f32.gmra.mxu0 %v2569
        %v2637 = vpop.f32.mrf.mxu0
        %v2638 = vadd.f32 0.0, %v2637
        %v2639 = vpop.f32.mrf.mxu0
        %2640 = vdwg.mxu0
        %v2641 = vadd.f32 %v2231, %v2638
        %2642 = vrot.lane.b32.xlu0 %v1419, 104
        %v2643 = vpop.permute.xlu0 %2642
        %2644 = vrot.lane.b32.xlu0 %v1420, 104
        %v2645 = vpop.permute.xlu0 %2644
        %2646 = vrot.lane.b32.xlu0 %v1421, 104
        %v2647 = vpop.permute.xlu0 %2646
        %2648 = vrot.lane.b32.xlu0 %v1422, 104
        %v2649 = vpop.permute.xlu0 %2648
        %2650 = vrot.lane.b32.xlu0 %v1423, 104
        %v2651 = vpop.permute.xlu0 %2650
        %2652 = vrot.lane.b32.xlu0 %v1424, 104
        %v2653 = vpop.permute.xlu0 %2652
        %2654 = vrot.lane.b32.xlu0 %v1425, 104
        %v2655 = vpop.permute.xlu0 %2654
        %v2663 = vsel %vm1426, %v2643, 0.0
        %2664 = vadd.xlane.f32.xlu0 %v2663
        %v2665 = vpop.xlane.xlu0 %2664
        %v2666 = vsel %vm1426, %v2645, 0.0
        %2667 = vadd.xlane.f32.xlu0 %v2666
        %v2668 = vpop.xlane.xlu0 %2667
        %v2669 = vsel %vm1426, %v2647, 0.0
        %2670 = vadd.xlane.f32.xlu0 %v2669
        %v2671 = vpop.xlane.xlu0 %2670
        %v2672 = vsel %vm1426, %v2649, 0.0
        %2673 = vadd.xlane.f32.xlu0 %v2672
        %v2674 = vpop.xlane.xlu0 %2673
        %v2675 = vsel %vm1426, %v2651, 0.0
        %2676 = vadd.xlane.f32.xlu0 %v2675
        %v2677 = vpop.xlane.xlu0 %2676
        %v2678 = vsel %vm1426, %v2653, 0.0
        %2679 = vadd.xlane.f32.xlu0 %v2678
        %v2680 = vpop.xlane.xlu0 %2679
        %v2681 = vsel %vm1426, %v2655, 0.0
        %2682 = vadd.xlane.f32.xlu0 %v2681
        %v2683 = vpop.xlane.xlu0 %2682
        %2684 = vrot.lane.b32.xlu0 %v1448, 104
        %v2685 = vpop.permute.xlu0 %2684
        %2686 = vrot.lane.b32.xlu0 %v1449, 104
        %v2687 = vpop.permute.xlu0 %2686
        %2688 = vrot.lane.b32.xlu0 %v1450, 104
        %v2689 = vpop.permute.xlu0 %2688
        %2690 = vrot.lane.b32.xlu0 %v1451, 104
        %v2691 = vpop.permute.xlu0 %2690
        %2692 = vrot.lane.b32.xlu0 %v1452, 104
        %v2693 = vpop.permute.xlu0 %2692
        %2694 = vrot.lane.b32.xlu0 %v1453, 104
        %v2695 = vpop.permute.xlu0 %2694
        %2696 = vrot.lane.b32.xlu0 %v1454, 104
        %v2697 = vpop.permute.xlu0 %2696
        %v2705 = vsel %vm1426, %v2685, 0.0
        %2706 = vadd.xlane.f32.xlu0 %v2705
        %v2707 = vpop.xlane.xlu0 %2706
        %v2708 = vsel %vm1426, %v2687, 0.0
        %2709 = vadd.xlane.f32.xlu0 %v2708
        %v2710 = vpop.xlane.xlu0 %2709
        %v2711 = vsel %vm1426, %v2689, 0.0
        %2712 = vadd.xlane.f32.xlu0 %v2711
        %v2713 = vpop.xlane.xlu0 %2712
        %v2714 = vsel %vm1426, %v2691, 0.0
        %2715 = vadd.xlane.f32.xlu0 %v2714
        %v2716 = vpop.xlane.xlu0 %2715
        %v2717 = vsel %vm1426, %v2693, 0.0
        %2718 = vadd.xlane.f32.xlu0 %v2717
        %v2719 = vpop.xlane.xlu0 %2718
        %v2720 = vsel %vm1426, %v2695, 0.0
        %2721 = vadd.xlane.f32.xlu0 %v2720
        %v2722 = vpop.xlane.xlu0 %2721
        %v2723 = vsel %vm1426, %v2697, 0.0
        %2724 = vadd.xlane.f32.xlu0 %v2723
        %v2725 = vpop.xlane.xlu0 %2724
        %v2726 = vadd.f32 %v2665, %v2707
        %v2727 = vadd.f32 %v2668, %v2710
        %v2728 = vadd.f32 %v2671, %v2713
        %v2729 = vadd.f32 %v2674, %v2716
        %v2730 = vadd.f32 %v2677, %v2719
        %v2731 = vadd.f32 %v2680, %v2722
        %v2732 = vadd.f32 %v2683, %v2725
        %v2740 = vlaneseq
        %v2741 = vshrl.u32 %v2740, 7
        %v2742 = vsub.s32 %v1318, %v2741
        %v2743 = vrot.slane %v2726, %v2742
        %v2744 = vlaneseq
        %v2745 = vshrl.u32 %v2744, 7
        %v2746 = vsub.s32 %v1318, %v2745
        %v2747 = vrot.slane %v2727, %v2746
        %v2748 = vlaneseq
        %v2749 = vshrl.u32 %v2748, 7
        %v2750 = vsub.s32 %v1318, %v2749
        %v2751 = vrot.slane %v2728, %v2750
        %v2752 = vlaneseq
        %v2753 = vshrl.u32 %v2752, 7
        %v2754 = vsub.s32 %v1318, %v2753
        %v2755 = vrot.slane %v2729, %v2754
        %v2756 = vlaneseq
        %v2757 = vshrl.u32 %v2756, 7
        %v2758 = vsub.s32 %v1318, %v2757
        %v2759 = vrot.slane %v2730, %v2758
        %v2760 = vlaneseq
        %v2761 = vshrl.u32 %v2760, 7
        %v2762 = vsub.s32 %v1318, %v2761
        %v2763 = vrot.slane %v2731, %v2762
        %v2764 = vlaneseq
        %v2765 = vshrl.u32 %v2764, 7
        %v2766 = vsub.s32 %v1318, %v2765
        %v2767 = vrot.slane %v2732, %v2766
        %v2768 = vsel %vm1518, %v2747, %v2743
        %v2769 = vsel %vm1520, %v2751, %v2768
        %v2770 = vsel %vm1522, %v2755, %v2769
        %v2771 = vsel %vm1524, %v2759, %v2770
        %v2772 = vsel %vm1526, %v2763, %v2771
        %v2773 = vsel %vm1528, %v2767, %v2772
        %2775 = vxpose.xlu0.b32.start [1/16] %v2773, 128
        %2776 = vxpose.xlu0.b32.cont [2/16] 0.0, 128
        %2777 = vxpose.xlu0.b32.cont [3/16] 0.0, 128
        %2778 = vxpose.xlu0.b32.cont [4/16] 0.0, 128
        %2779 = vxpose.xlu0.b32.cont [5/16] 0.0, 128
        %2780 = vxpose.xlu0.b32.cont [6/16] 0.0, 128
        %2781 = vxpose.xlu0.b32.cont [7/16] 0.0, 128
        %2782 = vxpose.xlu0.b32.cont [8/16] 0.0, 128
        %2783 = vxpose.xlu0.b32.cont [9/16] 0.0, 128
        %2784 = vxpose.xlu0.b32.cont [10/16] 0.0, 128
        %2785 = vxpose.xlu0.b32.cont [11/16] 0.0, 128
        %2786 = vxpose.xlu0.b32.cont [12/16] 0.0, 128
        %2787 = vxpose.xlu0.b32.cont [13/16] 0.0, 128
        %2788 = vxpose.xlu0.b32.cont [14/16] 0.0, 128
        %2789 = vxpose.xlu0.b32.cont [15/16] 0.0, 128
        %2790 = vxpose.xlu0.b32.end [16/16] 0.0, 128
        %v2791 = vpop.trf.xlu0
        %v2792 = vpop.trf.xlu0
        %v2793 = vpop.trf.xlu0
        %v2794 = vpop.trf.xlu0
        %v2795 = vpop.trf.xlu0
        %v2796 = vpop.trf.xlu0
        %v2797 = vpop.trf.xlu0
        %v2798 = vpop.trf.xlu0
        %v2799 = vpop.trf.xlu0
        %v2800 = vpop.trf.xlu0
        %v2801 = vpop.trf.xlu0
        %v2802 = vpop.trf.xlu0
        %v2803 = vpop.trf.xlu0
        %v2804 = vpop.trf.xlu0
        %v2805 = vpop.trf.xlu0
        %v2806 = vpop.trf.xlu0
        %2807 = vrot.lane.b32.xlu0 %v1306, 104
        %v2808 = vpop.permute.xlu0 %2807
        %2809 = vrot.lane.b32.xlu0 %v1296, 72
        %v2810 = vpop.permute.xlu0 %2809
        %v2811 = vsel %vm1566, %v2808, 0
        %v2813 = vsel %vm1566, %v2810, 0
        %2815 = vmatprep.subr.mxu0 0.0
        %2816 = vmatpush1.xpose.msra.mxu0 0.0
        %2817 = vmatprep.subr.mxu0 0.0
        %2818 = vmatpush1.xpose.msra.mxu0 0.0
        %2819 = vmatprep.subr.mxu0 0.0
        %2820 = vmatpush1.xpose.msra.mxu0 0.0
        %2821 = vmatprep.subr.mxu0 0.0
        %2822 = vmatpush1.xpose.msra.mxu0 0.0
        %2823 = vmatprep.subr.mxu0 0.0
        %2824 = vmatpush1.xpose.msra.mxu0 0.0
        %2825 = vmatprep.subr.mxu0 0.0
        %2826 = vmatpush1.xpose.msra.mxu0 0.0
        %2827 = vmatprep.subr.mxu0 0.0
        %2828 = vmatpush1.xpose.msra.mxu0 0.0
        %2829 = vmatprep.subr.mxu0 0.0
        %2830 = vmatpush1.xpose.msra.mxu0 0.0
        %2831 = vmatprep.subr.mxu0 0.0
        %2832 = vmatpush1.xpose.msra.mxu0 0.0
        %2833 = vmatprep.subr.mxu0 0.0
        %2834 = vmatpush1.xpose.msra.mxu0 0.0
        %2835 = vmatprep.subr.mxu0 0.0
        %2836 = vmatpush1.xpose.msra.mxu0 0.0
        %2837 = vmatprep.subr.mxu0 0.0
        %2838 = vmatpush1.xpose.msra.mxu0 0.0
        %2839 = vmatprep.subr.mxu0 0.0
        %2840 = vmatpush1.xpose.msra.mxu0 0.0
        %2841 = vmatprep.subr.mxu0 0.0
        %2842 = vmatpush1.xpose.msra.mxu0 0.0
        %2843 = vmatprep.subr.mxu0 0.0
        %2844 = vmatpush1.xpose.msra.mxu0 0.0
        %2845 = vmatprep.subr.mxu0 0.0
        %2846 = vmatpush1.xpose.msra.mxu0 %v2813
        %2847 = vmatprep.subr.mxu0 0.0
        %2848 = vmatpush2.xpose.msra.mxu0 0.0
        %2849 = vmatprep.subr.mxu0 0.0
        %2850 = vmatpush2.xpose.msra.mxu0 0.0
        %2851 = vmatprep.subr.mxu0 0.0
        %2852 = vmatpush2.xpose.msra.mxu0 0.0
        %2853 = vmatprep.subr.mxu0 0.0
        %2854 = vmatpush2.xpose.msra.mxu0 0.0
        %2855 = vmatprep.subr.mxu0 0.0
        %2856 = vmatpush2.xpose.msra.mxu0 0.0
        %2857 = vmatprep.subr.mxu0 0.0
        %2858 = vmatpush2.xpose.msra.mxu0 0.0
        %2859 = vmatprep.subr.mxu0 0.0
        %2860 = vmatpush2.xpose.msra.mxu0 0.0
        %2861 = vmatprep.subr.mxu0 0.0
        %2862 = vmatpush2.xpose.msra.mxu0 0.0
        %2863 = vmatprep.subr.mxu0 0.0
        %2864 = vmatpush2.xpose.msra.mxu0 0.0
        %2865 = vmatprep.subr.mxu0 0.0
        %2866 = vmatpush2.xpose.msra.mxu0 0.0
        %2867 = vmatprep.subr.mxu0 0.0
        %2868 = vmatpush2.xpose.msra.mxu0 0.0
        %2869 = vmatprep.subr.mxu0 0.0
        %2870 = vmatpush2.xpose.msra.mxu0 0.0
        %2871 = vmatprep.subr.mxu0 0.0
        %2872 = vmatpush2.xpose.msra.mxu0 0.0
        %2873 = vmatprep.subr.mxu0 0.0
        %2874 = vmatpush2.xpose.msra.mxu0 0.0
        %2875 = vmatprep.subr.mxu0 0.0
        %2876 = vmatpush2.xpose.msra.mxu0 0.0
        %2877 = vmatprep.subr.mxu0 0.0
        %2878 = vmatpush2.xpose.msra.mxu0 0.0
        %2879 = vmatprep.mubr.f32.mxu0 0.0
        %2880 = vmatmul.mubr.f32.gmra.mxu0 %v2811
        %v2881 = vpop.f32.mrf.mxu0
        %v2882 = vadd.f32 %v2791, %v2881
        %v2883 = vpop.f32.mrf.mxu0
        %2884 = vdwg.mxu0
        %v2885 = vmul.f32 %v2882, 0.35355338
        %v2886 = vsel %vm1648, -3.4028235e+38, %v2885
        %v2887 = vsel %vm1650, %v2886, -inf
        %2888 = vmax.xlane.f32.xlu0 %v2887
        %v2889 = vpop.xlane.xlu0 %2888
        %v2890 = vsub.f32 %v2886, %v2889
        %v2891 = vmul.f32 %v2890, 1.442695
        %v2892 = vpow.pop %v2891
        %v2893 = vsel %vm1650, %v2892, 0.0
        %2894 = vadd.xlane.f32.xlu0 %v2893
        %v2895 = vpop.xlane.xlu0 %2894
        %v2896 = vrcp.pop %v2895
        %v2897 = vmul.f32 %v2892, %v2896
        %v2898 = vsel %vm1648, 0.0, %v2897
        %2899 = vrot.lane.b32.xlu0 %v1296, 40
        %v2900 = vpop.permute.xlu0 %2899
        %v2902 = vsel %vm1323, %v2898, 0
        %v2904 = vsel %vm1327, %v2900, 0
        %2906 = vmatprep.subr.mxu0 0.0
        %2907 = vmatpush1.msra.mxu0 0.0
        %2908 = vmatprep.subr.mxu0 0.0
        %2909 = vmatpush1.msra.mxu0 0.0
        %2910 = vmatprep.subr.mxu0 0.0
        %2911 = vmatpush1.msra.mxu0 0.0
        %2912 = vmatprep.subr.mxu0 0.0
        %2913 = vmatpush1.msra.mxu0 0.0
        %2914 = vmatprep.subr.mxu0 0.0
        %2915 = vmatpush1.msra.mxu0 0.0
        %2916 = vmatprep.subr.mxu0 0.0
        %2917 = vmatpush1.msra.mxu0 0.0
        %2918 = vmatprep.subr.mxu0 0.0
        %2919 = vmatpush1.msra.mxu0 0.0
        %2920 = vmatprep.subr.mxu0 0.0
        %2921 = vmatpush1.msra.mxu0 0.0
        %2922 = vmatprep.subr.mxu0 0.0
        %2923 = vmatpush1.msra.mxu0 0.0
        %2924 = vmatprep.subr.mxu0 0.0
        %2925 = vmatpush1.msra.mxu0 0.0
        %2926 = vmatprep.subr.mxu0 0.0
        %2927 = vmatpush1.msra.mxu0 0.0
        %2928 = vmatprep.subr.mxu0 0.0
        %2929 = vmatpush1.msra.mxu0 0.0
        %2930 = vmatprep.subr.mxu0 0.0
        %2931 = vmatpush1.msra.mxu0 0.0
        %2932 = vmatprep.subr.mxu0 0.0
        %2933 = vmatpush1.msra.mxu0 0.0
        %2934 = vmatprep.subr.mxu0 0.0
        %2935 = vmatpush1.msra.mxu0 0.0
        %2936 = vmatprep.subr.mxu0 0.0
        %2937 = vmatpush1.msra.mxu0 %v2904
        %2938 = vmatprep.subr.mxu0 0.0
        %2939 = vmatpush2.msra.mxu0 0.0
        %2940 = vmatprep.subr.mxu0 0.0
        %2941 = vmatpush2.msra.mxu0 0.0
        %2942 = vmatprep.subr.mxu0 0.0
        %2943 = vmatpush2.msra.mxu0 0.0
        %2944 = vmatprep.subr.mxu0 0.0
        %2945 = vmatpush2.msra.mxu0 0.0
        %2946 = vmatprep.subr.mxu0 0.0
        %2947 = vmatpush2.msra.mxu0 0.0
        %2948 = vmatprep.subr.mxu0 0.0
        %2949 = vmatpush2.msra.mxu0 0.0
        %2950 = vmatprep.subr.mxu0 0.0
        %2951 = vmatpush2.msra.mxu0 0.0
        %2952 = vmatprep.subr.mxu0 0.0
        %2953 = vmatpush2.msra.mxu0 0.0
        %2954 = vmatprep.subr.mxu0 0.0
        %2955 = vmatpush2.msra.mxu0 0.0
        %2956 = vmatprep.subr.mxu0 0.0
        %2957 = vmatpush2.msra.mxu0 0.0
        %2958 = vmatprep.subr.mxu0 0.0
        %2959 = vmatpush2.msra.mxu0 0.0
        %2960 = vmatprep.subr.mxu0 0.0
        %2961 = vmatpush2.msra.mxu0 0.0
        %2962 = vmatprep.subr.mxu0 0.0
        %2963 = vmatpush2.msra.mxu0 0.0
        %2964 = vmatprep.subr.mxu0 0.0
        %2965 = vmatpush2.msra.mxu0 0.0
        %2966 = vmatprep.subr.mxu0 0.0
        %2967 = vmatpush2.msra.mxu0 0.0
        %2968 = vmatprep.subr.mxu0 0.0
        %2969 = vmatpush2.msra.mxu0 0.0
        %2970 = vmatprep.mubr.f32.mxu0 0.0
        %2971 = vmatmul.mubr.f32.gmra.mxu0 %v2902
        %v2972 = vpop.f32.mrf.mxu0
        %v2973 = vadd.f32 0.0, %v2972
        %v2974 = vpop.f32.mrf.mxu0
        %2975 = vdwg.mxu0
        %v2977 = vsel %vm1566, %v2973, 0
        %2979 = vmatprep.subr.mxu0 0.0
        %2980 = vmatpush1.msra.mxu0 0.0
        %2981 = vmatprep.subr.mxu0 0.0
        %2982 = vmatpush1.msra.mxu0 0.0
        %2983 = vmatprep.subr.mxu0 0.0
        %2984 = vmatpush1.msra.mxu0 0.0
        %2985 = vmatprep.subr.mxu0 0.0
        %2986 = vmatpush1.msra.mxu0 0.0
        %2987 = vmatprep.subr.mxu0 0.0
        %2988 = vmatpush1.msra.mxu0 0.0
        %2989 = vmatprep.subr.mxu0 0.0
        %2990 = vmatpush1.msra.mxu0 0.0
        %2991 = vmatprep.subr.mxu0 0.0
        %2992 = vmatpush1.msra.mxu0 0.0
        %2993 = vmatprep.subr.mxu0 0.0
        %2994 = vmatpush1.msra.mxu0 0.0
        %2995 = vmatprep.subr.mxu0 0.0
        %2996 = vmatpush1.msra.mxu0 0.0
        %2997 = vmatprep.subr.mxu0 0.0
        %2998 = vmatpush1.msra.mxu0 0.0
        %2999 = vmatprep.subr.mxu0 0.0
        %3000 = vmatpush1.msra.mxu0 0.0
        %3001 = vmatprep.subr.mxu0 0.0
        %3002 = vmatpush1.msra.mxu0 0.0
        %3003 = vmatprep.subr.mxu0 0.0
        %3004 = vmatpush1.msra.mxu0 0.0
        %3005 = vmatprep.subr.mxu0 0.0
        %3006 = vmatpush1.msra.mxu0 0.0
        %3007 = vmatprep.subr.mxu0 0.0
        %3008 = vmatpush1.msra.mxu0 0.0
        %3009 = vmatprep.subr.mxu0 0.0
        %3010 = vmatpush1.msra.mxu0 %v1418
        %3011 = vmatprep.subr.mxu0 0.0
        %3012 = vmatpush2.msra.mxu0 0.0
        %3013 = vmatprep.subr.mxu0 0.0
        %3014 = vmatpush2.msra.mxu0 0.0
        %3015 = vmatprep.subr.mxu0 0.0
        %3016 = vmatpush2.msra.mxu0 0.0
        %3017 = vmatprep.subr.mxu0 0.0
        %3018 = vmatpush2.msra.mxu0 0.0
        %3019 = vmatprep.subr.mxu0 0.0
        %3020 = vmatpush2.msra.mxu0 0.0
        %3021 = vmatprep.subr.mxu0 0.0
        %3022 = vmatpush2.msra.mxu0 0.0
        %3023 = vmatprep.subr.mxu0 0.0
        %3024 = vmatpush2.msra.mxu0 0.0
        %3025 = vmatprep.subr.mxu0 0.0
        %3026 = vmatpush2.msra.mxu0 0.0
        %3027 = vmatprep.subr.mxu0 0.0
        %3028 = vmatpush2.msra.mxu0 0.0
        %3029 = vmatprep.subr.mxu0 0.0
        %3030 = vmatpush2.msra.mxu0 0.0
        %3031 = vmatprep.subr.mxu0 0.0
        %3032 = vmatpush2.msra.mxu0 0.0
        %3033 = vmatprep.subr.mxu0 0.0
        %3034 = vmatpush2.msra.mxu0 0.0
        %3035 = vmatprep.subr.mxu0 0.0
        %3036 = vmatpush2.msra.mxu0 0.0
        %3037 = vmatprep.subr.mxu0 0.0
        %3038 = vmatpush2.msra.mxu0 0.0
        %3039 = vmatprep.subr.mxu0 0.0
        %3040 = vmatpush2.msra.mxu0 0.0
        %3041 = vmatprep.subr.mxu0 0.0
        %3042 = vmatpush2.msra.mxu0 0.0
        %3043 = vmatprep.mubr.f32.mxu0 0.0
        %3044 = vmatmul.mubr.f32.gmra.mxu0 %v2977
        %v3045 = vpop.f32.mrf.mxu0
        %v3046 = vadd.f32 0.0, %v3045
        %v3047 = vpop.f32.mrf.mxu0
        %3048 = vdwg.mxu0
        %v3049 = vadd.f32 %v2641, %v3046
        %v3050 = vadd.f32 %v1191, %v3049
        %v3051 = vld [vmem:[#allocation10] sm:$0x1]
        %v3053 = vlaneseq
        %v3054 = vshrl.u32 %v3053, 7
        %v3055 = vsub.s32 0, %v3054
        %v3056 = vrot.slane %v3051, %v3055
        %v3058 = vadd.f32 %v3050, %v3056
        %v3059 = vsel %vm984, %v3058, 0.0
        %3060 = vadd.xlane.f32.xlu0 %v3059
        %v3061 = vpop.xlane.xlu0 %3060
        %v3062 = vmul.f32 %v3061, %v988
        %v3063 = vsub.f32 %v3058, %v3062
        %v3064 = vmul.f32 %v3063, %v3063
        %v3065 = vsel %vm984, %v3064, 0.0
        %3066 = vadd.xlane.f32.xlu0 %v3065
        %v3067 = vpop.xlane.xlu0 %3066
        %v3068 = vmul.f32 %v3067, %v988
        %v3069 = vadd.f32 %v3068, 1e-12
        %v3070 = vrsqrt.pop %v3069
        %v3071 = vmul.f32 %v3063, %v3070
        %v3072 = vlaneseq
        %v3073 = vshrl.u32 %v3072, 7
        %v3074 = vsub.s32 2, %v3073
        %v3075 = vrot.slane %v982, %v3074
        %v3076 = vmul.f32 %v3071, %v3075
        %v3077 = vlaneseq
        %v3078 = vshrl.u32 %v3077, 7
        %v3079 = vsub.s32 2, %v3078
        %v3080 = vrot.slane %v983, %v3079
        %v3081 = vadd.f32 %v3076, %v3080
        %v3082 = vld [vmem:[%s16] sm:$0xff]
        %v3083 = vld [vmem:[%s16 + $0x8] sm:$0xff]
        %v3084 = vld [vmem:[%s16 + $0x10] sm:$0xff]
        %v3085 = vld [vmem:[%s16 + $0x18] sm:$0xff]
        %v3086 = vld [vmem:[#allocation12] sm:$0x1]
        %v3088 = vlaneseq
        %v3089 = vshrl.u32 %v3088, 7
        %v3090 = vsub.s32 0, %v3089
        %v3091 = vrot.slane %v3086, %v3090
        %v3094 = vsel %vm1020, %v3081, 0
        %3096 = vmatprep.subr.mxu0 0.0
        %3097 = vmatpush1.msra.mxu0 0.0
        %3098 = vmatprep.subr.mxu0 0.0
        %3099 = vmatpush1.msra.mxu0 0.0
        %3100 = vmatprep.subr.mxu0 0.0
        %3101 = vmatpush1.msra.mxu0 0.0
        %3102 = vmatprep.subr.mxu0 0.0
        %3103 = vmatpush1.msra.mxu0 0.0
        %3104 = vmatprep.subr.mxu0 0.0
        %3105 = vmatpush1.msra.mxu0 0.0
        %3106 = vmatprep.subr.mxu0 0.0
        %3107 = vmatpush1.msra.mxu0 0.0
        %3108 = vmatprep.subr.mxu0 0.0
        %3109 = vmatpush1.msra.mxu0 0.0
        %3110 = vmatprep.subr.mxu0 0.0
        %3111 = vmatpush1.msra.mxu0 0.0
        %3112 = vmatprep.subr.mxu0 0.0
        %3113 = vmatpush1.msra.mxu0 0.0
        %3114 = vmatprep.subr.mxu0 0.0
        %3115 = vmatpush1.msra.mxu0 0.0
        %3116 = vmatprep.subr.mxu0 0.0
        %3117 = vmatpush1.msra.mxu0 0.0
        %3118 = vmatprep.subr.mxu0 0.0
        %3119 = vmatpush1.msra.mxu0 0.0
        %3120 = vmatprep.subr.mxu0 0.0
        %3121 = vmatpush1.msra.mxu0 %v3085
        %3122 = vmatprep.subr.mxu0 0.0
        %3123 = vmatpush1.msra.mxu0 %v3084
        %3124 = vmatprep.subr.mxu0 0.0
        %3125 = vmatpush1.msra.mxu0 %v3083
        %3126 = vmatprep.subr.mxu0 0.0
        %3127 = vmatpush1.msra.mxu0 %v3082
        %3128 = vmatprep.subr.mxu0 0.0
        %3129 = vmatpush2.msra.mxu0 0.0
        %3130 = vmatprep.subr.mxu0 0.0
        %3131 = vmatpush2.msra.mxu0 0.0
        %3132 = vmatprep.subr.mxu0 0.0
        %3133 = vmatpush2.msra.mxu0 0.0
        %3134 = vmatprep.subr.mxu0 0.0
        %3135 = vmatpush2.msra.mxu0 0.0
        %3136 = vmatprep.subr.mxu0 0.0
        %3137 = vmatpush2.msra.mxu0 0.0
        %3138 = vmatprep.subr.mxu0 0.0
        %3139 = vmatpush2.msra.mxu0 0.0
        %3140 = vmatprep.subr.mxu0 0.0
        %3141 = vmatpush2.msra.mxu0 0.0
        %3142 = vmatprep.subr.mxu0 0.0
        %3143 = vmatpush2.msra.mxu0 0.0
        %3144 = vmatprep.subr.mxu0 0.0
        %3145 = vmatpush2.msra.mxu0 0.0
        %3146 = vmatprep.subr.mxu0 0.0
        %3147 = vmatpush2.msra.mxu0 0.0
        %3148 = vmatprep.subr.mxu0 0.0
        %3149 = vmatpush2.msra.mxu0 0.0
        %3150 = vmatprep.subr.mxu0 0.0
        %3151 = vmatpush2.msra.mxu0 0.0
        %3152 = vmatprep.subr.mxu0 0.0
        %3153 = vmatpush2.msra.mxu0 0.0
        %3154 = vmatprep.subr.mxu0 0.0
        %3155 = vmatpush2.msra.mxu0 0.0
        %3156 = vmatprep.subr.mxu0 0.0
        %3157 = vmatpush2.msra.mxu0 0.0
        %3158 = vmatprep.subr.mxu0 0.0
        %3159 = vmatpush2.msra.mxu0 0.0
        %3160 = vmatprep.mubr.f32.mxu0 0.0
        %3161 = vmatmul.mubr.f32.gmra.mxu0 %v3094
        %v3162 = vpop.f32.mrf.mxu0
        %v3163 = vadd.f32 %v3091, %v3162
        %v3164 = vpop.f32.mrf.mxu0
        %3165 = vdwg.mxu0
        %v3166 = vsub.f32 0.0, %v3163
        %v3167 = vmul.f32 %v3166, 1.442695
        %v3168 = vpow.pop %v3167
        %v3169 = vadd.f32 %v3168, 1.0
        %v3170 = vrcp.pop %v3169
        %v3171 = vmul.f32 1.0, %v3170
        %3173 = vrot.lane.b32.xlu0 %v3171, 96
        %v3174 = vpop.permute.xlu0 %3173
        %v3176 = vmul.f32 %v3163, %v3174
        %v3177 = vld [vmem:[%s18] sm:$0x7f]
        %v3178 = vld [vmem:[%s18 + $0x8] sm:$0x7f]
        %v3179 = vld [vmem:[%s18 + $0x10] sm:$0x7f]
        %v3180 = vld [vmem:[%s18 + $0x18] sm:$0x7f]
        %v3181 = vld [vmem:[%s18 + $0x20] sm:$0x7f]
        %v3182 = vld [vmem:[%s18 + $0x28] sm:$0x7f]
        %v3183 = vld [vmem:[%s18 + $0x30] sm:$0x7f]
        %v3184 = vmul.f32 %v3176, %v3177
        %v3185 = vmul.f32 %v3176, %v3178
        %v3186 = vmul.f32 %v3176, %v3179
        %v3187 = vmul.f32 %v3176, %v3180
        %v3188 = vmul.f32 %v3176, %v3181
        %v3189 = vmul.f32 %v3176, %v3182
        %v3190 = vmul.f32 %v3176, %v3183
        %v3191 = vsel %vm984, %v3184, 0.0
        %v3192 = vrot.slane %v3191, 4
        %v3193 = vadd.f32 %v3191, %v3192
        %v3194 = vrot.slane %v3193, 2
        %v3195 = vadd.f32 %v3193, %v3194
        %v3196 = vrot.slane %v3195, 1
        %v3197 = vadd.f32 %v3195, %v3196
        %v3198 = vsel %vm984, %v3185, 0.0
        %v3199 = vrot.slane %v3198, 4
        %v3200 = vadd.f32 %v3198, %v3199
        %v3201 = vrot.slane %v3200, 2
        %v3202 = vadd.f32 %v3200, %v3201
        %v3203 = vrot.slane %v3202, 1
        %v3204 = vadd.f32 %v3202, %v3203
        %v3205 = vsel %vm984, %v3186, 0.0
        %v3206 = vrot.slane %v3205, 4
        %v3207 = vadd.f32 %v3205, %v3206
        %v3208 = vrot.slane %v3207, 2
        %v3209 = vadd.f32 %v3207, %v3208
        %v3210 = vrot.slane %v3209, 1
        %v3211 = vadd.f32 %v3209, %v3210
        %v3212 = vsel %vm984, %v3187, 0.0
        %v3213 = vrot.slane %v3212, 4
        %v3214 = vadd.f32 %v3212, %v3213
        %v3215 = vrot.slane %v3214, 2
        %v3216 = vadd.f32 %v3214, %v3215
        %v3217 = vrot.slane %v3216, 1
        %v3218 = vadd.f32 %v3216, %v3217
        %v3219 = vsel %vm984, %v3188, 0.0
        %v3220 = vrot.slane %v3219, 4
        %v3221 = vadd.f32 %v3219, %v3220
        %v3222 = vrot.slane %v3221, 2
        %v3223 = vadd.f32 %v3221, %v3222
        %v3224 = vrot.slane %v3223, 1
        %v3225 = vadd.f32 %v3223, %v3224
        %v3226 = vsel %vm984, %v3189, 0.0
        %v3227 = vrot.slane %v3226, 4
        %v3228 = vadd.f32 %v3226, %v3227
        %v3229 = vrot.slane %v3228, 2
        %v3230 = vadd.f32 %v3228, %v3229
        %v3231 = vrot.slane %v3230, 1
        %v3232 = vadd.f32 %v3230, %v3231
        %v3233 = vsel %vm984, %v3190, 0.0
        %v3234 = vrot.slane %v3233, 4
        %v3235 = vadd.f32 %v3233, %v3234
        %v3236 = vrot.slane %v3235, 2
        %v3237 = vadd.f32 %v3235, %v3236
        %v3238 = vrot.slane %v3237, 1
        %v3239 = vadd.f32 %v3237, %v3238
        %v3240 = vld [vmem:[#allocation13] sm:$0x1]
        %v3242 = vlaneseq
        %v3243 = vshrl.u32 %v3242, 7
        %v3244 = vsub.s32 0, %v3243
        %v3245 = vrot.slane %v3240, %v3244
        %v3247 = vmul.f32 %v3197, %v3245
        %v3248 = vmul.f32 %v3204, %v3245
        %v3249 = vmul.f32 %v3211, %v3245
        %v3250 = vmul.f32 %v3218, %v3245
        %v3251 = vmul.f32 %v3225, %v3245
        %v3252 = vmul.f32 %v3232, %v3245
        %v3253 = vmul.f32 %v3239, %v3245
        %v3254 = vld [vmem:[#allocation15] sm:$0x1]
        %v3256 = vlaneseq
        %v3257 = vshrl.u32 %v3256, 7
        %v3258 = vsub.s32 0, %v3257
        %v3259 = vrot.slane %v3254, %v3258
        %v3261 = vadd.f32 %v3247, %v3259
        %v3262 = vadd.f32 %v3248, %v3259
        %v3263 = vadd.f32 %v3249, %v3259
        %v3264 = vadd.f32 %v3250, %v3259
        %v3265 = vadd.f32 %v3251, %v3259
        %v3266 = vadd.f32 %v3252, %v3259
        %v3267 = vadd.f32 %v3253, %v3259
        %v3268 = vsub.f32 0.0, %v3261
        %v3269 = vsub.f32 0.0, %v3262
        %v3270 = vsub.f32 0.0, %v3263
        %v3271 = vsub.f32 0.0, %v3264
        %v3272 = vsub.f32 0.0, %v3265
        %v3273 = vsub.f32 0.0, %v3266
        %v3274 = vsub.f32 0.0, %v3267
        %v3275 = vmul.f32 %v3268, 1.442695
        %v3276 = vpow.pop %v3275
        %v3277 = vmul.f32 %v3269, 1.442695
        %v3278 = vpow.pop %v3277
        %v3279 = vmul.f32 %v3270, 1.442695
        %v3280 = vpow.pop %v3279
        %v3281 = vmul.f32 %v3271, 1.442695
        %v3282 = vpow.pop %v3281
        %v3283 = vmul.f32 %v3272, 1.442695
        %v3284 = vpow.pop %v3283
        %v3285 = vmul.f32 %v3273, 1.442695
        %v3286 = vpow.pop %v3285
        %v3287 = vmul.f32 %v3274, 1.442695
        %v3288 = vpow.pop %v3287
        %v3289 = vadd.f32 %v3276, 1.0
        %v3290 = vadd.f32 %v3278, 1.0
        %v3291 = vadd.f32 %v3280, 1.0
        %v3292 = vadd.f32 %v3282, 1.0
        %v3293 = vadd.f32 %v3284, 1.0
        %v3294 = vadd.f32 %v3286, 1.0
        %v3295 = vadd.f32 %v3288, 1.0
        %v3296 = vrcp.pop %v3289
        %v3297 = vmul.f32 1.0, %v3296
        %v3298 = vrcp.pop %v3290
        %v3299 = vmul.f32 1.0, %v3298
        %v3300 = vrcp.pop %v3291
        %v3301 = vmul.f32 1.0, %v3300
        %v3302 = vrcp.pop %v3292
        %v3303 = vmul.f32 1.0, %v3302
        %v3304 = vrcp.pop %v3293
        %v3305 = vmul.f32 1.0, %v3304
        %v3306 = vrcp.pop %v3294
        %v3307 = vmul.f32 1.0, %v3306
        %v3308 = vrcp.pop %v3295
        %v3309 = vmul.f32 1.0, %v3308
        %v3310 = vmul.f32 %v3261, %v3297
        %v3311 = vmul.f32 %v3262, %v3299
        %v3312 = vmul.f32 %v3263, %v3301
        %v3313 = vmul.f32 %v3264, %v3303
        %v3314 = vmul.f32 %v3265, %v3305
        %v3315 = vmul.f32 %v3266, %v3307
        %v3316 = vmul.f32 %v3267, %v3309
        %v3317 = vld [vmem:[%s21] sm:$0xff]
        %v3318 = vld [vmem:[%s21 + $0x8] sm:$0xff]
        %v3319 = vld [vmem:[%s21 + $0x10] sm:$0xff]
        %v3320 = vld [vmem:[%s21 + $0x18] sm:$0xff]
        %v3328 = vrot.slane %v3311, 7
        %v3329 = vsel %vm1518, %v3328, %v3310
        %v3330 = vrot.slane %v3312, 6
        %v3331 = vsel %vm1520, %v3330, %v3329
        %v3332 = vrot.slane %v3313, 5
        %v3333 = vsel %vm1522, %v3332, %v3331
        %v3334 = vrot.slane %v3314, 4
        %v3335 = vsel %vm1524, %v3334, %v3333
        %v3336 = vrot.slane %v3315, 3
        %v3337 = vsel %vm1526, %v3336, %v3335
        %v3338 = vrot.slane %v3316, 2
        %v3339 = vsel %vm1528, %v3338, %v3337
        %v3340 = vsel %vm1020, %v3339, 0
        %3342 = vmatprep.subr.mxu0 0.0
        %3343 = vmatpush1.msra.mxu0 0.0
        %3344 = vmatprep.subr.mxu0 0.0
        %3345 = vmatpush1.msra.mxu0 0.0
        %3346 = vmatprep.subr.mxu0 0.0
        %3347 = vmatpush1.msra.mxu0 0.0
        %3348 = vmatprep.subr.mxu0 0.0
        %3349 = vmatpush1.msra.mxu0 0.0
        %3350 = vmatprep.subr.mxu0 0.0
        %3351 = vmatpush1.msra.mxu0 0.0
        %3352 = vmatprep.subr.mxu0 0.0
        %3353 = vmatpush1.msra.mxu0 0.0
        %3354 = vmatprep.subr.mxu0 0.0
        %3355 = vmatpush1.msra.mxu0 0.0
        %3356 = vmatprep.subr.mxu0 0.0
        %3357 = vmatpush1.msra.mxu0 0.0
        %3358 = vmatprep.subr.mxu0 0.0
        %3359 = vmatpush1.msra.mxu0 0.0
        %3360 = vmatprep.subr.mxu0 0.0
        %3361 = vmatpush1.msra.mxu0 0.0
        %3362 = vmatprep.subr.mxu0 0.0
        %3363 = vmatpush1.msra.mxu0 0.0
        %3364 = vmatprep.subr.mxu0 0.0
        %3365 = vmatpush1.msra.mxu0 0.0
        %3366 = vmatprep.subr.mxu0 0.0
        %3367 = vmatpush1.msra.mxu0 %v3320
        %3368 = vmatprep.subr.mxu0 0.0
        %3369 = vmatpush1.msra.mxu0 %v3319
        %3370 = vmatprep.subr.mxu0 0.0
        %3371 = vmatpush1.msra.mxu0 %v3318
        %3372 = vmatprep.subr.mxu0 0.0
        %3373 = vmatpush1.msra.mxu0 %v3317
        %3374 = vmatprep.subr.mxu0 0.0
        %3375 = vmatpush2.msra.mxu0 0.0
        %3376 = vmatprep.subr.mxu0 0.0
        %3377 = vmatpush2.msra.mxu0 0.0
        %3378 = vmatprep.subr.mxu0 0.0
        %3379 = vmatpush2.msra.mxu0 0.0
        %3380 = vmatprep.subr.mxu0 0.0
        %3381 = vmatpush2.msra.mxu0 0.0
        %3382 = vmatprep.subr.mxu0 0.0
        %3383 = vmatpush2.msra.mxu0 0.0
        %3384 = vmatprep.subr.mxu0 0.0
        %3385 = vmatpush2.msra.mxu0 0.0
        %3386 = vmatprep.subr.mxu0 0.0
        %3387 = vmatpush2.msra.mxu0 0.0
        %3388 = vmatprep.subr.mxu0 0.0
        %3389 = vmatpush2.msra.mxu0 0.0
        %3390 = vmatprep.subr.mxu0 0.0
        %3391 = vmatpush2.msra.mxu0 0.0
        %3392 = vmatprep.subr.mxu0 0.0
        %3393 = vmatpush2.msra.mxu0 0.0
        %3394 = vmatprep.subr.mxu0 0.0
        %3395 = vmatpush2.msra.mxu0 0.0
        %3396 = vmatprep.subr.mxu0 0.0
        %3397 = vmatpush2.msra.mxu0 0.0
        %3398 = vmatprep.subr.mxu0 0.0
        %3399 = vmatpush2.msra.mxu0 0.0
        %3400 = vmatprep.subr.mxu0 0.0
        %3401 = vmatpush2.msra.mxu0 0.0
        %3402 = vmatprep.subr.mxu0 0.0
        %3403 = vmatpush2.msra.mxu0 0.0
        %3404 = vmatprep.subr.mxu0 0.0
        %3405 = vmatpush2.msra.mxu0 0.0
        %3406 = vmatprep.mubr.f32.mxu0 0.0
        %3407 = vmatmul.mubr.f32.gmra.mxu0 %v3340
        %v3408 = vpop.f32.mrf.mxu0
        %v3409 = vadd.f32 0.0, %v3408
        %v3410 = vpop.f32.mrf.mxu0
        %3411 = vdwg.mxu0
        %v3412 = vadd.f32 %v3058, %v3409
        %v3413 = vld [vmem:[#allocation16] sm:$0x1]
        %v3415 = vlaneseq
        %v3416 = vshrl.u32 %v3415, 7
        %v3417 = vsub.s32 0, %v3416
        %v3418 = vrot.slane %v3413, %v3417
        %v3420 = vadd.f32 %v3412, %v3418
        %v3421 = vsel %vm984, %v3420, 0.0
        %3422 = vadd.xlane.f32.xlu0 %v3421
        %v3423 = vpop.xlane.xlu0 %3422
        %v3424 = vmul.f32 %v3423, %v988
        %v3425 = vsub.f32 %v3420, %v3424
        %v3426 = vmul.f32 %v3425, %v3425
        %v3427 = vsel %vm984, %v3426, 0.0
        %3428 = vadd.xlane.f32.xlu0 %v3427
        %v3429 = vpop.xlane.xlu0 %3428
        %v3430 = vmul.f32 %v3429, %v988
        %v3431 = vadd.f32 %v3430, 1e-12
        %v3432 = vrsqrt.pop %v3431
        %v3433 = vmul.f32 %v3425, %v3432
        %v3434 = vlaneseq
        %v3435 = vshrl.u32 %v3434, 7
        %v3436 = vsub.s32 3, %v3435
        %v3437 = vrot.slane %v982, %v3436
        %v3438 = vmul.f32 %v3433, %v3437
        %v3439 = vlaneseq
        %v3440 = vshrl.u32 %v3439, 7
        %v3441 = vsub.s32 3, %v3440
        %v3442 = vrot.slane %v983, %v3441
        %v3443 = vadd.f32 %v3438, %v3442
        %v3444 = vld [vmem:[%s23] sm:$0xff]
        %v3445 = vld [vmem:[%s23 + $0x8] sm:$0xff]
        %v3446 = vld [vmem:[%s23 + $0x10] sm:$0xff]
        %v3447 = vld [vmem:[%s23 + $0x18] sm:$0xff]
        %v3448 = vld [vmem:[#allocation18] sm:$0x1]
        %v3450 = vlaneseq
        %v3451 = vshrl.u32 %v3450, 7
        %v3452 = vsub.s32 0, %v3451
        %v3453 = vrot.slane %v3448, %v3452
        %v3456 = vsel %vm1020, %v3443, 0
        %3458 = vmatprep.subr.mxu0 0.0
        %3459 = vmatpush1.msra.mxu0 0.0
        %3460 = vmatprep.subr.mxu0 0.0
        %3461 = vmatpush1.msra.mxu0 0.0
        %3462 = vmatprep.subr.mxu0 0.0
        %3463 = vmatpush1.msra.mxu0 0.0
        %3464 = vmatprep.subr.mxu0 0.0
        %3465 = vmatpush1.msra.mxu0 0.0
        %3466 = vmatprep.subr.mxu0 0.0
        %3467 = vmatpush1.msra.mxu0 0.0
        %3468 = vmatprep.subr.mxu0 0.0
        %3469 = vmatpush1.msra.mxu0 0.0
        %3470 = vmatprep.subr.mxu0 0.0
        %3471 = vmatpush1.msra.mxu0 0.0
        %3472 = vmatprep.subr.mxu0 0.0
        %3473 = vmatpush1.msra.mxu0 0.0
        %3474 = vmatprep.subr.mxu0 0.0
        %3475 = vmatpush1.msra.mxu0 0.0
        %3476 = vmatprep.subr.mxu0 0.0
        %3477 = vmatpush1.msra.mxu0 0.0
        %3478 = vmatprep.subr.mxu0 0.0
        %3479 = vmatpush1.msra.mxu0 0.0
        %3480 = vmatprep.subr.mxu0 0.0
        %3481 = vmatpush1.msra.mxu0 0.0
        %3482 = vmatprep.subr.mxu0 0.0
        %3483 = vmatpush1.msra.mxu0 %v3447
        %3484 = vmatprep.subr.mxu0 0.0
        %3485 = vmatpush1.msra.mxu0 %v3446
        %3486 = vmatprep.subr.mxu0 0.0
        %3487 = vmatpush1.msra.mxu0 %v3445
        %3488 = vmatprep.subr.mxu0 0.0
        %3489 = vmatpush1.msra.mxu0 %v3444
        %3490 = vmatprep.subr.mxu0 0.0
        %3491 = vmatpush2.msra.mxu0 0.0
        %3492 = vmatprep.subr.mxu0 0.0
        %3493 = vmatpush2.msra.mxu0 0.0
        %3494 = vmatprep.subr.mxu0 0.0
        %3495 = vmatpush2.msra.mxu0 0.0
        %3496 = vmatprep.subr.mxu0 0.0
        %3497 = vmatpush2.msra.mxu0 0.0
        %3498 = vmatprep.subr.mxu0 0.0
        %3499 = vmatpush2.msra.mxu0 0.0
        %3500 = vmatprep.subr.mxu0 0.0
        %3501 = vmatpush2.msra.mxu0 0.0
        %3502 = vmatprep.subr.mxu0 0.0
        %3503 = vmatpush2.msra.mxu0 0.0
        %3504 = vmatprep.subr.mxu0 0.0
        %3505 = vmatpush2.msra.mxu0 0.0
        %3506 = vmatprep.subr.mxu0 0.0
        %3507 = vmatpush2.msra.mxu0 0.0
        %3508 = vmatprep.subr.mxu0 0.0
        %3509 = vmatpush2.msra.mxu0 0.0
        %3510 = vmatprep.subr.mxu0 0.0
        %3511 = vmatpush2.msra.mxu0 0.0
        %3512 = vmatprep.subr.mxu0 0.0
        %3513 = vmatpush2.msra.mxu0 0.0
        %3514 = vmatprep.subr.mxu0 0.0
        %3515 = vmatpush2.msra.mxu0 0.0
        %3516 = vmatprep.subr.mxu0 0.0
        %3517 = vmatpush2.msra.mxu0 0.0
        %3518 = vmatprep.subr.mxu0 0.0
        %3519 = vmatpush2.msra.mxu0 0.0
        %3520 = vmatprep.subr.mxu0 0.0
        %3521 = vmatpush2.msra.mxu0 0.0
        %3522 = vmatprep.mubr.f32.mxu0 0.0
        %3523 = vmatmul.mubr.f32.gmra.mxu0 %v3456
        %v3524 = vpop.f32.mrf.mxu0
        %v3525 = vadd.f32 %v3453, %v3524
        %v3526 = vpop.f32.mrf.mxu0
        %3527 = vdwg.mxu0
        %v3528 = vsub.f32 0.0, %v3525
        %v3529 = vmul.f32 %v3528, 1.442695
        %v3530 = vpow.pop %v3529
        %v3531 = vadd.f32 %v3530, 1.0
        %v3532 = vrcp.pop %v3531
        %v3533 = vmul.f32 1.0, %v3532
        %v3534 = vmul.f32 %v3525, %v3533
        %v3535 = vld [vmem:[%s25] sm:$0xff]
        %v3536 = vld [vmem:[%s25 + $0x8] sm:$0xff]
        %v3537 = vld [vmem:[%s25 + $0x10] sm:$0xff]
        %v3538 = vld [vmem:[%s25 + $0x18] sm:$0xff]
        %v3539 = vld [vmem:[%s25 + $0x20] sm:$0xff]
        %v3540 = vld [vmem:[%s25 + $0x28] sm:$0xff]
        %v3541 = vld [vmem:[%s25 + $0x30] sm:$0xff]
        %v3542 = vld [vmem:[%s25 + $0x38] sm:$0xff]
        %v3543 = vld [vmem:[#allocation19] sm:$0x1]
        %v3545 = vlaneseq
        %v3546 = vshrl.u32 %v3545, 7
        %v3547 = vsub.s32 0, %v3546
        %v3548 = vrot.slane %v3543, %v3547
        %v3551 = vsel %vm1116, %v3534, 0
        %3553 = vmatprep.subr.mxu0 0.0
        %3554 = vmatpush1.msra.mxu0 0.0
        %3555 = vmatprep.subr.mxu0 0.0
        %3556 = vmatpush1.msra.mxu0 0.0
        %3557 = vmatprep.subr.mxu0 0.0
        %3558 = vmatpush1.msra.mxu0 0.0
        %3559 = vmatprep.subr.mxu0 0.0
        %3560 = vmatpush1.msra.mxu0 0.0
        %3561 = vmatprep.subr.mxu0 0.0
        %3562 = vmatpush1.msra.mxu0 0.0
        %3563 = vmatprep.subr.mxu0 0.0
        %3564 = vmatpush1.msra.mxu0 0.0
        %3565 = vmatprep.subr.mxu0 0.0
        %3566 = vmatpush1.msra.mxu0 0.0
        %3567 = vmatprep.subr.mxu0 0.0
        %3568 = vmatpush1.msra.mxu0 0.0
        %3569 = vmatprep.subr.mxu0 0.0
        %3570 = vmatpush1.msra.mxu0 %v3542
        %3571 = vmatprep.subr.mxu0 0.0
        %3572 = vmatpush1.msra.mxu0 %v3541
        %3573 = vmatprep.subr.mxu0 0.0
        %3574 = vmatpush1.msra.mxu0 %v3540
        %3575 = vmatprep.subr.mxu0 0.0
        %3576 = vmatpush1.msra.mxu0 %v3539
        %3577 = vmatprep.subr.mxu0 0.0
        %3578 = vmatpush1.msra.mxu0 %v3538
        %3579 = vmatprep.subr.mxu0 0.0
        %3580 = vmatpush1.msra.mxu0 %v3537
        %3581 = vmatprep.subr.mxu0 0.0
        %3582 = vmatpush1.msra.mxu0 %v3536
        %3583 = vmatprep.subr.mxu0 0.0
        %3584 = vmatpush1.msra.mxu0 %v3535
        %3585 = vmatprep.subr.mxu0 0.0
        %3586 = vmatpush2.msra.mxu0 0.0
        %3587 = vmatprep.subr.mxu0 0.0
        %3588 = vmatpush2.msra.mxu0 0.0
        %3589 = vmatprep.subr.mxu0 0.0
        %3590 = vmatpush2.msra.mxu0 0.0
        %3591 = vmatprep.subr.mxu0 0.0
        %3592 = vmatpush2.msra.mxu0 0.0
        %3593 = vmatprep.subr.mxu0 0.0
        %3594 = vmatpush2.msra.mxu0 0.0
        %3595 = vmatprep.subr.mxu0 0.0
        %3596 = vmatpush2.msra.mxu0 0.0
        %3597 = vmatprep.subr.mxu0 0.0
        %3598 = vmatpush2.msra.mxu0 0.0
        %3599 = vmatprep.subr.mxu0 0.0
        %3600 = vmatpush2.msra.mxu0 0.0
        %3601 = vmatprep.subr.mxu0 0.0
        %3602 = vmatpush2.msra.mxu0 0.0
        %3603 = vmatprep.subr.mxu0 0.0
        %3604 = vmatpush2.msra.mxu0 0.0
        %3605 = vmatprep.subr.mxu0 0.0
        %3606 = vmatpush2.msra.mxu0 0.0
        %3607 = vmatprep.subr.mxu0 0.0
        %3608 = vmatpush2.msra.mxu0 0.0
        %3609 = vmatprep.subr.mxu0 0.0
        %3610 = vmatpush2.msra.mxu0 0.0
        %3611 = vmatprep.subr.mxu0 0.0
        %3612 = vmatpush2.msra.mxu0 0.0
        %3613 = vmatprep.subr.mxu0 0.0
        %3614 = vmatpush2.msra.mxu0 0.0
        %3615 = vmatprep.subr.mxu0 0.0
        %3616 = vmatpush2.msra.mxu0 0.0
        %3617 = vmatprep.mubr.f32.mxu0 0.0
        %3618 = vmatmul.mubr.f32.gmra.mxu0 %v3551
        %v3619 = vpop.f32.mrf.mxu0
        %v3620 = vadd.f32 %v3548, %v3619
        %v3621 = vpop.f32.mrf.mxu0
        %3622 = vdwg.mxu0
        %v3623 = vmul.f32 %v3620, 0.5
        %v3624 = vadd.f32 %v3420, %v3623
        %v3625 = vsel %vm984, %v3624, 0.0
        %3626 = vadd.xlane.f32.xlu0 %v3625
        %v3627 = vpop.xlane.xlu0 %3626
        %v3628 = vmul.f32 %v3627, %v988
        %v3629 = vsub.f32 %v3624, %v3628
        %v3630 = vmul.f32 %v3629, %v3629
        %v3631 = vsel %vm984, %v3630, 0.0
        %3632 = vadd.xlane.f32.xlu0 %v3631
        %v3633 = vpop.xlane.xlu0 %3632
        %v3634 = vmul.f32 %v3633, %v988
        %v3635 = vadd.f32 %v3634, 1e-12
        %v3636 = vrsqrt.pop %v3635
        %v3637 = vmul.f32 %v3629, %v3636
        %v3638 = vlaneseq
        %v3639 = vshrl.u32 %v3638, 7
        %v3640 = vsub.s32 4, %v3639
        %v3641 = vrot.slane %v982, %v3640
        %v3642 = vmul.f32 %v3637, %v3641
        %v3643 = vlaneseq
        %v3644 = vshrl.u32 %v3643, 7
        %v3645 = vsub.s32 4, %v3644
        %v3646 = vrot.slane %v983, %v3645
        %v3647 = vadd.f32 %v3642, %v3646
        %v3648 = vsel %vm984, %v3647, 0.0
        %3649 = vadd.xlane.f32.xlu0 %v3648
        %v3650 = vpop.xlane.xlu0 %3649
        %v3651 = vmul.f32 %v3650, %v988
        %v3652 = vsub.f32 %v3647, %v3651
        %v3653 = vmul.f32 %v3652, %v3652
        %v3654 = vsel %vm984, %v3653, 0.0
        %3655 = vadd.xlane.f32.xlu0 %v3654
        %v3656 = vpop.xlane.xlu0 %3655
        %v3657 = vmul.f32 %v3656, %v988
        %v3658 = vadd.f32 %v3657, 1e-12
        %v3659 = vrsqrt.pop %v3658
        %v3660 = vmul.f32 %v3652, %v3659
        %v3661 = vlaneseq
        %v3662 = vshrl.u32 %v3661, 7
        %v3663 = vsub.s32 5, %v3662
        %v3664 = vrot.slane %v982, %v3663
        %v3665 = vmul.f32 %v3660, %v3664
        %v3666 = vlaneseq
        %v3667 = vshrl.u32 %v3666, 7
        %v3668 = vsub.s32 5, %v3667
        %v3669 = vrot.slane %v983, %v3668
        %v3670 = vadd.f32 %v3665, %v3669
        %3671 = vst.msk [vmem:[%s978] sm:$0x7f] %vm984, %v3670
        %p3672 = scmp.lt.s32.totalorder %s45, 1
        %s3673 = scalar_select %p3672, %s45, 1
        %s3674 = smul.addr %s3673, 8
        %s3675 = scalar_lea.vmem %s27, %s3674
        // Predicated region
        $region177: #{espnet_forward.9} parent=127 // pred_check
          %p3676 = pneg %p640
        $region178: #{espnet_forward.9} parent=127 // pred_check_branch
          %3678 = sbr.rel (%p3676) target = $region180
        $region179: #{espnet_forward.9} parent=127 // pred_region
          _
        $region180: #{espnet_forward.9} parent=127 // pred_fallthru
          _
      $region128: #{espnet_forward.9} parent=5 // pred_fallthru
        _
      %p3679 = scmp.le.s32.totalorder 2, %s40
      // Predicated region
      $region181: #{espnet_forward.9} parent=5 // pred_check
        %p3680 = pneg %p3679
      $region182: #{espnet_forward.9} parent=5 // pred_check_branch
        %3682 = sbr.rel (%p3680) target = $region184
      $region183: #{espnet_forward.9} parent=5 // pred_region
        %s3683 = ssub.s32 %s40, 2
        // Predicated region
        $region185: #{espnet_forward.9} parent=183 // pred_check
          %p3684 = pneg %p646
        $region186: #{espnet_forward.9} parent=183 // pred_check_branch
          %3686 = sbr.rel (%p3684) target = $region188
        $region187: #{espnet_forward.9} parent=183 // pred_region
          %p3687 = scmp.lt.s32.totalorder %s46, 1
          %s3688 = scalar_select %p3687, %s46, 1
          %s3689 = smul.addr %s3688, 8
          %s3690 = scalar_lea.vmem %s27, %s3689
        $region188: #{espnet_forward.9} parent=183 // pred_fallthru
          _
      $region184: #{espnet_forward.9} parent=5 // pred_fallthru
        _
    $region6: #{espnet_forward.9} parent=1 // loop_footer
      %s44 = sadd.s32 1, %s40
    $region7: #{espnet_forward.9} parent=1 // loop_footer_branch
      %39 = sbr.rel target = $region3
    $region8: #{espnet_forward.9} parent=1 // loop_exit
      _
    %3691 = vsyncpa [#allocation3], 1
    %s3692 = scalar_lea.sflag [#allocation3], 1
    %3693 = vsyncpa %s3692, 1
    %3694 = vsyncpa [#allocation5], 1
    %3695 = vsyncpa [#allocation8], 1
    %3696 = vsyncpa [#allocation11], 1
    %3697 = vsyncpa [#allocation14], 1
    %3698 = vsyncpa [#allocation17], 1
    %3699 = vsyncpa [#allocation20], 1

</llo_original>
